<compile_context>
chip_gen: v5e
topology: v5e:2x2
jax: 0.10.0
libtpu: 0.0.40
codegen_flags: <defaults>
</compile_context>

<pallas_src>
import jax
import jax.numpy as jnp
from jax.experimental import pallas as pl
from jax.experimental.pallas import tpu as pltpu

K = 4            # conv kernel size
NC = 7           # input channels
NDF = 15         # discriminator base width
BN_EPS = 1e-5
LRELU_SLOPE = 0.2

# Dense per-layer channel padding (lane widths of the activations).
C1P = 32         # conv1 out 15 -> 32
C2P = 64         # conv2 out 30 -> 64
C3P = 64         # conv3 out 60 -> 64
C4P = 128        # conv4 out 1  -> 128 (lane-dense output slab)
CK1 = 128        # conv1 contraction K*K*NC = 112 -> 128


def _out_size(size, stride):
    # Conv2d(k=4, padding=1) output size.
    return (size + 2 - K) // stride + 1


# ---------------------------------------------------------------------------
# Kernel builder
# ---------------------------------------------------------------------------
def _make_kernel(n, h_in, w_in):
    h1, w1 = _out_size(h_in, 2), _out_size(w_in, 2)
    h2, w2 = _out_size(h1, 2), _out_size(w1, 2)
    h3, w3 = _out_size(h2, 2), _out_size(w2, 2)
    h4, w4 = _out_size(h3, 1), _out_size(w3, 1)
    assert min(h1, w1, h2, w2, h3, w3, h4, w4) >= 1, "input spatial size too small"
    # Column phase-split needs even activation widths at the stride-2 layers.
    assert w1 % 2 == 0 and w2 % 2 == 0, "unsupported width for phase-split layout"
    assert K * K * NC <= CK1

    ne1 = (w1 + 2) // 2   # #even-position columns in a1's padded width
    ne2 = (w2 + 2) // 2   # #even-position columns in a2's padded width

    m2 = h2 * n * w2
    m3 = h3 * n * w3
    m4 = h4 * n * w4

    def _lrelu(v):
        return jnp.where(v > 0, v, LRELU_SLOPE * v)

    def _bn(v, gamma, beta):
        # Training-mode BatchNorm: biased batch stats over all rows (= N*H*W).
        mean = jnp.mean(v, axis=0, keepdims=True)
        var = jnp.mean(jnp.square(v - mean), axis=0, keepdims=True)
        scale = gamma * jax.lax.rsqrt(var + BN_EPS)
        return v * scale + (beta - mean * scale)

    def _zero_border(ref):
        # Zero only the 1-pixel border (interior is fully overwritten later).
        hp, nn, wp, c = ref.shape
        ref[0:1] = jnp.zeros((1, nn, wp, c), ref.dtype)
        ref[hp - 1:hp] = jnp.zeros((1, nn, wp, c), ref.dtype)
        ref[:, :, 0:1, :] = jnp.zeros((hp, nn, 1, c), ref.dtype)
        ref[:, :, wp - 1:wp, :] = jnp.zeros((hp, nn, 1, c), ref.dtype)

    def _gather_s2(src_ref, lhs_ref, ne_in, h_out, w_out, cpad):
        # Stride-2 im2col out of a column-phase-split padded activation.
        # lhs rows ordered (ho, b, wo); lanes ordered (kh, kw, cin_padded).
        for ho in range(h_out):
            for kh in range(K):
                hi = 2 * ho + kh
                parts = []
                for kw in range(K):
                    c0 = (kw // 2) if kw % 2 == 0 else (ne_in + kw // 2)
                    parts.append(src_ref[hi, :, c0:c0 + w_out, :])   # (n, w_out, cpad)
                blk = jnp.concatenate(parts, axis=-1)                # (n, w_out, K*cpad)
                lhs_ref[ho * n * w_out:(ho + 1) * n * w_out,
                        kh * K * cpad:(kh + 1) * K * cpad] = blk.reshape(n * w_out, K * cpad)

    def _store_phase_split(dst_ref, y, h_out, w_out, ne_out, cpad):
        # y: (h_out*n*w_out, cpad) with rows ordered (ho, b, wo).  Scatter into
        # a column-phase-split padded activation (even positions first).
        yr = y.reshape(h_out, n, w_out // 2, 2, cpad)
        dst_ref[1:h_out + 1, :, ne_out:ne_out + w_out // 2, :] = yr[:, :, :, 0, :]  # even wo
        dst_ref[1:h_out + 1, :, 1:1 + w_out // 2, :] = yr[:, :, :, 1, :]            # odd wo

    def kernel(lhs1_ref, w1_ref, w2_ref, w3_ref, w4_ref,
               g2_ref, b2_ref, g3_ref, b3_ref,
               o_ref,
               a1_ref, a2_ref, a3_ref, lhs2_ref, lhs3_ref, lhs4_ref):
        _zero_border(a1_ref)
        _zero_border(a2_ref)
        _zero_border(a3_ref)

        # ---- Layer 1: single MXU matmul over the boundary im2col + LeakyReLU ----
        y1 = jnp.dot(lhs1_ref[...], w1_ref[...], preferred_element_type=jnp.float32)
        y1 = _lrelu(y1).astype(jnp.bfloat16)
        # lhs1 rows were pre-ordered (ho, b, parity, j) so even/odd-wo blocks
        # are already contiguous -> two plain stores.
        y1 = y1.reshape(h1, n, 2, w1 // 2, C1P)
        a1_ref[1:h1 + 1, :, ne1:ne1 + w1 // 2, :] = y1[:, :, 0]   # even wo -> odd positions
        a1_ref[1:h1 + 1, :, 1:1 + w1 // 2, :] = y1[:, :, 1]       # odd wo  -> even positions

        # ---- Layer 2: gather -> matmul -> BatchNorm -> LeakyReLU ----
        _gather_s2(a1_ref, lhs2_ref, ne1, h2, w2, C1P)
        y2 = jnp.dot(lhs2_ref[...], w2_ref[...], preferred_element_type=jnp.float32)
        y2 = _lrelu(_bn(y2, g2_ref[...], b2_ref[...])).astype(jnp.bfloat16)
        _store_phase_split(a2_ref, y2, h2, w2, ne2, C2P)

        # ---- Layer 3: gather -> matmul -> BatchNorm -> LeakyReLU ----
        _gather_s2(a2_ref, lhs3_ref, ne2, h3, w3, C2P)
        y3 = jnp.dot(lhs3_ref[...], w3_ref[...], preferred_element_type=jnp.float32)
        y3 = _lrelu(_bn(y3, g3_ref[...], b3_ref[...])).astype(jnp.bfloat16)
        a3_ref[1:h3 + 1, :, 1:1 + w3, :] = y3.reshape(h3, n, w3, C3P)   # stride-1 next: plain layout

        # ---- Layer 4: stride-1 conv (contiguous taps) + Sigmoid ----
        for ho in range(h4):
            for kh in range(K):
                hi = ho + kh
                parts = [a3_ref[hi, :, kw:kw + w4, :] for kw in range(K)]
                blk = jnp.concatenate(parts, axis=-1)                    # (n, w4, K*C3P)
                lhs4_ref[ho * n * w4:(ho + 1) * n * w4,
                         kh * K * C3P:(kh + 1) * K * C3P] = blk.reshape(n * w4, K * C3P)
        y4 = jnp.dot(lhs4_ref[...], w4_ref[...], preferred_element_type=jnp.float32)
        o_ref[...] = 1.0 / (1.0 + jnp.exp(-y4))   # lane-dense (m4, 128); real channel = lane 0

    shapes = {
        "a1": (h1 + 2, n, w1 + 2, C1P),
        "a2": (h2 + 2, n, w2 + 2, C2P),
        "a3": (h3 + 2, n, w3 + 2, C3P),
        "lhs2": (m2, K * K * C1P),
        "lhs3": (m3, K * K * C2P),
        "lhs4": (m4, K * K * C3P),
        "out": (m4, C4P),
        "dims": (h1, w1, h2, w2, h3, w3, h4, w4),
    }
    return kernel, shapes


# ---------------------------------------------------------------------------
# Boundary im2col for layer 1 (tiny XLA work; no 128-padded input in HBM)
# ---------------------------------------------------------------------------
def _boundary_im2col(x_nchw, h1, w1):
    n, c, h, w = x_nchw.shape
    xp = jnp.pad(jnp.transpose(x_nchw, (0, 2, 3, 1)), ((0, 0), (1, 1), (1, 1), (0, 0)))
    taps = []
    for kh in range(K):
        for kw in range(K):
            taps.append(xp[:, kh:kh + 2 * h1:2, kw:kw + 2 * w1:2, :])   # (n, h1, w1, c)
    p = jnp.concatenate(taps, axis=-1)                                   # (n, h1, w1, K*K*c)
    # Row order (ho, b, parity, j) with wo = 2*j + parity -> even/odd output
    # columns land in contiguous row blocks inside the kernel.
    p = p.reshape(n, h1, w1 // 2, 2, K * K * c)
    p = jnp.transpose(p, (1, 0, 3, 2, 4))                                # (h1, n, 2, w1//2, kkc)
    p = p.reshape(h1 * n * w1, K * K * c)
    return jnp.pad(p, ((0, 0), (0, CK1 - K * K * c))).astype(jnp.bfloat16)


# ---------------------------------------------------------------------------
# Public forward: one pallas_call
# ---------------------------------------------------------------------------
@jax.jit
def discriminator_forward(packed_params, x):
    """x: (N, nc, H, W) float32 (NCHW, like PyTorch). Returns (N, 1, Ho, Wo)."""
    n, c, h, w = x.shape
    kernel, shapes = _make_kernel(n, h, w)
    h1, w1, h2, w2, h3, w3, h4, w4 = shapes["dims"]
    lhs1 = _boundary_im2col(x, h1, w1)

    def full_spec(shape):
        return pl.BlockSpec(shape, lambda: (0,) * len(shape))

    operands = (lhs1,
                packed_params["w1"], packed_params["w2"],
                packed_params["w3"], packed_params["w4"],
                packed_params["g2"], packed_params["b2"],
                packed_params["g3"], packed_params["b3"])

    out = pl.pallas_call(
        kernel,
        out_shape=jax.ShapeDtypeStruct(shapes["out"], jnp.float32),
        in_specs=[full_spec(op.shape) for op in operands],
        out_specs=full_spec(shapes["out"]),
        scratch_shapes=[
            pltpu.VMEM(shapes["a1"], jnp.bfloat16),
            pltpu.VMEM(shapes["a2"], jnp.bfloat16),
            pltpu.VMEM(shapes["a3"], jnp.bfloat16),
            pltpu.VMEM(shapes["lhs2"], jnp.bfloat16),
            pltpu.VMEM(shapes["lhs3"], jnp.bfloat16),
            pltpu.VMEM(shapes["lhs4"], jnp.bfloat16),
        ],
    )(*operands)

    # Kernel rows are (ho, b, wo); real output channel is lane 0.
    o = out[:, :1].reshape(h4, n, w4, 1)
    return jnp.transpose(o, (1, 3, 0, 2))   # (N, 1, Ho, Wo)


# ---------------------------------------------------------------------------
# Parameters (PyTorch layout) + one-time packing to the kernel layout
# ---------------------------------------------------------------------------
def init_params(key):
    k1, k2, k3, k4 = jax.random.split(key, 4)
    s = 0.02
    return {
        "w1": s * jax.random.normal(k1, (NDF, NC, K, K), jnp.float32),
        "w2": s * jax.random.normal(k2, (NDF * 2, NDF, K, K), jnp.float32),
        "w3": s * jax.random.normal(k3, (NDF * 4, NDF * 2, K, K), jnp.float32),
        "w4": s * jax.random.normal(k4, (1, NDF * 4, K, K), jnp.float32),
        "bn2_gamma": jnp.ones((NDF * 2,), jnp.float32),
        "bn2_beta": jnp.zeros((NDF * 2,), jnp.float32),
        "bn3_gamma": jnp.ones((NDF * 4,), jnp.float32),
        "bn3_beta": jnp.zeros((NDF * 4,), jnp.float32),
    }


def _pack_conv_weight(wgt, cin_pad, cout_pad, rows_pad=None):
    """(Cout, Cin, kH, kW) -> (K*K*cin_pad [padded to rows_pad], cout_pad) bf16,
    rows ordered (kh, kw, cin)."""
    cout, cin = wgt.shape[0], wgt.shape[1]
    wt = jnp.transpose(wgt, (2, 3, 1, 0))                      # (K, K, cin, cout)
    wp = jnp.zeros((K, K, cin_pad, cout_pad), jnp.float32).at[:, :, :cin, :cout].set(wt)
    wp = wp.reshape(K * K * cin_pad, cout_pad)
    if rows_pad is not None:
        wp = jnp.pad(wp, ((0, rows_pad - wp.shape[0]), (0, 0)))
    return wp.astype(jnp.bfloat16)


def _pack_bn(v, pad_to, fill):
    return jnp.full((1, pad_to), fill, jnp.float32).at[0, :v.shape[0]].set(v)


def pack_params(raw):
    return {
        "w1": _pack_conv_weight(raw["w1"], NC, C1P, rows_pad=CK1),
        "w2": _pack_conv_weight(raw["w2"], C1P, C2P),
        "w3": _pack_conv_weight(raw["w3"], C2P, C3P),
        "w4": _pack_conv_weight(raw["w4"], C3P, C4P),
        "g2": _pack_bn(raw["bn2_gamma"], C2P, 1.0),
        "b2": _pack_bn(raw["bn2_beta"], C2P, 0.0),
        "g3": _pack_bn(raw["bn3_gamma"], C3P, 1.0),
        "b3": _pack_bn(raw["bn3_beta"], C3P, 0.0),
    }


# ---------------------------------------------------------------------------
# Pure-JAX f32 reference (for validation)
# ---------------------------------------------------------------------------
def _reference_forward(raw, x):
    def conv(v, w, stride):
        return jax.lax.conv_general_dilated(
            v, w, (stride, stride), ((1, 1), (1, 1)),
            dimension_numbers=("NCHW", "OIHW", "NCHW"),
            precision=jax.lax.Precision.HIGHEST)

    def bn(v, g, b):
        mean = v.mean(axis=(0, 2, 3), keepdims=True)
        var = ((v - mean) ** 2).mean(axis=(0, 2, 3), keepdims=True)
        return ((v - mean) * jax.lax.rsqrt(var + BN_EPS)
                * g.reshape(1, -1, 1, 1) + b.reshape(1, -1, 1, 1))

    def lrelu(v):
        return jnp.where(v > 0, v, LRELU_SLOPE * v)

    v = lrelu(conv(x, raw["w1"], 2))
    v = lrelu(bn(conv(v, raw["w2"], 2), raw["bn2_gamma"], raw["bn2_beta"]))
    v = lrelu(bn(conv(v, raw["w3"], 2), raw["bn3_gamma"], raw["bn3_beta"]))
    return jax.nn.sigmoid(conv(v, raw["w4"], 1))


if __name__ == "__main__":
    key = jax.random.PRNGKey(0)
    pkey, xkey = jax.random.split(key)
    raw = init_params(pkey)
    params = pack_params(raw)
    x = jax.random.normal(xkey, (2, NC, 16, 16), jnp.float32)

    y = discriminator_forward(params, x)
    jax.block_until_ready(y)

    assert y.shape == (2, 1, 1, 1), y.shape
    assert bool(jnp.all((y >= 0.0) & (y <= 1.0))), "sigmoid output out of range"

    y_ref = _reference_forward(raw, x)
    max_err = float(jnp.max(jnp.abs(y - y_ref)))
    assert max_err < 0.08, f"mismatch vs f32 reference: {max_err}"

    print("KERNEL_OK")
</pallas_src>

<mosaic_0001>
module attributes {stable_mosaic.version = 11 : i64} {
  func.func @kernel(%arg0: memref<128x128xbf16, #tpu.memory_space<vmem>>, %arg1: memref<128x32xbf16, #tpu.memory_space<vmem>>, %arg2: memref<512x64xbf16, #tpu.memory_space<vmem>>, %arg3: memref<1024x64xbf16, #tpu.memory_space<vmem>>, %arg4: memref<1024x128xbf16, #tpu.memory_space<vmem>>, %arg5: memref<1x64xf32, #tpu.memory_space<vmem>>, %arg6: memref<1x64xf32, #tpu.memory_space<vmem>>, %arg7: memref<1x64xf32, #tpu.memory_space<vmem>>, %arg8: memref<1x64xf32, #tpu.memory_space<vmem>>, %arg9: memref<2x128xf32, #tpu.memory_space<vmem>>, %arg10: memref<10x2x10x32xbf16, #tpu.memory_space<vmem>>, %arg11: memref<6x2x6x64xbf16, #tpu.memory_space<vmem>>, %arg12: memref<4x2x4x64xbf16, #tpu.memory_space<vmem>>, %arg13: memref<32x512xbf16, #tpu.memory_space<vmem>>, %arg14: memref<8x1024xbf16, #tpu.memory_space<vmem>>, %arg15: memref<2x1024xbf16, #tpu.memory_space<vmem>>) attributes {dimension_semantics = [], scalar_prefetch = 0 : i64, scratch_operands = 6 : i64, tpu.core_type = #tpu.core_type<tc>} {
    %cst = arith.constant 0.000000e+00 : bf16
    %0 = vector.broadcast %cst : bf16 to vector<1x2x10x32xbf16>
    %c0 = arith.constant 0 : index
    %c0_0 = arith.constant 0 : index
    %c0_1 = arith.constant 0 : index
    %c0_2 = arith.constant 0 : index
    %1 = vector.load %arg10[%c0, %c0_0, %c0_1, %c0_2] : memref<10x2x10x32xbf16, #tpu.memory_space<vmem>>, vector<1x2x10x32xbf16>
    tpu.vector_store %arg10[%c0, %c0_0, %c0_1, %c0_2], %0 {strides = array<i32>} : memref<10x2x10x32xbf16, #tpu.memory_space<vmem>>, vector<1x2x10x32xbf16>,
    %cst_3 = arith.constant 0.000000e+00 : bf16
    %2 = vector.broadcast %cst_3 : bf16 to vector<1x2x10x32xbf16>
    %c9 = arith.constant 9 : index
    %c0_4 = arith.constant 0 : index
    %c0_5 = arith.constant 0 : index
    %c0_6 = arith.constant 0 : index
    %3 = vector.load %arg10[%c9, %c0_4, %c0_5, %c0_6] : memref<10x2x10x32xbf16, #tpu.memory_space<vmem>>, vector<1x2x10x32xbf16>
    tpu.vector_store %arg10[%c9, %c0_4, %c0_5, %c0_6], %2 {strides = array<i32>} : memref<10x2x10x32xbf16, #tpu.memory_space<vmem>>, vector<1x2x10x32xbf16>,
    %cst_7 = arith.constant 0.000000e+00 : bf16
    %4 = vector.broadcast %cst_7 : bf16 to vector<10x2x1x32xbf16>
    %c0_8 = arith.constant 0 : index
    %c0_9 = arith.constant 0 : index
    %c0_10 = arith.constant 0 : index
    %c0_11 = arith.constant 0 : index
    %5 = vector.load %arg10[%c0_8, %c0_9, %c0_10, %c0_11] : memref<10x2x10x32xbf16, #tpu.memory_space<vmem>>, vector<10x2x1x32xbf16>
    tpu.vector_store %arg10[%c0_8, %c0_9, %c0_10, %c0_11], %4 {strides = array<i32>} : memref<10x2x10x32xbf16, #tpu.memory_space<vmem>>, vector<10x2x1x32xbf16>,
    %cst_12 = arith.constant 0.000000e+00 : bf16
    %6 = vector.broadcast %cst_12 : bf16 to vector<10x2x1x32xbf16>
    %c0_13 = arith.constant 0 : index
    %c0_14 = arith.constant 0 : index
    %c9_15 = arith.constant 9 : index
    %c0_16 = arith.constant 0 : index
    %7 = vector.load %arg10[%c0_13, %c0_14, %c9_15, %c0_16] : memref<10x2x10x32xbf16, #tpu.memory_space<vmem>>, vector<10x2x1x32xbf16>
    tpu.vector_store %arg10[%c0_13, %c0_14, %c9_15, %c0_16], %6 {strides = array<i32>} : memref<10x2x10x32xbf16, #tpu.memory_space<vmem>>, vector<10x2x1x32xbf16>,
    %cst_17 = arith.constant 0.000000e+00 : bf16
    %8 = vector.broadcast %cst_17 : bf16 to vector<1x2x6x64xbf16>
    %c0_18 = arith.constant 0 : index
    %c0_19 = arith.constant 0 : index
    %c0_20 = arith.constant 0 : index
    %c0_21 = arith.constant 0 : index
    %9 = vector.load %arg11[%c0_18, %c0_19, %c0_20, %c0_21] : memref<6x2x6x64xbf16, #tpu.memory_space<vmem>>, vector<1x2x6x64xbf16>
    tpu.vector_store %arg11[%c0_18, %c0_19, %c0_20, %c0_21], %8 {strides = array<i32>} : memref<6x2x6x64xbf16, #tpu.memory_space<vmem>>, vector<1x2x6x64xbf16>,
    %cst_22 = arith.constant 0.000000e+00 : bf16
    %10 = vector.broadcast %cst_22 : bf16 to vector<1x2x6x64xbf16>
    %c5 = arith.constant 5 : index
    %c0_23 = arith.constant 0 : index
    %c0_24 = arith.constant 0 : index
    %c0_25 = arith.constant 0 : index
    %11 = vector.load %arg11[%c5, %c0_23, %c0_24, %c0_25] : memref<6x2x6x64xbf16, #tpu.memory_space<vmem>>, vector<1x2x6x64xbf16>
    tpu.vector_store %arg11[%c5, %c0_23, %c0_24, %c0_25], %10 {strides = array<i32>} : memref<6x2x6x64xbf16, #tpu.memory_space<vmem>>, vector<1x2x6x64xbf16>,
    %cst_26 = arith.constant 0.000000e+00 : bf16
    %12 = vector.broadcast %cst_26 : bf16 to vector<6x2x1x64xbf16>
    %c0_27 = arith.constant 0 : index
    %c0_28 = arith.constant 0 : index
    %c0_29 = arith.constant 0 : index
    %c0_30 = arith.constant 0 : index
    %13 = vector.load %arg11[%c0_27, %c0_28, %c0_29, %c0_30] : memref<6x2x6x64xbf16, #tpu.memory_space<vmem>>, vector<6x2x1x64xbf16>
    tpu.vector_store %arg11[%c0_27, %c0_28, %c0_29, %c0_30], %12 {strides = array<i32>} : memref<6x2x6x64xbf16, #tpu.memory_space<vmem>>, vector<6x2x1x64xbf16>,
    %cst_31 = arith.constant 0.000000e+00 : bf16
    %14 = vector.broadcast %cst_31 : bf16 to vector<6x2x1x64xbf16>
    %c0_32 = arith.constant 0 : index
    %c0_33 = arith.constant 0 : index
    %c5_34 = arith.constant 5 : index
    %c0_35 = arith.constant 0 : index
    %15 = vector.load %arg11[%c0_32, %c0_33, %c5_34, %c0_35] : memref<6x2x6x64xbf16, #tpu.memory_space<vmem>>, vector<6x2x1x64xbf16>
    tpu.vector_store %arg11[%c0_32, %c0_33, %c5_34, %c0_35], %14 {strides = array<i32>} : memref<6x2x6x64xbf16, #tpu.memory_space<vmem>>, vector<6x2x1x64xbf16>,
    %cst_36 = arith.constant 0.000000e+00 : bf16
    %16 = vector.broadcast %cst_36 : bf16 to vector<1x2x4x64xbf16>
    %c0_37 = arith.constant 0 : index
    %c0_38 = arith.constant 0 : index
    %c0_39 = arith.constant 0 : index
    %c0_40 = arith.constant 0 : index
    %17 = vector.load %arg12[%c0_37, %c0_38, %c0_39, %c0_40] : memref<4x2x4x64xbf16, #tpu.memory_space<vmem>>, vector<1x2x4x64xbf16>
    tpu.vector_store %arg12[%c0_37, %c0_38, %c0_39, %c0_40], %16 {strides = array<i32>} : memref<4x2x4x64xbf16, #tpu.memory_space<vmem>>, vector<1x2x4x64xbf16>,
    %cst_41 = arith.constant 0.000000e+00 : bf16
    %18 = vector.broadcast %cst_41 : bf16 to vector<1x2x4x64xbf16>
    %c3 = arith.constant 3 : index
    %c0_42 = arith.constant 0 : index
    %c0_43 = arith.constant 0 : index
    %c0_44 = arith.constant 0 : index
    %19 = vector.load %arg12[%c3, %c0_42, %c0_43, %c0_44] : memref<4x2x4x64xbf16, #tpu.memory_space<vmem>>, vector<1x2x4x64xbf16>
    tpu.vector_store %arg12[%c3, %c0_42, %c0_43, %c0_44], %18 {strides = array<i32>} : memref<4x2x4x64xbf16, #tpu.memory_space<vmem>>, vector<1x2x4x64xbf16>,
    %cst_45 = arith.constant 0.000000e+00 : bf16
    %20 = vector.broadcast %cst_45 : bf16 to vector<4x2x1x64xbf16>
    %c0_46 = arith.constant 0 : index
    %c0_47 = arith.constant 0 : index
    %c0_48 = arith.constant 0 : index
    %c0_49 = arith.constant 0 : index
    %21 = vector.load %arg12[%c0_46, %c0_47, %c0_48, %c0_49] : memref<4x2x4x64xbf16, #tpu.memory_space<vmem>>, vector<4x2x1x64xbf16>
    tpu.vector_store %arg12[%c0_46, %c0_47, %c0_48, %c0_49], %20 {strides = array<i32>} : memref<4x2x4x64xbf16, #tpu.memory_space<vmem>>, vector<4x2x1x64xbf16>,
    %cst_50 = arith.constant 0.000000e+00 : bf16
    %22 = vector.broadcast %cst_50 : bf16 to vector<4x2x1x64xbf16>
    %c0_51 = arith.constant 0 : index
    %c0_52 = arith.constant 0 : index
    %c3_53 = arith.constant 3 : index
    %c0_54 = arith.constant 0 : index
    %23 = vector.load %arg12[%c0_51, %c0_52, %c3_53, %c0_54] : memref<4x2x4x64xbf16, #tpu.memory_space<vmem>>, vector<4x2x1x64xbf16>
    tpu.vector_store %arg12[%c0_51, %c0_52, %c3_53, %c0_54], %22 {strides = array<i32>} : memref<4x2x4x64xbf16, #tpu.memory_space<vmem>>, vector<4x2x1x64xbf16>,
    %c0_55 = arith.constant 0 : index
    %c0_56 = arith.constant 0 : index
    %24 = vector.load %arg0[%c0_55, %c0_56] : memref<128x128xbf16, #tpu.memory_space<vmem>>, vector<128x128xbf16>
    %c0_57 = arith.constant 0 : index
    %c0_58 = arith.constant 0 : index
    %25 = vector.load %arg1[%c0_57, %c0_58] : memref<128x32xbf16, #tpu.memory_space<vmem>>, vector<128x32xbf16>
    %cst_59 = arith.constant dense<0.000000e+00> : vector<128x32xf32>
    %26 = tpu.matmul %24, %25, %cst_59 {dimension_numbers = #tpu.dot_dimension_numbers<[1], [0], [0], [1], [0, 0, 1, 1], [], []>} : vector<128x128xbf16>, vector<128x32xbf16>, vector<128x32xf32> -> vector<128x32xf32>
    %cst_60 = arith.constant 0.000000e+00 : f32
    %27 = vector.broadcast %cst_60 : f32 to vector<128x32xf32>
    %28 = arith.cmpf ogt, %26, %27 : vector<128x32xf32>
    %cst_61 = arith.constant 2.000000e-01 : f32
    %29 = vector.broadcast %cst_61 : f32 to vector<128x32xf32>
    %30 = arith.mulf %29, %26 : vector<128x32xf32>
    %31 = arith.select %28, %26, %30 : vector<128x32xi1>, vector<128x32xf32>
    %32 = arith.truncf %31 : vector<128x32xf32> to vector<128x32xbf16>
    %33 = vector.shape_cast %32 : vector<128x32xbf16> to vector<8x2x2x4x32xbf16>
    %34 = vector.extract_strided_slice %33 {offsets = [0, 0, 0, 0, 0], sizes = [8, 2, 1, 4, 32], strides = [1, 1, 1, 1, 1]} : vector<8x2x2x4x32xbf16> to vector<8x2x1x4x32xbf16>
    %35 = vector.shape_cast %34 : vector<8x2x1x4x32xbf16> to vector<8x2x4x32xbf16>
    %c1 = arith.constant 1 : index
    %c0_62 = arith.constant 0 : index
    %c5_63 = arith.constant 5 : index
    %c0_64 = arith.constant 0 : index
    %36 = vector.load %arg10[%c1, %c0_62, %c5_63, %c0_64] : memref<10x2x10x32xbf16, #tpu.memory_space<vmem>>, vector<8x2x4x32xbf16>
    tpu.vector_store %arg10[%c1, %c0_62, %c5_63, %c0_64], %35 {strides = array<i32>} : memref<10x2x10x32xbf16, #tpu.memory_space<vmem>>, vector<8x2x4x32xbf16>,
    %37 = vector.extract_strided_slice %33 {offsets = [0, 0, 1, 0, 0], sizes = [8, 2, 1, 4, 32], strides = [1, 1, 1, 1, 1]} : vector<8x2x2x4x32xbf16> to vector<8x2x1x4x32xbf16>
    %38 = vector.shape_cast %37 : vector<8x2x1x4x32xbf16> to vector<8x2x4x32xbf16>
    %c1_65 = arith.constant 1 : index
    %c0_66 = arith.constant 0 : index
    %c1_67 = arith.constant 1 : index
    %c0_68 = arith.constant 0 : index
    %39 = vector.load %arg10[%c1_65, %c0_66, %c1_67, %c0_68] : memref<10x2x10x32xbf16, #tpu.memory_space<vmem>>, vector<8x2x4x32xbf16>
    tpu.vector_store %arg10[%c1_65, %c0_66, %c1_67, %c0_68], %38 {strides = array<i32>} : memref<10x2x10x32xbf16, #tpu.memory_space<vmem>>, vector<8x2x4x32xbf16>,
    %c0_69 = arith.constant 0 : index
    %c0_70 = arith.constant 0 : index
    %c0_71 = arith.constant 0 : index
    %c0_72 = arith.constant 0 : index
    %40 = vector.load %arg10[%c0_69, %c0_70, %c0_71, %c0_72] : memref<10x2x10x32xbf16, #tpu.memory_space<vmem>>, vector<1x2x4x32xbf16>
    %41 = vector.shape_cast %40 : vector<1x2x4x32xbf16> to vector<2x4x32xbf16>
    %c0_73 = arith.constant 0 : index
    %c0_74 = arith.constant 0 : index
    %c5_75 = arith.constant 5 : index
    %c0_76 = arith.constant 0 : index
    %42 = vector.load %arg10[%c0_73, %c0_74, %c5_75, %c0_76] : memref<10x2x10x32xbf16, #tpu.memory_space<vmem>>, vector<1x2x4x32xbf16>
    %43 = vector.shape_cast %42 : vector<1x2x4x32xbf16> to vector<2x4x32xbf16>
    %c0_77 = arith.constant 0 : index
    %c0_78 = arith.constant 0 : index
    %c1_79 = arith.constant 1 : index
    %c0_80 = arith.constant 0 : index
    %44 = vector.load %arg10[%c0_77, %c0_78, %c1_79, %c0_80] : memref<10x2x10x32xbf16, #tpu.memory_space<vmem>>, vector<1x2x4x32xbf16>
    %45 = vector.shape_cast %44 : vector<1x2x4x32xbf16> to vector<2x4x32xbf16>
    %c0_81 = arith.constant 0 : index
    %c0_82 = arith.constant 0 : index
    %c6 = arith.constant 6 : index
    %c0_83 = arith.constant 0 : index
    %46 = vector.load %arg10[%c0_81, %c0_82, %c6, %c0_83] : memref<10x2x10x32xbf16, #tpu.memory_space<vmem>>, vector<1x2x4x32xbf16>
    %47 = vector.shape_cast %46 : vector<1x2x4x32xbf16> to vector<2x4x32xbf16>
    %48 = tpu.concatenate %41, %43, %45, %47 in 2 : vector<2x4x32xbf16>, vector<2x4x32xbf16>, vector<2x4x32xbf16>, vector<2x4x32xbf16> -> vector<2x4x128xbf16>
    %49 = vector.shape_cast %48 : vector<2x4x128xbf16> to vector<8x128xbf16>
    %c0_84 = arith.constant 0 : index
    %c0_85 = arith.constant 0 : index
    %50 = vector.load %arg13[%c0_84, %c0_85] : memref<32x512xbf16, #tpu.memory_space<vmem>>, vector<8x128xbf16>
    tpu.vector_store %arg13[%c0_84, %c0_85], %49 {strides = array<i32>} : memref<32x512xbf16, #tpu.memory_space<vmem>>, vector<8x128xbf16>,
    %c1_86 = arith.constant 1 : index
    %c0_87 = arith.constant 0 : index
    %c0_88 = arith.constant 0 : index
    %c0_89 = arith.constant 0 : index
    %51 = vector.load %arg10[%c1_86, %c0_87, %c0_88, %c0_89] : memref<10x2x10x32xbf16, #tpu.memory_space<vmem>>, vector<1x2x4x32xbf16>
    %52 = vector.shape_cast %51 : vector<1x2x4x32xbf16> to vector<2x4x32xbf16>
    %c1_90 = arith.constant 1 : index
    %c0_91 = arith.constant 0 : index
    %c5_92 = arith.constant 5 : index
    %c0_93 = arith.constant 0 : index
    %53 = vector.load %arg10[%c1_90, %c0_91, %c5_92, %c0_93] : memref<10x2x10x32xbf16, #tpu.memory_space<vmem>>, vector<1x2x4x32xbf16>
    %54 = vector.shape_cast %53 : vector<1x2x4x32xbf16> to vector<2x4x32xbf16>
    %c1_94 = arith.constant 1 : index
    %c0_95 = arith.constant 0 : index
    %c1_96 = arith.constant 1 : index
    %c0_97 = arith.constant 0 : index
    %55 = vector.load %arg10[%c1_94, %c0_95, %c1_96, %c0_97] : memref<10x2x10x32xbf16, #tpu.memory_space<vmem>>, vector<1x2x4x32xbf16>
    %56 = vector.shape_cast %55 : vector<1x2x4x32xbf16> to vector<2x4x32xbf16>
    %c1_98 = arith.constant 1 : index
    %c0_99 = arith.constant 0 : index
    %c6_100 = arith.constant 6 : index
    %c0_101 = arith.constant 0 : index
    %57 = vector.load %arg10[%c1_98, %c0_99, %c6_100, %c0_101] : memref<10x2x10x32xbf16, #tpu.memory_space<vmem>>, vector<1x2x4x32xbf16>
    %58 = vector.shape_cast %57 : vector<1x2x4x32xbf16> to vector<2x4x32xbf16>
    %59 = tpu.concatenate %52, %54, %56, %58 in 2 : vector<2x4x32xbf16>, vector<2x4x32xbf16>, vector<2x4x32xbf16>, vector<2x4x32xbf16> -> vector<2x4x128xbf16>
    %60 = vector.shape_cast %59 : vector<2x4x128xbf16> to vector<8x128xbf16>
    %c0_102 = arith.constant 0 : index
    %c128 = arith.constant 128 : index
    %61 = vector.load %arg13[%c0_102, %c128] : memref<32x512xbf16, #tpu.memory_space<vmem>>, vector<8x128xbf16>
    tpu.vector_store %arg13[%c0_102, %c128], %60 {strides = array<i32>} : memref<32x512xbf16, #tpu.memory_space<vmem>>, vector<8x128xbf16>,
    %c2 = arith.constant 2 : index
    %c0_103 = arith.constant 0 : index
    %c0_104 = arith.constant 0 : index
    %c0_105 = arith.constant 0 : index
    %62 = vector.load %arg10[%c2, %c0_103, %c0_104, %c0_105] : memref<10x2x10x32xbf16, #tpu.memory_space<vmem>>, vector<1x2x4x32xbf16>
    %63 = vector.shape_cast %62 : vector<1x2x4x32xbf16> to vector<2x4x32xbf16>
    %c2_106 = arith.constant 2 : index
    %c0_107 = arith.constant 0 : index
    %c5_108 = arith.constant 5 : index
    %c0_109 = arith.constant 0 : index
    %64 = vector.load %arg10[%c2_106, %c0_107, %c5_108, %c0_109] : memref<10x2x10x32xbf16, #tpu.memory_space<vmem>>, vector<1x2x4x32xbf16>
    %65 = vector.shape_cast %64 : vector<1x2x4x32xbf16> to vector<2x4x32xbf16>
    %c2_110 = arith.constant 2 : index
    %c0_111 = arith.constant 0 : index
    %c1_112 = arith.constant 1 : index
    %c0_113 = arith.constant 0 : index
    %66 = vector.load %arg10[%c2_110, %c0_111, %c1_112, %c0_113] : memref<10x2x10x32xbf16, #tpu.memory_space<vmem>>, vector<1x2x4x32xbf16>
    %67 = vector.shape_cast %66 : vector<1x2x4x32xbf16> to vector<2x4x32xbf16>
    %c2_114 = arith.constant 2 : index
    %c0_115 = arith.constant 0 : index
    %c6_116 = arith.constant 6 : index
    %c0_117 = arith.constant 0 : index
    %68 = vector.load %arg10[%c2_114, %c0_115, %c6_116, %c0_117] : memref<10x2x10x32xbf16, #tpu.memory_space<vmem>>, vector<1x2x4x32xbf16>
    %69 = vector.shape_cast %68 : vector<1x2x4x32xbf16> to vector<2x4x32xbf16>
    %70 = tpu.concatenate %63, %65, %67, %69 in 2 : vector<2x4x32xbf16>, vector<2x4x32xbf16>, vector<2x4x32xbf16>, vector<2x4x32xbf16> -> vector<2x4x128xbf16>
    %71 = vector.shape_cast %70 : vector<2x4x128xbf16> to vector<8x128xbf16>
    %c0_118 = arith.constant 0 : index
    %c256 = arith.constant 256 : index
    %72 = vector.load %arg13[%c0_118, %c256] : memref<32x512xbf16, #tpu.memory_space<vmem>>, vector<8x128xbf16>
    tpu.vector_store %arg13[%c0_118, %c256], %71 {strides = array<i32>} : memref<32x512xbf16, #tpu.memory_space<vmem>>, vector<8x128xbf16>,
    %c3_119 = arith.constant 3 : index
    %c0_120 = arith.constant 0 : index
    %c0_121 = arith.constant 0 : index
    %c0_122 = arith.constant 0 : index
    %73 = vector.load %arg10[%c3_119, %c0_120, %c0_121, %c0_122] : memref<10x2x10x32xbf16, #tpu.memory_space<vmem>>, vector<1x2x4x32xbf16>
    %74 = vector.shape_cast %73 : vector<1x2x4x32xbf16> to vector<2x4x32xbf16>
    %c3_123 = arith.constant 3 : index
    %c0_124 = arith.constant 0 : index
    %c5_125 = arith.constant 5 : index
    %c0_126 = arith.constant 0 : index
    %75 = vector.load %arg10[%c3_123, %c0_124, %c5_125, %c0_126] : memref<10x2x10x32xbf16, #tpu.memory_space<vmem>>, vector<1x2x4x32xbf16>
    %76 = vector.shape_cast %75 : vector<1x2x4x32xbf16> to vector<2x4x32xbf16>
    %c3_127 = arith.constant 3 : index
    %c0_128 = arith.constant 0 : index
    %c1_129 = arith.constant 1 : index
    %c0_130 = arith.constant 0 : index
    %77 = vector.load %arg10[%c3_127, %c0_128, %c1_129, %c0_130] : memref<10x2x10x32xbf16, #tpu.memory_space<vmem>>, vector<1x2x4x32xbf16>
    %78 = vector.shape_cast %77 : vector<1x2x4x32xbf16> to vector<2x4x32xbf16>
    %c3_131 = arith.constant 3 : index
    %c0_132 = arith.constant 0 : index
    %c6_133 = arith.constant 6 : index
    %c0_134 = arith.constant 0 : index
    %79 = vector.load %arg10[%c3_131, %c0_132, %c6_133, %c0_134] : memref<10x2x10x32xbf16, #tpu.memory_space<vmem>>, vector<1x2x4x32xbf16>
    %80 = vector.shape_cast %79 : vector<1x2x4x32xbf16> to vector<2x4x32xbf16>
    %81 = tpu.concatenate %74, %76, %78, %80 in 2 : vector<2x4x32xbf16>, vector<2x4x32xbf16>, vector<2x4x32xbf16>, vector<2x4x32xbf16> -> vector<2x4x128xbf16>
    %82 = vector.shape_cast %81 : vector<2x4x128xbf16> to vector<8x128xbf16>
    %c0_135 = arith.constant 0 : index
    %c384 = arith.constant 384 : index
    %83 = vector.load %arg13[%c0_135, %c384] : memref<32x512xbf16, #tpu.memory_space<vmem>>, vector<8x128xbf16>
    tpu.vector_store %arg13[%c0_135, %c384], %82 {strides = array<i32>} : memref<32x512xbf16, #tpu.memory_space<vmem>>, vector<8x128xbf16>,
    %c2_136 = arith.constant 2 : index
    %c0_137 = arith.constant 0 : index
    %c0_138 = arith.constant 0 : index
    %c0_139 = arith.constant 0 : index
    %84 = vector.load %arg10[%c2_136, %c0_137, %c0_138, %c0_139] : memref<10x2x10x32xbf16, #tpu.memory_space<vmem>>, vector<1x2x4x32xbf16>
    %85 = vector.shape_cast %84 : vector<1x2x4x32xbf16> to vector<2x4x32xbf16>
    %c2_140 = arith.constant 2 : index
    %c0_141 = arith.constant 0 : index
    %c5_142 = arith.constant 5 : index
    %c0_143 = arith.constant 0 : index
    %86 = vector.load %arg10[%c2_140, %c0_141, %c5_142, %c0_143] : memref<10x2x10x32xbf16, #tpu.memory_space<vmem>>, vector<1x2x4x32xbf16>
    %87 = vector.shape_cast %86 : vector<1x2x4x32xbf16> to vector<2x4x32xbf16>
    %c2_144 = arith.constant 2 : index
    %c0_145 = arith.constant 0 : index
    %c1_146 = arith.constant 1 : index
    %c0_147 = arith.constant 0 : index
    %88 = vector.load %arg10[%c2_144, %c0_145, %c1_146, %c0_147] : memref<10x2x10x32xbf16, #tpu.memory_space<vmem>>, vector<1x2x4x32xbf16>
    %89 = vector.shape_cast %88 : vector<1x2x4x32xbf16> to vector<2x4x32xbf16>
    %c2_148 = arith.constant 2 : index
    %c0_149 = arith.constant 0 : index
    %c6_150 = arith.constant 6 : index
    %c0_151 = arith.constant 0 : index
    %90 = vector.load %arg10[%c2_148, %c0_149, %c6_150, %c0_151] : memref<10x2x10x32xbf16, #tpu.memory_space<vmem>>, vector<1x2x4x32xbf16>
    %91 = vector.shape_cast %90 : vector<1x2x4x32xbf16> to vector<2x4x32xbf16>
    %92 = tpu.concatenate %85, %87, %89, %91 in 2 : vector<2x4x32xbf16>, vector<2x4x32xbf16>, vector<2x4x32xbf16>, vector<2x4x32xbf16> -> vector<2x4x128xbf16>
    %93 = vector.shape_cast %92 : vector<2x4x128xbf16> to vector<8x128xbf16>
    %c8 = arith.constant 8 : index
    %c0_152 = arith.constant 0 : index
    %94 = vector.load %arg13[%c8, %c0_152] : memref<32x512xbf16, #tpu.memory_space<vmem>>, vector<8x128xbf16>
    tpu.vector_store %arg13[%c8, %c0_152], %93 {strides = array<i32>} : memref<32x512xbf16, #tpu.memory_space<vmem>>, vector<8x128xbf16>,
    %c3_153 = arith.constant 3 : index
    %c0_154 = arith.constant 0 : index
    %c0_155 = arith.constant 0 : index
    %c0_156 = arith.constant 0 : index
    %95 = vector.load %arg10[%c3_153, %c0_154, %c0_155, %c0_156] : memref<10x2x10x32xbf16, #tpu.memory_space<vmem>>, vector<1x2x4x32xbf16>
    %96 = vector.shape_cast %95 : vector<1x2x4x32xbf16> to vector<2x4x32xbf16>
    %c3_157 = arith.constant 3 : index
    %c0_158 = arith.constant 0 : index
    %c5_159 = arith.constant 5 : index
    %c0_160 = arith.constant 0 : index
    %97 = vector.load %arg10[%c3_157, %c0_158, %c5_159, %c0_160] : memref<10x2x10x32xbf16, #tpu.memory_space<vmem>>, vector<1x2x4x32xbf16>
    %98 = vector.shape_cast %97 : vector<1x2x4x32xbf16> to vector<2x4x32xbf16>
    %c3_161 = arith.constant 3 : index
    %c0_162 = arith.constant 0 : index
    %c1_163 = arith.constant 1 : index
    %c0_164 = arith.constant 0 : index
    %99 = vector.load %arg10[%c3_161, %c0_162, %c1_163, %c0_164] : memref<10x2x10x32xbf16, #tpu.memory_space<vmem>>, vector<1x2x4x32xbf16>
    %100 = vector.shape_cast %99 : vector<1x2x4x32xbf16> to vector<2x4x32xbf16>
    %c3_165 = arith.constant 3 : index
    %c0_166 = arith.constant 0 : index
    %c6_167 = arith.constant 6 : index
    %c0_168 = arith.constant 0 : index
    %101 = vector.load %arg10[%c3_165, %c0_166, %c6_167, %c0_168] : memref<10x2x10x32xbf16, #tpu.memory_space<vmem>>, vector<1x2x4x32xbf16>
    %102 = vector.shape_cast %101 : vector<1x2x4x32xbf16> to vector<2x4x32xbf16>
    %103 = tpu.concatenate %96, %98, %100, %102 in 2 : vector<2x4x32xbf16>, vector<2x4x32xbf16>, vector<2x4x32xbf16>, vector<2x4x32xbf16> -> vector<2x4x128xbf16>
    %104 = vector.shape_cast %103 : vector<2x4x128xbf16> to vector<8x128xbf16>
    %c8_169 = arith.constant 8 : index
    %c128_170 = arith.constant 128 : index
    %105 = vector.load %arg13[%c8_169, %c128_170] : memref<32x512xbf16, #tpu.memory_space<vmem>>, vector<8x128xbf16>
    tpu.vector_store %arg13[%c8_169, %c128_170], %104 {strides = array<i32>} : memref<32x512xbf16, #tpu.memory_space<vmem>>, vector<8x128xbf16>,
    %c4 = arith.constant 4 : index
    %c0_171 = arith.constant 0 : index
    %c0_172 = arith.constant 0 : index
    %c0_173 = arith.constant 0 : index
    %106 = vector.load %arg10[%c4, %c0_171, %c0_172, %c0_173] : memref<10x2x10x32xbf16, #tpu.memory_space<vmem>>, vector<1x2x4x32xbf16>
    %107 = vector.shape_cast %106 : vector<1x2x4x32xbf16> to vector<2x4x32xbf16>
    %c4_174 = arith.constant 4 : index
    %c0_175 = arith.constant 0 : index
    %c5_176 = arith.constant 5 : index
    %c0_177 = arith.constant 0 : index
    %108 = vector.load %arg10[%c4_174, %c0_175, %c5_176, %c0_177] : memref<10x2x10x32xbf16, #tpu.memory_space<vmem>>, vector<1x2x4x32xbf16>
    %109 = vector.shape_cast %108 : vector<1x2x4x32xbf16> to vector<2x4x32xbf16>
    %c4_178 = arith.constant 4 : index
    %c0_179 = arith.constant 0 : index
    %c1_180 = arith.constant 1 : index
    %c0_181 = arith.constant 0 : index
    %110 = vector.load %arg10[%c4_178, %c0_179, %c1_180, %c0_181] : memref<10x2x10x32xbf16, #tpu.memory_space<vmem>>, vector<1x2x4x32xbf16>
    %111 = vector.shape_cast %110 : vector<1x2x4x32xbf16> to vector<2x4x32xbf16>
    %c4_182 = arith.constant 4 : index
    %c0_183 = arith.constant 0 : index
    %c6_184 = arith.constant 6 : index
    %c0_185 = arith.constant 0 : index
    %112 = vector.load %arg10[%c4_182, %c0_183, %c6_184, %c0_185] : memref<10x2x10x32xbf16, #tpu.memory_space<vmem>>, vector<1x2x4x32xbf16>
    %113 = vector.shape_cast %112 : vector<1x2x4x32xbf16> to vector<2x4x32xbf16>
    %114 = tpu.concatenate %107, %109, %111, %113 in 2 : vector<2x4x32xbf16>, vector<2x4x32xbf16>, vector<2x4x32xbf16>, vector<2x4x32xbf16> -> vector<2x4x128xbf16>
    %115 = vector.shape_cast %114 : vector<2x4x128xbf16> to vector<8x128xbf16>
    %c8_186 = arith.constant 8 : index
    %c256_187 = arith.constant 256 : index
    %116 = vector.load %arg13[%c8_186, %c256_187] : memref<32x512xbf16, #tpu.memory_space<vmem>>, vector<8x128xbf16>
    tpu.vector_store %arg13[%c8_186, %c256_187], %115 {strides = array<i32>} : memref<32x512xbf16, #tpu.memory_space<vmem>>, vector<8x128xbf16>,
    %c5_188 = arith.constant 5 : index
    %c0_189 = arith.constant 0 : index
    %c0_190 = arith.constant 0 : index
    %c0_191 = arith.constant 0 : index
    %117 = vector.load %arg10[%c5_188, %c0_189, %c0_190, %c0_191] : memref<10x2x10x32xbf16, #tpu.memory_space<vmem>>, vector<1x2x4x32xbf16>
    %118 = vector.shape_cast %117 : vector<1x2x4x32xbf16> to vector<2x4x32xbf16>
    %c5_192 = arith.constant 5 : index
    %c0_193 = arith.constant 0 : index
    %c5_194 = arith.constant 5 : index
    %c0_195 = arith.constant 0 : index
    %119 = vector.load %arg10[%c5_192, %c0_193, %c5_194, %c0_195] : memref<10x2x10x32xbf16, #tpu.memory_space<vmem>>, vector<1x2x4x32xbf16>
    %120 = vector.shape_cast %119 : vector<1x2x4x32xbf16> to vector<2x4x32xbf16>
    %c5_196 = arith.constant 5 : index
    %c0_197 = arith.constant 0 : index
    %c1_198 = arith.constant 1 : index
    %c0_199 = arith.constant 0 : index
    %121 = vector.load %arg10[%c5_196, %c0_197, %c1_198, %c0_199] : memref<10x2x10x32xbf16, #tpu.memory_space<vmem>>, vector<1x2x4x32xbf16>
    %122 = vector.shape_cast %121 : vector<1x2x4x32xbf16> to vector<2x4x32xbf16>
    %c5_200 = arith.constant 5 : index
    %c0_201 = arith.constant 0 : index
    %c6_202 = arith.constant 6 : index
    %c0_203 = arith.constant 0 : index
    %123 = vector.load %arg10[%c5_200, %c0_201, %c6_202, %c0_203] : memref<10x2x10x32xbf16, #tpu.memory_space<vmem>>, vector<1x2x4x32xbf16>
    %124 = vector.shape_cast %123 : vector<1x2x4x32xbf16> to vector<2x4x32xbf16>
    %125 = tpu.concatenate %118, %120, %122, %124 in 2 : vector<2x4x32xbf16>, vector<2x4x32xbf16>, vector<2x4x32xbf16>, vector<2x4x32xbf16> -> vector<2x4x128xbf16>
    %126 = vector.shape_cast %125 : vector<2x4x128xbf16> to vector<8x128xbf16>
    %c8_204 = arith.constant 8 : index
    %c384_205 = arith.constant 384 : index
    %127 = vector.load %arg13[%c8_204, %c384_205] : memref<32x512xbf16, #tpu.memory_space<vmem>>, vector<8x128xbf16>
    tpu.vector_store %arg13[%c8_204, %c384_205], %126 {strides = array<i32>} : memref<32x512xbf16, #tpu.memory_space<vmem>>, vector<8x128xbf16>,
    %c4_206 = arith.constant 4 : index
    %c0_207 = arith.constant 0 : index
    %c0_208 = arith.constant 0 : index
    %c0_209 = arith.constant 0 : index
    %128 = vector.load %arg10[%c4_206, %c0_207, %c0_208, %c0_209] : memref<10x2x10x32xbf16, #tpu.memory_space<vmem>>, vector<1x2x4x32xbf16>
    %129 = vector.shape_cast %128 : vector<1x2x4x32xbf16> to vector<2x4x32xbf16>
    %c4_210 = arith.constant 4 : index
    %c0_211 = arith.constant 0 : index
    %c5_212 = arith.constant 5 : index
    %c0_213 = arith.constant 0 : index
    %130 = vector.load %arg10[%c4_210, %c0_211, %c5_212, %c0_213] : memref<10x2x10x32xbf16, #tpu.memory_space<vmem>>, vector<1x2x4x32xbf16>
    %131 = vector.shape_cast %130 : vector<1x2x4x32xbf16> to vector<2x4x32xbf16>
    %c4_214 = arith.constant 4 : index
    %c0_215 = arith.constant 0 : index
    %c1_216 = arith.constant 1 : index
    %c0_217 = arith.constant 0 : index
    %132 = vector.load %arg10[%c4_214, %c0_215, %c1_216, %c0_217] : memref<10x2x10x32xbf16, #tpu.memory_space<vmem>>, vector<1x2x4x32xbf16>
    %133 = vector.shape_cast %132 : vector<1x2x4x32xbf16> to vector<2x4x32xbf16>
    %c4_218 = arith.constant 4 : index
    %c0_219 = arith.constant 0 : index
    %c6_220 = arith.constant 6 : index
    %c0_221 = arith.constant 0 : index
    %134 = vector.load %arg10[%c4_218, %c0_219, %c6_220, %c0_221] : memref<10x2x10x32xbf16, #tpu.memory_space<vmem>>, vector<1x2x4x32xbf16>
    %135 = vector.shape_cast %134 : vector<1x2x4x32xbf16> to vector<2x4x32xbf16>
    %136 = tpu.concatenate %129, %131, %133, %135 in 2 : vector<2x4x32xbf16>, vector<2x4x32xbf16>, vector<2x4x32xbf16>, vector<2x4x32xbf16> -> vector<2x4x128xbf16>
    %137 = vector.shape_cast %136 : vector<2x4x128xbf16> to vector<8x128xbf16>
    %c16 = arith.constant 16 : index
    %c0_222 = arith.constant 0 : index
    %138 = vector.load %arg13[%c16, %c0_222] : memref<32x512xbf16, #tpu.memory_space<vmem>>, vector<8x128xbf16>
    tpu.vector_store %arg13[%c16, %c0_222], %137 {strides = array<i32>} : memref<32x512xbf16, #tpu.memory_space<vmem>>, vector<8x128xbf16>,
    %c5_223 = arith.constant 5 : index
    %c0_224 = arith.constant 0 : index
    %c0_225 = arith.constant 0 : index
    %c0_226 = arith.constant 0 : index
    %139 = vector.load %arg10[%c5_223, %c0_224, %c0_225, %c0_226] : memref<10x2x10x32xbf16, #tpu.memory_space<vmem>>, vector<1x2x4x32xbf16>
    %140 = vector.shape_cast %139 : vector<1x2x4x32xbf16> to vector<2x4x32xbf16>
    %c5_227 = arith.constant 5 : index
    %c0_228 = arith.constant 0 : index
    %c5_229 = arith.constant 5 : index
    %c0_230 = arith.constant 0 : index
    %141 = vector.load %arg10[%c5_227, %c0_228, %c5_229, %c0_230] : memref<10x2x10x32xbf16, #tpu.memory_space<vmem>>, vector<1x2x4x32xbf16>
    %142 = vector.shape_cast %141 : vector<1x2x4x32xbf16> to vector<2x4x32xbf16>
    %c5_231 = arith.constant 5 : index
    %c0_232 = arith.constant 0 : index
    %c1_233 = arith.constant 1 : index
    %c0_234 = arith.constant 0 : index
    %143 = vector.load %arg10[%c5_231, %c0_232, %c1_233, %c0_234] : memref<10x2x10x32xbf16, #tpu.memory_space<vmem>>, vector<1x2x4x32xbf16>
    %144 = vector.shape_cast %143 : vector<1x2x4x32xbf16> to vector<2x4x32xbf16>
    %c5_235 = arith.constant 5 : index
    %c0_236 = arith.constant 0 : index
    %c6_237 = arith.constant 6 : index
    %c0_238 = arith.constant 0 : index
    %145 = vector.load %arg10[%c5_235, %c0_236, %c6_237, %c0_238] : memref<10x2x10x32xbf16, #tpu.memory_space<vmem>>, vector<1x2x4x32xbf16>
    %146 = vector.shape_cast %145 : vector<1x2x4x32xbf16> to vector<2x4x32xbf16>
    %147 = tpu.concatenate %140, %142, %144, %146 in 2 : vector<2x4x32xbf16>, vector<2x4x32xbf16>, vector<2x4x32xbf16>, vector<2x4x32xbf16> -> vector<2x4x128xbf16>
    %148 = vector.shape_cast %147 : vector<2x4x128xbf16> to vector<8x128xbf16>
    %c16_239 = arith.constant 16 : index
    %c128_240 = arith.constant 128 : index
    %149 = vector.load %arg13[%c16_239, %c128_240] : memref<32x512xbf16, #tpu.memory_space<vmem>>, vector<8x128xbf16>
    tpu.vector_store %arg13[%c16_239, %c128_240], %148 {strides = array<i32>} : memref<32x512xbf16, #tpu.memory_space<vmem>>, vector<8x128xbf16>,
    %c6_241 = arith.constant 6 : index
    %c0_242 = arith.constant 0 : index
    %c0_243 = arith.constant 0 : index
    %c0_244 = arith.constant 0 : index
    %150 = vector.load %arg10[%c6_241, %c0_242, %c0_243, %c0_244] : memref<10x2x10x32xbf16, #tpu.memory_space<vmem>>, vector<1x2x4x32xbf16>
    %151 = vector.shape_cast %150 : vector<1x2x4x32xbf16> to vector<2x4x32xbf16>
    %c6_245 = arith.constant 6 : index
    %c0_246 = arith.constant 0 : index
    %c5_247 = arith.constant 5 : index
    %c0_248 = arith.constant 0 : index
    %152 = vector.load %arg10[%c6_245, %c0_246, %c5_247, %c0_248] : memref<10x2x10x32xbf16, #tpu.memory_space<vmem>>, vector<1x2x4x32xbf16>
    %153 = vector.shape_cast %152 : vector<1x2x4x32xbf16> to vector<2x4x32xbf16>
    %c6_249 = arith.constant 6 : index
    %c0_250 = arith.constant 0 : index
    %c1_251 = arith.constant 1 : index
    %c0_252 = arith.constant 0 : index
    %154 = vector.load %arg10[%c6_249, %c0_250, %c1_251, %c0_252] : memref<10x2x10x32xbf16, #tpu.memory_space<vmem>>, vector<1x2x4x32xbf16>
    %155 = vector.shape_cast %154 : vector<1x2x4x32xbf16> to vector<2x4x32xbf16>
    %c6_253 = arith.constant 6 : index
    %c0_254 = arith.constant 0 : index
    %c6_255 = arith.constant 6 : index
    %c0_256 = arith.constant 0 : index
    %156 = vector.load %arg10[%c6_253, %c0_254, %c6_255, %c0_256] : memref<10x2x10x32xbf16, #tpu.memory_space<vmem>>, vector<1x2x4x32xbf16>
    %157 = vector.shape_cast %156 : vector<1x2x4x32xbf16> to vector<2x4x32xbf16>
    %158 = tpu.concatenate %151, %153, %155, %157 in 2 : vector<2x4x32xbf16>, vector<2x4x32xbf16>, vector<2x4x32xbf16>, vector<2x4x32xbf16> -> vector<2x4x128xbf16>
    %159 = vector.shape_cast %158 : vector<2x4x128xbf16> to vector<8x128xbf16>
    %c16_257 = arith.constant 16 : index
    %c256_258 = arith.constant 256 : index
    %160 = vector.load %arg13[%c16_257, %c256_258] : memref<32x512xbf16, #tpu.memory_space<vmem>>, vector<8x128xbf16>
    tpu.vector_store %arg13[%c16_257, %c256_258], %159 {strides = array<i32>} : memref<32x512xbf16, #tpu.memory_space<vmem>>, vector<8x128xbf16>,
    %c7 = arith.constant 7 : index
    %c0_259 = arith.constant 0 : index
    %c0_260 = arith.constant 0 : index
    %c0_261 = arith.constant 0 : index
    %161 = vector.load %arg10[%c7, %c0_259, %c0_260, %c0_261] : memref<10x2x10x32xbf16, #tpu.memory_space<vmem>>, vector<1x2x4x32xbf16>
    %162 = vector.shape_cast %161 : vector<1x2x4x32xbf16> to vector<2x4x32xbf16>
    %c7_262 = arith.constant 7 : index
    %c0_263 = arith.constant 0 : index
    %c5_264 = arith.constant 5 : index
    %c0_265 = arith.constant 0 : index
    %163 = vector.load %arg10[%c7_262, %c0_263, %c5_264, %c0_265] : memref<10x2x10x32xbf16, #tpu.memory_space<vmem>>, vector<1x2x4x32xbf16>
    %164 = vector.shape_cast %163 : vector<1x2x4x32xbf16> to vector<2x4x32xbf16>
    %c7_266 = arith.constant 7 : index
    %c0_267 = arith.constant 0 : index
    %c1_268 = arith.constant 1 : index
    %c0_269 = arith.constant 0 : index
    %165 = vector.load %arg10[%c7_266, %c0_267, %c1_268, %c0_269] : memref<10x2x10x32xbf16, #tpu.memory_space<vmem>>, vector<1x2x4x32xbf16>
    %166 = vector.shape_cast %165 : vector<1x2x4x32xbf16> to vector<2x4x32xbf16>
    %c7_270 = arith.constant 7 : index
    %c0_271 = arith.constant 0 : index
    %c6_272 = arith.constant 6 : index
    %c0_273 = arith.constant 0 : index
    %167 = vector.load %arg10[%c7_270, %c0_271, %c6_272, %c0_273] : memref<10x2x10x32xbf16, #tpu.memory_space<vmem>>, vector<1x2x4x32xbf16>
    %168 = vector.shape_cast %167 : vector<1x2x4x32xbf16> to vector<2x4x32xbf16>
    %169 = tpu.concatenate %162, %164, %166, %168 in 2 : vector<2x4x32xbf16>, vector<2x4x32xbf16>, vector<2x4x32xbf16>, vector<2x4x32xbf16> -> vector<2x4x128xbf16>
    %170 = vector.shape_cast %169 : vector<2x4x128xbf16> to vector<8x128xbf16>
    %c16_274 = arith.constant 16 : index
    %c384_275 = arith.constant 384 : index
    %171 = vector.load %arg13[%c16_274, %c384_275] : memref<32x512xbf16, #tpu.memory_space<vmem>>, vector<8x128xbf16>
    tpu.vector_store %arg13[%c16_274, %c384_275], %170 {strides = array<i32>} : memref<32x512xbf16, #tpu.memory_space<vmem>>, vector<8x128xbf16>,
    %c6_276 = arith.constant 6 : index
    %c0_277 = arith.constant 0 : index
    %c0_278 = arith.constant 0 : index
    %c0_279 = arith.constant 0 : index
    %172 = vector.load %arg10[%c6_276, %c0_277, %c0_278, %c0_279] : memref<10x2x10x32xbf16, #tpu.memory_space<vmem>>, vector<1x2x4x32xbf16>
    %173 = vector.shape_cast %172 : vector<1x2x4x32xbf16> to vector<2x4x32xbf16>
    %c6_280 = arith.constant 6 : index
    %c0_281 = arith.constant 0 : index
    %c5_282 = arith.constant 5 : index
    %c0_283 = arith.constant 0 : index
    %174 = vector.load %arg10[%c6_280, %c0_281, %c5_282, %c0_283] : memref<10x2x10x32xbf16, #tpu.memory_space<vmem>>, vector<1x2x4x32xbf16>
    %175 = vector.shape_cast %174 : vector<1x2x4x32xbf16> to vector<2x4x32xbf16>
    %c6_284 = arith.constant 6 : index
    %c0_285 = arith.constant 0 : index
    %c1_286 = arith.constant 1 : index
    %c0_287 = arith.constant 0 : index
    %176 = vector.load %arg10[%c6_284, %c0_285, %c1_286, %c0_287] : memref<10x2x10x32xbf16, #tpu.memory_space<vmem>>, vector<1x2x4x32xbf16>
    %177 = vector.shape_cast %176 : vector<1x2x4x32xbf16> to vector<2x4x32xbf16>
    %c6_288 = arith.constant 6 : index
    %c0_289 = arith.constant 0 : index
    %c6_290 = arith.constant 6 : index
    %c0_291 = arith.constant 0 : index
    %178 = vector.load %arg10[%c6_288, %c0_289, %c6_290, %c0_291] : memref<10x2x10x32xbf16, #tpu.memory_space<vmem>>, vector<1x2x4x32xbf16>
    %179 = vector.shape_cast %178 : vector<1x2x4x32xbf16> to vector<2x4x32xbf16>
    %180 = tpu.concatenate %173, %175, %177, %179 in 2 : vector<2x4x32xbf16>, vector<2x4x32xbf16>, vector<2x4x32xbf16>, vector<2x4x32xbf16> -> vector<2x4x128xbf16>
    %181 = vector.shape_cast %180 : vector<2x4x128xbf16> to vector<8x128xbf16>
    %c24 = arith.constant 24 : index
    %c0_292 = arith.constant 0 : index
    %182 = vector.load %arg13[%c24, %c0_292] : memref<32x512xbf16, #tpu.memory_space<vmem>>, vector<8x128xbf16>
    tpu.vector_store %arg13[%c24, %c0_292], %181 {strides = array<i32>} : memref<32x512xbf16, #tpu.memory_space<vmem>>, vector<8x128xbf16>,
    %c7_293 = arith.constant 7 : index
    %c0_294 = arith.constant 0 : index
    %c0_295 = arith.constant 0 : index
    %c0_296 = arith.constant 0 : index
    %183 = vector.load %arg10[%c7_293, %c0_294, %c0_295, %c0_296] : memref<10x2x10x32xbf16, #tpu.memory_space<vmem>>, vector<1x2x4x32xbf16>
    %184 = vector.shape_cast %183 : vector<1x2x4x32xbf16> to vector<2x4x32xbf16>
    %c7_297 = arith.constant 7 : index
    %c0_298 = arith.constant 0 : index
    %c5_299 = arith.constant 5 : index
    %c0_300 = arith.constant 0 : index
    %185 = vector.load %arg10[%c7_297, %c0_298, %c5_299, %c0_300] : memref<10x2x10x32xbf16, #tpu.memory_space<vmem>>, vector<1x2x4x32xbf16>
    %186 = vector.shape_cast %185 : vector<1x2x4x32xbf16> to vector<2x4x32xbf16>
    %c7_301 = arith.constant 7 : index
    %c0_302 = arith.constant 0 : index
    %c1_303 = arith.constant 1 : index
    %c0_304 = arith.constant 0 : index
    %187 = vector.load %arg10[%c7_301, %c0_302, %c1_303, %c0_304] : memref<10x2x10x32xbf16, #tpu.memory_space<vmem>>, vector<1x2x4x32xbf16>
    %188 = vector.shape_cast %187 : vector<1x2x4x32xbf16> to vector<2x4x32xbf16>
    %c7_305 = arith.constant 7 : index
    %c0_306 = arith.constant 0 : index
    %c6_307 = arith.constant 6 : index
    %c0_308 = arith.constant 0 : index
    %189 = vector.load %arg10[%c7_305, %c0_306, %c6_307, %c0_308] : memref<10x2x10x32xbf16, #tpu.memory_space<vmem>>, vector<1x2x4x32xbf16>
    %190 = vector.shape_cast %189 : vector<1x2x4x32xbf16> to vector<2x4x32xbf16>
    %191 = tpu.concatenate %184, %186, %188, %190 in 2 : vector<2x4x32xbf16>, vector<2x4x32xbf16>, vector<2x4x32xbf16>, vector<2x4x32xbf16> -> vector<2x4x128xbf16>
    %192 = vector.shape_cast %191 : vector<2x4x128xbf16> to vector<8x128xbf16>
    %c24_309 = arith.constant 24 : index
    %c128_310 = arith.constant 128 : index
    %193 = vector.load %arg13[%c24_309, %c128_310] : memref<32x512xbf16, #tpu.memory_space<vmem>>, vector<8x128xbf16>
    tpu.vector_store %arg13[%c24_309, %c128_310], %192 {strides = array<i32>} : memref<32x512xbf16, #tpu.memory_space<vmem>>, vector<8x128xbf16>,
    %c8_311 = arith.constant 8 : index
    %c0_312 = arith.constant 0 : index
    %c0_313 = arith.constant 0 : index
    %c0_314 = arith.constant 0 : index
    %194 = vector.load %arg10[%c8_311, %c0_312, %c0_313, %c0_314] : memref<10x2x10x32xbf16, #tpu.memory_space<vmem>>, vector<1x2x4x32xbf16>
    %195 = vector.shape_cast %194 : vector<1x2x4x32xbf16> to vector<2x4x32xbf16>
    %c8_315 = arith.constant 8 : index
    %c0_316 = arith.constant 0 : index
    %c5_317 = arith.constant 5 : index
    %c0_318 = arith.constant 0 : index
    %196 = vector.load %arg10[%c8_315, %c0_316, %c5_317, %c0_318] : memref<10x2x10x32xbf16, #tpu.memory_space<vmem>>, vector<1x2x4x32xbf16>
    %197 = vector.shape_cast %196 : vector<1x2x4x32xbf16> to vector<2x4x32xbf16>
    %c8_319 = arith.constant 8 : index
    %c0_320 = arith.constant 0 : index
    %c1_321 = arith.constant 1 : index
    %c0_322 = arith.constant 0 : index
    %198 = vector.load %arg10[%c8_319, %c0_320, %c1_321, %c0_322] : memref<10x2x10x32xbf16, #tpu.memory_space<vmem>>, vector<1x2x4x32xbf16>
    %199 = vector.shape_cast %198 : vector<1x2x4x32xbf16> to vector<2x4x32xbf16>
    %c8_323 = arith.constant 8 : index
    %c0_324 = arith.constant 0 : index
    %c6_325 = arith.constant 6 : index
    %c0_326 = arith.constant 0 : index
    %200 = vector.load %arg10[%c8_323, %c0_324, %c6_325, %c0_326] : memref<10x2x10x32xbf16, #tpu.memory_space<vmem>>, vector<1x2x4x32xbf16>
    %201 = vector.shape_cast %200 : vector<1x2x4x32xbf16> to vector<2x4x32xbf16>
    %202 = tpu.concatenate %195, %197, %199, %201 in 2 : vector<2x4x32xbf16>, vector<2x4x32xbf16>, vector<2x4x32xbf16>, vector<2x4x32xbf16> -> vector<2x4x128xbf16>
    %203 = vector.shape_cast %202 : vector<2x4x128xbf16> to vector<8x128xbf16>
    %c24_327 = arith.constant 24 : index
    %c256_328 = arith.constant 256 : index
    %204 = vector.load %arg13[%c24_327, %c256_328] : memref<32x512xbf16, #tpu.memory_space<vmem>>, vector<8x128xbf16>
    tpu.vector_store %arg13[%c24_327, %c256_328], %203 {strides = array<i32>} : memref<32x512xbf16, #tpu.memory_space<vmem>>, vector<8x128xbf16>,
    %c9_329 = arith.constant 9 : index
    %c0_330 = arith.constant 0 : index
    %c0_331 = arith.constant 0 : index
    %c0_332 = arith.constant 0 : index
    %205 = vector.load %arg10[%c9_329, %c0_330, %c0_331, %c0_332] : memref<10x2x10x32xbf16, #tpu.memory_space<vmem>>, vector<1x2x4x32xbf16>
    %206 = vector.shape_cast %205 : vector<1x2x4x32xbf16> to vector<2x4x32xbf16>
    %c9_333 = arith.constant 9 : index
    %c0_334 = arith.constant 0 : index
    %c5_335 = arith.constant 5 : index
    %c0_336 = arith.constant 0 : index
    %207 = vector.load %arg10[%c9_333, %c0_334, %c5_335, %c0_336] : memref<10x2x10x32xbf16, #tpu.memory_space<vmem>>, vector<1x2x4x32xbf16>
    %208 = vector.shape_cast %207 : vector<1x2x4x32xbf16> to vector<2x4x32xbf16>
    %c9_337 = arith.constant 9 : index
    %c0_338 = arith.constant 0 : index
    %c1_339 = arith.constant 1 : index
    %c0_340 = arith.constant 0 : index
    %209 = vector.load %arg10[%c9_337, %c0_338, %c1_339, %c0_340] : memref<10x2x10x32xbf16, #tpu.memory_space<vmem>>, vector<1x2x4x32xbf16>
    %210 = vector.shape_cast %209 : vector<1x2x4x32xbf16> to vector<2x4x32xbf16>
    %c9_341 = arith.constant 9 : index
    %c0_342 = arith.constant 0 : index
    %c6_343 = arith.constant 6 : index
    %c0_344 = arith.constant 0 : index
    %211 = vector.load %arg10[%c9_341, %c0_342, %c6_343, %c0_344] : memref<10x2x10x32xbf16, #tpu.memory_space<vmem>>, vector<1x2x4x32xbf16>
    %212 = vector.shape_cast %211 : vector<1x2x4x32xbf16> to vector<2x4x32xbf16>
    %213 = tpu.concatenate %206, %208, %210, %212 in 2 : vector<2x4x32xbf16>, vector<2x4x32xbf16>, vector<2x4x32xbf16>, vector<2x4x32xbf16> -> vector<2x4x128xbf16>
    %214 = vector.shape_cast %213 : vector<2x4x128xbf16> to vector<8x128xbf16>
    %c24_345 = arith.constant 24 : index
    %c384_346 = arith.constant 384 : index
    %215 = vector.load %arg13[%c24_345, %c384_346] : memref<32x512xbf16, #tpu.memory_space<vmem>>, vector<8x128xbf16>
    tpu.vector_store %arg13[%c24_345, %c384_346], %214 {strides = array<i32>} : memref<32x512xbf16, #tpu.memory_space<vmem>>, vector<8x128xbf16>,
    %c0_347 = arith.constant 0 : index
    %c0_348 = arith.constant 0 : index
    %216 = vector.load %arg13[%c0_347, %c0_348] : memref<32x512xbf16, #tpu.memory_space<vmem>>, vector<32x512xbf16>
    %c0_349 = arith.constant 0 : index
    %c0_350 = arith.constant 0 : index
    %217 = vector.load %arg2[%c0_349, %c0_350] : memref<512x64xbf16, #tpu.memory_space<vmem>>, vector<512x64xbf16>
    %cst_351 = arith.constant dense<0.000000e+00> : vector<32x64xf32>
    %218 = tpu.matmul %216, %217, %cst_351 {dimension_numbers = #tpu.dot_dimension_numbers<[1], [0], [0], [1], [0, 0, 1, 1], [], []>} : vector<32x512xbf16>, vector<512x64xbf16>, vector<32x64xf32> -> vector<32x64xf32>
    %c0_352 = arith.constant 0 : index
    %c0_353 = arith.constant 0 : index
    %219 = vector.load %arg5[%c0_352, %c0_353] : memref<1x64xf32, #tpu.memory_space<vmem>>, vector<1x64xf32>
    %c0_354 = arith.constant 0 : index
    %c0_355 = arith.constant 0 : index
    %220 = vector.load %arg6[%c0_354, %c0_355] : memref<1x64xf32, #tpu.memory_space<vmem>>, vector<1x64xf32>
    %cst_356 = arith.constant dense<0.000000e+00> : vector<64xf32>
    %221 = vector.multi_reduction <add>, %218, %cst_356 [0] : vector<32x64xf32> to vector<64xf32>
    %222 = vector.shape_cast %221 : vector<64xf32> to vector<1x64xf32>
    %cst_357 = arith.constant 3.200000e+01 : f32
    %223 = vector.broadcast %cst_357 : f32 to vector<1x64xf32>
    %224 = arith.divf %222, %223 : vector<1x64xf32>
    %225 = vector.broadcast %224 : vector<1x64xf32> to vector<32x64xf32>
    %226 = arith.subf %218, %225 : vector<32x64xf32>
    %227 = arith.mulf %226, %226 : vector<32x64xf32>
    %cst_358 = arith.constant dense<0.000000e+00> : vector<64xf32>
    %228 = vector.multi_reduction <add>, %227, %cst_358 [0] : vector<32x64xf32> to vector<64xf32>
    %229 = vector.shape_cast %228 : vector<64xf32> to vector<1x64xf32>
    %cst_359 = arith.constant 3.200000e+01 : f32
    %230 = vector.broadcast %cst_359 : f32 to vector<1x64xf32>
    %231 = arith.divf %229, %230 : vector<1x64xf32>
    %cst_360 = arith.constant 9.99999974E-6 : f32
    %232 = vector.broadcast %cst_360 : f32 to vector<1x64xf32>
    %233 = arith.addf %231, %232 : vector<1x64xf32>
    %234 = math.rsqrt %233 : vector<1x64xf32>
    %235 = arith.mulf %219, %234 : vector<1x64xf32>
    %236 = vector.broadcast %235 : vector<1x64xf32> to vector<32x64xf32>
    %237 = arith.mulf %218, %236 : vector<32x64xf32>
    %238 = arith.mulf %224, %235 : vector<1x64xf32>
    %239 = arith.subf %220, %238 : vector<1x64xf32>
    %240 = vector.broadcast %239 : vector<1x64xf32> to vector<32x64xf32>
    %241 = arith.addf %237, %240 : vector<32x64xf32>
    %cst_361 = arith.constant 0.000000e+00 : f32
    %242 = vector.broadcast %cst_361 : f32 to vector<32x64xf32>
    %243 = arith.cmpf ogt, %241, %242 : vector<32x64xf32>
    %cst_362 = arith.constant 2.000000e-01 : f32
    %244 = vector.broadcast %cst_362 : f32 to vector<32x64xf32>
    %245 = arith.mulf %244, %241 : vector<32x64xf32>
    %246 = arith.select %243, %241, %245 : vector<32x64xi1>, vector<32x64xf32>
    %247 = arith.truncf %246 : vector<32x64xf32> to vector<32x64xbf16>
    %248 = vector.shape_cast %247 : vector<32x64xbf16> to vector<4x2x2x2x64xbf16>
    %249 = vector.extract_strided_slice %248 {offsets = [0, 0, 0, 0, 0], sizes = [4, 2, 2, 1, 64], strides = [1, 1, 1, 1, 1]} : vector<4x2x2x2x64xbf16> to vector<4x2x2x1x64xbf16>
    %250 = vector.shape_cast %249 : vector<4x2x2x1x64xbf16> to vector<4x2x2x64xbf16>
    %c1_363 = arith.constant 1 : index
    %c0_364 = arith.constant 0 : index
    %c3_365 = arith.constant 3 : index
    %c0_366 = arith.constant 0 : index
    %251 = vector.load %arg11[%c1_363, %c0_364, %c3_365, %c0_366] : memref<6x2x6x64xbf16, #tpu.memory_space<vmem>>, vector<4x2x2x64xbf16>
    tpu.vector_store %arg11[%c1_363, %c0_364, %c3_365, %c0_366], %250 {strides = array<i32>} : memref<6x2x6x64xbf16, #tpu.memory_space<vmem>>, vector<4x2x2x64xbf16>,
    %252 = vector.extract_strided_slice %248 {offsets = [0, 0, 0, 1, 0], sizes = [4, 2, 2, 1, 64], strides = [1, 1, 1, 1, 1]} : vector<4x2x2x2x64xbf16> to vector<4x2x2x1x64xbf16>
    %253 = vector.shape_cast %252 : vector<4x2x2x1x64xbf16> to vector<4x2x2x64xbf16>
    %c1_367 = arith.constant 1 : index
    %c0_368 = arith.constant 0 : index
    %c1_369 = arith.constant 1 : index
    %c0_370 = arith.constant 0 : index
    %254 = vector.load %arg11[%c1_367, %c0_368, %c1_369, %c0_370] : memref<6x2x6x64xbf16, #tpu.memory_space<vmem>>, vector<4x2x2x64xbf16>
    tpu.vector_store %arg11[%c1_367, %c0_368, %c1_369, %c0_370], %253 {strides = array<i32>} : memref<6x2x6x64xbf16, #tpu.memory_space<vmem>>, vector<4x2x2x64xbf16>,
    %c0_371 = arith.constant 0 : index
    %c0_372 = arith.constant 0 : index
    %c0_373 = arith.constant 0 : index
    %c0_374 = arith.constant 0 : index
    %255 = vector.load %arg11[%c0_371, %c0_372, %c0_373, %c0_374] : memref<6x2x6x64xbf16, #tpu.memory_space<vmem>>, vector<1x2x2x64xbf16>
    %256 = vector.shape_cast %255 : vector<1x2x2x64xbf16> to vector<2x2x64xbf16>
    %c0_375 = arith.constant 0 : index
    %c0_376 = arith.constant 0 : index
    %c3_377 = arith.constant 3 : index
    %c0_378 = arith.constant 0 : index
    %257 = vector.load %arg11[%c0_375, %c0_376, %c3_377, %c0_378] : memref<6x2x6x64xbf16, #tpu.memory_space<vmem>>, vector<1x2x2x64xbf16>
    %258 = vector.shape_cast %257 : vector<1x2x2x64xbf16> to vector<2x2x64xbf16>
    %c0_379 = arith.constant 0 : index
    %c0_380 = arith.constant 0 : index
    %c1_381 = arith.constant 1 : index
    %c0_382 = arith.constant 0 : index
    %259 = vector.load %arg11[%c0_379, %c0_380, %c1_381, %c0_382] : memref<6x2x6x64xbf16, #tpu.memory_space<vmem>>, vector<1x2x2x64xbf16>
    %260 = vector.shape_cast %259 : vector<1x2x2x64xbf16> to vector<2x2x64xbf16>
    %c0_383 = arith.constant 0 : index
    %c0_384 = arith.constant 0 : index
    %c4_385 = arith.constant 4 : index
    %c0_386 = arith.constant 0 : index
    %261 = vector.load %arg11[%c0_383, %c0_384, %c4_385, %c0_386] : memref<6x2x6x64xbf16, #tpu.memory_space<vmem>>, vector<1x2x2x64xbf16>
    %262 = vector.shape_cast %261 : vector<1x2x2x64xbf16> to vector<2x2x64xbf16>
    %263 = tpu.concatenate %256, %258, %260, %262 in 2 : vector<2x2x64xbf16>, vector<2x2x64xbf16>, vector<2x2x64xbf16>, vector<2x2x64xbf16> -> vector<2x2x256xbf16>
    %264 = vector.shape_cast %263 : vector<2x2x256xbf16> to vector<4x256xbf16>
    %c0_387 = arith.constant 0 : index
    %c0_388 = arith.constant 0 : index
    %265 = vector.load %arg14[%c0_387, %c0_388] : memref<8x1024xbf16, #tpu.memory_space<vmem>>, vector<4x256xbf16>
    tpu.vector_store %arg14[%c0_387, %c0_388], %264 {strides = array<i32>} : memref<8x1024xbf16, #tpu.memory_space<vmem>>, vector<4x256xbf16>,
    %c1_389 = arith.constant 1 : index
    %c0_390 = arith.constant 0 : index
    %c0_391 = arith.constant 0 : index
    %c0_392 = arith.constant 0 : index
    %266 = vector.load %arg11[%c1_389, %c0_390, %c0_391, %c0_392] : memref<6x2x6x64xbf16, #tpu.memory_space<vmem>>, vector<1x2x2x64xbf16>
    %267 = vector.shape_cast %266 : vector<1x2x2x64xbf16> to vector<2x2x64xbf16>
    %c1_393 = arith.constant 1 : index
    %c0_394 = arith.constant 0 : index
    %c3_395 = arith.constant 3 : index
    %c0_396 = arith.constant 0 : index
    %268 = vector.load %arg11[%c1_393, %c0_394, %c3_395, %c0_396] : memref<6x2x6x64xbf16, #tpu.memory_space<vmem>>, vector<1x2x2x64xbf16>
    %269 = vector.shape_cast %268 : vector<1x2x2x64xbf16> to vector<2x2x64xbf16>
    %c1_397 = arith.constant 1 : index
    %c0_398 = arith.constant 0 : index
    %c1_399 = arith.constant 1 : index
    %c0_400 = arith.constant 0 : index
    %270 = vector.load %arg11[%c1_397, %c0_398, %c1_399, %c0_400] : memref<6x2x6x64xbf16, #tpu.memory_space<vmem>>, vector<1x2x2x64xbf16>
    %271 = vector.shape_cast %270 : vector<1x2x2x64xbf16> to vector<2x2x64xbf16>
    %c1_401 = arith.constant 1 : index
    %c0_402 = arith.constant 0 : index
    %c4_403 = arith.constant 4 : index
    %c0_404 = arith.constant 0 : index
    %272 = vector.load %arg11[%c1_401, %c0_402, %c4_403, %c0_404] : memref<6x2x6x64xbf16, #tpu.memory_space<vmem>>, vector<1x2x2x64xbf16>
    %273 = vector.shape_cast %272 : vector<1x2x2x64xbf16> to vector<2x2x64xbf16>
    %274 = tpu.concatenate %267, %269, %271, %273 in 2 : vector<2x2x64xbf16>, vector<2x2x64xbf16>, vector<2x2x64xbf16>, vector<2x2x64xbf16> -> vector<2x2x256xbf16>
    %275 = vector.shape_cast %274 : vector<2x2x256xbf16> to vector<4x256xbf16>
    %c0_405 = arith.constant 0 : index
    %c256_406 = arith.constant 256 : index
    %276 = vector.load %arg14[%c0_405, %c256_406] : memref<8x1024xbf16, #tpu.memory_space<vmem>>, vector<4x256xbf16>
    tpu.vector_store %arg14[%c0_405, %c256_406], %275 {strides = array<i32>} : memref<8x1024xbf16, #tpu.memory_space<vmem>>, vector<4x256xbf16>,
    %c2_407 = arith.constant 2 : index
    %c0_408 = arith.constant 0 : index
    %c0_409 = arith.constant 0 : index
    %c0_410 = arith.constant 0 : index
    %277 = vector.load %arg11[%c2_407, %c0_408, %c0_409, %c0_410] : memref<6x2x6x64xbf16, #tpu.memory_space<vmem>>, vector<1x2x2x64xbf16>
    %278 = vector.shape_cast %277 : vector<1x2x2x64xbf16> to vector<2x2x64xbf16>
    %c2_411 = arith.constant 2 : index
    %c0_412 = arith.constant 0 : index
    %c3_413 = arith.constant 3 : index
    %c0_414 = arith.constant 0 : index
    %279 = vector.load %arg11[%c2_411, %c0_412, %c3_413, %c0_414] : memref<6x2x6x64xbf16, #tpu.memory_space<vmem>>, vector<1x2x2x64xbf16>
    %280 = vector.shape_cast %279 : vector<1x2x2x64xbf16> to vector<2x2x64xbf16>
    %c2_415 = arith.constant 2 : index
    %c0_416 = arith.constant 0 : index
    %c1_417 = arith.constant 1 : index
    %c0_418 = arith.constant 0 : index
    %281 = vector.load %arg11[%c2_415, %c0_416, %c1_417, %c0_418] : memref<6x2x6x64xbf16, #tpu.memory_space<vmem>>, vector<1x2x2x64xbf16>
    %282 = vector.shape_cast %281 : vector<1x2x2x64xbf16> to vector<2x2x64xbf16>
    %c2_419 = arith.constant 2 : index
    %c0_420 = arith.constant 0 : index
    %c4_421 = arith.constant 4 : index
    %c0_422 = arith.constant 0 : index
    %283 = vector.load %arg11[%c2_419, %c0_420, %c4_421, %c0_422] : memref<6x2x6x64xbf16, #tpu.memory_space<vmem>>, vector<1x2x2x64xbf16>
    %284 = vector.shape_cast %283 : vector<1x2x2x64xbf16> to vector<2x2x64xbf16>
    %285 = tpu.concatenate %278, %280, %282, %284 in 2 : vector<2x2x64xbf16>, vector<2x2x64xbf16>, vector<2x2x64xbf16>, vector<2x2x64xbf16> -> vector<2x2x256xbf16>
    %286 = vector.shape_cast %285 : vector<2x2x256xbf16> to vector<4x256xbf16>
    %c0_423 = arith.constant 0 : index
    %c512 = arith.constant 512 : index
    %287 = vector.load %arg14[%c0_423, %c512] : memref<8x1024xbf16, #tpu.memory_space<vmem>>, vector<4x256xbf16>
    tpu.vector_store %arg14[%c0_423, %c512], %286 {strides = array<i32>} : memref<8x1024xbf16, #tpu.memory_space<vmem>>, vector<4x256xbf16>,
    %c3_424 = arith.constant 3 : index
    %c0_425 = arith.constant 0 : index
    %c0_426 = arith.constant 0 : index
    %c0_427 = arith.constant 0 : index
    %288 = vector.load %arg11[%c3_424, %c0_425, %c0_426, %c0_427] : memref<6x2x6x64xbf16, #tpu.memory_space<vmem>>, vector<1x2x2x64xbf16>
    %289 = vector.shape_cast %288 : vector<1x2x2x64xbf16> to vector<2x2x64xbf16>
    %c3_428 = arith.constant 3 : index
    %c0_429 = arith.constant 0 : index
    %c3_430 = arith.constant 3 : index
    %c0_431 = arith.constant 0 : index
    %290 = vector.load %arg11[%c3_428, %c0_429, %c3_430, %c0_431] : memref<6x2x6x64xbf16, #tpu.memory_space<vmem>>, vector<1x2x2x64xbf16>
    %291 = vector.shape_cast %290 : vector<1x2x2x64xbf16> to vector<2x2x64xbf16>
    %c3_432 = arith.constant 3 : index
    %c0_433 = arith.constant 0 : index
    %c1_434 = arith.constant 1 : index
    %c0_435 = arith.constant 0 : index
    %292 = vector.load %arg11[%c3_432, %c0_433, %c1_434, %c0_435] : memref<6x2x6x64xbf16, #tpu.memory_space<vmem>>, vector<1x2x2x64xbf16>
    %293 = vector.shape_cast %292 : vector<1x2x2x64xbf16> to vector<2x2x64xbf16>
    %c3_436 = arith.constant 3 : index
    %c0_437 = arith.constant 0 : index
    %c4_438 = arith.constant 4 : index
    %c0_439 = arith.constant 0 : index
    %294 = vector.load %arg11[%c3_436, %c0_437, %c4_438, %c0_439] : memref<6x2x6x64xbf16, #tpu.memory_space<vmem>>, vector<1x2x2x64xbf16>
    %295 = vector.shape_cast %294 : vector<1x2x2x64xbf16> to vector<2x2x64xbf16>
    %296 = tpu.concatenate %289, %291, %293, %295 in 2 : vector<2x2x64xbf16>, vector<2x2x64xbf16>, vector<2x2x64xbf16>, vector<2x2x64xbf16> -> vector<2x2x256xbf16>
    %297 = vector.shape_cast %296 : vector<2x2x256xbf16> to vector<4x256xbf16>
    %c0_440 = arith.constant 0 : index
    %c768 = arith.constant 768 : index
    %298 = vector.load %arg14[%c0_440, %c768] : memref<8x1024xbf16, #tpu.memory_space<vmem>>, vector<4x256xbf16>
    tpu.vector_store %arg14[%c0_440, %c768], %297 {strides = array<i32>} : memref<8x1024xbf16, #tpu.memory_space<vmem>>, vector<4x256xbf16>,
    %c2_441 = arith.constant 2 : index
    %c0_442 = arith.constant 0 : index
    %c0_443 = arith.constant 0 : index
    %c0_444 = arith.constant 0 : index
    %299 = vector.load %arg11[%c2_441, %c0_442, %c0_443, %c0_444] : memref<6x2x6x64xbf16, #tpu.memory_space<vmem>>, vector<1x2x2x64xbf16>
    %300 = vector.shape_cast %299 : vector<1x2x2x64xbf16> to vector<2x2x64xbf16>
    %c2_445 = arith.constant 2 : index
    %c0_446 = arith.constant 0 : index
    %c3_447 = arith.constant 3 : index
    %c0_448 = arith.constant 0 : index
    %301 = vector.load %arg11[%c2_445, %c0_446, %c3_447, %c0_448] : memref<6x2x6x64xbf16, #tpu.memory_space<vmem>>, vector<1x2x2x64xbf16>
    %302 = vector.shape_cast %301 : vector<1x2x2x64xbf16> to vector<2x2x64xbf16>
    %c2_449 = arith.constant 2 : index
    %c0_450 = arith.constant 0 : index
    %c1_451 = arith.constant 1 : index
    %c0_452 = arith.constant 0 : index
    %303 = vector.load %arg11[%c2_449, %c0_450, %c1_451, %c0_452] : memref<6x2x6x64xbf16, #tpu.memory_space<vmem>>, vector<1x2x2x64xbf16>
    %304 = vector.shape_cast %303 : vector<1x2x2x64xbf16> to vector<2x2x64xbf16>
    %c2_453 = arith.constant 2 : index
    %c0_454 = arith.constant 0 : index
    %c4_455 = arith.constant 4 : index
    %c0_456 = arith.constant 0 : index
    %305 = vector.load %arg11[%c2_453, %c0_454, %c4_455, %c0_456] : memref<6x2x6x64xbf16, #tpu.memory_space<vmem>>, vector<1x2x2x64xbf16>
    %306 = vector.shape_cast %305 : vector<1x2x2x64xbf16> to vector<2x2x64xbf16>
    %307 = tpu.concatenate %300, %302, %304, %306 in 2 : vector<2x2x64xbf16>, vector<2x2x64xbf16>, vector<2x2x64xbf16>, vector<2x2x64xbf16> -> vector<2x2x256xbf16>
    %308 = vector.shape_cast %307 : vector<2x2x256xbf16> to vector<4x256xbf16>
    %c4_457 = arith.constant 4 : index
    %c0_458 = arith.constant 0 : index
    %309 = vector.load %arg14[%c4_457, %c0_458] : memref<8x1024xbf16, #tpu.memory_space<vmem>>, vector<4x256xbf16>
    tpu.vector_store %arg14[%c4_457, %c0_458], %308 {strides = array<i32>} : memref<8x1024xbf16, #tpu.memory_space<vmem>>, vector<4x256xbf16>,
    %c3_459 = arith.constant 3 : index
    %c0_460 = arith.constant 0 : index
    %c0_461 = arith.constant 0 : index
    %c0_462 = arith.constant 0 : index
    %310 = vector.load %arg11[%c3_459, %c0_460, %c0_461, %c0_462] : memref<6x2x6x64xbf16, #tpu.memory_space<vmem>>, vector<1x2x2x64xbf16>
    %311 = vector.shape_cast %310 : vector<1x2x2x64xbf16> to vector<2x2x64xbf16>
    %c3_463 = arith.constant 3 : index
    %c0_464 = arith.constant 0 : index
    %c3_465 = arith.constant 3 : index
    %c0_466 = arith.constant 0 : index
    %312 = vector.load %arg11[%c3_463, %c0_464, %c3_465, %c0_466] : memref<6x2x6x64xbf16, #tpu.memory_space<vmem>>, vector<1x2x2x64xbf16>
    %313 = vector.shape_cast %312 : vector<1x2x2x64xbf16> to vector<2x2x64xbf16>
    %c3_467 = arith.constant 3 : index
    %c0_468 = arith.constant 0 : index
    %c1_469 = arith.constant 1 : index
    %c0_470 = arith.constant 0 : index
    %314 = vector.load %arg11[%c3_467, %c0_468, %c1_469, %c0_470] : memref<6x2x6x64xbf16, #tpu.memory_space<vmem>>, vector<1x2x2x64xbf16>
    %315 = vector.shape_cast %314 : vector<1x2x2x64xbf16> to vector<2x2x64xbf16>
    %c3_471 = arith.constant 3 : index
    %c0_472 = arith.constant 0 : index
    %c4_473 = arith.constant 4 : index
    %c0_474 = arith.constant 0 : index
    %316 = vector.load %arg11[%c3_471, %c0_472, %c4_473, %c0_474] : memref<6x2x6x64xbf16, #tpu.memory_space<vmem>>, vector<1x2x2x64xbf16>
    %317 = vector.shape_cast %316 : vector<1x2x2x64xbf16> to vector<2x2x64xbf16>
    %318 = tpu.concatenate %311, %313, %315, %317 in 2 : vector<2x2x64xbf16>, vector<2x2x64xbf16>, vector<2x2x64xbf16>, vector<2x2x64xbf16> -> vector<2x2x256xbf16>
    %319 = vector.shape_cast %318 : vector<2x2x256xbf16> to vector<4x256xbf16>
    %c4_475 = arith.constant 4 : index
    %c256_476 = arith.constant 256 : index
    %320 = vector.load %arg14[%c4_475, %c256_476] : memref<8x1024xbf16, #tpu.memory_space<vmem>>, vector<4x256xbf16>
    tpu.vector_store %arg14[%c4_475, %c256_476], %319 {strides = array<i32>} : memref<8x1024xbf16, #tpu.memory_space<vmem>>, vector<4x256xbf16>,
    %c4_477 = arith.constant 4 : index
    %c0_478 = arith.constant 0 : index
    %c0_479 = arith.constant 0 : index
    %c0_480 = arith.constant 0 : index
    %321 = vector.load %arg11[%c4_477, %c0_478, %c0_479, %c0_480] : memref<6x2x6x64xbf16, #tpu.memory_space<vmem>>, vector<1x2x2x64xbf16>
    %322 = vector.shape_cast %321 : vector<1x2x2x64xbf16> to vector<2x2x64xbf16>
    %c4_481 = arith.constant 4 : index
    %c0_482 = arith.constant 0 : index
    %c3_483 = arith.constant 3 : index
    %c0_484 = arith.constant 0 : index
    %323 = vector.load %arg11[%c4_481, %c0_482, %c3_483, %c0_484] : memref<6x2x6x64xbf16, #tpu.memory_space<vmem>>, vector<1x2x2x64xbf16>
    %324 = vector.shape_cast %323 : vector<1x2x2x64xbf16> to vector<2x2x64xbf16>
    %c4_485 = arith.constant 4 : index
    %c0_486 = arith.constant 0 : index
    %c1_487 = arith.constant 1 : index
    %c0_488 = arith.constant 0 : index
    %325 = vector.load %arg11[%c4_485, %c0_486, %c1_487, %c0_488] : memref<6x2x6x64xbf16, #tpu.memory_space<vmem>>, vector<1x2x2x64xbf16>
    %326 = vector.shape_cast %325 : vector<1x2x2x64xbf16> to vector<2x2x64xbf16>
    %c4_489 = arith.constant 4 : index
    %c0_490 = arith.constant 0 : index
    %c4_491 = arith.constant 4 : index
    %c0_492 = arith.constant 0 : index
    %327 = vector.load %arg11[%c4_489, %c0_490, %c4_491, %c0_492] : memref<6x2x6x64xbf16, #tpu.memory_space<vmem>>, vector<1x2x2x64xbf16>
    %328 = vector.shape_cast %327 : vector<1x2x2x64xbf16> to vector<2x2x64xbf16>
    %329 = tpu.concatenate %322, %324, %326, %328 in 2 : vector<2x2x64xbf16>, vector<2x2x64xbf16>, vector<2x2x64xbf16>, vector<2x2x64xbf16> -> vector<2x2x256xbf16>
    %330 = vector.shape_cast %329 : vector<2x2x256xbf16> to vector<4x256xbf16>
    %c4_493 = arith.constant 4 : index
    %c512_494 = arith.constant 512 : index
    %331 = vector.load %arg14[%c4_493, %c512_494] : memref<8x1024xbf16, #tpu.memory_space<vmem>>, vector<4x256xbf16>
    tpu.vector_store %arg14[%c4_493, %c512_494], %330 {strides = array<i32>} : memref<8x1024xbf16, #tpu.memory_space<vmem>>, vector<4x256xbf16>,
    %c5_495 = arith.constant 5 : index
    %c0_496 = arith.constant 0 : index
    %c0_497 = arith.constant 0 : index
    %c0_498 = arith.constant 0 : index
    %332 = vector.load %arg11[%c5_495, %c0_496, %c0_497, %c0_498] : memref<6x2x6x64xbf16, #tpu.memory_space<vmem>>, vector<1x2x2x64xbf16>
    %333 = vector.shape_cast %332 : vector<1x2x2x64xbf16> to vector<2x2x64xbf16>
    %c5_499 = arith.constant 5 : index
    %c0_500 = arith.constant 0 : index
    %c3_501 = arith.constant 3 : index
    %c0_502 = arith.constant 0 : index
    %334 = vector.load %arg11[%c5_499, %c0_500, %c3_501, %c0_502] : memref<6x2x6x64xbf16, #tpu.memory_space<vmem>>, vector<1x2x2x64xbf16>
    %335 = vector.shape_cast %334 : vector<1x2x2x64xbf16> to vector<2x2x64xbf16>
    %c5_503 = arith.constant 5 : index
    %c0_504 = arith.constant 0 : index
    %c1_505 = arith.constant 1 : index
    %c0_506 = arith.constant 0 : index
    %336 = vector.load %arg11[%c5_503, %c0_504, %c1_505, %c0_506] : memref<6x2x6x64xbf16, #tpu.memory_space<vmem>>, vector<1x2x2x64xbf16>
    %337 = vector.shape_cast %336 : vector<1x2x2x64xbf16> to vector<2x2x64xbf16>
    %c5_507 = arith.constant 5 : index
    %c0_508 = arith.constant 0 : index
    %c4_509 = arith.constant 4 : index
    %c0_510 = arith.constant 0 : index
    %338 = vector.load %arg11[%c5_507, %c0_508, %c4_509, %c0_510] : memref<6x2x6x64xbf16, #tpu.memory_space<vmem>>, vector<1x2x2x64xbf16>
    %339 = vector.shape_cast %338 : vector<1x2x2x64xbf16> to vector<2x2x64xbf16>
    %340 = tpu.concatenate %333, %335, %337, %339 in 2 : vector<2x2x64xbf16>, vector<2x2x64xbf16>, vector<2x2x64xbf16>, vector<2x2x64xbf16> -> vector<2x2x256xbf16>
    %341 = vector.shape_cast %340 : vector<2x2x256xbf16> to vector<4x256xbf16>
    %c4_511 = arith.constant 4 : index
    %c768_512 = arith.constant 768 : index
    %342 = vector.load %arg14[%c4_511, %c768_512] : memref<8x1024xbf16, #tpu.memory_space<vmem>>, vector<4x256xbf16>
    tpu.vector_store %arg14[%c4_511, %c768_512], %341 {strides = array<i32>} : memref<8x1024xbf16, #tpu.memory_space<vmem>>, vector<4x256xbf16>,
    %c0_513 = arith.constant 0 : index
    %c0_514 = arith.constant 0 : index
    %343 = vector.load %arg14[%c0_513, %c0_514] : memref<8x1024xbf16, #tpu.memory_space<vmem>>, vector<8x1024xbf16>
    %c0_515 = arith.constant 0 : index
    %c0_516 = arith.constant 0 : index
    %344 = vector.load %arg3[%c0_515, %c0_516] : memref<1024x64xbf16, #tpu.memory_space<vmem>>, vector<1024x64xbf16>
    %cst_517 = arith.constant dense<0.000000e+00> : vector<8x64xf32>
    %345 = tpu.matmul %343, %344, %cst_517 {dimension_numbers = #tpu.dot_dimension_numbers<[1], [0], [0], [1], [0, 0, 1, 1], [], []>} : vector<8x1024xbf16>, vector<1024x64xbf16>, vector<8x64xf32> -> vector<8x64xf32>
    %c0_518 = arith.constant 0 : index
    %c0_519 = arith.constant 0 : index
    %346 = vector.load %arg7[%c0_518, %c0_519] : memref<1x64xf32, #tpu.memory_space<vmem>>, vector<1x64xf32>
    %c0_520 = arith.constant 0 : index
    %c0_521 = arith.constant 0 : index
    %347 = vector.load %arg8[%c0_520, %c0_521] : memref<1x64xf32, #tpu.memory_space<vmem>>, vector<1x64xf32>
    %cst_522 = arith.constant dense<0.000000e+00> : vector<64xf32>
    %348 = vector.multi_reduction <add>, %345, %cst_522 [0] : vector<8x64xf32> to vector<64xf32>
    %349 = vector.shape_cast %348 : vector<64xf32> to vector<1x64xf32>
    %cst_523 = arith.constant 8.000000e+00 : f32
    %350 = vector.broadcast %cst_523 : f32 to vector<1x64xf32>
    %351 = arith.divf %349, %350 : vector<1x64xf32>
    %352 = vector.broadcast %351 : vector<1x64xf32> to vector<8x64xf32>
    %353 = arith.subf %345, %352 : vector<8x64xf32>
    %354 = arith.mulf %353, %353 : vector<8x64xf32>
    %cst_524 = arith.constant dense<0.000000e+00> : vector<64xf32>
    %355 = vector.multi_reduction <add>, %354, %cst_524 [0] : vector<8x64xf32> to vector<64xf32>
    %356 = vector.shape_cast %355 : vector<64xf32> to vector<1x64xf32>
    %cst_525 = arith.constant 8.000000e+00 : f32
    %357 = vector.broadcast %cst_525 : f32 to vector<1x64xf32>
    %358 = arith.divf %356, %357 : vector<1x64xf32>
    %cst_526 = arith.constant 9.99999974E-6 : f32
    %359 = vector.broadcast %cst_526 : f32 to vector<1x64xf32>
    %360 = arith.addf %358, %359 : vector<1x64xf32>
    %361 = math.rsqrt %360 : vector<1x64xf32>
    %362 = arith.mulf %346, %361 : vector<1x64xf32>
    %363 = vector.broadcast %362 : vector<1x64xf32> to vector<8x64xf32>
    %364 = arith.mulf %345, %363 : vector<8x64xf32>
    %365 = arith.mulf %351, %362 : vector<1x64xf32>
    %366 = arith.subf %347, %365 : vector<1x64xf32>
    %367 = vector.broadcast %366 : vector<1x64xf32> to vector<8x64xf32>
    %368 = arith.addf %364, %367 : vector<8x64xf32>
    %cst_527 = arith.constant 0.000000e+00 : f32
    %369 = vector.broadcast %cst_527 : f32 to vector<8x64xf32>
    %370 = arith.cmpf ogt, %368, %369 : vector<8x64xf32>
    %cst_528 = arith.constant 2.000000e-01 : f32
    %371 = vector.broadcast %cst_528 : f32 to vector<8x64xf32>
    %372 = arith.mulf %371, %368 : vector<8x64xf32>
    %373 = arith.select %370, %368, %372 : vector<8x64xi1>, vector<8x64xf32>
    %374 = arith.truncf %373 : vector<8x64xf32> to vector<8x64xbf16>
    %375 = vector.shape_cast %374 : vector<8x64xbf16> to vector<2x2x2x64xbf16>
    %c1_529 = arith.constant 1 : index
    %c0_530 = arith.constant 0 : index
    %c1_531 = arith.constant 1 : index
    %c0_532 = arith.constant 0 : index
    %376 = vector.load %arg12[%c1_529, %c0_530, %c1_531, %c0_532] : memref<4x2x4x64xbf16, #tpu.memory_space<vmem>>, vector<2x2x2x64xbf16>
    tpu.vector_store %arg12[%c1_529, %c0_530, %c1_531, %c0_532], %375 {strides = array<i32>} : memref<4x2x4x64xbf16, #tpu.memory_space<vmem>>, vector<2x2x2x64xbf16>,
    %c0_533 = arith.constant 0 : index
    %c0_534 = arith.constant 0 : index
    %c0_535 = arith.constant 0 : index
    %c0_536 = arith.constant 0 : index
    %377 = vector.load %arg12[%c0_533, %c0_534, %c0_535, %c0_536] : memref<4x2x4x64xbf16, #tpu.memory_space<vmem>>, vector<1x2x1x64xbf16>
    %378 = vector.shape_cast %377 : vector<1x2x1x64xbf16> to vector<2x1x64xbf16>
    %c0_537 = arith.constant 0 : index
    %c0_538 = arith.constant 0 : index
    %c1_539 = arith.constant 1 : index
    %c0_540 = arith.constant 0 : index
    %379 = vector.load %arg12[%c0_537, %c0_538, %c1_539, %c0_540] : memref<4x2x4x64xbf16, #tpu.memory_space<vmem>>, vector<1x2x1x64xbf16>
    %380 = vector.shape_cast %379 : vector<1x2x1x64xbf16> to vector<2x1x64xbf16>
    %c0_541 = arith.constant 0 : index
    %c0_542 = arith.constant 0 : index
    %c2_543 = arith.constant 2 : index
    %c0_544 = arith.constant 0 : index
    %381 = vector.load %arg12[%c0_541, %c0_542, %c2_543, %c0_544] : memref<4x2x4x64xbf16, #tpu.memory_space<vmem>>, vector<1x2x1x64xbf16>
    %382 = vector.shape_cast %381 : vector<1x2x1x64xbf16> to vector<2x1x64xbf16>
    %c0_545 = arith.constant 0 : index
    %c0_546 = arith.constant 0 : index
    %c3_547 = arith.constant 3 : index
    %c0_548 = arith.constant 0 : index
    %383 = vector.load %arg12[%c0_545, %c0_546, %c3_547, %c0_548] : memref<4x2x4x64xbf16, #tpu.memory_space<vmem>>, vector<1x2x1x64xbf16>
    %384 = vector.shape_cast %383 : vector<1x2x1x64xbf16> to vector<2x1x64xbf16>
    %385 = tpu.concatenate %378, %380, %382, %384 in 2 : vector<2x1x64xbf16>, vector<2x1x64xbf16>, vector<2x1x64xbf16>, vector<2x1x64xbf16> -> vector<2x1x256xbf16>
    %386 = vector.shape_cast %385 : vector<2x1x256xbf16> to vector<2x256xbf16>
    %c0_549 = arith.constant 0 : index
    %c0_550 = arith.constant 0 : index
    %387 = vector.load %arg15[%c0_549, %c0_550] : memref<2x1024xbf16, #tpu.memory_space<vmem>>, vector<2x256xbf16>
    tpu.vector_store %arg15[%c0_549, %c0_550], %386 {strides = array<i32>} : memref<2x1024xbf16, #tpu.memory_space<vmem>>, vector<2x256xbf16>,
    %c1_551 = arith.constant 1 : index
    %c0_552 = arith.constant 0 : index
    %c0_553 = arith.constant 0 : index
    %c0_554 = arith.constant 0 : index
    %388 = vector.load %arg12[%c1_551, %c0_552, %c0_553, %c0_554] : memref<4x2x4x64xbf16, #tpu.memory_space<vmem>>, vector<1x2x1x64xbf16>
    %389 = vector.shape_cast %388 : vector<1x2x1x64xbf16> to vector<2x1x64xbf16>
    %c1_555 = arith.constant 1 : index
    %c0_556 = arith.constant 0 : index
    %c1_557 = arith.constant 1 : index
    %c0_558 = arith.constant 0 : index
    %390 = vector.load %arg12[%c1_555, %c0_556, %c1_557, %c0_558] : memref<4x2x4x64xbf16, #tpu.memory_space<vmem>>, vector<1x2x1x64xbf16>
    %391 = vector.shape_cast %390 : vector<1x2x1x64xbf16> to vector<2x1x64xbf16>
    %c1_559 = arith.constant 1 : index
    %c0_560 = arith.constant 0 : index
    %c2_561 = arith.constant 2 : index
    %c0_562 = arith.constant 0 : index
    %392 = vector.load %arg12[%c1_559, %c0_560, %c2_561, %c0_562] : memref<4x2x4x64xbf16, #tpu.memory_space<vmem>>, vector<1x2x1x64xbf16>
    %393 = vector.shape_cast %392 : vector<1x2x1x64xbf16> to vector<2x1x64xbf16>
    %c1_563 = arith.constant 1 : index
    %c0_564 = arith.constant 0 : index
    %c3_565 = arith.constant 3 : index
    %c0_566 = arith.constant 0 : index
    %394 = vector.load %arg12[%c1_563, %c0_564, %c3_565, %c0_566] : memref<4x2x4x64xbf16, #tpu.memory_space<vmem>>, vector<1x2x1x64xbf16>
    %395 = vector.shape_cast %394 : vector<1x2x1x64xbf16> to vector<2x1x64xbf16>
    %396 = tpu.concatenate %389, %391, %393, %395 in 2 : vector<2x1x64xbf16>, vector<2x1x64xbf16>, vector<2x1x64xbf16>, vector<2x1x64xbf16> -> vector<2x1x256xbf16>
    %397 = vector.shape_cast %396 : vector<2x1x256xbf16> to vector<2x256xbf16>
    %c0_567 = arith.constant 0 : index
    %c256_568 = arith.constant 256 : index
    %398 = vector.load %arg15[%c0_567, %c256_568] : memref<2x1024xbf16, #tpu.memory_space<vmem>>, vector<2x256xbf16>
    tpu.vector_store %arg15[%c0_567, %c256_568], %397 {strides = array<i32>} : memref<2x1024xbf16, #tpu.memory_space<vmem>>, vector<2x256xbf16>,
    %c2_569 = arith.constant 2 : index
    %c0_570 = arith.constant 0 : index
    %c0_571 = arith.constant 0 : index
    %c0_572 = arith.constant 0 : index
    %399 = vector.load %arg12[%c2_569, %c0_570, %c0_571, %c0_572] : memref<4x2x4x64xbf16, #tpu.memory_space<vmem>>, vector<1x2x1x64xbf16>
    %400 = vector.shape_cast %399 : vector<1x2x1x64xbf16> to vector<2x1x64xbf16>
    %c2_573 = arith.constant 2 : index
    %c0_574 = arith.constant 0 : index
    %c1_575 = arith.constant 1 : index
    %c0_576 = arith.constant 0 : index
    %401 = vector.load %arg12[%c2_573, %c0_574, %c1_575, %c0_576] : memref<4x2x4x64xbf16, #tpu.memory_space<vmem>>, vector<1x2x1x64xbf16>
    %402 = vector.shape_cast %401 : vector<1x2x1x64xbf16> to vector<2x1x64xbf16>
    %c2_577 = arith.constant 2 : index
    %c0_578 = arith.constant 0 : index
    %c2_579 = arith.constant 2 : index
    %c0_580 = arith.constant 0 : index
    %403 = vector.load %arg12[%c2_577, %c0_578, %c2_579, %c0_580] : memref<4x2x4x64xbf16, #tpu.memory_space<vmem>>, vector<1x2x1x64xbf16>
    %404 = vector.shape_cast %403 : vector<1x2x1x64xbf16> to vector<2x1x64xbf16>
    %c2_581 = arith.constant 2 : index
    %c0_582 = arith.constant 0 : index
    %c3_583 = arith.constant 3 : index
    %c0_584 = arith.constant 0 : index
    %405 = vector.load %arg12[%c2_581, %c0_582, %c3_583, %c0_584] : memref<4x2x4x64xbf16, #tpu.memory_space<vmem>>, vector<1x2x1x64xbf16>
    %406 = vector.shape_cast %405 : vector<1x2x1x64xbf16> to vector<2x1x64xbf16>
    %407 = tpu.concatenate %400, %402, %404, %406 in 2 : vector<2x1x64xbf16>, vector<2x1x64xbf16>, vector<2x1x64xbf16>, vector<2x1x64xbf16> -> vector<2x1x256xbf16>
    %408 = vector.shape_cast %407 : vector<2x1x256xbf16> to vector<2x256xbf16>
    %c0_585 = arith.constant 0 : index
    %c512_586 = arith.constant 512 : index
    %409 = vector.load %arg15[%c0_585, %c512_586] : memref<2x1024xbf16, #tpu.memory_space<vmem>>, vector<2x256xbf16>
    tpu.vector_store %arg15[%c0_585, %c512_586], %408 {strides = array<i32>} : memref<2x1024xbf16, #tpu.memory_space<vmem>>, vector<2x256xbf16>,
    %c3_587 = arith.constant 3 : index
    %c0_588 = arith.constant 0 : index
    %c0_589 = arith.constant 0 : index
    %c0_590 = arith.constant 0 : index
    %410 = vector.load %arg12[%c3_587, %c0_588, %c0_589, %c0_590] : memref<4x2x4x64xbf16, #tpu.memory_space<vmem>>, vector<1x2x1x64xbf16>
    %411 = vector.shape_cast %410 : vector<1x2x1x64xbf16> to vector<2x1x64xbf16>
    %c3_591 = arith.constant 3 : index
    %c0_592 = arith.constant 0 : index
    %c1_593 = arith.constant 1 : index
    %c0_594 = arith.constant 0 : index
    %412 = vector.load %arg12[%c3_591, %c0_592, %c1_593, %c0_594] : memref<4x2x4x64xbf16, #tpu.memory_space<vmem>>, vector<1x2x1x64xbf16>
    %413 = vector.shape_cast %412 : vector<1x2x1x64xbf16> to vector<2x1x64xbf16>
    %c3_595 = arith.constant 3 : index
    %c0_596 = arith.constant 0 : index
    %c2_597 = arith.constant 2 : index
    %c0_598 = arith.constant 0 : index
    %414 = vector.load %arg12[%c3_595, %c0_596, %c2_597, %c0_598] : memref<4x2x4x64xbf16, #tpu.memory_space<vmem>>, vector<1x2x1x64xbf16>
    %415 = vector.shape_cast %414 : vector<1x2x1x64xbf16> to vector<2x1x64xbf16>
    %c3_599 = arith.constant 3 : index
    %c0_600 = arith.constant 0 : index
    %c3_601 = arith.constant 3 : index
    %c0_602 = arith.constant 0 : index
    %416 = vector.load %arg12[%c3_599, %c0_600, %c3_601, %c0_602] : memref<4x2x4x64xbf16, #tpu.memory_space<vmem>>, vector<1x2x1x64xbf16>
    %417 = vector.shape_cast %416 : vector<1x2x1x64xbf16> to vector<2x1x64xbf16>
    %418 = tpu.concatenate %411, %413, %415, %417 in 2 : vector<2x1x64xbf16>, vector<2x1x64xbf16>, vector<2x1x64xbf16>, vector<2x1x64xbf16> -> vector<2x1x256xbf16>
    %419 = vector.shape_cast %418 : vector<2x1x256xbf16> to vector<2x256xbf16>
    %c0_603 = arith.constant 0 : index
    %c768_604 = arith.constant 768 : index
    %420 = vector.load %arg15[%c0_603, %c768_604] : memref<2x1024xbf16, #tpu.memory_space<vmem>>, vector<2x256xbf16>
    tpu.vector_store %arg15[%c0_603, %c768_604], %419 {strides = array<i32>} : memref<2x1024xbf16, #tpu.memory_space<vmem>>, vector<2x256xbf16>,
    %c0_605 = arith.constant 0 : index
    %c0_606 = arith.constant 0 : index
    %421 = vector.load %arg15[%c0_605, %c0_606] : memref<2x1024xbf16, #tpu.memory_space<vmem>>, vector<2x1024xbf16>
    %c0_607 = arith.constant 0 : index
    %c0_608 = arith.constant 0 : index
    %422 = vector.load %arg4[%c0_607, %c0_608] : memref<1024x128xbf16, #tpu.memory_space<vmem>>, vector<1024x128xbf16>
    %cst_609 = arith.constant dense<0.000000e+00> : vector<2x128xf32>
    %423 = tpu.matmul %421, %422, %cst_609 {dimension_numbers = #tpu.dot_dimension_numbers<[1], [0], [0], [1], [0, 0, 1, 1], [], []>} : vector<2x1024xbf16>, vector<1024x128xbf16>, vector<2x128xf32> -> vector<2x128xf32>
    %cst_610 = arith.constant 0.000000e+00 : f32
    %424 = vector.broadcast %cst_610 : f32 to vector<2x128xf32>
    %425 = arith.subf %424, %423 : vector<2x128xf32>
    %426 = math.exp %425 : vector<2x128xf32>
    %cst_611 = arith.constant 1.000000e+00 : f32
    %427 = vector.broadcast %cst_611 : f32 to vector<2x128xf32>
    %428 = arith.addf %427, %426 : vector<2x128xf32>
    %cst_612 = arith.constant 1.000000e+00 : f32
    %429 = vector.broadcast %cst_612 : f32 to vector<2x128xf32>
    %430 = arith.divf %429, %428 : vector<2x128xf32>
    %c0_613 = arith.constant 0 : index
    %c0_614 = arith.constant 0 : index
    %431 = vector.load %arg9[%c0_613, %c0_614] : memref<2x128xf32, #tpu.memory_space<vmem>>, vector<2x128xf32>
    tpu.vector_store %arg9[%c0_613, %c0_614], %430 {strides = array<i32>} : memref<2x128xf32, #tpu.memory_space<vmem>>, vector<2x128xf32>,
    return
  }
}

</mosaic_0001>

<llo_original>
// kernel: discriminator_forward.1
$region0: #{discriminator_forward.1}
  #allocation0 [shape = 'u32[]', space=smem, size = 0x4, offset = 0x4, fixed_abs, tag = 'smem constant byte address 0x4 - core index']
  #allocation1 [shape = 'u32[72,128]{1,0:T(1,128)}', space=vmem, size = 0x9000, scoped, tag = 'internal scratch']
  #allocation2 [shape = 'bf16[10,2,10,32]{3,2,1,0:T(8,128)(2,1)}', space=vmem, size = 0x14000, scoped, tag = 'scratch operand']
  #allocation3 [shape = 'bf16[6,2,6,64]{3,2,1,0:T(8,128)(2,1)}', space=vmem, size = 0x6000, scoped, tag = 'scratch operand']
  #allocation4 [shape = 'bf16[4,2,4,64]{3,2,1,0:T(4,128)(2,1)}', space=vmem, size = 0x2000, scoped, tag = 'scratch operand']
  #allocation5 [shape = 'bf16[32,512]{1,0:T(8,128)(2,1)}', space=vmem, size = 0x8000, scoped, tag = 'scratch operand']
  #allocation6 [shape = 'bf16[8,1024]{1,0:T(8,128)(2,1)}', space=vmem, size = 0x4000, scoped, tag = 'scratch operand']
  #allocation7 [shape = 'bf16[2,1024]{1,0:T(2,128)(2,1)}', space=vmem, size = 0x1000, scoped, tag = 'scratch operand']
  %s0 = inlined_call_operand.vmem [shape: bf16[128,128], index: 0, kind: input, shape index: {}]
  %s1 = inlined_call_operand.vmem [shape: bf16[128,32], index: 1, kind: input, shape index: {}]
  %s2 = inlined_call_operand.vmem [shape: bf16[512,64], index: 2, kind: input, shape index: {}]
  %s3 = inlined_call_operand.vmem [shape: bf16[1024,64], index: 3, kind: input, shape index: {}]
  %s4 = inlined_call_operand.vmem [shape: bf16[1024,128], index: 4, kind: input, shape index: {}]
  %s5 = inlined_call_operand.vmem [shape: f32[1,64], index: 5, kind: input, shape index: {}]
  %s6 = inlined_call_operand.vmem [shape: f32[1,64], index: 6, kind: input, shape index: {}]
  %s7 = inlined_call_operand.vmem [shape: f32[1,64], index: 7, kind: input, shape index: {}]
  %s8 = inlined_call_operand.vmem [shape: f32[1,64], index: 8, kind: input, shape index: {}]
  %s9 = inlined_call_operand.vmem [shape: f32[2,128], index: 9, kind: output, shape index: {}]
  %s10 = sld [smem:[#allocation0]]
  $region46: #{discriminator_forward.1} parent=0
    _
  %s12 = ssub.s32 1, %s10
  %s13 = scalar_select 0, %s12, %s10
  // Predicated region
  $region2: #{discriminator_forward.1} parent=0 // pred_check
    _
  $region3: #{discriminator_forward.1} parent=0 // pred_check_branch
    %15 = sbr.rel (0) target = $region5
  $region4: #{discriminator_forward.1} parent=0 // pred_region
    _
  $region5: #{discriminator_forward.1} parent=0 // pred_fallthru
    _
  // Predicated region
  $region6: #{discriminator_forward.1} parent=0 // pred_check
    _
  $region7: #{discriminator_forward.1} parent=0 // pred_check_branch
    %17 = sbr.rel (0) target = $region9
  $region8: #{discriminator_forward.1} parent=0 // pred_region
    _
  $region9: #{discriminator_forward.1} parent=0 // pred_fallthru
    _
  // Predicated region
  $region10: #{discriminator_forward.1} parent=0 // pred_check
    _
  $region11: #{discriminator_forward.1} parent=0 // pred_check_branch
    %19 = sbr.rel (0) target = $region13
  $region12: #{discriminator_forward.1} parent=0 // pred_region
    _
  $region13: #{discriminator_forward.1} parent=0 // pred_fallthru
    _
  // Predicated region
  $region14: #{discriminator_forward.1} parent=0 // pred_check
    _
  $region15: #{discriminator_forward.1} parent=0 // pred_check_branch
    %21 = sbr.rel (0) target = $region17
  $region16: #{discriminator_forward.1} parent=0 // pred_region
    _
  $region17: #{discriminator_forward.1} parent=0 // pred_fallthru
    _
  // Predicated region
  $region18: #{discriminator_forward.1} parent=0 // pred_check
    _
  $region19: #{discriminator_forward.1} parent=0 // pred_check_branch
    %23 = sbr.rel (0) target = $region21
  $region20: #{discriminator_forward.1} parent=0 // pred_region
    _
  $region21: #{discriminator_forward.1} parent=0 // pred_fallthru
    _
  // Predicated region
  $region22: #{discriminator_forward.1} parent=0 // pred_check
    _
  $region23: #{discriminator_forward.1} parent=0 // pred_check_branch
    %25 = sbr.rel (0) target = $region25
  $region24: #{discriminator_forward.1} parent=0 // pred_region
    _
  $region25: #{discriminator_forward.1} parent=0 // pred_fallthru
    _
  // Predicated region
  $region26: #{discriminator_forward.1} parent=0 // pred_check
    _
  $region27: #{discriminator_forward.1} parent=0 // pred_check_branch
    %27 = sbr.rel (0) target = $region29
  $region28: #{discriminator_forward.1} parent=0 // pred_region
    _
  $region29: #{discriminator_forward.1} parent=0 // pred_fallthru
    _
  // Predicated region
  $region30: #{discriminator_forward.1} parent=0 // pred_check
    _
  $region31: #{discriminator_forward.1} parent=0 // pred_check_branch
    %29 = sbr.rel (0) target = $region33
  $region32: #{discriminator_forward.1} parent=0 // pred_region
    _
  $region33: #{discriminator_forward.1} parent=0 // pred_fallthru
    _
  // Predicated region
  $region34: #{discriminator_forward.1} parent=0 // pred_check
    _
  $region35: #{discriminator_forward.1} parent=0 // pred_check_branch
    %31 = sbr.rel (0) target = $region37
  $region36: #{discriminator_forward.1} parent=0 // pred_region
    _
  $region37: #{discriminator_forward.1} parent=0 // pred_fallthru
    _
  %vm33 = vcmask 257024
  %34 = vst.msk [vmem:[#allocation2] sm:$0xf] %vm33, 0
  %vm35 = vcmask 253952
  %36 = vst.msk [vmem:[#allocation2 + $0x4] sm:$0x1] %vm35, 0
  %37 = vst.msk [vmem:[#allocation2 + $0x8] sm:$0xf] %vm33, 0
  %38 = vst.msk [vmem:[#allocation2 + $0xc] sm:$0x1] %vm35, 0
  %s39 = scalar_lea.vmem [#allocation2], 144
  %40 = vst.msk [vmem:[%s39] sm:$0xf] %vm33, 0
  %41 = vst.msk [vmem:[%s39 + $0x4] sm:$0x1] %vm35, 0
  %42 = vst.msk [vmem:[%s39 + $0x8] sm:$0xf] %vm33, 0
  %43 = vst.msk [vmem:[%s39 + $0xc] sm:$0x1] %vm35, 0
  %vm44 = vcmask 253952
  %vm45 = vsmask.f32 256
  %vm46 = vmand %vm44, %vm45
  %v47 = vld [vmem:[#allocation2] sm:$0x1]
  %v48 = vsel %vm46, 0, %v47
  %49 = vst [vmem:[#allocation2] sm:$0x1] %v48
  %v50 = vld [vmem:[#allocation2 + $0x8] sm:$0x1]
  %v51 = vsel %vm46, 0, %v50
  %52 = vst [vmem:[#allocation2 + $0x8] sm:$0x1] %v51
  %v53 = vld [vmem:[#allocation2 + $0x10] sm:$0x1]
  %v54 = vsel %vm46, 0, %v53
  %55 = vst [vmem:[#allocation2 + $0x10] sm:$0x1] %v54
  %v56 = vld [vmem:[#allocation2 + $0x18] sm:$0x1]
  %v57 = vsel %vm46, 0, %v56
  %58 = vst [vmem:[#allocation2 + $0x18] sm:$0x1] %v57
  %v59 = vld [vmem:[#allocation2 + $0x20] sm:$0x1]
  %v60 = vsel %vm46, 0, %v59
  %61 = vst [vmem:[#allocation2 + $0x20] sm:$0x1] %v60
  %v62 = vld [vmem:[#allocation2 + $0x28] sm:$0x1]
  %v63 = vsel %vm46, 0, %v62
  %64 = vst [vmem:[#allocation2 + $0x28] sm:$0x1] %v63
  %v65 = vld [vmem:[#allocation2 + $0x30] sm:$0x1]
  %v66 = vsel %vm46, 0, %v65
  %67 = vst [vmem:[#allocation2 + $0x30] sm:$0x1] %v66
  %v68 = vld [vmem:[#allocation2 + $0x38] sm:$0x1]
  %v69 = vsel %vm46, 0, %v68
  %70 = vst [vmem:[#allocation2 + $0x38] sm:$0x1] %v69
  %v71 = vld [vmem:[#allocation2 + $0x40] sm:$0x1]
  %v72 = vsel %vm46, 0, %v71
  %73 = vst [vmem:[#allocation2 + $0x40] sm:$0x1] %v72
  %v74 = vld [vmem:[#allocation2 + $0x48] sm:$0x1]
  %v75 = vsel %vm46, 0, %v74
  %76 = vst [vmem:[#allocation2 + $0x48] sm:$0x1] %v75
  %v77 = vld [vmem:[#allocation2 + $0x50] sm:$0x1]
  %v78 = vsel %vm46, 0, %v77
  %79 = vst [vmem:[#allocation2 + $0x50] sm:$0x1] %v78
  %v80 = vld [vmem:[#allocation2 + $0x58] sm:$0x1]
  %v81 = vsel %vm46, 0, %v80
  %82 = vst [vmem:[#allocation2 + $0x58] sm:$0x1] %v81
  %v83 = vld [vmem:[#allocation2 + $0x60] sm:$0x1]
  %v84 = vsel %vm46, 0, %v83
  %85 = vst [vmem:[#allocation2 + $0x60] sm:$0x1] %v84
  %v86 = vld [vmem:[#allocation2 + $0x68] sm:$0x1]
  %v87 = vsel %vm46, 0, %v86
  %88 = vst [vmem:[#allocation2 + $0x68] sm:$0x1] %v87
  %v89 = vld [vmem:[#allocation2 + $0x70] sm:$0x1]
  %v90 = vsel %vm46, 0, %v89
  %91 = vst [vmem:[#allocation2 + $0x70] sm:$0x1] %v90
  %v92 = vld [vmem:[#allocation2 + $0x78] sm:$0x1]
  %v93 = vsel %vm46, 0, %v92
  %94 = vst [vmem:[#allocation2 + $0x78] sm:$0x1] %v93
  %v95 = vld [vmem:[#allocation2 + $0x80] sm:$0x1]
  %v96 = vsel %vm46, 0, %v95
  %97 = vst [vmem:[#allocation2 + $0x80] sm:$0x1] %v96
  %v98 = vld [vmem:[#allocation2 + $0x88] sm:$0x1]
  %v99 = vsel %vm46, 0, %v98
  %100 = vst [vmem:[#allocation2 + $0x88] sm:$0x1] %v99
  %v101 = vld [vmem:[#allocation2 + $0x90] sm:$0x1]
  %v102 = vsel %vm46, 0, %v101
  %103 = vst [vmem:[#allocation2 + $0x90] sm:$0x1] %v102
  %v104 = vld [vmem:[#allocation2 + $0x98] sm:$0x1]
  %v105 = vsel %vm46, 0, %v104
  %106 = vst [vmem:[#allocation2 + $0x98] sm:$0x1] %v105
  %vm107 = vsmask.f32 7938
  %vm108 = vmand %vm44, %vm107
  %v109 = vld [vmem:[#allocation2 + $0x4] sm:$0x1]
  %v110 = vsel %vm108, 0, %v109
  %111 = vst [vmem:[#allocation2 + $0x4] sm:$0x1] %v110
  %v112 = vld [vmem:[#allocation2 + $0xc] sm:$0x1]
  %v113 = vsel %vm108, 0, %v112
  %114 = vst [vmem:[#allocation2 + $0xc] sm:$0x1] %v113
  %v115 = vld [vmem:[#allocation2 + $0x14] sm:$0x1]
  %v116 = vsel %vm108, 0, %v115
  %117 = vst [vmem:[#allocation2 + $0x14] sm:$0x1] %v116
  %v118 = vld [vmem:[#allocation2 + $0x1c] sm:$0x1]
  %v119 = vsel %vm108, 0, %v118
  %120 = vst [vmem:[#allocation2 + $0x1c] sm:$0x1] %v119
  %v121 = vld [vmem:[#allocation2 + $0x24] sm:$0x1]
  %v122 = vsel %vm108, 0, %v121
  %123 = vst [vmem:[#allocation2 + $0x24] sm:$0x1] %v122
  %v124 = vld [vmem:[#allocation2 + $0x2c] sm:$0x1]
  %v125 = vsel %vm108, 0, %v124
  %126 = vst [vmem:[#allocation2 + $0x2c] sm:$0x1] %v125
  %v127 = vld [vmem:[#allocation2 + $0x34] sm:$0x1]
  %v128 = vsel %vm108, 0, %v127
  %129 = vst [vmem:[#allocation2 + $0x34] sm:$0x1] %v128
  %v130 = vld [vmem:[#allocation2 + $0x3c] sm:$0x1]
  %v131 = vsel %vm108, 0, %v130
  %132 = vst [vmem:[#allocation2 + $0x3c] sm:$0x1] %v131
  %v133 = vld [vmem:[#allocation2 + $0x44] sm:$0x1]
  %v134 = vsel %vm108, 0, %v133
  %135 = vst [vmem:[#allocation2 + $0x44] sm:$0x1] %v134
  %v136 = vld [vmem:[#allocation2 + $0x4c] sm:$0x1]
  %v137 = vsel %vm108, 0, %v136
  %138 = vst [vmem:[#allocation2 + $0x4c] sm:$0x1] %v137
  %v139 = vld [vmem:[#allocation2 + $0x54] sm:$0x1]
  %v140 = vsel %vm108, 0, %v139
  %141 = vst [vmem:[#allocation2 + $0x54] sm:$0x1] %v140
  %v142 = vld [vmem:[#allocation2 + $0x5c] sm:$0x1]
  %v143 = vsel %vm108, 0, %v142
  %144 = vst [vmem:[#allocation2 + $0x5c] sm:$0x1] %v143
  %v145 = vld [vmem:[#allocation2 + $0x64] sm:$0x1]
  %v146 = vsel %vm108, 0, %v145
  %147 = vst [vmem:[#allocation2 + $0x64] sm:$0x1] %v146
  %v148 = vld [vmem:[#allocation2 + $0x6c] sm:$0x1]
  %v149 = vsel %vm108, 0, %v148
  %150 = vst [vmem:[#allocation2 + $0x6c] sm:$0x1] %v149
  %v151 = vld [vmem:[#allocation2 + $0x74] sm:$0x1]
  %v152 = vsel %vm108, 0, %v151
  %153 = vst [vmem:[#allocation2 + $0x74] sm:$0x1] %v152
  %v154 = vld [vmem:[#allocation2 + $0x7c] sm:$0x1]
  %v155 = vsel %vm108, 0, %v154
  %156 = vst [vmem:[#allocation2 + $0x7c] sm:$0x1] %v155
  %v157 = vld [vmem:[#allocation2 + $0x84] sm:$0x1]
  %v158 = vsel %vm108, 0, %v157
  %159 = vst [vmem:[#allocation2 + $0x84] sm:$0x1] %v158
  %v160 = vld [vmem:[#allocation2 + $0x8c] sm:$0x1]
  %v161 = vsel %vm108, 0, %v160
  %162 = vst [vmem:[#allocation2 + $0x8c] sm:$0x1] %v161
  %v163 = vld [vmem:[#allocation2 + $0x94] sm:$0x1]
  %v164 = vsel %vm108, 0, %v163
  %165 = vst [vmem:[#allocation2 + $0x94] sm:$0x1] %v164
  %v166 = vld [vmem:[#allocation2 + $0x9c] sm:$0x1]
  %v167 = vsel %vm108, 0, %v166
  %168 = vst [vmem:[#allocation2 + $0x9c] sm:$0x1] %v167
  %vm169 = vcmask 518144
  %170 = vst.msk [vmem:[#allocation3] sm:$0x7] %vm169, 0
  %171 = vst.msk [vmem:[#allocation3 + $0x4] sm:$0x7] %vm169, 0
  %s172 = scalar_lea.vmem [#allocation3], 40
  %173 = vst.msk [vmem:[%s172] sm:$0x7] %vm169, 0
  %174 = vst.msk [vmem:[%s172 + $0x4] sm:$0x7] %vm169, 0
  %vm175 = vcmask 516096
  %vm176 = vmand %vm175, %vm45
  %v177 = vld [vmem:[#allocation3] sm:$0x1]
  %v178 = vsel %vm176, 0, %v177
  %179 = vst [vmem:[#allocation3] sm:$0x1] %v178
  %v180 = vld [vmem:[#allocation3 + $0x4] sm:$0x1]
  %v181 = vsel %vm176, 0, %v180
  %182 = vst [vmem:[#allocation3 + $0x4] sm:$0x1] %v181
  %v183 = vld [vmem:[#allocation3 + $0x8] sm:$0x1]
  %v184 = vsel %vm176, 0, %v183
  %185 = vst [vmem:[#allocation3 + $0x8] sm:$0x1] %v184
  %v186 = vld [vmem:[#allocation3 + $0xc] sm:$0x1]
  %v187 = vsel %vm176, 0, %v186
  %188 = vst [vmem:[#allocation3 + $0xc] sm:$0x1] %v187
  %v189 = vld [vmem:[#allocation3 + $0x10] sm:$0x1]
  %v190 = vsel %vm176, 0, %v189
  %191 = vst [vmem:[#allocation3 + $0x10] sm:$0x1] %v190
  %v192 = vld [vmem:[#allocation3 + $0x14] sm:$0x1]
  %v193 = vsel %vm176, 0, %v192
  %194 = vst [vmem:[#allocation3 + $0x14] sm:$0x1] %v193
  %v195 = vld [vmem:[#allocation3 + $0x18] sm:$0x1]
  %v196 = vsel %vm176, 0, %v195
  %197 = vst [vmem:[#allocation3 + $0x18] sm:$0x1] %v196
  %v198 = vld [vmem:[#allocation3 + $0x1c] sm:$0x1]
  %v199 = vsel %vm176, 0, %v198
  %200 = vst [vmem:[#allocation3 + $0x1c] sm:$0x1] %v199
  %v201 = vld [vmem:[#allocation3 + $0x20] sm:$0x1]
  %v202 = vsel %vm176, 0, %v201
  %203 = vst [vmem:[#allocation3 + $0x20] sm:$0x1] %v202
  %v204 = vld [vmem:[#allocation3 + $0x24] sm:$0x1]
  %v205 = vsel %vm176, 0, %v204
  %206 = vst [vmem:[#allocation3 + $0x24] sm:$0x1] %v205
  %v207 = vld [vmem:[#allocation3 + $0x28] sm:$0x1]
  %v208 = vsel %vm176, 0, %v207
  %209 = vst [vmem:[#allocation3 + $0x28] sm:$0x1] %v208
  %v210 = vld [vmem:[#allocation3 + $0x2c] sm:$0x1]
  %v211 = vsel %vm176, 0, %v210
  %212 = vst [vmem:[#allocation3 + $0x2c] sm:$0x1] %v211
  %vm213 = vcmask 518146
  %vm214 = vsmask.f32 7946
  %vm215 = vmand %vm213, %vm214
  %v216 = vld [vmem:[#allocation3] sm:$0x4]
  %v217 = vsel %vm215, 0, %v216
  %218 = vst [vmem:[#allocation3] sm:$0x4] %v217
  %v219 = vld [vmem:[#allocation3 + $0x4] sm:$0x4]
  %v220 = vsel %vm215, 0, %v219
  %221 = vst [vmem:[#allocation3 + $0x4] sm:$0x4] %v220
  %v222 = vld [vmem:[#allocation3 + $0x8] sm:$0x4]
  %v223 = vsel %vm215, 0, %v222
  %224 = vst [vmem:[#allocation3 + $0x8] sm:$0x4] %v223
  %v225 = vld [vmem:[#allocation3 + $0xc] sm:$0x4]
  %v226 = vsel %vm215, 0, %v225
  %227 = vst [vmem:[#allocation3 + $0xc] sm:$0x4] %v226
  %v228 = vld [vmem:[#allocation3 + $0x10] sm:$0x4]
  %v229 = vsel %vm215, 0, %v228
  %230 = vst [vmem:[#allocation3 + $0x10] sm:$0x4] %v229
  %v231 = vld [vmem:[#allocation3 + $0x14] sm:$0x4]
  %v232 = vsel %vm215, 0, %v231
  %233 = vst [vmem:[#allocation3 + $0x14] sm:$0x4] %v232
  %v234 = vld [vmem:[#allocation3 + $0x18] sm:$0x4]
  %v235 = vsel %vm215, 0, %v234
  %236 = vst [vmem:[#allocation3 + $0x18] sm:$0x4] %v235
  %v237 = vld [vmem:[#allocation3 + $0x1c] sm:$0x4]
  %v238 = vsel %vm215, 0, %v237
  %239 = vst [vmem:[#allocation3 + $0x1c] sm:$0x4] %v238
  %v240 = vld [vmem:[#allocation3 + $0x20] sm:$0x4]
  %v241 = vsel %vm215, 0, %v240
  %242 = vst [vmem:[#allocation3 + $0x20] sm:$0x4] %v241
  %v243 = vld [vmem:[#allocation3 + $0x24] sm:$0x4]
  %v244 = vsel %vm215, 0, %v243
  %245 = vst [vmem:[#allocation3 + $0x24] sm:$0x4] %v244
  %v246 = vld [vmem:[#allocation3 + $0x28] sm:$0x4]
  %v247 = vsel %vm215, 0, %v246
  %248 = vst [vmem:[#allocation3 + $0x28] sm:$0x4] %v247
  %v249 = vld [vmem:[#allocation3 + $0x2c] sm:$0x4]
  %v250 = vsel %vm215, 0, %v249
  %251 = vst [vmem:[#allocation3 + $0x2c] sm:$0x4] %v250
  %vm252 = vcmask 517120
  %253 = vst.msk [vmem:[#allocation4] sm:$0x3] %vm252, 0
  %254 = vst.msk [vmem:[#allocation4 + $0x2] sm:$0x3] %vm252, 0
  %s255 = scalar_lea.vmem [#allocation4], 12
  %256 = vst.msk [vmem:[%s255] sm:$0x3] %vm252, 0
  %257 = vst.msk [vmem:[%s255 + $0x2] sm:$0x3] %vm252, 0
  %v258 = vld [vmem:[#allocation4] sm:$0x1]
  %v259 = vsel %vm176, 0, %v258
  %260 = vst [vmem:[#allocation4] sm:$0x1] %v259
  %v261 = vld [vmem:[#allocation4 + $0x2] sm:$0x1]
  %v262 = vsel %vm176, 0, %v261
  %263 = vst [vmem:[#allocation4 + $0x2] sm:$0x1] %v262
  %v264 = vld [vmem:[#allocation4 + $0x4] sm:$0x1]
  %v265 = vsel %vm176, 0, %v264
  %266 = vst [vmem:[#allocation4 + $0x4] sm:$0x1] %v265
  %v267 = vld [vmem:[#allocation4 + $0x6] sm:$0x1]
  %v268 = vsel %vm176, 0, %v267
  %269 = vst [vmem:[#allocation4 + $0x6] sm:$0x1] %v268
  %v270 = vld [vmem:[#allocation4 + $0x8] sm:$0x1]
  %v271 = vsel %vm176, 0, %v270
  %272 = vst [vmem:[#allocation4 + $0x8] sm:$0x1] %v271
  %v273 = vld [vmem:[#allocation4 + $0xa] sm:$0x1]
  %v274 = vsel %vm176, 0, %v273
  %275 = vst [vmem:[#allocation4 + $0xa] sm:$0x1] %v274
  %v276 = vld [vmem:[#allocation4 + $0xc] sm:$0x1]
  %v277 = vsel %vm176, 0, %v276
  %278 = vst [vmem:[#allocation4 + $0xc] sm:$0x1] %v277
  %v279 = vld [vmem:[#allocation4 + $0xe] sm:$0x1]
  %v280 = vsel %vm176, 0, %v279
  %281 = vst [vmem:[#allocation4 + $0xe] sm:$0x1] %v280
  %vm282 = vcmask 517121
  %vm283 = vsmask.f32 7942
  %vm284 = vmand %vm282, %vm283
  %v285 = vld [vmem:[#allocation4] sm:$0x2]
  %v286 = vsel %vm284, 0, %v285
  %287 = vst [vmem:[#allocation4] sm:$0x2] %v286
  %v288 = vld [vmem:[#allocation4 + $0x2] sm:$0x2]
  %v289 = vsel %vm284, 0, %v288
  %290 = vst [vmem:[#allocation4 + $0x2] sm:$0x2] %v289
  %v291 = vld [vmem:[#allocation4 + $0x4] sm:$0x2]
  %v292 = vsel %vm284, 0, %v291
  %293 = vst [vmem:[#allocation4 + $0x4] sm:$0x2] %v292
  %v294 = vld [vmem:[#allocation4 + $0x6] sm:$0x2]
  %v295 = vsel %vm284, 0, %v294
  %296 = vst [vmem:[#allocation4 + $0x6] sm:$0x2] %v295
  %v297 = vld [vmem:[#allocation4 + $0x8] sm:$0x2]
  %v298 = vsel %vm284, 0, %v297
  %299 = vst [vmem:[#allocation4 + $0x8] sm:$0x2] %v298
  %v300 = vld [vmem:[#allocation4 + $0xa] sm:$0x2]
  %v301 = vsel %vm284, 0, %v300
  %302 = vst [vmem:[#allocation4 + $0xa] sm:$0x2] %v301
  %v303 = vld [vmem:[#allocation4 + $0xc] sm:$0x2]
  %v304 = vsel %vm284, 0, %v303
  %305 = vst [vmem:[#allocation4 + $0xc] sm:$0x2] %v304
  %v306 = vld [vmem:[#allocation4 + $0xe] sm:$0x2]
  %v307 = vsel %vm284, 0, %v306
  %308 = vst [vmem:[#allocation4 + $0xe] sm:$0x2] %v307
  %v309 = vld [vmem:[%s0] sm:$0xf]
  %v310 = vld [vmem:[%s0 + $0x4] sm:$0xf]
  %v311 = vld [vmem:[%s0 + $0x8] sm:$0xf]
  %v312 = vld [vmem:[%s0 + $0xc] sm:$0xf]
  %v313 = vld [vmem:[%s0 + $0x10] sm:$0xf]
  %v314 = vld [vmem:[%s0 + $0x14] sm:$0xf]
  %v315 = vld [vmem:[%s0 + $0x18] sm:$0xf]
  %v316 = vld [vmem:[%s0 + $0x1c] sm:$0xf]
  %v317 = vld [vmem:[%s0 + $0x20] sm:$0xf]
  %v318 = vld [vmem:[%s0 + $0x24] sm:$0xf]
  %v319 = vld [vmem:[%s0 + $0x28] sm:$0xf]
  %v320 = vld [vmem:[%s0 + $0x2c] sm:$0xf]
  %v321 = vld [vmem:[%s0 + $0x30] sm:$0xf]
  %v322 = vld [vmem:[%s0 + $0x34] sm:$0xf]
  %v323 = vld [vmem:[%s0 + $0x38] sm:$0xf]
  %v324 = vld [vmem:[%s0 + $0x3c] sm:$0xf]
  %v325 = vld [vmem:[%s1] sm:$0xf]
  %v326 = vld [vmem:[%s1 + $0x4] sm:$0xf]
  %v327 = vld [vmem:[%s1 + $0x8] sm:$0xf]
  %v328 = vld [vmem:[%s1 + $0xc] sm:$0xf]
  %v329 = vld [vmem:[%s1 + $0x10] sm:$0xf]
  %v330 = vld [vmem:[%s1 + $0x14] sm:$0xf]
  %v331 = vld [vmem:[%s1 + $0x18] sm:$0xf]
  %v332 = vld [vmem:[%s1 + $0x1c] sm:$0xf]
  %v333 = vld [vmem:[%s1 + $0x20] sm:$0xf]
  %v334 = vld [vmem:[%s1 + $0x24] sm:$0xf]
  %v335 = vld [vmem:[%s1 + $0x28] sm:$0xf]
  %v336 = vld [vmem:[%s1 + $0x2c] sm:$0xf]
  %v337 = vld [vmem:[%s1 + $0x30] sm:$0xf]
  %v338 = vld [vmem:[%s1 + $0x34] sm:$0xf]
  %v339 = vld [vmem:[%s1 + $0x38] sm:$0xf]
  %v340 = vld [vmem:[%s1 + $0x3c] sm:$0xf]
  %v357 = vunpack.c.l.b16 %v309
  %v358 = vunpack.c.l.b16 %v310
  %v359 = vunpack.c.l.b16 %v311
  %v360 = vunpack.c.l.b16 %v312
  %v361 = vunpack.c.l.b16 %v313
  %v362 = vunpack.c.l.b16 %v314
  %v363 = vunpack.c.l.b16 %v315
  %v364 = vunpack.c.l.b16 %v316
  %v365 = vunpack.c.l.b16 %v317
  %v366 = vunpack.c.l.b16 %v318
  %v367 = vunpack.c.l.b16 %v319
  %v368 = vunpack.c.l.b16 %v320
  %v369 = vunpack.c.l.b16 %v321
  %v370 = vunpack.c.l.b16 %v322
  %v371 = vunpack.c.l.b16 %v323
  %v372 = vunpack.c.l.b16 %v324
  %v373 = vpack.c.b16 %v358, %v357
  %v374 = vpack.c.b16 %v360, %v359
  %v375 = vpack.c.b16 %v362, %v361
  %v376 = vpack.c.b16 %v364, %v363
  %v377 = vpack.c.b16 %v366, %v365
  %v378 = vpack.c.b16 %v368, %v367
  %v379 = vpack.c.b16 %v370, %v369
  %v380 = vpack.c.b16 %v372, %v371
  %v405 = vunpack.c.l.b16 %v325
  %v406 = vunpack.c.l.b16 %v326
  %v407 = vunpack.c.l.b16 %v327
  %v408 = vunpack.c.l.b16 %v328
  %v409 = vunpack.c.l.b16 %v329
  %v410 = vunpack.c.l.b16 %v330
  %v411 = vunpack.c.l.b16 %v331
  %v412 = vunpack.c.l.b16 %v332
  %v413 = vunpack.c.l.b16 %v333
  %v414 = vunpack.c.l.b16 %v334
  %v415 = vunpack.c.l.b16 %v335
  %v416 = vunpack.c.l.b16 %v336
  %v417 = vunpack.c.l.b16 %v337
  %v418 = vunpack.c.l.b16 %v338
  %v419 = vunpack.c.l.b16 %v339
  %v420 = vunpack.c.l.b16 %v340
  %v421 = vpack.c.b16 %v406, %v405
  %v422 = vpack.c.b16 %v408, %v407
  %v423 = vpack.c.b16 %v410, %v409
  %v424 = vpack.c.b16 %v412, %v411
  %v425 = vpack.c.b16 %v414, %v413
  %v426 = vpack.c.b16 %v416, %v415
  %v427 = vpack.c.b16 %v418, %v417
  %v428 = vpack.c.b16 %v420, %v419
  %437 = vmatpush.bf16.msra.mxu0 %v428
  %438 = vmatpush.bf16.msra.mxu0 %v427
  %439 = vmatpush.bf16.msra.mxu0 %v426
  %440 = vmatpush.bf16.msra.mxu0 %v425
  %441 = vmatpush.bf16.msra.mxu0 %v424
  %442 = vmatpush.bf16.msra.mxu0 %v423
  %443 = vmatpush.bf16.msra.mxu0 %v422
  %444 = vmatpush.bf16.msra.mxu0 %v421
  %445 = vmatmul.bf16.gmra.mxu0 %v373
  %v446 = vpop.f32.mrf.mxu0
  %v447 = vadd.f32 0.0, %v446
  %v448 = vpop.f32.mrf.mxu0
  %v449 = vadd.f32 0.0, %v448
  %450 = vmatmul.bf16.gmra.mxu0 %v374
  %v451 = vpop.f32.mrf.mxu0
  %v452 = vadd.f32 0.0, %v451
  %v453 = vpop.f32.mrf.mxu0
  %v454 = vadd.f32 0.0, %v453
  %455 = vmatmul.bf16.gmra.mxu0 %v375
  %v456 = vpop.f32.mrf.mxu0
  %v457 = vadd.f32 0.0, %v456
  %v458 = vpop.f32.mrf.mxu0
  %v459 = vadd.f32 0.0, %v458
  %460 = vmatmul.bf16.gmra.mxu0 %v376
  %v461 = vpop.f32.mrf.mxu0
  %v462 = vadd.f32 0.0, %v461
  %v463 = vpop.f32.mrf.mxu0
  %v464 = vadd.f32 0.0, %v463
  %465 = vmatmul.bf16.gmra.mxu0 %v377
  %v466 = vpop.f32.mrf.mxu0
  %v467 = vadd.f32 0.0, %v466
  %v468 = vpop.f32.mrf.mxu0
  %v469 = vadd.f32 0.0, %v468
  %470 = vmatmul.bf16.gmra.mxu0 %v378
  %v471 = vpop.f32.mrf.mxu0
  %v472 = vadd.f32 0.0, %v471
  %v473 = vpop.f32.mrf.mxu0
  %v474 = vadd.f32 0.0, %v473
  %475 = vmatmul.bf16.gmra.mxu0 %v379
  %v476 = vpop.f32.mrf.mxu0
  %v477 = vadd.f32 0.0, %v476
  %v478 = vpop.f32.mrf.mxu0
  %v479 = vadd.f32 0.0, %v478
  %480 = vmatmul.bf16.gmra.mxu0 %v380
  %v481 = vpop.f32.mrf.mxu0
  %v482 = vadd.f32 0.0, %v481
  %v483 = vpop.f32.mrf.mxu0
  %v484 = vadd.f32 0.0, %v483
  %485 = vdwg.mxu0
  %vm486 = vcmp.gt.f32.partialorder %v447, 0.0
  %vm487 = vcmp.gt.f32.partialorder %v449, 0.0
  %vm488 = vcmp.gt.f32.partialorder %v452, 0.0
  %vm489 = vcmp.gt.f32.partialorder %v454, 0.0
  %vm490 = vcmp.gt.f32.partialorder %v457, 0.0
  %vm491 = vcmp.gt.f32.partialorder %v459, 0.0
  %vm492 = vcmp.gt.f32.partialorder %v462, 0.0
  %vm493 = vcmp.gt.f32.partialorder %v464, 0.0
  %vm494 = vcmp.gt.f32.partialorder %v467, 0.0
  %vm495 = vcmp.gt.f32.partialorder %v469, 0.0
  %vm496 = vcmp.gt.f32.partialorder %v472, 0.0
  %vm497 = vcmp.gt.f32.partialorder %v474, 0.0
  %vm498 = vcmp.gt.f32.partialorder %v477, 0.0
  %vm499 = vcmp.gt.f32.partialorder %v479, 0.0
  %vm500 = vcmp.gt.f32.partialorder %v482, 0.0
  %vm501 = vcmp.gt.f32.partialorder %v484, 0.0
  %v502 = vmul.f32 %v447, 0.2
  %v503 = vmul.f32 %v449, 0.2
  %v504 = vmul.f32 %v452, 0.2
  %v505 = vmul.f32 %v454, 0.2
  %v506 = vmul.f32 %v457, 0.2
  %v507 = vmul.f32 %v459, 0.2
  %v508 = vmul.f32 %v462, 0.2
  %v509 = vmul.f32 %v464, 0.2
  %v510 = vmul.f32 %v467, 0.2
  %v511 = vmul.f32 %v469, 0.2
  %v512 = vmul.f32 %v472, 0.2
  %v513 = vmul.f32 %v474, 0.2
  %v514 = vmul.f32 %v477, 0.2
  %v515 = vmul.f32 %v479, 0.2
  %v516 = vmul.f32 %v482, 0.2
  %v517 = vmul.f32 %v484, 0.2
  %v518 = vsel %vm486, %v447, %v502
  %v519 = vsel %vm487, %v449, %v503
  %v520 = vsel %vm488, %v452, %v504
  %v521 = vsel %vm489, %v454, %v505
  %v522 = vsel %vm490, %v457, %v506
  %v523 = vsel %vm491, %v459, %v507
  %v524 = vsel %vm492, %v462, %v508
  %v525 = vsel %vm493, %v464, %v509
  %v526 = vsel %vm494, %v467, %v510
  %v527 = vsel %vm495, %v469, %v511
  %v528 = vsel %vm496, %v472, %v512
  %v529 = vsel %vm497, %v474, %v513
  %v530 = vsel %vm498, %v477, %v514
  %v531 = vsel %vm499, %v479, %v515
  %v532 = vsel %vm500, %v482, %v516
  %v533 = vsel %vm501, %v484, %v517
  %v534 = vpack.c.bf16 %v518, %v518
  %v535 = vpack.c.bf16 %v519, %v519
  %v536 = vpack.c.bf16 %v520, %v520
  %v537 = vpack.c.bf16 %v521, %v521
  %v538 = vpack.c.bf16 %v522, %v522
  %v539 = vpack.c.bf16 %v523, %v523
  %v540 = vpack.c.bf16 %v524, %v524
  %v541 = vpack.c.bf16 %v525, %v525
  %v542 = vpack.c.bf16 %v526, %v526
  %v543 = vpack.c.bf16 %v527, %v527
  %v544 = vpack.c.bf16 %v528, %v528
  %v545 = vpack.c.bf16 %v529, %v529
  %v546 = vpack.c.bf16 %v530, %v530
  %v547 = vpack.c.bf16 %v531, %v531
  %v548 = vpack.c.bf16 %v532, %v532
  %v549 = vpack.c.bf16 %v533, %v533
  %v566 = vrot.slane %v534, 2
  %v567 = vrot.slane %v535, 2
  %v568 = vrot.slane %v536, 2
  %v569 = vrot.slane %v537, 2
  %v570 = vrot.slane %v538, 2
  %v571 = vrot.slane %v539, 2
  %v572 = vrot.slane %v540, 2
  %v573 = vrot.slane %v541, 2
  %v574 = vrot.slane %v542, 2
  %v575 = vrot.slane %v543, 2
  %v576 = vrot.slane %v544, 2
  %v577 = vrot.slane %v545, 2
  %v578 = vrot.slane %v546, 2
  %v579 = vrot.slane %v547, 2
  %v580 = vrot.slane %v548, 2
  %v581 = vrot.slane %v549, 2
  %vm582 = vcmask 1041408
  %v585 = vsel %vm582, %v534, %v566
  %vm586 = vcmask 1043458
  %v587 = vsel %vm586, %v534, %v566
  %v589 = vrot.slane %v587, 2
  %v592 = vsel %vm582, %v535, %v567
  %v593 = vsel %vm586, %v535, %v567
  %v595 = vrot.slane %v593, 2
  %v598 = vsel %vm582, %v536, %v568
  %v599 = vsel %vm586, %v536, %v568
  %v601 = vrot.slane %v599, 2
  %v604 = vsel %vm582, %v537, %v569
  %v605 = vsel %vm586, %v537, %v569
  %v607 = vrot.slane %v605, 2
  %v610 = vsel %vm582, %v538, %v570
  %v611 = vsel %vm586, %v538, %v570
  %v613 = vrot.slane %v611, 2
  %v616 = vsel %vm582, %v539, %v571
  %v617 = vsel %vm586, %v539, %v571
  %v619 = vrot.slane %v617, 2
  %v622 = vsel %vm582, %v540, %v572
  %v623 = vsel %vm586, %v540, %v572
  %v625 = vrot.slane %v623, 2
  %v628 = vsel %vm582, %v541, %v573
  %v629 = vsel %vm586, %v541, %v573
  %v631 = vrot.slane %v629, 2
  %v634 = vsel %vm582, %v542, %v574
  %v635 = vsel %vm586, %v542, %v574
  %v637 = vrot.slane %v635, 2
  %v640 = vsel %vm582, %v543, %v575
  %v641 = vsel %vm586, %v543, %v575
  %v643 = vrot.slane %v641, 2
  %v646 = vsel %vm582, %v544, %v576
  %v647 = vsel %vm586, %v544, %v576
  %v649 = vrot.slane %v647, 2
  %v652 = vsel %vm582, %v545, %v577
  %v653 = vsel %vm586, %v545, %v577
  %v655 = vrot.slane %v653, 2
  %v658 = vsel %vm582, %v546, %v578
  %v659 = vsel %vm586, %v546, %v578
  %v661 = vrot.slane %v659, 2
  %v664 = vsel %vm582, %v547, %v579
  %v665 = vsel %vm586, %v547, %v579
  %v667 = vrot.slane %v665, 2
  %v670 = vsel %vm582, %v548, %v580
  %v671 = vsel %vm586, %v548, %v580
  %v673 = vrot.slane %v671, 2
  %v676 = vsel %vm582, %v549, %v581
  %v677 = vsel %vm586, %v549, %v581
  %v679 = vrot.slane %v677, 2
  %680 = vst [vmem:[#allocation1] ss:$2 sm:$0xff] %v585
  %v681 = vld.sshfl [vmem:[#allocation1] sm:$0xff pattern:$0x75643120]
  %s682 = scalar_lea.vmem [#allocation1], 16
  %683 = vst [vmem:[%s682] ss:$2 sm:$0xff] %v592
  %v684 = vld.sshfl [vmem:[#allocation1 + $0x10] sm:$0xff pattern:$0x75643120]
  %s685 = scalar_lea.vmem [#allocation1], 32
  %686 = vst [vmem:[%s685] ss:$2 sm:$0xff] %v598
  %v687 = vld.sshfl [vmem:[#allocation1 + $0x20] sm:$0xff pattern:$0x75643120]
  %s688 = scalar_lea.vmem [#allocation1], 48
  %689 = vst [vmem:[%s688] ss:$2 sm:$0xff] %v604
  %v690 = vld.sshfl [vmem:[#allocation1 + $0x30] sm:$0xff pattern:$0x75643120]
  %691 = vst [vmem:[#allocation1] ss:$2 sm:$0xff] %v610
  %v692 = vld.sshfl [vmem:[#allocation1] sm:$0xff pattern:$0x75643120]
  %693 = vst [vmem:[%s682] ss:$2 sm:$0xff] %v616
  %v694 = vld.sshfl [vmem:[#allocation1 + $0x10] sm:$0xff pattern:$0x75643120]
  %695 = vst [vmem:[%s685] ss:$2 sm:$0xff] %v622
  %v696 = vld.sshfl [vmem:[#allocation1 + $0x20] sm:$0xff pattern:$0x75643120]
  %697 = vst [vmem:[%s688] ss:$2 sm:$0xff] %v628
  %v698 = vld.sshfl [vmem:[#allocation1 + $0x30] sm:$0xff pattern:$0x75643120]
  %699 = vst [vmem:[#allocation1] ss:$2 sm:$0xff] %v634
  %v700 = vld.sshfl [vmem:[#allocation1] sm:$0xff pattern:$0x75643120]
  %701 = vst [vmem:[%s682] ss:$2 sm:$0xff] %v640
  %v702 = vld.sshfl [vmem:[#allocation1 + $0x10] sm:$0xff pattern:$0x75643120]
  %703 = vst [vmem:[%s685] ss:$2 sm:$0xff] %v646
  %v704 = vld.sshfl [vmem:[#allocation1 + $0x20] sm:$0xff pattern:$0x75643120]
  %705 = vst [vmem:[%s688] ss:$2 sm:$0xff] %v652
  %v706 = vld.sshfl [vmem:[#allocation1 + $0x30] sm:$0xff pattern:$0x75643120]
  %707 = vst [vmem:[#allocation1] ss:$2 sm:$0xff] %v658
  %v708 = vld.sshfl [vmem:[#allocation1] sm:$0xff pattern:$0x75643120]
  %709 = vst [vmem:[%s682] ss:$2 sm:$0xff] %v664
  %v710 = vld.sshfl [vmem:[#allocation1 + $0x10] sm:$0xff pattern:$0x75643120]
  %711 = vst [vmem:[%s685] ss:$2 sm:$0xff] %v670
  %v712 = vld.sshfl [vmem:[#allocation1 + $0x20] sm:$0xff pattern:$0x75643120]
  %713 = vst [vmem:[%s688] ss:$2 sm:$0xff] %v676
  %v714 = vld.sshfl [vmem:[#allocation1 + $0x30] sm:$0xff pattern:$0x75643120]
  %v715 = vshrl.u32 %v681, 16
  %v717 = vrot.slane %v715, 5
  %v718 = vshll.u32 %v681, 16
  %v720 = vrot.slane %v718, 6
  %v721 = vor.u32 %v717, %v720
  %v722 = vrot.slane %v717, 4
  %v723 = vshrl.u32 %v684, 16
  %v725 = vrot.slane %v723, 5
  %v726 = vshll.u32 %v684, 16
  %v728 = vrot.slane %v726, 6
  %v729 = vor.u32 %v725, %v728
  %v730 = vrot.slane %v725, 4
  %v731 = vshrl.u32 %v687, 16
  %v733 = vrot.slane %v731, 5
  %v734 = vshll.u32 %v687, 16
  %v736 = vrot.slane %v734, 6
  %v737 = vor.u32 %v733, %v736
  %v738 = vrot.slane %v733, 4
  %v739 = vshrl.u32 %v690, 16
  %v741 = vrot.slane %v739, 5
  %v742 = vshll.u32 %v690, 16
  %v744 = vrot.slane %v742, 6
  %v745 = vor.u32 %v741, %v744
  %v746 = vrot.slane %v741, 4
  %v747 = vshrl.u32 %v692, 16
  %v749 = vrot.slane %v747, 5
  %v750 = vshll.u32 %v692, 16
  %v752 = vrot.slane %v750, 6
  %v753 = vor.u32 %v749, %v752
  %v754 = vrot.slane %v749, 4
  %v755 = vshrl.u32 %v694, 16
  %v757 = vrot.slane %v755, 5
  %v758 = vshll.u32 %v694, 16
  %v760 = vrot.slane %v758, 6
  %v761 = vor.u32 %v757, %v760
  %v762 = vrot.slane %v757, 4
  %v763 = vshrl.u32 %v696, 16
  %v765 = vrot.slane %v763, 5
  %v766 = vshll.u32 %v696, 16
  %v768 = vrot.slane %v766, 6
  %v769 = vor.u32 %v765, %v768
  %v770 = vrot.slane %v765, 4
  %v771 = vshrl.u32 %v698, 16
  %v773 = vrot.slane %v771, 5
  %v774 = vshll.u32 %v698, 16
  %v776 = vrot.slane %v774, 6
  %v777 = vor.u32 %v773, %v776
  %v778 = vrot.slane %v773, 4
  %v779 = vshrl.u32 %v700, 16
  %v781 = vrot.slane %v779, 5
  %v782 = vshll.u32 %v700, 16
  %v784 = vrot.slane %v782, 6
  %v785 = vor.u32 %v781, %v784
  %v786 = vrot.slane %v781, 4
  %v787 = vshrl.u32 %v702, 16
  %v789 = vrot.slane %v787, 5
  %v790 = vshll.u32 %v702, 16
  %v792 = vrot.slane %v790, 6
  %v793 = vor.u32 %v789, %v792
  %v794 = vrot.slane %v789, 4
  %v795 = vshrl.u32 %v704, 16
  %v797 = vrot.slane %v795, 5
  %v798 = vshll.u32 %v704, 16
  %v800 = vrot.slane %v798, 6
  %v801 = vor.u32 %v797, %v800
  %v802 = vrot.slane %v797, 4
  %v803 = vshrl.u32 %v706, 16
  %v805 = vrot.slane %v803, 5
  %v806 = vshll.u32 %v706, 16
  %v808 = vrot.slane %v806, 6
  %v809 = vor.u32 %v805, %v808
  %v810 = vrot.slane %v805, 4
  %v811 = vshrl.u32 %v708, 16
  %v813 = vrot.slane %v811, 5
  %v814 = vshll.u32 %v708, 16
  %v816 = vrot.slane %v814, 6
  %v817 = vor.u32 %v813, %v816
  %v818 = vrot.slane %v813, 4
  %v819 = vshrl.u32 %v710, 16
  %v821 = vrot.slane %v819, 5
  %v822 = vshll.u32 %v710, 16
  %v824 = vrot.slane %v822, 6
  %v825 = vor.u32 %v821, %v824
  %v826 = vrot.slane %v821, 4
  %v827 = vshrl.u32 %v712, 16
  %v829 = vrot.slane %v827, 5
  %v830 = vshll.u32 %v712, 16
  %v832 = vrot.slane %v830, 6
  %v833 = vor.u32 %v829, %v832
  %v834 = vrot.slane %v829, 4
  %v835 = vshrl.u32 %v714, 16
  %v837 = vrot.slane %v835, 5
  %v838 = vshll.u32 %v714, 16
  %v840 = vrot.slane %v838, 6
  %v841 = vor.u32 %v837, %v840
  %v842 = vrot.slane %v837, 4
  %s875 = scalar_lea.vmem [#allocation2], 16
  %vm876 = vcmask 257026
  %vm877 = vmand %vm876, %vm214
  %v878 = vld [vmem:[%s875] sm:$0xc]
  %v879 = vsel %vm877, %v721, %v878
  %880 = vst [vmem:[%s875] sm:$0xc] %v879
  %v881 = vld [vmem:[%s875 + $0x4] sm:$0x1]
  %v882 = vsel %vm46, %v722, %v881
  %883 = vst [vmem:[%s875 + $0x4] sm:$0x1] %v882
  %v884 = vld [vmem:[%s875 + $0x8] sm:$0xc]
  %v885 = vsel %vm877, %v729, %v884
  %886 = vst [vmem:[%s875 + $0x8] sm:$0xc] %v885
  %v887 = vld [vmem:[%s875 + $0xc] sm:$0x1]
  %v888 = vsel %vm46, %v730, %v887
  %889 = vst [vmem:[%s875 + $0xc] sm:$0x1] %v888
  %v890 = vld [vmem:[%s875 + $0x10] sm:$0xc]
  %v891 = vsel %vm877, %v737, %v890
  %892 = vst [vmem:[%s875 + $0x10] sm:$0xc] %v891
  %v893 = vld [vmem:[%s875 + $0x14] sm:$0x1]
  %v894 = vsel %vm46, %v738, %v893
  %895 = vst [vmem:[%s875 + $0x14] sm:$0x1] %v894
  %v896 = vld [vmem:[%s875 + $0x18] sm:$0xc]
  %v897 = vsel %vm877, %v745, %v896
  %898 = vst [vmem:[%s875 + $0x18] sm:$0xc] %v897
  %v899 = vld [vmem:[%s875 + $0x1c] sm:$0x1]
  %v900 = vsel %vm46, %v746, %v899
  %901 = vst [vmem:[%s875 + $0x1c] sm:$0x1] %v900
  %v902 = vld [vmem:[%s875 + $0x20] sm:$0xc]
  %v903 = vsel %vm877, %v753, %v902
  %904 = vst [vmem:[%s875 + $0x20] sm:$0xc] %v903
  %v905 = vld [vmem:[%s875 + $0x24] sm:$0x1]
  %v906 = vsel %vm46, %v754, %v905
  %907 = vst [vmem:[%s875 + $0x24] sm:$0x1] %v906
  %v908 = vld [vmem:[%s875 + $0x28] sm:$0xc]
  %v909 = vsel %vm877, %v761, %v908
  %910 = vst [vmem:[%s875 + $0x28] sm:$0xc] %v909
  %v911 = vld [vmem:[%s875 + $0x2c] sm:$0x1]
  %v912 = vsel %vm46, %v762, %v911
  %913 = vst [vmem:[%s875 + $0x2c] sm:$0x1] %v912
  %v914 = vld [vmem:[%s875 + $0x30] sm:$0xc]
  %v915 = vsel %vm877, %v769, %v914
  %916 = vst [vmem:[%s875 + $0x30] sm:$0xc] %v915
  %v917 = vld [vmem:[%s875 + $0x34] sm:$0x1]
  %v918 = vsel %vm46, %v770, %v917
  %919 = vst [vmem:[%s875 + $0x34] sm:$0x1] %v918
  %v920 = vld [vmem:[%s875 + $0x38] sm:$0xc]
  %v921 = vsel %vm877, %v777, %v920
  %922 = vst [vmem:[%s875 + $0x38] sm:$0xc] %v921
  %v923 = vld [vmem:[%s875 + $0x3c] sm:$0x1]
  %v924 = vsel %vm46, %v778, %v923
  %925 = vst [vmem:[%s875 + $0x3c] sm:$0x1] %v924
  %v926 = vld [vmem:[%s875 + $0x40] sm:$0xc]
  %v927 = vsel %vm877, %v785, %v926
  %928 = vst [vmem:[%s875 + $0x40] sm:$0xc] %v927
  %v929 = vld [vmem:[%s875 + $0x44] sm:$0x1]
  %v930 = vsel %vm46, %v786, %v929
  %931 = vst [vmem:[%s875 + $0x44] sm:$0x1] %v930
  %v932 = vld [vmem:[%s875 + $0x48] sm:$0xc]
  %v933 = vsel %vm877, %v793, %v932
  %934 = vst [vmem:[%s875 + $0x48] sm:$0xc] %v933
  %v935 = vld [vmem:[%s875 + $0x4c] sm:$0x1]
  %v936 = vsel %vm46, %v794, %v935
  %937 = vst [vmem:[%s875 + $0x4c] sm:$0x1] %v936
  %v938 = vld [vmem:[%s875 + $0x50] sm:$0xc]
  %v939 = vsel %vm877, %v801, %v938
  %940 = vst [vmem:[%s875 + $0x50] sm:$0xc] %v939
  %v941 = vld [vmem:[%s875 + $0x54] sm:$0x1]
  %v942 = vsel %vm46, %v802, %v941
  %943 = vst [vmem:[%s875 + $0x54] sm:$0x1] %v942
  %v944 = vld [vmem:[%s875 + $0x58] sm:$0xc]
  %v945 = vsel %vm877, %v809, %v944
  %946 = vst [vmem:[%s875 + $0x58] sm:$0xc] %v945
  %v947 = vld [vmem:[%s875 + $0x5c] sm:$0x1]
  %v948 = vsel %vm46, %v810, %v947
  %949 = vst [vmem:[%s875 + $0x5c] sm:$0x1] %v948
  %v950 = vld [vmem:[%s875 + $0x60] sm:$0xc]
  %v951 = vsel %vm877, %v817, %v950
  %952 = vst [vmem:[%s875 + $0x60] sm:$0xc] %v951
  %v953 = vld [vmem:[%s875 + $0x64] sm:$0x1]
  %v954 = vsel %vm46, %v818, %v953
  %955 = vst [vmem:[%s875 + $0x64] sm:$0x1] %v954
  %v956 = vld [vmem:[%s875 + $0x68] sm:$0xc]
  %v957 = vsel %vm877, %v825, %v956
  %958 = vst [vmem:[%s875 + $0x68] sm:$0xc] %v957
  %v959 = vld [vmem:[%s875 + $0x6c] sm:$0x1]
  %v960 = vsel %vm46, %v826, %v959
  %961 = vst [vmem:[%s875 + $0x6c] sm:$0x1] %v960
  %v962 = vld [vmem:[%s875 + $0x70] sm:$0xc]
  %v963 = vsel %vm877, %v833, %v962
  %964 = vst [vmem:[%s875 + $0x70] sm:$0xc] %v963
  %v965 = vld [vmem:[%s875 + $0x74] sm:$0x1]
  %v966 = vsel %vm46, %v834, %v965
  %967 = vst [vmem:[%s875 + $0x74] sm:$0x1] %v966
  %v968 = vld [vmem:[%s875 + $0x78] sm:$0xc]
  %v969 = vsel %vm877, %v841, %v968
  %970 = vst [vmem:[%s875 + $0x78] sm:$0xc] %v969
  %v971 = vld [vmem:[%s875 + $0x7c] sm:$0x1]
  %v972 = vsel %vm46, %v842, %v971
  %973 = vst [vmem:[%s875 + $0x7c] sm:$0x1] %v972
  %975 = vst [vmem:[#allocation1] ss:$2 sm:$0xff] %v589
  %v976 = vld.sshfl [vmem:[#allocation1] sm:$0xff pattern:$0x75643120]
  %s978 = scalar_lea.vmem [#allocation1], 16
  %979 = vst [vmem:[%s978] ss:$2 sm:$0xff] %v595
  %v980 = vld.sshfl [vmem:[#allocation1 + $0x10] sm:$0xff pattern:$0x75643120]
  %s982 = scalar_lea.vmem [#allocation1], 32
  %983 = vst [vmem:[%s982] ss:$2 sm:$0xff] %v601
  %v984 = vld.sshfl [vmem:[#allocation1 + $0x20] sm:$0xff pattern:$0x75643120]
  %s986 = scalar_lea.vmem [#allocation1], 48
  %987 = vst [vmem:[%s986] ss:$2 sm:$0xff] %v607
  %v988 = vld.sshfl [vmem:[#allocation1 + $0x30] sm:$0xff pattern:$0x75643120]
  %990 = vst [vmem:[#allocation1] ss:$2 sm:$0xff] %v613
  %v991 = vld.sshfl [vmem:[#allocation1] sm:$0xff pattern:$0x75643120]
  %993 = vst [vmem:[%s978] ss:$2 sm:$0xff] %v619
  %v994 = vld.sshfl [vmem:[#allocation1 + $0x10] sm:$0xff pattern:$0x75643120]
  %996 = vst [vmem:[%s982] ss:$2 sm:$0xff] %v625
  %v997 = vld.sshfl [vmem:[#allocation1 + $0x20] sm:$0xff pattern:$0x75643120]
  %999 = vst [vmem:[%s986] ss:$2 sm:$0xff] %v631
  %v1000 = vld.sshfl [vmem:[#allocation1 + $0x30] sm:$0xff pattern:$0x75643120]
  %1002 = vst [vmem:[#allocation1] ss:$2 sm:$0xff] %v637
  %v1003 = vld.sshfl [vmem:[#allocation1] sm:$0xff pattern:$0x75643120]
  %1005 = vst [vmem:[%s978] ss:$2 sm:$0xff] %v643
  %v1006 = vld.sshfl [vmem:[#allocation1 + $0x10] sm:$0xff pattern:$0x75643120]
  %1008 = vst [vmem:[%s982] ss:$2 sm:$0xff] %v649
  %v1009 = vld.sshfl [vmem:[#allocation1 + $0x20] sm:$0xff pattern:$0x75643120]
  %1011 = vst [vmem:[%s986] ss:$2 sm:$0xff] %v655
  %v1012 = vld.sshfl [vmem:[#allocation1 + $0x30] sm:$0xff pattern:$0x75643120]
  %1014 = vst [vmem:[#allocation1] ss:$2 sm:$0xff] %v661
  %v1015 = vld.sshfl [vmem:[#allocation1] sm:$0xff pattern:$0x75643120]
  %1017 = vst [vmem:[%s978] ss:$2 sm:$0xff] %v667
  %v1018 = vld.sshfl [vmem:[#allocation1 + $0x10] sm:$0xff pattern:$0x75643120]
  %1020 = vst [vmem:[%s982] ss:$2 sm:$0xff] %v673
  %v1021 = vld.sshfl [vmem:[#allocation1 + $0x20] sm:$0xff pattern:$0x75643120]
  %1023 = vst [vmem:[%s986] ss:$2 sm:$0xff] %v679
  %v1024 = vld.sshfl [vmem:[#allocation1 + $0x30] sm:$0xff pattern:$0x75643120]
  %v1025 = vshrl.u32 %v976, 16
  %v1027 = vrot.slane %v1025, 7
  %v1028 = vshll.u32 %v976, 16
  %v1030 = vor.u32 %v1027, %v1028
  %v1031 = vshrl.u32 %v980, 16
  %v1033 = vrot.slane %v1031, 7
  %v1034 = vshll.u32 %v980, 16
  %v1036 = vor.u32 %v1033, %v1034
  %v1037 = vshrl.u32 %v984, 16
  %v1039 = vrot.slane %v1037, 7
  %v1040 = vshll.u32 %v984, 16
  %v1042 = vor.u32 %v1039, %v1040
  %v1043 = vshrl.u32 %v988, 16
  %v1045 = vrot.slane %v1043, 7
  %v1046 = vshll.u32 %v988, 16
  %v1048 = vor.u32 %v1045, %v1046
  %v1049 = vshrl.u32 %v991, 16
  %v1051 = vrot.slane %v1049, 7
  %v1052 = vshll.u32 %v991, 16
  %v1054 = vor.u32 %v1051, %v1052
  %v1055 = vshrl.u32 %v994, 16
  %v1057 = vrot.slane %v1055, 7
  %v1058 = vshll.u32 %v994, 16
  %v1060 = vor.u32 %v1057, %v1058
  %v1061 = vshrl.u32 %v997, 16
  %v1063 = vrot.slane %v1061, 7
  %v1064 = vshll.u32 %v997, 16
  %v1066 = vor.u32 %v1063, %v1064
  %v1067 = vshrl.u32 %v1000, 16
  %v1069 = vrot.slane %v1067, 7
  %v1070 = vshll.u32 %v1000, 16
  %v1072 = vor.u32 %v1069, %v1070
  %v1073 = vshrl.u32 %v1003, 16
  %v1075 = vrot.slane %v1073, 7
  %v1076 = vshll.u32 %v1003, 16
  %v1078 = vor.u32 %v1075, %v1076
  %v1079 = vshrl.u32 %v1006, 16
  %v1081 = vrot.slane %v1079, 7
  %v1082 = vshll.u32 %v1006, 16
  %v1084 = vor.u32 %v1081, %v1082
  %v1085 = vshrl.u32 %v1009, 16
  %v1087 = vrot.slane %v1085, 7
  %v1088 = vshll.u32 %v1009, 16
  %v1090 = vor.u32 %v1087, %v1088
  %v1091 = vshrl.u32 %v1012, 16
  %v1093 = vrot.slane %v1091, 7
  %v1094 = vshll.u32 %v1012, 16
  %v1096 = vor.u32 %v1093, %v1094
  %v1097 = vshrl.u32 %v1015, 16
  %v1099 = vrot.slane %v1097, 7
  %v1100 = vshll.u32 %v1015, 16
  %v1102 = vor.u32 %v1099, %v1100
  %v1103 = vshrl.u32 %v1018, 16
  %v1105 = vrot.slane %v1103, 7
  %v1106 = vshll.u32 %v1018, 16
  %v1108 = vor.u32 %v1105, %v1106
  %v1109 = vshrl.u32 %v1021, 16
  %v1111 = vrot.slane %v1109, 7
  %v1112 = vshll.u32 %v1021, 16
  %v1114 = vor.u32 %v1111, %v1112
  %v1115 = vshrl.u32 %v1024, 16
  %v1117 = vrot.slane %v1115, 7
  %v1118 = vshll.u32 %v1024, 16
  %v1120 = vor.u32 %v1117, %v1118
  %vm1137 = vcmask 256000
  %vm1138 = vsmask.f32 2306
  %vm1139 = vmand %vm1137, %vm1138
  %v1140 = vld [vmem:[%s875] sm:$0x7]
  %v1141 = vsel %vm1139, %v1030, %v1140
  %1142 = vst [vmem:[%s875] sm:$0x7] %v1141
  %v1143 = vld [vmem:[%s875 + $0x8] sm:$0x7]
  %v1144 = vsel %vm1139, %v1036, %v1143
  %1145 = vst [vmem:[%s875 + $0x8] sm:$0x7] %v1144
  %v1146 = vld [vmem:[%s875 + $0x10] sm:$0x7]
  %v1147 = vsel %vm1139, %v1042, %v1146
  %1148 = vst [vmem:[%s875 + $0x10] sm:$0x7] %v1147
  %v1149 = vld [vmem:[%s875 + $0x18] sm:$0x7]
  %v1150 = vsel %vm1139, %v1048, %v1149
  %1151 = vst [vmem:[%s875 + $0x18] sm:$0x7] %v1150
  %v1152 = vld [vmem:[%s875 + $0x20] sm:$0x7]
  %v1153 = vsel %vm1139, %v1054, %v1152
  %1154 = vst [vmem:[%s875 + $0x20] sm:$0x7] %v1153
  %v1155 = vld [vmem:[%s875 + $0x28] sm:$0x7]
  %v1156 = vsel %vm1139, %v1060, %v1155
  %1157 = vst [vmem:[%s875 + $0x28] sm:$0x7] %v1156
  %v1158 = vld [vmem:[%s875 + $0x30] sm:$0x7]
  %v1159 = vsel %vm1139, %v1066, %v1158
  %1160 = vst [vmem:[%s875 + $0x30] sm:$0x7] %v1159
  %v1161 = vld [vmem:[%s875 + $0x38] sm:$0x7]
  %v1162 = vsel %vm1139, %v1072, %v1161
  %1163 = vst [vmem:[%s875 + $0x38] sm:$0x7] %v1162
  %v1164 = vld [vmem:[%s875 + $0x40] sm:$0x7]
  %v1165 = vsel %vm1139, %v1078, %v1164
  %1166 = vst [vmem:[%s875 + $0x40] sm:$0x7] %v1165
  %v1167 = vld [vmem:[%s875 + $0x48] sm:$0x7]
  %v1168 = vsel %vm1139, %v1084, %v1167
  %1169 = vst [vmem:[%s875 + $0x48] sm:$0x7] %v1168
  %v1170 = vld [vmem:[%s875 + $0x50] sm:$0x7]
  %v1171 = vsel %vm1139, %v1090, %v1170
  %1172 = vst [vmem:[%s875 + $0x50] sm:$0x7] %v1171
  %v1173 = vld [vmem:[%s875 + $0x58] sm:$0x7]
  %v1174 = vsel %vm1139, %v1096, %v1173
  %1175 = vst [vmem:[%s875 + $0x58] sm:$0x7] %v1174
  %v1176 = vld [vmem:[%s875 + $0x60] sm:$0x7]
  %v1177 = vsel %vm1139, %v1102, %v1176
  %1178 = vst [vmem:[%s875 + $0x60] sm:$0x7] %v1177
  %v1179 = vld [vmem:[%s875 + $0x68] sm:$0x7]
  %v1180 = vsel %vm1139, %v1108, %v1179
  %1181 = vst [vmem:[%s875 + $0x68] sm:$0x7] %v1180
  %v1182 = vld [vmem:[%s875 + $0x70] sm:$0x7]
  %v1183 = vsel %vm1139, %v1114, %v1182
  %1184 = vst [vmem:[%s875 + $0x70] sm:$0x7] %v1183
  %v1185 = vld [vmem:[%s875 + $0x78] sm:$0x7]
  %v1186 = vsel %vm1139, %v1120, %v1185
  %1187 = vst [vmem:[%s875 + $0x78] sm:$0x7] %v1186
  %v1188 = vld [vmem:[#allocation2] sm:$0x3]
  %v1189 = vld [vmem:[#allocation2 + $0x8] sm:$0x3]
  %v1190 = vld [vmem:[#allocation2] sm:$0xc]
  %v1191 = vld [vmem:[#allocation2 + $0x4] sm:$0x1]
  %v1192 = vld [vmem:[#allocation2 + $0x8] sm:$0xc]
  %v1193 = vld [vmem:[#allocation2 + $0xc] sm:$0x1]
  %v1194 = vld [vmem:[#allocation2] sm:$0x7]
  %v1195 = vld [vmem:[#allocation2 + $0x8] sm:$0x7]
  %v1196 = vld [vmem:[#allocation2] sm:$0x8]
  %v1197 = vld [vmem:[#allocation2 + $0x8] sm:$0x8]
  %v1202 = vunpack.c.l.b16 %v1190
  %v1203 = vunpack.c.l.b16 %v1191
  %v1204 = vunpack.c.l.b16 %v1192
  %v1205 = vunpack.c.l.b16 %v1193
  %v1206 = vpack.c.b16 %v1203, %v1202
  %v1207 = vpack.c.b16 %v1205, %v1204
  %v1209 = vshrl.u32 %v1206, 16
  %v1211 = vrot.slane %v1209, 2
  %v1212 = vshll.u32 %v1206, 16
  %v1214 = vrot.slane %v1212, 3
  %v1215 = vor.u32 %v1211, %v1214
  %v1217 = vshrl.u32 %v1207, 16
  %v1219 = vrot.slane %v1217, 2
  %v1220 = vshll.u32 %v1207, 16
  %v1222 = vrot.slane %v1220, 3
  %v1223 = vor.u32 %v1219, %v1222
  %1224 = vrot.lane.b32.xlu0 %v1215, 32
  %v1225 = vpop.permute.xlu0 %1224
  %1226 = vrot.lane.b32.xlu0 %v1223, 32
  %v1227 = vpop.permute.xlu0 %1226
  %v1230 = vunpack.c.l.b16 %v1194
  %v1231 = vunpack.c.l.b16 %v1195
  %v1232 = vpack.c.b16 %v1230, %v1230
  %v1233 = vpack.c.b16 %v1231, %v1231
  %v1235 = vshrl.u32 %v1232, 16
  %v1237 = vshll.u32 %v1232, 16
  %v1239 = vrot.slane %v1237, 1
  %v1240 = vor.u32 %v1235, %v1239
  %v1242 = vshrl.u32 %v1233, 16
  %v1244 = vshll.u32 %v1233, 16
  %v1246 = vrot.slane %v1244, 1
  %v1247 = vor.u32 %v1242, %v1246
  %1248 = vrot.lane.b32.xlu0 %v1240, 64
  %v1249 = vpop.permute.xlu0 %1248
  %1250 = vrot.lane.b32.xlu0 %v1247, 64
  %v1251 = vpop.permute.xlu0 %1250
  %v1254 = vunpack.c.l.b16 %v1196
  %v1255 = vunpack.c.l.b16 %v1197
  %v1256 = vpack.c.b16 %v1203, %v1254
  %v1257 = vpack.c.b16 %v1205, %v1255
  %v1258 = vrot.slane %v1256, 3
  %v1259 = vrot.slane %v1257, 3
  %1260 = vrot.lane.b32.xlu0 %v1258, 96
  %v1261 = vpop.permute.xlu0 %1260
  %1262 = vrot.lane.b32.xlu0 %v1259, 96
  %v1263 = vpop.permute.xlu0 %1262
  %vm1264 = vcmask 261120
  %v1267 = vsel %vm1264, %v1188, %v1225
  %v1270 = vsel %vm1264, %v1189, %v1227
  %vm1271 = vcmask 523264
  %v1273 = vsel %vm1271, %v1267, %v1249
  %v1275 = vsel %vm1271, %v1270, %v1251
  %vm1276 = vcmask 785408
  %v1278 = vsel %vm1276, %v1273, %v1261
  %v1280 = vsel %vm1276, %v1275, %v1263
  %1281 = vst [vmem:[#allocation1] ss:$2 sm:$0xff] %v1278
  %s1282 = scalar_lea.vmem [#allocation1], 1
  %1283 = vst [vmem:[%s1282] ss:$2 sm:$0xff] %v1280
  %v1284 = vld.sshfl [vmem:[#allocation1] sm:$0xff pattern:$0x75643120]
  %1286 = vst [vmem:[#allocation5] sm:$0xf] %v1284
  %v1287 = vld [vmem:[%s875] sm:$0x3]
  %v1288 = vld [vmem:[%s875 + $0x8] sm:$0x3]
  %v1289 = vld [vmem:[%s875] sm:$0xc]
  %v1290 = vld [vmem:[%s875 + $0x4] sm:$0x1]
  %v1291 = vld [vmem:[%s875 + $0x8] sm:$0xc]
  %v1292 = vld [vmem:[%s875 + $0xc] sm:$0x1]
  %v1293 = vld [vmem:[%s875] sm:$0x7]
  %v1294 = vld [vmem:[%s875 + $0x8] sm:$0x7]
  %v1295 = vld [vmem:[%s875] sm:$0x8]
  %v1296 = vld [vmem:[%s875 + $0x8] sm:$0x8]
  %v1301 = vunpack.c.l.b16 %v1289
  %v1302 = vunpack.c.l.b16 %v1290
  %v1303 = vunpack.c.l.b16 %v1291
  %v1304 = vunpack.c.l.b16 %v1292
  %v1305 = vpack.c.b16 %v1302, %v1301
  %v1306 = vpack.c.b16 %v1304, %v1303
  %v1308 = vshrl.u32 %v1305, 16
  %v1310 = vrot.slane %v1308, 2
  %v1311 = vshll.u32 %v1305, 16
  %v1313 = vrot.slane %v1311, 3
  %v1314 = vor.u32 %v1310, %v1313
  %v1316 = vshrl.u32 %v1306, 16
  %v1318 = vrot.slane %v1316, 2
  %v1319 = vshll.u32 %v1306, 16
  %v1321 = vrot.slane %v1319, 3
  %v1322 = vor.u32 %v1318, %v1321
  %1323 = vrot.lane.b32.xlu0 %v1314, 32
  %v1324 = vpop.permute.xlu0 %1323
  %1325 = vrot.lane.b32.xlu0 %v1322, 32
  %v1326 = vpop.permute.xlu0 %1325
  %v1329 = vunpack.c.l.b16 %v1293
  %v1330 = vunpack.c.l.b16 %v1294
  %v1331 = vpack.c.b16 %v1329, %v1329
  %v1332 = vpack.c.b16 %v1330, %v1330
  %v1334 = vshrl.u32 %v1331, 16
  %v1336 = vshll.u32 %v1331, 16
  %v1338 = vrot.slane %v1336, 1
  %v1339 = vor.u32 %v1334, %v1338
  %v1341 = vshrl.u32 %v1332, 16
  %v1343 = vshll.u32 %v1332, 16
  %v1345 = vrot.slane %v1343, 1
  %v1346 = vor.u32 %v1341, %v1345
  %1347 = vrot.lane.b32.xlu0 %v1339, 64
  %v1348 = vpop.permute.xlu0 %1347
  %1349 = vrot.lane.b32.xlu0 %v1346, 64
  %v1350 = vpop.permute.xlu0 %1349
  %v1353 = vunpack.c.l.b16 %v1295
  %v1354 = vunpack.c.l.b16 %v1296
  %v1355 = vpack.c.b16 %v1302, %v1353
  %v1356 = vpack.c.b16 %v1304, %v1354
  %v1357 = vrot.slane %v1355, 3
  %v1358 = vrot.slane %v1356, 3
  %1359 = vrot.lane.b32.xlu0 %v1357, 96
  %v1360 = vpop.permute.xlu0 %1359
  %1361 = vrot.lane.b32.xlu0 %v1358, 96
  %v1362 = vpop.permute.xlu0 %1361
  %v1365 = vsel %vm1264, %v1287, %v1324
  %v1368 = vsel %vm1264, %v1288, %v1326
  %v1370 = vsel %vm1271, %v1365, %v1348
  %v1372 = vsel %vm1271, %v1368, %v1350
  %v1374 = vsel %vm1276, %v1370, %v1360
  %v1376 = vsel %vm1276, %v1372, %v1362
  %1377 = vst [vmem:[#allocation1] ss:$2 sm:$0xff] %v1374
  %s1378 = scalar_lea.vmem [#allocation1], 1
  %1379 = vst [vmem:[%s1378] ss:$2 sm:$0xff] %v1376
  %v1380 = vld.sshfl [vmem:[#allocation1] sm:$0xff pattern:$0x75643120]
  %1382 = vst [vmem:[#allocation5 + $0x4] sm:$0xf] %v1380
  %s1383 = scalar_lea.vmem [#allocation2], 32
  %v1384 = vld [vmem:[%s1383] sm:$0x3]
  %v1385 = vld [vmem:[%s1383 + $0x8] sm:$0x3]
  %v1386 = vld [vmem:[%s1383] sm:$0xc]
  %v1387 = vld [vmem:[%s1383 + $0x4] sm:$0x1]
  %v1388 = vld [vmem:[%s1383 + $0x8] sm:$0xc]
  %v1389 = vld [vmem:[%s1383 + $0xc] sm:$0x1]
  %v1390 = vld [vmem:[%s1383] sm:$0x7]
  %v1391 = vld [vmem:[%s1383 + $0x8] sm:$0x7]
  %v1392 = vld [vmem:[%s1383] sm:$0x8]
  %v1393 = vld [vmem:[%s1383 + $0x8] sm:$0x8]
  %v1398 = vunpack.c.l.b16 %v1386
  %v1399 = vunpack.c.l.b16 %v1387
  %v1400 = vunpack.c.l.b16 %v1388
  %v1401 = vunpack.c.l.b16 %v1389
  %v1402 = vpack.c.b16 %v1399, %v1398
  %v1403 = vpack.c.b16 %v1401, %v1400
  %v1405 = vshrl.u32 %v1402, 16
  %v1407 = vrot.slane %v1405, 2
  %v1408 = vshll.u32 %v1402, 16
  %v1410 = vrot.slane %v1408, 3
  %v1411 = vor.u32 %v1407, %v1410
  %v1413 = vshrl.u32 %v1403, 16
  %v1415 = vrot.slane %v1413, 2
  %v1416 = vshll.u32 %v1403, 16
  %v1418 = vrot.slane %v1416, 3
  %v1419 = vor.u32 %v1415, %v1418
  %1420 = vrot.lane.b32.xlu0 %v1411, 32
  %v1421 = vpop.permute.xlu0 %1420
  %1422 = vrot.lane.b32.xlu0 %v1419, 32
  %v1423 = vpop.permute.xlu0 %1422
  %v1426 = vunpack.c.l.b16 %v1390
  %v1427 = vunpack.c.l.b16 %v1391
  %v1428 = vpack.c.b16 %v1426, %v1426
  %v1429 = vpack.c.b16 %v1427, %v1427
  %v1431 = vshrl.u32 %v1428, 16
  %v1433 = vshll.u32 %v1428, 16
  %v1435 = vrot.slane %v1433, 1
  %v1436 = vor.u32 %v1431, %v1435
  %v1438 = vshrl.u32 %v1429, 16
  %v1440 = vshll.u32 %v1429, 16
  %v1442 = vrot.slane %v1440, 1
  %v1443 = vor.u32 %v1438, %v1442
  %1444 = vrot.lane.b32.xlu0 %v1436, 64
  %v1445 = vpop.permute.xlu0 %1444
  %1446 = vrot.lane.b32.xlu0 %v1443, 64
  %v1447 = vpop.permute.xlu0 %1446
  %v1450 = vunpack.c.l.b16 %v1392
  %v1451 = vunpack.c.l.b16 %v1393
  %v1452 = vpack.c.b16 %v1399, %v1450
  %v1453 = vpack.c.b16 %v1401, %v1451
  %v1454 = vrot.slane %v1452, 3
  %v1455 = vrot.slane %v1453, 3
  %1456 = vrot.lane.b32.xlu0 %v1454, 96
  %v1457 = vpop.permute.xlu0 %1456
  %1458 = vrot.lane.b32.xlu0 %v1455, 96
  %v1459 = vpop.permute.xlu0 %1458
  %v1462 = vsel %vm1264, %v1384, %v1421
  %v1465 = vsel %vm1264, %v1385, %v1423
  %v1467 = vsel %vm1271, %v1462, %v1445
  %v1469 = vsel %vm1271, %v1465, %v1447
  %v1471 = vsel %vm1276, %v1467, %v1457
  %v1473 = vsel %vm1276, %v1469, %v1459
  %1474 = vst [vmem:[#allocation1] ss:$2 sm:$0xff] %v1471
  %s1475 = scalar_lea.vmem [#allocation1], 1
  %1476 = vst [vmem:[%s1475] ss:$2 sm:$0xff] %v1473
  %v1477 = vld.sshfl [vmem:[#allocation1] sm:$0xff pattern:$0x75643120]
  %1479 = vst [vmem:[#allocation5 + $0x8] sm:$0xf] %v1477
  %s1480 = scalar_lea.vmem [#allocation2], 48
  %v1481 = vld [vmem:[%s1480] sm:$0x3]
  %v1482 = vld [vmem:[%s1480 + $0x8] sm:$0x3]
  %v1483 = vld [vmem:[%s1480] sm:$0xc]
  %v1484 = vld [vmem:[%s1480 + $0x4] sm:$0x1]
  %v1485 = vld [vmem:[%s1480 + $0x8] sm:$0xc]
  %v1486 = vld [vmem:[%s1480 + $0xc] sm:$0x1]
  %v1487 = vld [vmem:[%s1480] sm:$0x7]
  %v1488 = vld [vmem:[%s1480 + $0x8] sm:$0x7]
  %v1489 = vld [vmem:[%s1480] sm:$0x8]
  %v1490 = vld [vmem:[%s1480 + $0x8] sm:$0x8]
  %v1495 = vunpack.c.l.b16 %v1483
  %v1496 = vunpack.c.l.b16 %v1484
  %v1497 = vunpack.c.l.b16 %v1485
  %v1498 = vunpack.c.l.b16 %v1486
  %v1499 = vpack.c.b16 %v1496, %v1495
  %v1500 = vpack.c.b16 %v1498, %v1497
  %v1502 = vshrl.u32 %v1499, 16
  %v1504 = vrot.slane %v1502, 2
  %v1505 = vshll.u32 %v1499, 16
  %v1507 = vrot.slane %v1505, 3
  %v1508 = vor.u32 %v1504, %v1507
  %v1510 = vshrl.u32 %v1500, 16
  %v1512 = vrot.slane %v1510, 2
  %v1513 = vshll.u32 %v1500, 16
  %v1515 = vrot.slane %v1513, 3
  %v1516 = vor.u32 %v1512, %v1515
  %1517 = vrot.lane.b32.xlu0 %v1508, 32
  %v1518 = vpop.permute.xlu0 %1517
  %1519 = vrot.lane.b32.xlu0 %v1516, 32
  %v1520 = vpop.permute.xlu0 %1519
  %v1523 = vunpack.c.l.b16 %v1487
  %v1524 = vunpack.c.l.b16 %v1488
  %v1525 = vpack.c.b16 %v1523, %v1523
  %v1526 = vpack.c.b16 %v1524, %v1524
  %v1528 = vshrl.u32 %v1525, 16
  %v1530 = vshll.u32 %v1525, 16
  %v1532 = vrot.slane %v1530, 1
  %v1533 = vor.u32 %v1528, %v1532
  %v1535 = vshrl.u32 %v1526, 16
  %v1537 = vshll.u32 %v1526, 16
  %v1539 = vrot.slane %v1537, 1
  %v1540 = vor.u32 %v1535, %v1539
  %1541 = vrot.lane.b32.xlu0 %v1533, 64
  %v1542 = vpop.permute.xlu0 %1541
  %1543 = vrot.lane.b32.xlu0 %v1540, 64
  %v1544 = vpop.permute.xlu0 %1543
  %v1547 = vunpack.c.l.b16 %v1489
  %v1548 = vunpack.c.l.b16 %v1490
  %v1549 = vpack.c.b16 %v1496, %v1547
  %v1550 = vpack.c.b16 %v1498, %v1548
  %v1551 = vrot.slane %v1549, 3
  %v1552 = vrot.slane %v1550, 3
  %1553 = vrot.lane.b32.xlu0 %v1551, 96
  %v1554 = vpop.permute.xlu0 %1553
  %1555 = vrot.lane.b32.xlu0 %v1552, 96
  %v1556 = vpop.permute.xlu0 %1555
  %v1559 = vsel %vm1264, %v1481, %v1518
  %v1562 = vsel %vm1264, %v1482, %v1520
  %v1564 = vsel %vm1271, %v1559, %v1542
  %v1566 = vsel %vm1271, %v1562, %v1544
  %v1568 = vsel %vm1276, %v1564, %v1554
  %v1570 = vsel %vm1276, %v1566, %v1556
  %1571 = vst [vmem:[#allocation1] ss:$2 sm:$0xff] %v1568
  %s1572 = scalar_lea.vmem [#allocation1], 1
  %1573 = vst [vmem:[%s1572] ss:$2 sm:$0xff] %v1570
  %v1574 = vld.sshfl [vmem:[#allocation1] sm:$0xff pattern:$0x75643120]
  %1576 = vst [vmem:[#allocation5 + $0xc] sm:$0xf] %v1574
  %v1577 = vld [vmem:[%s1383] sm:$0x3]
  %v1578 = vld [vmem:[%s1383 + $0x8] sm:$0x3]
  %v1579 = vld [vmem:[%s1383] sm:$0xc]
  %v1580 = vld [vmem:[%s1383 + $0x4] sm:$0x1]
  %v1581 = vld [vmem:[%s1383 + $0x8] sm:$0xc]
  %v1582 = vld [vmem:[%s1383 + $0xc] sm:$0x1]
  %v1583 = vld [vmem:[%s1383] sm:$0x7]
  %v1584 = vld [vmem:[%s1383 + $0x8] sm:$0x7]
  %v1585 = vld [vmem:[%s1383] sm:$0x8]
  %v1586 = vld [vmem:[%s1383 + $0x8] sm:$0x8]
  %v1591 = vunpack.c.l.b16 %v1579
  %v1592 = vunpack.c.l.b16 %v1580
  %v1593 = vunpack.c.l.b16 %v1581
  %v1594 = vunpack.c.l.b16 %v1582
  %v1595 = vpack.c.b16 %v1592, %v1591
  %v1596 = vpack.c.b16 %v1594, %v1593
  %v1598 = vshrl.u32 %v1595, 16
  %v1600 = vrot.slane %v1598, 2
  %v1601 = vshll.u32 %v1595, 16
  %v1603 = vrot.slane %v1601, 3
  %v1604 = vor.u32 %v1600, %v1603
  %v1606 = vshrl.u32 %v1596, 16
  %v1608 = vrot.slane %v1606, 2
  %v1609 = vshll.u32 %v1596, 16
  %v1611 = vrot.slane %v1609, 3
  %v1612 = vor.u32 %v1608, %v1611
  %1613 = vrot.lane.b32.xlu0 %v1604, 32
  %v1614 = vpop.permute.xlu0 %1613
  %1615 = vrot.lane.b32.xlu0 %v1612, 32
  %v1616 = vpop.permute.xlu0 %1615
  %v1619 = vunpack.c.l.b16 %v1583
  %v1620 = vunpack.c.l.b16 %v1584
  %v1621 = vpack.c.b16 %v1619, %v1619
  %v1622 = vpack.c.b16 %v1620, %v1620
  %v1624 = vshrl.u32 %v1621, 16
  %v1626 = vshll.u32 %v1621, 16
  %v1628 = vrot.slane %v1626, 1
  %v1629 = vor.u32 %v1624, %v1628
  %v1631 = vshrl.u32 %v1622, 16
  %v1633 = vshll.u32 %v1622, 16
  %v1635 = vrot.slane %v1633, 1
  %v1636 = vor.u32 %v1631, %v1635
  %1637 = vrot.lane.b32.xlu0 %v1629, 64
  %v1638 = vpop.permute.xlu0 %1637
  %1639 = vrot.lane.b32.xlu0 %v1636, 64
  %v1640 = vpop.permute.xlu0 %1639
  %v1643 = vunpack.c.l.b16 %v1585
  %v1644 = vunpack.c.l.b16 %v1586
  %v1645 = vpack.c.b16 %v1592, %v1643
  %v1646 = vpack.c.b16 %v1594, %v1644
  %v1647 = vrot.slane %v1645, 3
  %v1648 = vrot.slane %v1646, 3
  %1649 = vrot.lane.b32.xlu0 %v1647, 96
  %v1650 = vpop.permute.xlu0 %1649
  %1651 = vrot.lane.b32.xlu0 %v1648, 96
  %v1652 = vpop.permute.xlu0 %1651
  %v1655 = vsel %vm1264, %v1577, %v1614
  %v1658 = vsel %vm1264, %v1578, %v1616
  %v1660 = vsel %vm1271, %v1655, %v1638
  %v1662 = vsel %vm1271, %v1658, %v1640
  %v1664 = vsel %vm1276, %v1660, %v1650
  %v1666 = vsel %vm1276, %v1662, %v1652
  %1667 = vst [vmem:[#allocation1] ss:$2 sm:$0xff] %v1664
  %s1668 = scalar_lea.vmem [#allocation1], 1
  %1669 = vst [vmem:[%s1668] ss:$2 sm:$0xff] %v1666
  %v1670 = vld.sshfl [vmem:[#allocation1] sm:$0xff pattern:$0x75643120]
  %1672 = vst [vmem:[#allocation5 + $0x10] sm:$0xf] %v1670
  %v1673 = vld [vmem:[%s1480] sm:$0x3]
  %v1674 = vld [vmem:[%s1480 + $0x8] sm:$0x3]
  %v1675 = vld [vmem:[%s1480] sm:$0xc]
  %v1676 = vld [vmem:[%s1480 + $0x4] sm:$0x1]
  %v1677 = vld [vmem:[%s1480 + $0x8] sm:$0xc]
  %v1678 = vld [vmem:[%s1480 + $0xc] sm:$0x1]
  %v1679 = vld [vmem:[%s1480] sm:$0x7]
  %v1680 = vld [vmem:[%s1480 + $0x8] sm:$0x7]
  %v1681 = vld [vmem:[%s1480] sm:$0x8]
  %v1682 = vld [vmem:[%s1480 + $0x8] sm:$0x8]
  %v1687 = vunpack.c.l.b16 %v1675
  %v1688 = vunpack.c.l.b16 %v1676
  %v1689 = vunpack.c.l.b16 %v1677
  %v1690 = vunpack.c.l.b16 %v1678
  %v1691 = vpack.c.b16 %v1688, %v1687
  %v1692 = vpack.c.b16 %v1690, %v1689
  %v1694 = vshrl.u32 %v1691, 16
  %v1696 = vrot.slane %v1694, 2
  %v1697 = vshll.u32 %v1691, 16
  %v1699 = vrot.slane %v1697, 3
  %v1700 = vor.u32 %v1696, %v1699
  %v1702 = vshrl.u32 %v1692, 16
  %v1704 = vrot.slane %v1702, 2
  %v1705 = vshll.u32 %v1692, 16
  %v1707 = vrot.slane %v1705, 3
  %v1708 = vor.u32 %v1704, %v1707
  %1709 = vrot.lane.b32.xlu0 %v1700, 32
  %v1710 = vpop.permute.xlu0 %1709
  %1711 = vrot.lane.b32.xlu0 %v1708, 32
  %v1712 = vpop.permute.xlu0 %1711
  %v1715 = vunpack.c.l.b16 %v1679
  %v1716 = vunpack.c.l.b16 %v1680
  %v1717 = vpack.c.b16 %v1715, %v1715
  %v1718 = vpack.c.b16 %v1716, %v1716
  %v1720 = vshrl.u32 %v1717, 16
  %v1722 = vshll.u32 %v1717, 16
  %v1724 = vrot.slane %v1722, 1
  %v1725 = vor.u32 %v1720, %v1724
  %v1727 = vshrl.u32 %v1718, 16
  %v1729 = vshll.u32 %v1718, 16
  %v1731 = vrot.slane %v1729, 1
  %v1732 = vor.u32 %v1727, %v1731
  %1733 = vrot.lane.b32.xlu0 %v1725, 64
  %v1734 = vpop.permute.xlu0 %1733
  %1735 = vrot.lane.b32.xlu0 %v1732, 64
  %v1736 = vpop.permute.xlu0 %1735
  %v1739 = vunpack.c.l.b16 %v1681
  %v1740 = vunpack.c.l.b16 %v1682
  %v1741 = vpack.c.b16 %v1688, %v1739
  %v1742 = vpack.c.b16 %v1690, %v1740
  %v1743 = vrot.slane %v1741, 3
  %v1744 = vrot.slane %v1742, 3
  %1745 = vrot.lane.b32.xlu0 %v1743, 96
  %v1746 = vpop.permute.xlu0 %1745
  %1747 = vrot.lane.b32.xlu0 %v1744, 96
  %v1748 = vpop.permute.xlu0 %1747
  %v1751 = vsel %vm1264, %v1673, %v1710
  %v1754 = vsel %vm1264, %v1674, %v1712
  %v1756 = vsel %vm1271, %v1751, %v1734
  %v1758 = vsel %vm1271, %v1754, %v1736
  %v1760 = vsel %vm1276, %v1756, %v1746
  %v1762 = vsel %vm1276, %v1758, %v1748
  %1763 = vst [vmem:[#allocation1] ss:$2 sm:$0xff] %v1760
  %s1764 = scalar_lea.vmem [#allocation1], 1
  %1765 = vst [vmem:[%s1764] ss:$2 sm:$0xff] %v1762
  %v1766 = vld.sshfl [vmem:[#allocation1] sm:$0xff pattern:$0x75643120]
  %1768 = vst [vmem:[#allocation5 + $0x14] sm:$0xf] %v1766
  %s1769 = scalar_lea.vmem [#allocation2], 64
  %v1770 = vld [vmem:[%s1769] sm:$0x3]
  %v1771 = vld [vmem:[%s1769 + $0x8] sm:$0x3]
  %v1772 = vld [vmem:[%s1769] sm:$0xc]
  %v1773 = vld [vmem:[%s1769 + $0x4] sm:$0x1]
  %v1774 = vld [vmem:[%s1769 + $0x8] sm:$0xc]
  %v1775 = vld [vmem:[%s1769 + $0xc] sm:$0x1]
  %v1776 = vld [vmem:[%s1769] sm:$0x7]
  %v1777 = vld [vmem:[%s1769 + $0x8] sm:$0x7]
  %v1778 = vld [vmem:[%s1769] sm:$0x8]
  %v1779 = vld [vmem:[%s1769 + $0x8] sm:$0x8]
  %v1784 = vunpack.c.l.b16 %v1772
  %v1785 = vunpack.c.l.b16 %v1773
  %v1786 = vunpack.c.l.b16 %v1774
  %v1787 = vunpack.c.l.b16 %v1775
  %v1788 = vpack.c.b16 %v1785, %v1784
  %v1789 = vpack.c.b16 %v1787, %v1786
  %v1791 = vshrl.u32 %v1788, 16
  %v1793 = vrot.slane %v1791, 2
  %v1794 = vshll.u32 %v1788, 16
  %v1796 = vrot.slane %v1794, 3
  %v1797 = vor.u32 %v1793, %v1796
  %v1799 = vshrl.u32 %v1789, 16
  %v1801 = vrot.slane %v1799, 2
  %v1802 = vshll.u32 %v1789, 16
  %v1804 = vrot.slane %v1802, 3
  %v1805 = vor.u32 %v1801, %v1804
  %1806 = vrot.lane.b32.xlu0 %v1797, 32
  %v1807 = vpop.permute.xlu0 %1806
  %1808 = vrot.lane.b32.xlu0 %v1805, 32
  %v1809 = vpop.permute.xlu0 %1808
  %v1812 = vunpack.c.l.b16 %v1776
  %v1813 = vunpack.c.l.b16 %v1777
  %v1814 = vpack.c.b16 %v1812, %v1812
  %v1815 = vpack.c.b16 %v1813, %v1813
  %v1817 = vshrl.u32 %v1814, 16
  %v1819 = vshll.u32 %v1814, 16
  %v1821 = vrot.slane %v1819, 1
  %v1822 = vor.u32 %v1817, %v1821
  %v1824 = vshrl.u32 %v1815, 16
  %v1826 = vshll.u32 %v1815, 16
  %v1828 = vrot.slane %v1826, 1
  %v1829 = vor.u32 %v1824, %v1828
  %1830 = vrot.lane.b32.xlu0 %v1822, 64
  %v1831 = vpop.permute.xlu0 %1830
  %1832 = vrot.lane.b32.xlu0 %v1829, 64
  %v1833 = vpop.permute.xlu0 %1832
  %v1836 = vunpack.c.l.b16 %v1778
  %v1837 = vunpack.c.l.b16 %v1779
  %v1838 = vpack.c.b16 %v1785, %v1836
  %v1839 = vpack.c.b16 %v1787, %v1837
  %v1840 = vrot.slane %v1838, 3
  %v1841 = vrot.slane %v1839, 3
  %1842 = vrot.lane.b32.xlu0 %v1840, 96
  %v1843 = vpop.permute.xlu0 %1842
  %1844 = vrot.lane.b32.xlu0 %v1841, 96
  %v1845 = vpop.permute.xlu0 %1844
  %v1848 = vsel %vm1264, %v1770, %v1807
  %v1851 = vsel %vm1264, %v1771, %v1809
  %v1853 = vsel %vm1271, %v1848, %v1831
  %v1855 = vsel %vm1271, %v1851, %v1833
  %v1857 = vsel %vm1276, %v1853, %v1843
  %v1859 = vsel %vm1276, %v1855, %v1845
  %1860 = vst [vmem:[#allocation1] ss:$2 sm:$0xff] %v1857
  %s1861 = scalar_lea.vmem [#allocation1], 1
  %1862 = vst [vmem:[%s1861] ss:$2 sm:$0xff] %v1859
  %v1863 = vld.sshfl [vmem:[#allocation1] sm:$0xff pattern:$0x75643120]
  %1865 = vst [vmem:[#allocation5 + $0x18] sm:$0xf] %v1863
  %s1866 = scalar_lea.vmem [#allocation2], 80
  %v1867 = vld [vmem:[%s1866] sm:$0x3]
  %v1868 = vld [vmem:[%s1866 + $0x8] sm:$0x3]
  %v1869 = vld [vmem:[%s1866] sm:$0xc]
  %v1870 = vld [vmem:[%s1866 + $0x4] sm:$0x1]
  %v1871 = vld [vmem:[%s1866 + $0x8] sm:$0xc]
  %v1872 = vld [vmem:[%s1866 + $0xc] sm:$0x1]
  %v1873 = vld [vmem:[%s1866] sm:$0x7]
  %v1874 = vld [vmem:[%s1866 + $0x8] sm:$0x7]
  %v1875 = vld [vmem:[%s1866] sm:$0x8]
  %v1876 = vld [vmem:[%s1866 + $0x8] sm:$0x8]
  %v1881 = vunpack.c.l.b16 %v1869
  %v1882 = vunpack.c.l.b16 %v1870
  %v1883 = vunpack.c.l.b16 %v1871
  %v1884 = vunpack.c.l.b16 %v1872
  %v1885 = vpack.c.b16 %v1882, %v1881
  %v1886 = vpack.c.b16 %v1884, %v1883
  %v1888 = vshrl.u32 %v1885, 16
  %v1890 = vrot.slane %v1888, 2
  %v1891 = vshll.u32 %v1885, 16
  %v1893 = vrot.slane %v1891, 3
  %v1894 = vor.u32 %v1890, %v1893
  %v1896 = vshrl.u32 %v1886, 16
  %v1898 = vrot.slane %v1896, 2
  %v1899 = vshll.u32 %v1886, 16
  %v1901 = vrot.slane %v1899, 3
  %v1902 = vor.u32 %v1898, %v1901
  %1903 = vrot.lane.b32.xlu0 %v1894, 32
  %v1904 = vpop.permute.xlu0 %1903
  %1905 = vrot.lane.b32.xlu0 %v1902, 32
  %v1906 = vpop.permute.xlu0 %1905
  %v1909 = vunpack.c.l.b16 %v1873
  %v1910 = vunpack.c.l.b16 %v1874
  %v1911 = vpack.c.b16 %v1909, %v1909
  %v1912 = vpack.c.b16 %v1910, %v1910
  %v1914 = vshrl.u32 %v1911, 16
  %v1916 = vshll.u32 %v1911, 16
  %v1918 = vrot.slane %v1916, 1
  %v1919 = vor.u32 %v1914, %v1918
  %v1921 = vshrl.u32 %v1912, 16
  %v1923 = vshll.u32 %v1912, 16
  %v1925 = vrot.slane %v1923, 1
  %v1926 = vor.u32 %v1921, %v1925
  %1927 = vrot.lane.b32.xlu0 %v1919, 64
  %v1928 = vpop.permute.xlu0 %1927
  %1929 = vrot.lane.b32.xlu0 %v1926, 64
  %v1930 = vpop.permute.xlu0 %1929
  %v1933 = vunpack.c.l.b16 %v1875
  %v1934 = vunpack.c.l.b16 %v1876
  %v1935 = vpack.c.b16 %v1882, %v1933
  %v1936 = vpack.c.b16 %v1884, %v1934
  %v1937 = vrot.slane %v1935, 3
  %v1938 = vrot.slane %v1936, 3
  %1939 = vrot.lane.b32.xlu0 %v1937, 96
  %v1940 = vpop.permute.xlu0 %1939
  %1941 = vrot.lane.b32.xlu0 %v1938, 96
  %v1942 = vpop.permute.xlu0 %1941
  %v1945 = vsel %vm1264, %v1867, %v1904
  %v1948 = vsel %vm1264, %v1868, %v1906
  %v1950 = vsel %vm1271, %v1945, %v1928
  %v1952 = vsel %vm1271, %v1948, %v1930
  %v1954 = vsel %vm1276, %v1950, %v1940
  %v1956 = vsel %vm1276, %v1952, %v1942
  %1957 = vst [vmem:[#allocation1] ss:$2 sm:$0xff] %v1954
  %s1958 = scalar_lea.vmem [#allocation1], 1
  %1959 = vst [vmem:[%s1958] ss:$2 sm:$0xff] %v1956
  %v1960 = vld.sshfl [vmem:[#allocation1] sm:$0xff pattern:$0x75643120]
  %1962 = vst [vmem:[#allocation5 + $0x1c] sm:$0xf] %v1960
  %v1963 = vld [vmem:[%s1769] sm:$0x3]
  %v1964 = vld [vmem:[%s1769 + $0x8] sm:$0x3]
  %v1965 = vld [vmem:[%s1769] sm:$0xc]
  %v1966 = vld [vmem:[%s1769 + $0x4] sm:$0x1]
  %v1967 = vld [vmem:[%s1769 + $0x8] sm:$0xc]
  %v1968 = vld [vmem:[%s1769 + $0xc] sm:$0x1]
  %v1969 = vld [vmem:[%s1769] sm:$0x7]
  %v1970 = vld [vmem:[%s1769 + $0x8] sm:$0x7]
  %v1971 = vld [vmem:[%s1769] sm:$0x8]
  %v1972 = vld [vmem:[%s1769 + $0x8] sm:$0x8]
  %v1977 = vunpack.c.l.b16 %v1965
  %v1978 = vunpack.c.l.b16 %v1966
  %v1979 = vunpack.c.l.b16 %v1967
  %v1980 = vunpack.c.l.b16 %v1968
  %v1981 = vpack.c.b16 %v1978, %v1977
  %v1982 = vpack.c.b16 %v1980, %v1979
  %v1984 = vshrl.u32 %v1981, 16
  %v1986 = vrot.slane %v1984, 2
  %v1987 = vshll.u32 %v1981, 16
  %v1989 = vrot.slane %v1987, 3
  %v1990 = vor.u32 %v1986, %v1989
  %v1992 = vshrl.u32 %v1982, 16
  %v1994 = vrot.slane %v1992, 2
  %v1995 = vshll.u32 %v1982, 16
  %v1997 = vrot.slane %v1995, 3
  %v1998 = vor.u32 %v1994, %v1997
  %1999 = vrot.lane.b32.xlu0 %v1990, 32
  %v2000 = vpop.permute.xlu0 %1999
  %2001 = vrot.lane.b32.xlu0 %v1998, 32
  %v2002 = vpop.permute.xlu0 %2001
  %v2005 = vunpack.c.l.b16 %v1969
  %v2006 = vunpack.c.l.b16 %v1970
  %v2007 = vpack.c.b16 %v2005, %v2005
  %v2008 = vpack.c.b16 %v2006, %v2006
  %v2010 = vshrl.u32 %v2007, 16
  %v2012 = vshll.u32 %v2007, 16
  %v2014 = vrot.slane %v2012, 1
  %v2015 = vor.u32 %v2010, %v2014
  %v2017 = vshrl.u32 %v2008, 16
  %v2019 = vshll.u32 %v2008, 16
  %v2021 = vrot.slane %v2019, 1
  %v2022 = vor.u32 %v2017, %v2021
  %2023 = vrot.lane.b32.xlu0 %v2015, 64
  %v2024 = vpop.permute.xlu0 %2023
  %2025 = vrot.lane.b32.xlu0 %v2022, 64
  %v2026 = vpop.permute.xlu0 %2025
  %v2029 = vunpack.c.l.b16 %v1971
  %v2030 = vunpack.c.l.b16 %v1972
  %v2031 = vpack.c.b16 %v1978, %v2029
  %v2032 = vpack.c.b16 %v1980, %v2030
  %v2033 = vrot.slane %v2031, 3
  %v2034 = vrot.slane %v2032, 3
  %2035 = vrot.lane.b32.xlu0 %v2033, 96
  %v2036 = vpop.permute.xlu0 %2035
  %2037 = vrot.lane.b32.xlu0 %v2034, 96
  %v2038 = vpop.permute.xlu0 %2037
  %v2041 = vsel %vm1264, %v1963, %v2000
  %v2044 = vsel %vm1264, %v1964, %v2002
  %v2046 = vsel %vm1271, %v2041, %v2024
  %v2048 = vsel %vm1271, %v2044, %v2026
  %v2050 = vsel %vm1276, %v2046, %v2036
  %v2052 = vsel %vm1276, %v2048, %v2038
  %2053 = vst [vmem:[#allocation1] ss:$2 sm:$0xff] %v2050
  %s2054 = scalar_lea.vmem [#allocation1], 1
  %2055 = vst [vmem:[%s2054] ss:$2 sm:$0xff] %v2052
  %v2056 = vld.sshfl [vmem:[#allocation1] sm:$0xff pattern:$0x75643120]
  %2058 = vst [vmem:[#allocation5 + $0x20] sm:$0xf] %v2056
  %v2059 = vld [vmem:[%s1866] sm:$0x3]
  %v2060 = vld [vmem:[%s1866 + $0x8] sm:$0x3]
  %v2061 = vld [vmem:[%s1866] sm:$0xc]
  %v2062 = vld [vmem:[%s1866 + $0x4] sm:$0x1]
  %v2063 = vld [vmem:[%s1866 + $0x8] sm:$0xc]
  %v2064 = vld [vmem:[%s1866 + $0xc] sm:$0x1]
  %v2065 = vld [vmem:[%s1866] sm:$0x7]
  %v2066 = vld [vmem:[%s1866 + $0x8] sm:$0x7]
  %v2067 = vld [vmem:[%s1866] sm:$0x8]
  %v2068 = vld [vmem:[%s1866 + $0x8] sm:$0x8]
  %v2073 = vunpack.c.l.b16 %v2061
  %v2074 = vunpack.c.l.b16 %v2062
  %v2075 = vunpack.c.l.b16 %v2063
  %v2076 = vunpack.c.l.b16 %v2064
  %v2077 = vpack.c.b16 %v2074, %v2073
  %v2078 = vpack.c.b16 %v2076, %v2075
  %v2080 = vshrl.u32 %v2077, 16
  %v2082 = vrot.slane %v2080, 2
  %v2083 = vshll.u32 %v2077, 16
  %v2085 = vrot.slane %v2083, 3
  %v2086 = vor.u32 %v2082, %v2085
  %v2088 = vshrl.u32 %v2078, 16
  %v2090 = vrot.slane %v2088, 2
  %v2091 = vshll.u32 %v2078, 16
  %v2093 = vrot.slane %v2091, 3
  %v2094 = vor.u32 %v2090, %v2093
  %2095 = vrot.lane.b32.xlu0 %v2086, 32
  %v2096 = vpop.permute.xlu0 %2095
  %2097 = vrot.lane.b32.xlu0 %v2094, 32
  %v2098 = vpop.permute.xlu0 %2097
  %v2101 = vunpack.c.l.b16 %v2065
  %v2102 = vunpack.c.l.b16 %v2066
  %v2103 = vpack.c.b16 %v2101, %v2101
  %v2104 = vpack.c.b16 %v2102, %v2102
  %v2106 = vshrl.u32 %v2103, 16
  %v2108 = vshll.u32 %v2103, 16
  %v2110 = vrot.slane %v2108, 1
  %v2111 = vor.u32 %v2106, %v2110
  %v2113 = vshrl.u32 %v2104, 16
  %v2115 = vshll.u32 %v2104, 16
  %v2117 = vrot.slane %v2115, 1
  %v2118 = vor.u32 %v2113, %v2117
  %2119 = vrot.lane.b32.xlu0 %v2111, 64
  %v2120 = vpop.permute.xlu0 %2119
  %2121 = vrot.lane.b32.xlu0 %v2118, 64
  %v2122 = vpop.permute.xlu0 %2121
  %v2125 = vunpack.c.l.b16 %v2067
  %v2126 = vunpack.c.l.b16 %v2068
  %v2127 = vpack.c.b16 %v2074, %v2125
  %v2128 = vpack.c.b16 %v2076, %v2126
  %v2129 = vrot.slane %v2127, 3
  %v2130 = vrot.slane %v2128, 3
  %2131 = vrot.lane.b32.xlu0 %v2129, 96
  %v2132 = vpop.permute.xlu0 %2131
  %2133 = vrot.lane.b32.xlu0 %v2130, 96
  %v2134 = vpop.permute.xlu0 %2133
  %v2137 = vsel %vm1264, %v2059, %v2096
  %v2140 = vsel %vm1264, %v2060, %v2098
  %v2142 = vsel %vm1271, %v2137, %v2120
  %v2144 = vsel %vm1271, %v2140, %v2122
  %v2146 = vsel %vm1276, %v2142, %v2132
  %v2148 = vsel %vm1276, %v2144, %v2134
  %2149 = vst [vmem:[#allocation1] ss:$2 sm:$0xff] %v2146
  %s2150 = scalar_lea.vmem [#allocation1], 1
  %2151 = vst [vmem:[%s2150] ss:$2 sm:$0xff] %v2148
  %v2152 = vld.sshfl [vmem:[#allocation1] sm:$0xff pattern:$0x75643120]
  %2154 = vst [vmem:[#allocation5 + $0x24] sm:$0xf] %v2152
  %s2155 = scalar_lea.vmem [#allocation2], 96
  %v2156 = vld [vmem:[%s2155] sm:$0x3]
  %v2157 = vld [vmem:[%s2155 + $0x8] sm:$0x3]
  %v2158 = vld [vmem:[%s2155] sm:$0xc]
  %v2159 = vld [vmem:[%s2155 + $0x4] sm:$0x1]
  %v2160 = vld [vmem:[%s2155 + $0x8] sm:$0xc]
  %v2161 = vld [vmem:[%s2155 + $0xc] sm:$0x1]
  %v2162 = vld [vmem:[%s2155] sm:$0x7]
  %v2163 = vld [vmem:[%s2155 + $0x8] sm:$0x7]
  %v2164 = vld [vmem:[%s2155] sm:$0x8]
  %v2165 = vld [vmem:[%s2155 + $0x8] sm:$0x8]
  %v2170 = vunpack.c.l.b16 %v2158
  %v2171 = vunpack.c.l.b16 %v2159
  %v2172 = vunpack.c.l.b16 %v2160
  %v2173 = vunpack.c.l.b16 %v2161
  %v2174 = vpack.c.b16 %v2171, %v2170
  %v2175 = vpack.c.b16 %v2173, %v2172
  %v2177 = vshrl.u32 %v2174, 16
  %v2179 = vrot.slane %v2177, 2
  %v2180 = vshll.u32 %v2174, 16
  %v2182 = vrot.slane %v2180, 3
  %v2183 = vor.u32 %v2179, %v2182
  %v2185 = vshrl.u32 %v2175, 16
  %v2187 = vrot.slane %v2185, 2
  %v2188 = vshll.u32 %v2175, 16
  %v2190 = vrot.slane %v2188, 3
  %v2191 = vor.u32 %v2187, %v2190
  %2192 = vrot.lane.b32.xlu0 %v2183, 32
  %v2193 = vpop.permute.xlu0 %2192
  %2194 = vrot.lane.b32.xlu0 %v2191, 32
  %v2195 = vpop.permute.xlu0 %2194
  %v2198 = vunpack.c.l.b16 %v2162
  %v2199 = vunpack.c.l.b16 %v2163
  %v2200 = vpack.c.b16 %v2198, %v2198
  %v2201 = vpack.c.b16 %v2199, %v2199
  %v2203 = vshrl.u32 %v2200, 16
  %v2205 = vshll.u32 %v2200, 16
  %v2207 = vrot.slane %v2205, 1
  %v2208 = vor.u32 %v2203, %v2207
  %v2210 = vshrl.u32 %v2201, 16
  %v2212 = vshll.u32 %v2201, 16
  %v2214 = vrot.slane %v2212, 1
  %v2215 = vor.u32 %v2210, %v2214
  %2216 = vrot.lane.b32.xlu0 %v2208, 64
  %v2217 = vpop.permute.xlu0 %2216
  %2218 = vrot.lane.b32.xlu0 %v2215, 64
  %v2219 = vpop.permute.xlu0 %2218
  %v2222 = vunpack.c.l.b16 %v2164
  %v2223 = vunpack.c.l.b16 %v2165
  %v2224 = vpack.c.b16 %v2171, %v2222
  %v2225 = vpack.c.b16 %v2173, %v2223
  %v2226 = vrot.slane %v2224, 3
  %v2227 = vrot.slane %v2225, 3
  %2228 = vrot.lane.b32.xlu0 %v2226, 96
  %v2229 = vpop.permute.xlu0 %2228
  %2230 = vrot.lane.b32.xlu0 %v2227, 96
  %v2231 = vpop.permute.xlu0 %2230
  %v2234 = vsel %vm1264, %v2156, %v2193
  %v2237 = vsel %vm1264, %v2157, %v2195
  %v2239 = vsel %vm1271, %v2234, %v2217
  %v2241 = vsel %vm1271, %v2237, %v2219
  %v2243 = vsel %vm1276, %v2239, %v2229
  %v2245 = vsel %vm1276, %v2241, %v2231
  %2246 = vst [vmem:[#allocation1] ss:$2 sm:$0xff] %v2243
  %s2247 = scalar_lea.vmem [#allocation1], 1
  %2248 = vst [vmem:[%s2247] ss:$2 sm:$0xff] %v2245
  %v2249 = vld.sshfl [vmem:[#allocation1] sm:$0xff pattern:$0x75643120]
  %2251 = vst [vmem:[#allocation5 + $0x28] sm:$0xf] %v2249
  %s2252 = scalar_lea.vmem [#allocation2], 112
  %v2253 = vld [vmem:[%s2252] sm:$0x3]
  %v2254 = vld [vmem:[%s2252 + $0x8] sm:$0x3]
  %v2255 = vld [vmem:[%s2252] sm:$0xc]
  %v2256 = vld [vmem:[%s2252 + $0x4] sm:$0x1]
  %v2257 = vld [vmem:[%s2252 + $0x8] sm:$0xc]
  %v2258 = vld [vmem:[%s2252 + $0xc] sm:$0x1]
  %v2259 = vld [vmem:[%s2252] sm:$0x7]
  %v2260 = vld [vmem:[%s2252 + $0x8] sm:$0x7]
  %v2261 = vld [vmem:[%s2252] sm:$0x8]
  %v2262 = vld [vmem:[%s2252 + $0x8] sm:$0x8]
  %v2267 = vunpack.c.l.b16 %v2255
  %v2268 = vunpack.c.l.b16 %v2256
  %v2269 = vunpack.c.l.b16 %v2257
  %v2270 = vunpack.c.l.b16 %v2258
  %v2271 = vpack.c.b16 %v2268, %v2267
  %v2272 = vpack.c.b16 %v2270, %v2269
  %v2274 = vshrl.u32 %v2271, 16
  %v2276 = vrot.slane %v2274, 2
  %v2277 = vshll.u32 %v2271, 16
  %v2279 = vrot.slane %v2277, 3
  %v2280 = vor.u32 %v2276, %v2279
  %v2282 = vshrl.u32 %v2272, 16
  %v2284 = vrot.slane %v2282, 2
  %v2285 = vshll.u32 %v2272, 16
  %v2287 = vrot.slane %v2285, 3
  %v2288 = vor.u32 %v2284, %v2287
  %2289 = vrot.lane.b32.xlu0 %v2280, 32
  %v2290 = vpop.permute.xlu0 %2289
  %2291 = vrot.lane.b32.xlu0 %v2288, 32
  %v2292 = vpop.permute.xlu0 %2291
  %v2295 = vunpack.c.l.b16 %v2259
  %v2296 = vunpack.c.l.b16 %v2260
  %v2297 = vpack.c.b16 %v2295, %v2295
  %v2298 = vpack.c.b16 %v2296, %v2296
  %v2300 = vshrl.u32 %v2297, 16
  %v2302 = vshll.u32 %v2297, 16
  %v2304 = vrot.slane %v2302, 1
  %v2305 = vor.u32 %v2300, %v2304
  %v2307 = vshrl.u32 %v2298, 16
  %v2309 = vshll.u32 %v2298, 16
  %v2311 = vrot.slane %v2309, 1
  %v2312 = vor.u32 %v2307, %v2311
  %2313 = vrot.lane.b32.xlu0 %v2305, 64
  %v2314 = vpop.permute.xlu0 %2313
  %2315 = vrot.lane.b32.xlu0 %v2312, 64
  %v2316 = vpop.permute.xlu0 %2315
  %v2319 = vunpack.c.l.b16 %v2261
  %v2320 = vunpack.c.l.b16 %v2262
  %v2321 = vpack.c.b16 %v2268, %v2319
  %v2322 = vpack.c.b16 %v2270, %v2320
  %v2323 = vrot.slane %v2321, 3
  %v2324 = vrot.slane %v2322, 3
  %2325 = vrot.lane.b32.xlu0 %v2323, 96
  %v2326 = vpop.permute.xlu0 %2325
  %2327 = vrot.lane.b32.xlu0 %v2324, 96
  %v2328 = vpop.permute.xlu0 %2327
  %v2331 = vsel %vm1264, %v2253, %v2290
  %v2334 = vsel %vm1264, %v2254, %v2292
  %v2336 = vsel %vm1271, %v2331, %v2314
  %v2338 = vsel %vm1271, %v2334, %v2316
  %v2340 = vsel %vm1276, %v2336, %v2326
  %v2342 = vsel %vm1276, %v2338, %v2328
  %2343 = vst [vmem:[#allocation1] ss:$2 sm:$0xff] %v2340
  %s2344 = scalar_lea.vmem [#allocation1], 1
  %2345 = vst [vmem:[%s2344] ss:$2 sm:$0xff] %v2342
  %v2346 = vld.sshfl [vmem:[#allocation1] sm:$0xff pattern:$0x75643120]
  %2348 = vst [vmem:[#allocation5 + $0x2c] sm:$0xf] %v2346
  %v2349 = vld [vmem:[%s2155] sm:$0x3]
  %v2350 = vld [vmem:[%s2155 + $0x8] sm:$0x3]
  %v2351 = vld [vmem:[%s2155] sm:$0xc]
  %v2352 = vld [vmem:[%s2155 + $0x4] sm:$0x1]
  %v2353 = vld [vmem:[%s2155 + $0x8] sm:$0xc]
  %v2354 = vld [vmem:[%s2155 + $0xc] sm:$0x1]
  %v2355 = vld [vmem:[%s2155] sm:$0x7]
  %v2356 = vld [vmem:[%s2155 + $0x8] sm:$0x7]
  %v2357 = vld [vmem:[%s2155] sm:$0x8]
  %v2358 = vld [vmem:[%s2155 + $0x8] sm:$0x8]
  %v2363 = vunpack.c.l.b16 %v2351
  %v2364 = vunpack.c.l.b16 %v2352
  %v2365 = vunpack.c.l.b16 %v2353
  %v2366 = vunpack.c.l.b16 %v2354
  %v2367 = vpack.c.b16 %v2364, %v2363
  %v2368 = vpack.c.b16 %v2366, %v2365
  %v2370 = vshrl.u32 %v2367, 16
  %v2372 = vrot.slane %v2370, 2
  %v2373 = vshll.u32 %v2367, 16
  %v2375 = vrot.slane %v2373, 3
  %v2376 = vor.u32 %v2372, %v2375
  %v2378 = vshrl.u32 %v2368, 16
  %v2380 = vrot.slane %v2378, 2
  %v2381 = vshll.u32 %v2368, 16
  %v2383 = vrot.slane %v2381, 3
  %v2384 = vor.u32 %v2380, %v2383
  %2385 = vrot.lane.b32.xlu0 %v2376, 32
  %v2386 = vpop.permute.xlu0 %2385
  %2387 = vrot.lane.b32.xlu0 %v2384, 32
  %v2388 = vpop.permute.xlu0 %2387
  %v2391 = vunpack.c.l.b16 %v2355
  %v2392 = vunpack.c.l.b16 %v2356
  %v2393 = vpack.c.b16 %v2391, %v2391
  %v2394 = vpack.c.b16 %v2392, %v2392
  %v2396 = vshrl.u32 %v2393, 16
  %v2398 = vshll.u32 %v2393, 16
  %v2400 = vrot.slane %v2398, 1
  %v2401 = vor.u32 %v2396, %v2400
  %v2403 = vshrl.u32 %v2394, 16
  %v2405 = vshll.u32 %v2394, 16
  %v2407 = vrot.slane %v2405, 1
  %v2408 = vor.u32 %v2403, %v2407
  %2409 = vrot.lane.b32.xlu0 %v2401, 64
  %v2410 = vpop.permute.xlu0 %2409
  %2411 = vrot.lane.b32.xlu0 %v2408, 64
  %v2412 = vpop.permute.xlu0 %2411
  %v2415 = vunpack.c.l.b16 %v2357
  %v2416 = vunpack.c.l.b16 %v2358
  %v2417 = vpack.c.b16 %v2364, %v2415
  %v2418 = vpack.c.b16 %v2366, %v2416
  %v2419 = vrot.slane %v2417, 3
  %v2420 = vrot.slane %v2418, 3
  %2421 = vrot.lane.b32.xlu0 %v2419, 96
  %v2422 = vpop.permute.xlu0 %2421
  %2423 = vrot.lane.b32.xlu0 %v2420, 96
  %v2424 = vpop.permute.xlu0 %2423
  %v2427 = vsel %vm1264, %v2349, %v2386
  %v2430 = vsel %vm1264, %v2350, %v2388
  %v2432 = vsel %vm1271, %v2427, %v2410
  %v2434 = vsel %vm1271, %v2430, %v2412
  %v2436 = vsel %vm1276, %v2432, %v2422
  %v2438 = vsel %vm1276, %v2434, %v2424
  %2439 = vst [vmem:[#allocation1] ss:$2 sm:$0xff] %v2436
  %s2440 = scalar_lea.vmem [#allocation1], 1
  %2441 = vst [vmem:[%s2440] ss:$2 sm:$0xff] %v2438
  %v2442 = vld.sshfl [vmem:[#allocation1] sm:$0xff pattern:$0x75643120]
  %2444 = vst [vmem:[#allocation5 + $0x30] sm:$0xf] %v2442
  %v2445 = vld [vmem:[%s2252] sm:$0x3]
  %v2446 = vld [vmem:[%s2252 + $0x8] sm:$0x3]
  %v2447 = vld [vmem:[%s2252] sm:$0xc]
  %v2448 = vld [vmem:[%s2252 + $0x4] sm:$0x1]
  %v2449 = vld [vmem:[%s2252 + $0x8] sm:$0xc]
  %v2450 = vld [vmem:[%s2252 + $0xc] sm:$0x1]
  %v2451 = vld [vmem:[%s2252] sm:$0x7]
  %v2452 = vld [vmem:[%s2252 + $0x8] sm:$0x7]
  %v2453 = vld [vmem:[%s2252] sm:$0x8]
  %v2454 = vld [vmem:[%s2252 + $0x8] sm:$0x8]
  %v2459 = vunpack.c.l.b16 %v2447
  %v2460 = vunpack.c.l.b16 %v2448
  %v2461 = vunpack.c.l.b16 %v2449
  %v2462 = vunpack.c.l.b16 %v2450
  %v2463 = vpack.c.b16 %v2460, %v2459
  %v2464 = vpack.c.b16 %v2462, %v2461
  %v2466 = vshrl.u32 %v2463, 16
  %v2468 = vrot.slane %v2466, 2
  %v2469 = vshll.u32 %v2463, 16
  %v2471 = vrot.slane %v2469, 3
  %v2472 = vor.u32 %v2468, %v2471
  %v2474 = vshrl.u32 %v2464, 16
  %v2476 = vrot.slane %v2474, 2
  %v2477 = vshll.u32 %v2464, 16
  %v2479 = vrot.slane %v2477, 3
  %v2480 = vor.u32 %v2476, %v2479
  %2481 = vrot.lane.b32.xlu0 %v2472, 32
  %v2482 = vpop.permute.xlu0 %2481
  %2483 = vrot.lane.b32.xlu0 %v2480, 32
  %v2484 = vpop.permute.xlu0 %2483
  %v2487 = vunpack.c.l.b16 %v2451
  %v2488 = vunpack.c.l.b16 %v2452
  %v2489 = vpack.c.b16 %v2487, %v2487
  %v2490 = vpack.c.b16 %v2488, %v2488
  %v2492 = vshrl.u32 %v2489, 16
  %v2494 = vshll.u32 %v2489, 16
  %v2496 = vrot.slane %v2494, 1
  %v2497 = vor.u32 %v2492, %v2496
  %v2499 = vshrl.u32 %v2490, 16
  %v2501 = vshll.u32 %v2490, 16
  %v2503 = vrot.slane %v2501, 1
  %v2504 = vor.u32 %v2499, %v2503
  %2505 = vrot.lane.b32.xlu0 %v2497, 64
  %v2506 = vpop.permute.xlu0 %2505
  %2507 = vrot.lane.b32.xlu0 %v2504, 64
  %v2508 = vpop.permute.xlu0 %2507
  %v2511 = vunpack.c.l.b16 %v2453
  %v2512 = vunpack.c.l.b16 %v2454
  %v2513 = vpack.c.b16 %v2460, %v2511
  %v2514 = vpack.c.b16 %v2462, %v2512
  %v2515 = vrot.slane %v2513, 3
  %v2516 = vrot.slane %v2514, 3
  %2517 = vrot.lane.b32.xlu0 %v2515, 96
  %v2518 = vpop.permute.xlu0 %2517
  %2519 = vrot.lane.b32.xlu0 %v2516, 96
  %v2520 = vpop.permute.xlu0 %2519
  %v2523 = vsel %vm1264, %v2445, %v2482
  %v2526 = vsel %vm1264, %v2446, %v2484
  %v2528 = vsel %vm1271, %v2523, %v2506
  %v2530 = vsel %vm1271, %v2526, %v2508
  %v2532 = vsel %vm1276, %v2528, %v2518
  %v2534 = vsel %vm1276, %v2530, %v2520
  %2535 = vst [vmem:[#allocation1] ss:$2 sm:$0xff] %v2532
  %s2536 = scalar_lea.vmem [#allocation1], 1
  %2537 = vst [vmem:[%s2536] ss:$2 sm:$0xff] %v2534
  %v2538 = vld.sshfl [vmem:[#allocation1] sm:$0xff pattern:$0x75643120]
  %2540 = vst [vmem:[#allocation5 + $0x34] sm:$0xf] %v2538
  %s2541 = scalar_lea.vmem [#allocation2], 128
  %v2542 = vld [vmem:[%s2541] sm:$0x3]
  %v2543 = vld [vmem:[%s2541 + $0x8] sm:$0x3]
  %v2544 = vld [vmem:[%s2541] sm:$0xc]
  %v2545 = vld [vmem:[%s2541 + $0x4] sm:$0x1]
  %v2546 = vld [vmem:[%s2541 + $0x8] sm:$0xc]
  %v2547 = vld [vmem:[%s2541 + $0xc] sm:$0x1]
  %v2548 = vld [vmem:[%s2541] sm:$0x7]
  %v2549 = vld [vmem:[%s2541 + $0x8] sm:$0x7]
  %v2550 = vld [vmem:[%s2541] sm:$0x8]
  %v2551 = vld [vmem:[%s2541 + $0x8] sm:$0x8]
  %v2556 = vunpack.c.l.b16 %v2544
  %v2557 = vunpack.c.l.b16 %v2545
  %v2558 = vunpack.c.l.b16 %v2546
  %v2559 = vunpack.c.l.b16 %v2547
  %v2560 = vpack.c.b16 %v2557, %v2556
  %v2561 = vpack.c.b16 %v2559, %v2558
  %v2563 = vshrl.u32 %v2560, 16
  %v2565 = vrot.slane %v2563, 2
  %v2566 = vshll.u32 %v2560, 16
  %v2568 = vrot.slane %v2566, 3
  %v2569 = vor.u32 %v2565, %v2568
  %v2571 = vshrl.u32 %v2561, 16
  %v2573 = vrot.slane %v2571, 2
  %v2574 = vshll.u32 %v2561, 16
  %v2576 = vrot.slane %v2574, 3
  %v2577 = vor.u32 %v2573, %v2576
  %2578 = vrot.lane.b32.xlu0 %v2569, 32
  %v2579 = vpop.permute.xlu0 %2578
  %2580 = vrot.lane.b32.xlu0 %v2577, 32
  %v2581 = vpop.permute.xlu0 %2580
  %v2584 = vunpack.c.l.b16 %v2548
  %v2585 = vunpack.c.l.b16 %v2549
  %v2586 = vpack.c.b16 %v2584, %v2584
  %v2587 = vpack.c.b16 %v2585, %v2585
  %v2589 = vshrl.u32 %v2586, 16
  %v2591 = vshll.u32 %v2586, 16
  %v2593 = vrot.slane %v2591, 1
  %v2594 = vor.u32 %v2589, %v2593
  %v2596 = vshrl.u32 %v2587, 16
  %v2598 = vshll.u32 %v2587, 16
  %v2600 = vrot.slane %v2598, 1
  %v2601 = vor.u32 %v2596, %v2600
  %2602 = vrot.lane.b32.xlu0 %v2594, 64
  %v2603 = vpop.permute.xlu0 %2602
  %2604 = vrot.lane.b32.xlu0 %v2601, 64
  %v2605 = vpop.permute.xlu0 %2604
  %v2608 = vunpack.c.l.b16 %v2550
  %v2609 = vunpack.c.l.b16 %v2551
  %v2610 = vpack.c.b16 %v2557, %v2608
  %v2611 = vpack.c.b16 %v2559, %v2609
  %v2612 = vrot.slane %v2610, 3
  %v2613 = vrot.slane %v2611, 3
  %2614 = vrot.lane.b32.xlu0 %v2612, 96
  %v2615 = vpop.permute.xlu0 %2614
  %2616 = vrot.lane.b32.xlu0 %v2613, 96
  %v2617 = vpop.permute.xlu0 %2616
  %v2620 = vsel %vm1264, %v2542, %v2579
  %v2623 = vsel %vm1264, %v2543, %v2581
  %v2625 = vsel %vm1271, %v2620, %v2603
  %v2627 = vsel %vm1271, %v2623, %v2605
  %v2629 = vsel %vm1276, %v2625, %v2615
  %v2631 = vsel %vm1276, %v2627, %v2617
  %2632 = vst [vmem:[#allocation1] ss:$2 sm:$0xff] %v2629
  %s2633 = scalar_lea.vmem [#allocation1], 1
  %2634 = vst [vmem:[%s2633] ss:$2 sm:$0xff] %v2631
  %v2635 = vld.sshfl [vmem:[#allocation1] sm:$0xff pattern:$0x75643120]
  %2637 = vst [vmem:[#allocation5 + $0x38] sm:$0xf] %v2635
  %v2638 = vld [vmem:[%s39] sm:$0x3]
  %v2639 = vld [vmem:[%s39 + $0x8] sm:$0x3]
  %v2640 = vld [vmem:[%s39] sm:$0xc]
  %v2641 = vld [vmem:[%s39 + $0x4] sm:$0x1]
  %v2642 = vld [vmem:[%s39 + $0x8] sm:$0xc]
  %v2643 = vld [vmem:[%s39 + $0xc] sm:$0x1]
  %v2644 = vld [vmem:[%s39] sm:$0x7]
  %v2645 = vld [vmem:[%s39 + $0x8] sm:$0x7]
  %v2646 = vld [vmem:[%s39] sm:$0x8]
  %v2647 = vld [vmem:[%s39 + $0x8] sm:$0x8]
  %v2652 = vunpack.c.l.b16 %v2640
  %v2653 = vunpack.c.l.b16 %v2641
  %v2654 = vunpack.c.l.b16 %v2642
  %v2655 = vunpack.c.l.b16 %v2643
  %v2656 = vpack.c.b16 %v2653, %v2652
  %v2657 = vpack.c.b16 %v2655, %v2654
  %v2659 = vshrl.u32 %v2656, 16
  %v2661 = vrot.slane %v2659, 2
  %v2662 = vshll.u32 %v2656, 16
  %v2664 = vrot.slane %v2662, 3
  %v2665 = vor.u32 %v2661, %v2664
  %v2667 = vshrl.u32 %v2657, 16
  %v2669 = vrot.slane %v2667, 2
  %v2670 = vshll.u32 %v2657, 16
  %v2672 = vrot.slane %v2670, 3
  %v2673 = vor.u32 %v2669, %v2672
  %2674 = vrot.lane.b32.xlu0 %v2665, 32
  %v2675 = vpop.permute.xlu0 %2674
  %2676 = vrot.lane.b32.xlu0 %v2673, 32
  %v2677 = vpop.permute.xlu0 %2676
  %v2680 = vunpack.c.l.b16 %v2644
  %v2681 = vunpack.c.l.b16 %v2645
  %v2682 = vpack.c.b16 %v2680, %v2680
  %v2683 = vpack.c.b16 %v2681, %v2681
  %v2685 = vshrl.u32 %v2682, 16
  %v2687 = vshll.u32 %v2682, 16
  %v2689 = vrot.slane %v2687, 1
  %v2690 = vor.u32 %v2685, %v2689
  %v2692 = vshrl.u32 %v2683, 16
  %v2694 = vshll.u32 %v2683, 16
  %v2696 = vrot.slane %v2694, 1
  %v2697 = vor.u32 %v2692, %v2696
  %2698 = vrot.lane.b32.xlu0 %v2690, 64
  %v2699 = vpop.permute.xlu0 %2698
  %2700 = vrot.lane.b32.xlu0 %v2697, 64
  %v2701 = vpop.permute.xlu0 %2700
  %v2704 = vunpack.c.l.b16 %v2646
  %v2705 = vunpack.c.l.b16 %v2647
  %v2706 = vpack.c.b16 %v2653, %v2704
  %v2707 = vpack.c.b16 %v2655, %v2705
  %v2708 = vrot.slane %v2706, 3
  %v2709 = vrot.slane %v2707, 3
  %2710 = vrot.lane.b32.xlu0 %v2708, 96
  %v2711 = vpop.permute.xlu0 %2710
  %2712 = vrot.lane.b32.xlu0 %v2709, 96
  %v2713 = vpop.permute.xlu0 %2712
  %v2716 = vsel %vm1264, %v2638, %v2675
  %v2719 = vsel %vm1264, %v2639, %v2677
  %v2721 = vsel %vm1271, %v2716, %v2699
  %v2723 = vsel %vm1271, %v2719, %v2701
  %v2725 = vsel %vm1276, %v2721, %v2711
  %v2727 = vsel %vm1276, %v2723, %v2713
  %2728 = vst [vmem:[#allocation1] ss:$2 sm:$0xff] %v2725
  %s2729 = scalar_lea.vmem [#allocation1], 1
  %2730 = vst [vmem:[%s2729] ss:$2 sm:$0xff] %v2727
  %v2731 = vld.sshfl [vmem:[#allocation1] sm:$0xff pattern:$0x75643120]
  %2733 = vst [vmem:[#allocation5 + $0x3c] sm:$0xf] %v2731
  %v2734 = vld [vmem:[#allocation5] sm:$0xff]
  %v2735 = vld [vmem:[#allocation5 + $0x8] sm:$0xff]
  %v2736 = vld [vmem:[#allocation5 + $0x10] sm:$0xff]
  %v2737 = vld [vmem:[#allocation5 + $0x18] sm:$0xff]
  %v2738 = vld [vmem:[#allocation5 + $0x20] sm:$0xff]
  %v2739 = vld [vmem:[#allocation5 + $0x28] sm:$0xff]
  %v2740 = vld [vmem:[#allocation5 + $0x30] sm:$0xff]
  %v2741 = vld [vmem:[#allocation5 + $0x38] sm:$0xff]
  %v2742 = vld [vmem:[%s2] sm:$0xf]
  %v2743 = vld [vmem:[%s2 + $0x4] sm:$0xf]
  %v2744 = vld [vmem:[%s2 + $0x8] sm:$0xf]
  %v2745 = vld [vmem:[%s2 + $0xc] sm:$0xf]
  %v2746 = vld [vmem:[%s2 + $0x10] sm:$0xf]
  %v2747 = vld [vmem:[%s2 + $0x14] sm:$0xf]
  %v2748 = vld [vmem:[%s2 + $0x18] sm:$0xf]
  %v2749 = vld [vmem:[%s2 + $0x1c] sm:$0xf]
  %v2750 = vld [vmem:[%s2 + $0x20] sm:$0xf]
  %v2751 = vld [vmem:[%s2 + $0x24] sm:$0xf]
  %v2752 = vld [vmem:[%s2 + $0x28] sm:$0xf]
  %v2753 = vld [vmem:[%s2 + $0x2c] sm:$0xf]
  %v2754 = vld [vmem:[%s2 + $0x30] sm:$0xf]
  %v2755 = vld [vmem:[%s2 + $0x34] sm:$0xf]
  %v2756 = vld [vmem:[%s2 + $0x38] sm:$0xf]
  %v2757 = vld [vmem:[%s2 + $0x3c] sm:$0xf]
  %v2758 = vld [vmem:[%s2 + $0x40] sm:$0xf]
  %v2759 = vld [vmem:[%s2 + $0x44] sm:$0xf]
  %v2760 = vld [vmem:[%s2 + $0x48] sm:$0xf]
  %v2761 = vld [vmem:[%s2 + $0x4c] sm:$0xf]
  %v2762 = vld [vmem:[%s2 + $0x50] sm:$0xf]
  %v2763 = vld [vmem:[%s2 + $0x54] sm:$0xf]
  %v2764 = vld [vmem:[%s2 + $0x58] sm:$0xf]
  %v2765 = vld [vmem:[%s2 + $0x5c] sm:$0xf]
  %v2766 = vld [vmem:[%s2 + $0x60] sm:$0xf]
  %v2767 = vld [vmem:[%s2 + $0x64] sm:$0xf]
  %v2768 = vld [vmem:[%s2 + $0x68] sm:$0xf]
  %v2769 = vld [vmem:[%s2 + $0x6c] sm:$0xf]
  %v2770 = vld [vmem:[%s2 + $0x70] sm:$0xf]
  %v2771 = vld [vmem:[%s2 + $0x74] sm:$0xf]
  %v2772 = vld [vmem:[%s2 + $0x78] sm:$0xf]
  %v2773 = vld [vmem:[%s2 + $0x7c] sm:$0xf]
  %v2774 = vld [vmem:[%s2 + $0x80] sm:$0xf]
  %v2775 = vld [vmem:[%s2 + $0x84] sm:$0xf]
  %v2776 = vld [vmem:[%s2 + $0x88] sm:$0xf]
  %v2777 = vld [vmem:[%s2 + $0x8c] sm:$0xf]
  %v2778 = vld [vmem:[%s2 + $0x90] sm:$0xf]
  %v2779 = vld [vmem:[%s2 + $0x94] sm:$0xf]
  %v2780 = vld [vmem:[%s2 + $0x98] sm:$0xf]
  %v2781 = vld [vmem:[%s2 + $0x9c] sm:$0xf]
  %v2782 = vld [vmem:[%s2 + $0xa0] sm:$0xf]
  %v2783 = vld [vmem:[%s2 + $0xa4] sm:$0xf]
  %v2784 = vld [vmem:[%s2 + $0xa8] sm:$0xf]
  %v2785 = vld [vmem:[%s2 + $0xac] sm:$0xf]
  %v2786 = vld [vmem:[%s2 + $0xb0] sm:$0xf]
  %v2787 = vld [vmem:[%s2 + $0xb4] sm:$0xf]
  %v2788 = vld [vmem:[%s2 + $0xb8] sm:$0xf]
  %v2789 = vld [vmem:[%s2 + $0xbc] sm:$0xf]
  %v2790 = vld [vmem:[%s2 + $0xc0] sm:$0xf]
  %v2791 = vld [vmem:[%s2 + $0xc4] sm:$0xf]
  %v2792 = vld [vmem:[%s2 + $0xc8] sm:$0xf]
  %v2793 = vld [vmem:[%s2 + $0xcc] sm:$0xf]
  %v2794 = vld [vmem:[%s2 + $0xd0] sm:$0xf]
  %v2795 = vld [vmem:[%s2 + $0xd4] sm:$0xf]
  %v2796 = vld [vmem:[%s2 + $0xd8] sm:$0xf]
  %v2797 = vld [vmem:[%s2 + $0xdc] sm:$0xf]
  %v2798 = vld [vmem:[%s2 + $0xe0] sm:$0xf]
  %v2799 = vld [vmem:[%s2 + $0xe4] sm:$0xf]
  %v2800 = vld [vmem:[%s2 + $0xe8] sm:$0xf]
  %v2801 = vld [vmem:[%s2 + $0xec] sm:$0xf]
  %v2802 = vld [vmem:[%s2 + $0xf0] sm:$0xf]
  %v2803 = vld [vmem:[%s2 + $0xf4] sm:$0xf]
  %v2804 = vld [vmem:[%s2 + $0xf8] sm:$0xf]
  %v2805 = vld [vmem:[%s2 + $0xfc] sm:$0xf]
  %v2814 = vunpack.c.l.b16 %v2734
  %v2815 = vunpack.c.h.b16 %v2734
  %v2816 = vunpack.c.l.b16 %v2735
  %v2817 = vunpack.c.h.b16 %v2735
  %v2818 = vunpack.c.l.b16 %v2736
  %v2819 = vunpack.c.h.b16 %v2736
  %v2820 = vunpack.c.l.b16 %v2737
  %v2821 = vunpack.c.h.b16 %v2737
  %v2822 = vunpack.c.l.b16 %v2738
  %v2823 = vunpack.c.h.b16 %v2738
  %v2824 = vunpack.c.l.b16 %v2739
  %v2825 = vunpack.c.h.b16 %v2739
  %v2826 = vunpack.c.l.b16 %v2740
  %v2827 = vunpack.c.h.b16 %v2740
  %v2828 = vunpack.c.l.b16 %v2741
  %v2829 = vunpack.c.h.b16 %v2741
  %v2830 = vpack.c.b16 %v2818, %v2814
  %v2831 = vpack.c.b16 %v2819, %v2815
  %v2832 = vpack.c.b16 %v2820, %v2816
  %v2833 = vpack.c.b16 %v2821, %v2817
  %v2834 = vpack.c.b16 %v2826, %v2822
  %v2835 = vpack.c.b16 %v2827, %v2823
  %v2836 = vpack.c.b16 %v2828, %v2824
  %v2837 = vpack.c.b16 %v2829, %v2825
  %v2910 = vunpack.c.l.b16 %v2742
  %v2911 = vunpack.c.l.b16 %v2743
  %v2912 = vunpack.c.l.b16 %v2744
  %v2913 = vunpack.c.l.b16 %v2745
  %v2914 = vunpack.c.l.b16 %v2746
  %v2915 = vunpack.c.l.b16 %v2747
  %v2916 = vunpack.c.l.b16 %v2748
  %v2917 = vunpack.c.l.b16 %v2749
  %v2918 = vunpack.c.l.b16 %v2750
  %v2919 = vunpack.c.l.b16 %v2751
  %v2920 = vunpack.c.l.b16 %v2752
  %v2921 = vunpack.c.l.b16 %v2753
  %v2922 = vunpack.c.l.b16 %v2754
  %v2923 = vunpack.c.l.b16 %v2755
  %v2924 = vunpack.c.l.b16 %v2756
  %v2925 = vunpack.c.l.b16 %v2757
  %v2926 = vunpack.c.l.b16 %v2758
  %v2927 = vunpack.c.l.b16 %v2759
  %v2928 = vunpack.c.l.b16 %v2760
  %v2929 = vunpack.c.l.b16 %v2761
  %v2930 = vunpack.c.l.b16 %v2762
  %v2931 = vunpack.c.l.b16 %v2763
  %v2932 = vunpack.c.l.b16 %v2764
  %v2933 = vunpack.c.l.b16 %v2765
  %v2934 = vunpack.c.l.b16 %v2766
  %v2935 = vunpack.c.l.b16 %v2767
  %v2936 = vunpack.c.l.b16 %v2768
  %v2937 = vunpack.c.l.b16 %v2769
  %v2938 = vunpack.c.l.b16 %v2770
  %v2939 = vunpack.c.l.b16 %v2771
  %v2940 = vunpack.c.l.b16 %v2772
  %v2941 = vunpack.c.l.b16 %v2773
  %v2942 = vunpack.c.l.b16 %v2774
  %v2943 = vunpack.c.l.b16 %v2775
  %v2944 = vunpack.c.l.b16 %v2776
  %v2945 = vunpack.c.l.b16 %v2777
  %v2946 = vunpack.c.l.b16 %v2778
  %v2947 = vunpack.c.l.b16 %v2779
  %v2948 = vunpack.c.l.b16 %v2780
  %v2949 = vunpack.c.l.b16 %v2781
  %v2950 = vunpack.c.l.b16 %v2782
  %v2951 = vunpack.c.l.b16 %v2783
  %v2952 = vunpack.c.l.b16 %v2784
  %v2953 = vunpack.c.l.b16 %v2785
  %v2954 = vunpack.c.l.b16 %v2786
  %v2955 = vunpack.c.l.b16 %v2787
  %v2956 = vunpack.c.l.b16 %v2788
  %v2957 = vunpack.c.l.b16 %v2789
  %v2958 = vunpack.c.l.b16 %v2790
  %v2959 = vunpack.c.l.b16 %v2791
  %v2960 = vunpack.c.l.b16 %v2792
  %v2961 = vunpack.c.l.b16 %v2793
  %v2962 = vunpack.c.l.b16 %v2794
  %v2963 = vunpack.c.l.b16 %v2795
  %v2964 = vunpack.c.l.b16 %v2796
  %v2965 = vunpack.c.l.b16 %v2797
  %v2966 = vunpack.c.l.b16 %v2798
  %v2967 = vunpack.c.l.b16 %v2799
  %v2968 = vunpack.c.l.b16 %v2800
  %v2969 = vunpack.c.l.b16 %v2801
  %v2970 = vunpack.c.l.b16 %v2802
  %v2971 = vunpack.c.l.b16 %v2803
  %v2972 = vunpack.c.l.b16 %v2804
  %v2973 = vunpack.c.l.b16 %v2805
  %v2974 = vpack.c.b16 %v2911, %v2910
  %v2975 = vpack.c.b16 %v2913, %v2912
  %v2976 = vpack.c.b16 %v2915, %v2914
  %v2977 = vpack.c.b16 %v2917, %v2916
  %v2978 = vpack.c.b16 %v2919, %v2918
  %v2979 = vpack.c.b16 %v2921, %v2920
  %v2980 = vpack.c.b16 %v2923, %v2922
  %v2981 = vpack.c.b16 %v2925, %v2924
  %v2982 = vpack.c.b16 %v2927, %v2926
  %v2983 = vpack.c.b16 %v2929, %v2928
  %v2984 = vpack.c.b16 %v2931, %v2930
  %v2985 = vpack.c.b16 %v2933, %v2932
  %v2986 = vpack.c.b16 %v2935, %v2934
  %v2987 = vpack.c.b16 %v2937, %v2936
  %v2988 = vpack.c.b16 %v2939, %v2938
  %v2989 = vpack.c.b16 %v2941, %v2940
  %v2990 = vpack.c.b16 %v2943, %v2942
  %v2991 = vpack.c.b16 %v2945, %v2944
  %v2992 = vpack.c.b16 %v2947, %v2946
  %v2993 = vpack.c.b16 %v2949, %v2948
  %v2994 = vpack.c.b16 %v2951, %v2950
  %v2995 = vpack.c.b16 %v2953, %v2952
  %v2996 = vpack.c.b16 %v2955, %v2954
  %v2997 = vpack.c.b16 %v2957, %v2956
  %v2998 = vpack.c.b16 %v2959, %v2958
  %v2999 = vpack.c.b16 %v2961, %v2960
  %v3000 = vpack.c.b16 %v2963, %v2962
  %v3001 = vpack.c.b16 %v2965, %v2964
  %v3002 = vpack.c.b16 %v2967, %v2966
  %v3003 = vpack.c.b16 %v2969, %v2968
  %v3004 = vpack.c.b16 %v2971, %v2970
  %v3005 = vpack.c.b16 %v2973, %v2972
  %3038 = vmatpush.bf16.msra.mxu0 %v2981
  %3039 = vmatpush.bf16.msra.mxu0 %v2980
  %3040 = vmatpush.bf16.msra.mxu0 %v2979
  %3041 = vmatpush.bf16.msra.mxu0 %v2978
  %3042 = vmatpush.bf16.msra.mxu0 %v2977
  %3043 = vmatpush.bf16.msra.mxu0 %v2976
  %3044 = vmatpush.bf16.msra.mxu0 %v2975
  %3045 = vmatpush.bf16.msra.mxu0 %v2974
  %3046 = vmatmul.bf16.gmra.mxu0 %v2830
  %v3047 = vpop.f32.mrf.mxu0
  %v3048 = vadd.f32 0.0, %v3047
  %v3049 = vpop.f32.mrf.mxu0
  %v3050 = vadd.f32 0.0, %v3049
  %3051 = vmatmul.bf16.gmra.mxu0 %v2834
  %v3052 = vpop.f32.mrf.mxu0
  %v3053 = vadd.f32 0.0, %v3052
  %v3054 = vpop.f32.mrf.mxu0
  %v3055 = vadd.f32 0.0, %v3054
  %3056 = vdwg.mxu0
  %3057 = vmatpush.bf16.msra.mxu0 %v2989
  %3058 = vmatpush.bf16.msra.mxu0 %v2988
  %3059 = vmatpush.bf16.msra.mxu0 %v2987
  %3060 = vmatpush.bf16.msra.mxu0 %v2986
  %3061 = vmatpush.bf16.msra.mxu0 %v2985
  %3062 = vmatpush.bf16.msra.mxu0 %v2984
  %3063 = vmatpush.bf16.msra.mxu0 %v2983
  %3064 = vmatpush.bf16.msra.mxu0 %v2982
  %3065 = vmatmul.bf16.gmra.mxu0 %v2831
  %v3066 = vpop.f32.mrf.mxu0
  %v3067 = vadd.f32 %v3048, %v3066
  %v3068 = vpop.f32.mrf.mxu0
  %v3069 = vadd.f32 %v3050, %v3068
  %3070 = vmatmul.bf16.gmra.mxu0 %v2835
  %v3071 = vpop.f32.mrf.mxu0
  %v3072 = vadd.f32 %v3053, %v3071
  %v3073 = vpop.f32.mrf.mxu0
  %v3074 = vadd.f32 %v3055, %v3073
  %3075 = vdwg.mxu0
  %3076 = vmatpush.bf16.msra.mxu0 %v2997
  %3077 = vmatpush.bf16.msra.mxu0 %v2996
  %3078 = vmatpush.bf16.msra.mxu0 %v2995
  %3079 = vmatpush.bf16.msra.mxu0 %v2994
  %3080 = vmatpush.bf16.msra.mxu0 %v2993
  %3081 = vmatpush.bf16.msra.mxu0 %v2992
  %3082 = vmatpush.bf16.msra.mxu0 %v2991
  %3083 = vmatpush.bf16.msra.mxu0 %v2990
  %3084 = vmatmul.bf16.gmra.mxu0 %v2832
  %v3085 = vpop.f32.mrf.mxu0
  %v3086 = vadd.f32 %v3067, %v3085
  %v3087 = vpop.f32.mrf.mxu0
  %v3088 = vadd.f32 %v3069, %v3087
  %3089 = vmatmul.bf16.gmra.mxu0 %v2836
  %v3090 = vpop.f32.mrf.mxu0
  %v3091 = vadd.f32 %v3072, %v3090
  %v3092 = vpop.f32.mrf.mxu0
  %v3093 = vadd.f32 %v3074, %v3092
  %3094 = vdwg.mxu0
  %3095 = vmatpush.bf16.msra.mxu0 %v3005
  %3096 = vmatpush.bf16.msra.mxu0 %v3004
  %3097 = vmatpush.bf16.msra.mxu0 %v3003
  %3098 = vmatpush.bf16.msra.mxu0 %v3002
  %3099 = vmatpush.bf16.msra.mxu0 %v3001
  %3100 = vmatpush.bf16.msra.mxu0 %v3000
  %3101 = vmatpush.bf16.msra.mxu0 %v2999
  %3102 = vmatpush.bf16.msra.mxu0 %v2998
  %3103 = vmatmul.bf16.gmra.mxu0 %v2833
  %v3104 = vpop.f32.mrf.mxu0
  %v3105 = vadd.f32 %v3086, %v3104
  %v3106 = vpop.f32.mrf.mxu0
  %v3107 = vadd.f32 %v3088, %v3106
  %3108 = vmatmul.bf16.gmra.mxu0 %v2837
  %v3109 = vpop.f32.mrf.mxu0
  %v3110 = vadd.f32 %v3091, %v3109
  %v3111 = vpop.f32.mrf.mxu0
  %v3112 = vadd.f32 %v3093, %v3111
  %3113 = vdwg.mxu0
  %v3114 = vld [vmem:[%s5] sm:$0x1]
  %v3115 = vld [vmem:[%s6] sm:$0x1]
  %v3116 = vsel %vm1271, %v3105, 0.0
  %v3117 = vsel %vm1271, %v3107, 0.0
  %v3118 = vadd.f32 %v3116, %v3117
  %v3119 = vsel %vm1271, %v3110, 0.0
  %v3120 = vadd.f32 %v3118, %v3119
  %v3121 = vsel %vm1271, %v3112, 0.0
  %v3122 = vadd.f32 %v3120, %v3121
  %v3123 = vrot.slane %v3122, 4
  %v3124 = vadd.f32 %v3122, %v3123
  %v3125 = vrot.slane %v3124, 2
  %v3126 = vadd.f32 %v3124, %v3125
  %v3127 = vrot.slane %v3126, 1
  %v3128 = vadd.f32 %v3126, %v3127
  %v3129 = vrcp.pop 32.0
  %v3130 = vmul.f32 32.0, %v3129
  %v3131 = vsub.f32 1.0, %v3130
  %v3132 = vmul.f32 %v3129, %v3131
  %v3133 = vadd.f32 %v3129, %v3132
  %vm3134 = vweird.f32 %v3129
  %v3135 = vsel %vm3134, %v3129, %v3133
  %v3136 = vmul.f32 %v3128, %v3135
  %v3137 = vsub.f32 %v3105, %v3136
  %v3138 = vsub.f32 %v3107, %v3136
  %v3139 = vsub.f32 %v3110, %v3136
  %v3140 = vsub.f32 %v3112, %v3136
  %v3141 = vmul.f32 %v3137, %v3137
  %v3142 = vmul.f32 %v3138, %v3138
  %v3143 = vmul.f32 %v3139, %v3139
  %v3144 = vmul.f32 %v3140, %v3140
  %v3145 = vsel %vm1271, %v3141, 0.0
  %v3146 = vsel %vm1271, %v3142, 0.0
  %v3147 = vadd.f32 %v3145, %v3146
  %v3148 = vsel %vm1271, %v3143, 0.0
  %v3149 = vadd.f32 %v3147, %v3148
  %v3150 = vsel %vm1271, %v3144, 0.0
  %v3151 = vadd.f32 %v3149, %v3150
  %v3152 = vrot.slane %v3151, 4
  %v3153 = vadd.f32 %v3151, %v3152
  %v3154 = vrot.slane %v3153, 2
  %v3155 = vadd.f32 %v3153, %v3154
  %v3156 = vrot.slane %v3155, 1
  %v3157 = vadd.f32 %v3155, %v3156
  %v3158 = vmul.f32 %v3157, %v3135
  %v3159 = vadd.f32 %v3158, 1e-05
  %v3160 = vrsqrt.pop %v3159
  %v3161 = vmul.f32 %v3160, %v3159
  %v3162 = vmul.f32 %v3161, %v3160
  %v3163 = vmul.f32 0.5, %v3162
  %v3164 = vsub.f32 1.5, %v3163
  %v3165 = vmul.f32 %v3160, %v3164
  %vm3166 = vweird.f32 %v3159
  %vm3167 = vweird.f32 %v3160
  %vm3168 = vmor %vm3166, %vm3167
  %v3169 = vsel %vm3168, %v3160, %v3165
  %v3170 = vmul.f32 %v3114, %v3169
  %v3172 = vperm.slane %v3170, 0
  %v3174 = vmul.f32 %v3105, %v3172
  %v3175 = vmul.f32 %v3107, %v3172
  %v3176 = vmul.f32 %v3110, %v3172
  %v3177 = vmul.f32 %v3112, %v3172
  %v3178 = vmul.f32 %v3136, %v3170
  %v3179 = vsub.f32 %v3115, %v3178
  %v3181 = vperm.slane %v3179, 0
  %v3183 = vadd.f32 %v3174, %v3181
  %v3184 = vadd.f32 %v3175, %v3181
  %v3185 = vadd.f32 %v3176, %v3181
  %v3186 = vadd.f32 %v3177, %v3181
  %vm3187 = vcmp.gt.f32.partialorder %v3183, 0.0
  %vm3188 = vcmp.gt.f32.partialorder %v3184, 0.0
  %vm3189 = vcmp.gt.f32.partialorder %v3185, 0.0
  %vm3190 = vcmp.gt.f32.partialorder %v3186, 0.0
  %v3191 = vmul.f32 %v3183, 0.2
  %v3192 = vmul.f32 %v3184, 0.2
  %v3193 = vmul.f32 %v3185, 0.2
  %v3194 = vmul.f32 %v3186, 0.2
  %v3195 = vsel %vm3187, %v3183, %v3191
  %v3196 = vsel %vm3188, %v3184, %v3192
  %v3197 = vsel %vm3189, %v3185, %v3193
  %v3198 = vsel %vm3190, %v3186, %v3194
  %v3199 = vpack.c.bf16 %v3195, %v3195
  %v3200 = vpack.c.bf16 %v3196, %v3196
  %v3201 = vpack.c.bf16 %v3197, %v3197
  %v3202 = vpack.c.bf16 %v3198, %v3198
  %v3207 = vrot.slane %v3199, 3
  %v3208 = vrot.slane %v3200, 3
  %v3209 = vrot.slane %v3201, 3
  %v3210 = vrot.slane %v3202, 3
  %vm3211 = vcmask 1040384
  %v3214 = vsel %vm3211, %v3199, %v3207
  %vm3215 = vcmask 1041409
  %v3216 = vsel %vm3215, %v3199, %v3207
  %v3218 = vrot.slane %v3216, 1
  %vm3219 = vcmask 1042434
  %v3220 = vsel %vm3219, %v3199, %v3207
  %v3222 = vrot.slane %v3220, 2
  %vm3223 = vcmask 1043459
  %v3224 = vsel %vm3223, %v3199, %v3207
  %v3226 = vrot.slane %v3224, 3
  %v3229 = vsel %vm3211, %v3200, %v3208
  %v3230 = vsel %vm3215, %v3200, %v3208
  %v3232 = vrot.slane %v3230, 1
  %v3233 = vsel %vm3219, %v3200, %v3208
  %v3235 = vrot.slane %v3233, 2
  %v3236 = vsel %vm3223, %v3200, %v3208
  %v3238 = vrot.slane %v3236, 3
  %v3241 = vsel %vm3211, %v3201, %v3209
  %v3242 = vsel %vm3215, %v3201, %v3209
  %v3244 = vrot.slane %v3242, 1
  %v3245 = vsel %vm3219, %v3201, %v3209
  %v3247 = vrot.slane %v3245, 2
  %v3248 = vsel %vm3223, %v3201, %v3209
  %v3250 = vrot.slane %v3248, 3
  %v3253 = vsel %vm3211, %v3202, %v3210
  %v3254 = vsel %vm3215, %v3202, %v3210
  %v3256 = vrot.slane %v3254, 1
  %v3257 = vsel %vm3219, %v3202, %v3210
  %v3259 = vrot.slane %v3257, 2
  %v3260 = vsel %vm3223, %v3202, %v3210
  %v3262 = vrot.slane %v3260, 3
  %3263 = vst [vmem:[#allocation1] ss:$4 sm:$0xff] %v3214
  %v3264 = vld [vmem:[#allocation1] sm:$0xff]
  %s3267 = scalar_lea.vmem [#allocation1], 32
  %3268 = vst [vmem:[%s3267] ss:$4 sm:$0xff] %v3218
  %v3269 = vld [vmem:[#allocation1 + $0x20] sm:$0xff]
  %3272 = vst [vmem:[#allocation1] ss:$4 sm:$0xff] %v3222
  %v3273 = vld [vmem:[#allocation1] sm:$0xff]
  %3276 = vst [vmem:[%s3267] ss:$4 sm:$0xff] %v3226
  %v3277 = vld [vmem:[#allocation1 + $0x20] sm:$0xff]
  %3279 = vst [vmem:[#allocation1] ss:$4 sm:$0xff] %v3229
  %v3280 = vld [vmem:[#allocation1] sm:$0xff]
  %3283 = vst [vmem:[%s3267] ss:$4 sm:$0xff] %v3232
  %v3284 = vld [vmem:[#allocation1 + $0x20] sm:$0xff]
  %3287 = vst [vmem:[#allocation1] ss:$4 sm:$0xff] %v3235
  %v3288 = vld [vmem:[#allocation1] sm:$0xff]
  %3291 = vst [vmem:[%s3267] ss:$4 sm:$0xff] %v3238
  %v3292 = vld [vmem:[#allocation1 + $0x20] sm:$0xff]
  %3294 = vst [vmem:[#allocation1] ss:$4 sm:$0xff] %v3241
  %v3295 = vld [vmem:[#allocation1] sm:$0xff]
  %3298 = vst [vmem:[%s3267] ss:$4 sm:$0xff] %v3244
  %v3299 = vld [vmem:[#allocation1 + $0x20] sm:$0xff]
  %3302 = vst [vmem:[#allocation1] ss:$4 sm:$0xff] %v3247
  %v3303 = vld [vmem:[#allocation1] sm:$0xff]
  %3306 = vst [vmem:[%s3267] ss:$4 sm:$0xff] %v3250
  %v3307 = vld [vmem:[#allocation1 + $0x20] sm:$0xff]
  %3309 = vst [vmem:[#allocation1] ss:$4 sm:$0xff] %v3253
  %v3310 = vld [vmem:[#allocation1] sm:$0xff]
  %3313 = vst [vmem:[%s3267] ss:$4 sm:$0xff] %v3256
  %v3314 = vld [vmem:[#allocation1 + $0x20] sm:$0xff]
  %3317 = vst [vmem:[#allocation1] ss:$4 sm:$0xff] %v3259
  %v3318 = vld [vmem:[#allocation1] sm:$0xff]
  %3321 = vst [vmem:[%s3267] ss:$4 sm:$0xff] %v3262
  %v3322 = vld [vmem:[#allocation1 + $0x20] sm:$0xff]
  %v3324 = vunpack.c.l.b16 %v3264
  %v3325 = vunpack.c.l.b16 %v3269
  %v3326 = vunpack.c.l.b16 %v3273
  %v3327 = vunpack.c.l.b16 %v3277
  %v3328 = vunpack.c.l.b16 %v3280
  %v3329 = vunpack.c.l.b16 %v3284
  %v3330 = vunpack.c.l.b16 %v3288
  %v3331 = vunpack.c.l.b16 %v3292
  %v3332 = vunpack.c.l.b16 %v3295
  %v3333 = vunpack.c.l.b16 %v3299
  %v3334 = vunpack.c.l.b16 %v3303
  %v3335 = vunpack.c.l.b16 %v3307
  %v3336 = vunpack.c.l.b16 %v3310
  %v3337 = vunpack.c.l.b16 %v3314
  %v3338 = vunpack.c.l.b16 %v3318
  %v3339 = vunpack.c.l.b16 %v3322
  %v3340 = vrot.slane %v3324, 5
  %v3341 = vrot.slane %v3325, 4
  %vm3342 = vcmask 1044484
  %v3343 = vsel %vm3342, %v3341, %v3340
  %v3344 = vrot.slane %v3326, 5
  %v3345 = vrot.slane %v3327, 4
  %v3346 = vsel %vm3342, %v3345, %v3344
  %v3347 = vrot.slane %v3328, 5
  %v3348 = vrot.slane %v3329, 4
  %v3349 = vsel %vm3342, %v3348, %v3347
  %v3350 = vrot.slane %v3330, 5
  %v3351 = vrot.slane %v3331, 4
  %v3352 = vsel %vm3342, %v3351, %v3350
  %v3353 = vrot.slane %v3332, 5
  %v3354 = vrot.slane %v3333, 4
  %v3355 = vsel %vm3342, %v3354, %v3353
  %v3356 = vrot.slane %v3334, 5
  %v3357 = vrot.slane %v3335, 4
  %v3358 = vsel %vm3342, %v3357, %v3356
  %v3359 = vrot.slane %v3336, 5
  %v3360 = vrot.slane %v3337, 4
  %v3361 = vsel %vm3342, %v3360, %v3359
  %v3362 = vrot.slane %v3338, 5
  %v3363 = vrot.slane %v3339, 4
  %v3364 = vsel %vm3342, %v3363, %v3362
  %v3365 = vpack.c.b16 %v3343, %v3343
  %v3366 = vpack.c.b16 %v3346, %v3346
  %v3367 = vpack.c.b16 %v3349, %v3349
  %v3368 = vpack.c.b16 %v3352, %v3352
  %v3369 = vpack.c.b16 %v3355, %v3355
  %v3370 = vpack.c.b16 %v3358, %v3358
  %v3371 = vpack.c.b16 %v3361, %v3361
  %v3372 = vpack.c.b16 %v3364, %v3364
  %s3381 = scalar_lea.vmem [#allocation3], 8
  %vm3382 = vcmask 518145
  %vm3383 = vsmask.f32 2310
  %vm3384 = vmand %vm3382, %vm3383
  %v3385 = vld [vmem:[%s3381] sm:$0x6]
  %v3386 = vsel %vm3384, %v3365, %v3385
  %3387 = vst [vmem:[%s3381] sm:$0x6] %v3386
  %v3388 = vld [vmem:[%s3381 + $0x4] sm:$0x6]
  %v3389 = vsel %vm3384, %v3366, %v3388
  %3390 = vst [vmem:[%s3381 + $0x4] sm:$0x6] %v3389
  %v3391 = vld [vmem:[%s3381 + $0x8] sm:$0x6]
  %v3392 = vsel %vm3384, %v3367, %v3391
  %3393 = vst [vmem:[%s3381 + $0x8] sm:$0x6] %v3392
  %v3394 = vld [vmem:[%s3381 + $0xc] sm:$0x6]
  %v3395 = vsel %vm3384, %v3368, %v3394
  %3396 = vst [vmem:[%s3381 + $0xc] sm:$0x6] %v3395
  %v3397 = vld [vmem:[%s3381 + $0x10] sm:$0x6]
  %v3398 = vsel %vm3384, %v3369, %v3397
  %3399 = vst [vmem:[%s3381 + $0x10] sm:$0x6] %v3398
  %v3400 = vld [vmem:[%s3381 + $0x14] sm:$0x6]
  %v3401 = vsel %vm3384, %v3370, %v3400
  %3402 = vst [vmem:[%s3381 + $0x14] sm:$0x6] %v3401
  %v3403 = vld [vmem:[%s3381 + $0x18] sm:$0x6]
  %v3404 = vsel %vm3384, %v3371, %v3403
  %3405 = vst [vmem:[%s3381 + $0x18] sm:$0x6] %v3404
  %v3406 = vld [vmem:[%s3381 + $0x1c] sm:$0x6]
  %v3407 = vsel %vm3384, %v3372, %v3406
  %3408 = vst [vmem:[%s3381 + $0x1c] sm:$0x6] %v3407
  %3409 = vst [vmem:[#allocation1] ss:$4 sm:$0xff] %v3214
  %v3410 = vld [vmem:[#allocation1] sm:$0xff]
  %s3412 = scalar_lea.vmem [#allocation1], 32
  %3413 = vst [vmem:[%s3412] ss:$4 sm:$0xff] %v3218
  %v3414 = vld [vmem:[#allocation1 + $0x20] sm:$0xff]
  %3416 = vst [vmem:[#allocation1] ss:$4 sm:$0xff] %v3222
  %v3417 = vld [vmem:[#allocation1] sm:$0xff]
  %3419 = vst [vmem:[%s3412] ss:$4 sm:$0xff] %v3226
  %v3420 = vld [vmem:[#allocation1 + $0x20] sm:$0xff]
  %3422 = vst [vmem:[#allocation1] ss:$4 sm:$0xff] %v3229
  %v3423 = vld [vmem:[#allocation1] sm:$0xff]
  %3425 = vst [vmem:[%s3412] ss:$4 sm:$0xff] %v3232
  %v3426 = vld [vmem:[#allocation1 + $0x20] sm:$0xff]
  %3428 = vst [vmem:[#allocation1] ss:$4 sm:$0xff] %v3235
  %v3429 = vld [vmem:[#allocation1] sm:$0xff]
  %3431 = vst [vmem:[%s3412] ss:$4 sm:$0xff] %v3238
  %v3432 = vld [vmem:[#allocation1 + $0x20] sm:$0xff]
  %3434 = vst [vmem:[#allocation1] ss:$4 sm:$0xff] %v3241
  %v3435 = vld [vmem:[#allocation1] sm:$0xff]
  %3437 = vst [vmem:[%s3412] ss:$4 sm:$0xff] %v3244
  %v3438 = vld [vmem:[#allocation1 + $0x20] sm:$0xff]
  %3440 = vst [vmem:[#allocation1] ss:$4 sm:$0xff] %v3247
  %v3441 = vld [vmem:[#allocation1] sm:$0xff]
  %3443 = vst [vmem:[%s3412] ss:$4 sm:$0xff] %v3250
  %v3444 = vld [vmem:[#allocation1 + $0x20] sm:$0xff]
  %3446 = vst [vmem:[#allocation1] ss:$4 sm:$0xff] %v3253
  %v3447 = vld [vmem:[#allocation1] sm:$0xff]
  %3449 = vst [vmem:[%s3412] ss:$4 sm:$0xff] %v3256
  %v3450 = vld [vmem:[#allocation1 + $0x20] sm:$0xff]
  %3452 = vst [vmem:[#allocation1] ss:$4 sm:$0xff] %v3259
  %v3453 = vld [vmem:[#allocation1] sm:$0xff]
  %3455 = vst [vmem:[%s3412] ss:$4 sm:$0xff] %v3262
  %v3456 = vld [vmem:[#allocation1 + $0x20] sm:$0xff]
  %v3458 = vunpack.c.l.b16 %v3410
  %v3459 = vunpack.c.l.b16 %v3414
  %v3460 = vunpack.c.l.b16 %v3417
  %v3461 = vunpack.c.l.b16 %v3420
  %v3462 = vunpack.c.l.b16 %v3423
  %v3463 = vunpack.c.l.b16 %v3426
  %v3464 = vunpack.c.l.b16 %v3429
  %v3465 = vunpack.c.l.b16 %v3432
  %v3466 = vunpack.c.l.b16 %v3435
  %v3467 = vunpack.c.l.b16 %v3438
  %v3468 = vunpack.c.l.b16 %v3441
  %v3469 = vunpack.c.l.b16 %v3444
  %v3470 = vunpack.c.l.b16 %v3447
  %v3471 = vunpack.c.l.b16 %v3450
  %v3472 = vunpack.c.l.b16 %v3453
  %v3473 = vunpack.c.l.b16 %v3456
  %v3474 = vrot.slane %v3459, 7
  %v3475 = vsel %vm3219, %v3474, %v3458
  %v3476 = vrot.slane %v3461, 7
  %v3477 = vsel %vm3219, %v3476, %v3460
  %v3478 = vrot.slane %v3463, 7
  %v3479 = vsel %vm3219, %v3478, %v3462
  %v3480 = vrot.slane %v3465, 7
  %v3481 = vsel %vm3219, %v3480, %v3464
  %v3482 = vrot.slane %v3467, 7
  %v3483 = vsel %vm3219, %v3482, %v3466
  %v3484 = vrot.slane %v3469, 7
  %v3485 = vsel %vm3219, %v3484, %v3468
  %v3486 = vrot.slane %v3471, 7
  %v3487 = vsel %vm3219, %v3486, %v3470
  %v3488 = vrot.slane %v3473, 7
  %v3489 = vsel %vm3219, %v3488, %v3472
  %v3490 = vpack.c.b16 %v3475, %v3475
  %v3491 = vpack.c.b16 %v3477, %v3477
  %v3492 = vpack.c.b16 %v3479, %v3479
  %v3493 = vpack.c.b16 %v3481, %v3481
  %v3494 = vpack.c.b16 %v3483, %v3483
  %v3495 = vpack.c.b16 %v3485, %v3485
  %v3496 = vpack.c.b16 %v3487, %v3487
  %v3497 = vpack.c.b16 %v3489, %v3489
  %vm3506 = vcmask 517120
  %vm3507 = vsmask.f32 1282
  %vm3508 = vmand %vm3506, %vm3507
  %v3509 = vld [vmem:[%s3381] sm:$0x3]
  %v3510 = vsel %vm3508, %v3490, %v3509
  %3511 = vst [vmem:[%s3381] sm:$0x3] %v3510
  %v3512 = vld [vmem:[%s3381 + $0x4] sm:$0x3]
  %v3513 = vsel %vm3508, %v3491, %v3512
  %3514 = vst [vmem:[%s3381 + $0x4] sm:$0x3] %v3513
  %v3515 = vld [vmem:[%s3381 + $0x8] sm:$0x3]
  %v3516 = vsel %vm3508, %v3492, %v3515
  %3517 = vst [vmem:[%s3381 + $0x8] sm:$0x3] %v3516
  %v3518 = vld [vmem:[%s3381 + $0xc] sm:$0x3]
  %v3519 = vsel %vm3508, %v3493, %v3518
  %3520 = vst [vmem:[%s3381 + $0xc] sm:$0x3] %v3519
  %v3521 = vld [vmem:[%s3381 + $0x10] sm:$0x3]
  %v3522 = vsel %vm3508, %v3494, %v3521
  %3523 = vst [vmem:[%s3381 + $0x10] sm:$0x3] %v3522
  %v3524 = vld [vmem:[%s3381 + $0x14] sm:$0x3]
  %v3525 = vsel %vm3508, %v3495, %v3524
  %3526 = vst [vmem:[%s3381 + $0x14] sm:$0x3] %v3525
  %v3527 = vld [vmem:[%s3381 + $0x18] sm:$0x3]
  %v3528 = vsel %vm3508, %v3496, %v3527
  %3529 = vst [vmem:[%s3381 + $0x18] sm:$0x3] %v3528
  %v3530 = vld [vmem:[%s3381 + $0x1c] sm:$0x3]
  %v3531 = vsel %vm3508, %v3497, %v3530
  %3532 = vst [vmem:[%s3381 + $0x1c] sm:$0x3] %v3531
  %v3533 = vld [vmem:[#allocation3] sm:$0x1]
  %v3534 = vld [vmem:[#allocation3 + $0x4] sm:$0x1]
  %v3535 = vld [vmem:[#allocation3] sm:$0x6]
  %v3536 = vld [vmem:[#allocation3 + $0x4] sm:$0x6]
  %v3537 = vld [vmem:[#allocation3] sm:$0x3]
  %v3538 = vld [vmem:[#allocation3 + $0x4] sm:$0x3]
  %v3539 = vld [vmem:[#allocation3] sm:$0x4]
  %v3540 = vld [vmem:[#allocation3 + $0x4] sm:$0x4]
  %v3543 = vunpack.c.l.b16 %v3535
  %v3544 = vunpack.c.l.b16 %v3536
  %v3545 = vpack.c.b16 %v3543, %v3543
  %v3546 = vpack.c.b16 %v3544, %v3544
  %v3548 = vshrl.u32 %v3545, 16
  %v3550 = vrot.slane %v3548, 1
  %v3551 = vshll.u32 %v3545, 16
  %v3553 = vrot.slane %v3551, 2
  %v3554 = vor.u32 %v3550, %v3553
  %v3556 = vshrl.u32 %v3546, 16
  %v3558 = vrot.slane %v3556, 1
  %v3559 = vshll.u32 %v3546, 16
  %v3561 = vrot.slane %v3559, 2
  %v3562 = vor.u32 %v3558, %v3561
  %3563 = vrot.lane.b32.xlu0 %v3554, 64
  %v3564 = vpop.permute.xlu0 %3563
  %3565 = vrot.lane.b32.xlu0 %v3562, 64
  %v3566 = vpop.permute.xlu0 %3565
  %v3569 = vunpack.c.l.b16 %v3537
  %v3570 = vunpack.c.l.b16 %v3538
  %v3571 = vpack.c.b16 %v3569, %v3569
  %v3572 = vpack.c.b16 %v3570, %v3570
  %v3574 = vshrl.u32 %v3571, 16
  %v3576 = vshll.u32 %v3571, 16
  %v3578 = vrot.slane %v3576, 1
  %v3579 = vor.u32 %v3574, %v3578
  %v3581 = vshrl.u32 %v3572, 16
  %v3583 = vshll.u32 %v3572, 16
  %v3585 = vrot.slane %v3583, 1
  %v3586 = vor.u32 %v3581, %v3585
  %v3589 = vunpack.c.l.b16 %v3539
  %v3590 = vunpack.c.l.b16 %v3540
  %v3591 = vpack.c.b16 %v3589, %v3589
  %v3592 = vpack.c.b16 %v3590, %v3590
  %v3593 = vrot.slane %v3591, 2
  %v3594 = vrot.slane %v3592, 2
  %3595 = vrot.lane.b32.xlu0 %v3593, 64
  %v3596 = vpop.permute.xlu0 %3595
  %3597 = vrot.lane.b32.xlu0 %v3594, 64
  %v3598 = vpop.permute.xlu0 %3597
  %v3601 = vsel %vm1271, %v3533, %v3564
  %v3604 = vsel %vm1271, %v3534, %v3566
  %v3607 = vsel %vm1271, %v3579, %v3596
  %v3610 = vsel %vm1271, %v3586, %v3598
  %v3613 = vrot.slane %v3607, 7
  %v3614 = vrot.slane %v3610, 7
  %v3616 = vsel %vm3211, %v3601, %v3613
  %v3618 = vsel %vm3211, %v3604, %v3614
  %3619 = vst [vmem:[#allocation1] ss:$4 sm:$0xff] %v3616
  %s3620 = scalar_lea.vmem [#allocation1], 1
  %3621 = vst [vmem:[%s3620] ss:$4 sm:$0xff] %v3618
  %v3622 = vld [vmem:[#allocation1] sm:$0xff]
  %3624 = vst [vmem:[#allocation6] sm:$0x33] %v3622
  %v3625 = vld [vmem:[%s3381] sm:$0x1]
  %v3626 = vld [vmem:[%s3381 + $0x4] sm:$0x1]
  %v3627 = vld [vmem:[%s3381] sm:$0x6]
  %v3628 = vld [vmem:[%s3381 + $0x4] sm:$0x6]
  %v3629 = vld [vmem:[%s3381] sm:$0x3]
  %v3630 = vld [vmem:[%s3381 + $0x4] sm:$0x3]
  %v3631 = vld [vmem:[%s3381] sm:$0x4]
  %v3632 = vld [vmem:[%s3381 + $0x4] sm:$0x4]
  %v3635 = vunpack.c.l.b16 %v3627
  %v3636 = vunpack.c.l.b16 %v3628
  %v3637 = vpack.c.b16 %v3635, %v3635
  %v3638 = vpack.c.b16 %v3636, %v3636
  %v3640 = vshrl.u32 %v3637, 16
  %v3642 = vrot.slane %v3640, 1
  %v3643 = vshll.u32 %v3637, 16
  %v3645 = vrot.slane %v3643, 2
  %v3646 = vor.u32 %v3642, %v3645
  %v3648 = vshrl.u32 %v3638, 16
  %v3650 = vrot.slane %v3648, 1
  %v3651 = vshll.u32 %v3638, 16
  %v3653 = vrot.slane %v3651, 2
  %v3654 = vor.u32 %v3650, %v3653
  %3655 = vrot.lane.b32.xlu0 %v3646, 64
  %v3656 = vpop.permute.xlu0 %3655
  %3657 = vrot.lane.b32.xlu0 %v3654, 64
  %v3658 = vpop.permute.xlu0 %3657
  %v3661 = vunpack.c.l.b16 %v3629
  %v3662 = vunpack.c.l.b16 %v3630
  %v3663 = vpack.c.b16 %v3661, %v3661
  %v3664 = vpack.c.b16 %v3662, %v3662
  %v3666 = vshrl.u32 %v3663, 16
  %v3668 = vshll.u32 %v3663, 16
  %v3670 = vrot.slane %v3668, 1
  %v3671 = vor.u32 %v3666, %v3670
  %v3673 = vshrl.u32 %v3664, 16
  %v3675 = vshll.u32 %v3664, 16
  %v3677 = vrot.slane %v3675, 1
  %v3678 = vor.u32 %v3673, %v3677
  %v3681 = vunpack.c.l.b16 %v3631
  %v3682 = vunpack.c.l.b16 %v3632
  %v3683 = vpack.c.b16 %v3681, %v3681
  %v3684 = vpack.c.b16 %v3682, %v3682
  %v3685 = vrot.slane %v3683, 2
  %v3686 = vrot.slane %v3684, 2
  %3687 = vrot.lane.b32.xlu0 %v3685, 64
  %v3688 = vpop.permute.xlu0 %3687
  %3689 = vrot.lane.b32.xlu0 %v3686, 64
  %v3690 = vpop.permute.xlu0 %3689
  %v3693 = vsel %vm1271, %v3625, %v3656
  %v3696 = vsel %vm1271, %v3626, %v3658
  %v3699 = vsel %vm1271, %v3671, %v3688
  %v3702 = vsel %vm1271, %v3678, %v3690
  %v3705 = vrot.slane %v3699, 7
  %v3706 = vrot.slane %v3702, 7
  %v3708 = vsel %vm3211, %v3693, %v3705
  %v3710 = vsel %vm3211, %v3696, %v3706
  %3711 = vst [vmem:[#allocation1] ss:$4 sm:$0xff] %v3708
  %s3712 = scalar_lea.vmem [#allocation1], 1
  %3713 = vst [vmem:[%s3712] ss:$4 sm:$0xff] %v3710
  %v3714 = vld [vmem:[#allocation1] sm:$0xff]
  %3716 = vst [vmem:[#allocation6 + $0x8] sm:$0x33] %v3714
  %s3717 = scalar_lea.vmem [#allocation3], 16
  %v3718 = vld [vmem:[%s3717] sm:$0x1]
  %v3719 = vld [vmem:[%s3717 + $0x4] sm:$0x1]
  %v3720 = vld [vmem:[%s3717] sm:$0x6]
  %v3721 = vld [vmem:[%s3717 + $0x4] sm:$0x6]
  %v3722 = vld [vmem:[%s3717] sm:$0x3]
  %v3723 = vld [vmem:[%s3717 + $0x4] sm:$0x3]
  %v3724 = vld [vmem:[%s3717] sm:$0x4]
  %v3725 = vld [vmem:[%s3717 + $0x4] sm:$0x4]
  %v3728 = vunpack.c.l.b16 %v3720
  %v3729 = vunpack.c.l.b16 %v3721
  %v3730 = vpack.c.b16 %v3728, %v3728
  %v3731 = vpack.c.b16 %v3729, %v3729
  %v3733 = vshrl.u32 %v3730, 16
  %v3735 = vrot.slane %v3733, 1
  %v3736 = vshll.u32 %v3730, 16
  %v3738 = vrot.slane %v3736, 2
  %v3739 = vor.u32 %v3735, %v3738
  %v3741 = vshrl.u32 %v3731, 16
  %v3743 = vrot.slane %v3741, 1
  %v3744 = vshll.u32 %v3731, 16
  %v3746 = vrot.slane %v3744, 2
  %v3747 = vor.u32 %v3743, %v3746
  %3748 = vrot.lane.b32.xlu0 %v3739, 64
  %v3749 = vpop.permute.xlu0 %3748
  %3750 = vrot.lane.b32.xlu0 %v3747, 64
  %v3751 = vpop.permute.xlu0 %3750
  %v3754 = vunpack.c.l.b16 %v3722
  %v3755 = vunpack.c.l.b16 %v3723
  %v3756 = vpack.c.b16 %v3754, %v3754
  %v3757 = vpack.c.b16 %v3755, %v3755
  %v3759 = vshrl.u32 %v3756, 16
  %v3761 = vshll.u32 %v3756, 16
  %v3763 = vrot.slane %v3761, 1
  %v3764 = vor.u32 %v3759, %v3763
  %v3766 = vshrl.u32 %v3757, 16
  %v3768 = vshll.u32 %v3757, 16
  %v3770 = vrot.slane %v3768, 1
  %v3771 = vor.u32 %v3766, %v3770
  %v3774 = vunpack.c.l.b16 %v3724
  %v3775 = vunpack.c.l.b16 %v3725
  %v3776 = vpack.c.b16 %v3774, %v3774
  %v3777 = vpack.c.b16 %v3775, %v3775
  %v3778 = vrot.slane %v3776, 2
  %v3779 = vrot.slane %v3777, 2
  %3780 = vrot.lane.b32.xlu0 %v3778, 64
  %v3781 = vpop.permute.xlu0 %3780
  %3782 = vrot.lane.b32.xlu0 %v3779, 64
  %v3783 = vpop.permute.xlu0 %3782
  %v3786 = vsel %vm1271, %v3718, %v3749
  %v3789 = vsel %vm1271, %v3719, %v3751
  %v3792 = vsel %vm1271, %v3764, %v3781
  %v3795 = vsel %vm1271, %v3771, %v3783
  %v3798 = vrot.slane %v3792, 7
  %v3799 = vrot.slane %v3795, 7
  %v3801 = vsel %vm3211, %v3786, %v3798
  %v3803 = vsel %vm3211, %v3789, %v3799
  %3804 = vst [vmem:[#allocation1] ss:$4 sm:$0xff] %v3801
  %s3805 = scalar_lea.vmem [#allocation1], 1
  %3806 = vst [vmem:[%s3805] ss:$4 sm:$0xff] %v3803
  %v3807 = vld [vmem:[#allocation1] sm:$0xff]
  %3809 = vst [vmem:[#allocation6 + $0x10] sm:$0x33] %v3807
  %s3810 = scalar_lea.vmem [#allocation3], 24
  %v3811 = vld [vmem:[%s3810] sm:$0x1]
  %v3812 = vld [vmem:[%s3810 + $0x4] sm:$0x1]
  %v3813 = vld [vmem:[%s3810] sm:$0x6]
  %v3814 = vld [vmem:[%s3810 + $0x4] sm:$0x6]
  %v3815 = vld [vmem:[%s3810] sm:$0x3]
  %v3816 = vld [vmem:[%s3810 + $0x4] sm:$0x3]
  %v3817 = vld [vmem:[%s3810] sm:$0x4]
  %v3818 = vld [vmem:[%s3810 + $0x4] sm:$0x4]
  %v3821 = vunpack.c.l.b16 %v3813
  %v3822 = vunpack.c.l.b16 %v3814
  %v3823 = vpack.c.b16 %v3821, %v3821
  %v3824 = vpack.c.b16 %v3822, %v3822
  %v3826 = vshrl.u32 %v3823, 16
  %v3828 = vrot.slane %v3826, 1
  %v3829 = vshll.u32 %v3823, 16
  %v3831 = vrot.slane %v3829, 2
  %v3832 = vor.u32 %v3828, %v3831
  %v3834 = vshrl.u32 %v3824, 16
  %v3836 = vrot.slane %v3834, 1
  %v3837 = vshll.u32 %v3824, 16
  %v3839 = vrot.slane %v3837, 2
  %v3840 = vor.u32 %v3836, %v3839
  %3841 = vrot.lane.b32.xlu0 %v3832, 64
  %v3842 = vpop.permute.xlu0 %3841
  %3843 = vrot.lane.b32.xlu0 %v3840, 64
  %v3844 = vpop.permute.xlu0 %3843
  %v3847 = vunpack.c.l.b16 %v3815
  %v3848 = vunpack.c.l.b16 %v3816
  %v3849 = vpack.c.b16 %v3847, %v3847
  %v3850 = vpack.c.b16 %v3848, %v3848
  %v3852 = vshrl.u32 %v3849, 16
  %v3854 = vshll.u32 %v3849, 16
  %v3856 = vrot.slane %v3854, 1
  %v3857 = vor.u32 %v3852, %v3856
  %v3859 = vshrl.u32 %v3850, 16
  %v3861 = vshll.u32 %v3850, 16
  %v3863 = vrot.slane %v3861, 1
  %v3864 = vor.u32 %v3859, %v3863
  %v3867 = vunpack.c.l.b16 %v3817
  %v3868 = vunpack.c.l.b16 %v3818
  %v3869 = vpack.c.b16 %v3867, %v3867
  %v3870 = vpack.c.b16 %v3868, %v3868
  %v3871 = vrot.slane %v3869, 2
  %v3872 = vrot.slane %v3870, 2
  %3873 = vrot.lane.b32.xlu0 %v3871, 64
  %v3874 = vpop.permute.xlu0 %3873
  %3875 = vrot.lane.b32.xlu0 %v3872, 64
  %v3876 = vpop.permute.xlu0 %3875
  %v3879 = vsel %vm1271, %v3811, %v3842
  %v3882 = vsel %vm1271, %v3812, %v3844
  %v3885 = vsel %vm1271, %v3857, %v3874
  %v3888 = vsel %vm1271, %v3864, %v3876
  %v3891 = vrot.slane %v3885, 7
  %v3892 = vrot.slane %v3888, 7
  %v3894 = vsel %vm3211, %v3879, %v3891
  %v3896 = vsel %vm3211, %v3882, %v3892
  %3897 = vst [vmem:[#allocation1] ss:$4 sm:$0xff] %v3894
  %s3898 = scalar_lea.vmem [#allocation1], 1
  %3899 = vst [vmem:[%s3898] ss:$4 sm:$0xff] %v3896
  %v3900 = vld [vmem:[#allocation1] sm:$0xff]
  %3902 = vst [vmem:[#allocation6 + $0x18] sm:$0x33] %v3900
  %v3903 = vld [vmem:[%s3717] sm:$0x1]
  %v3904 = vld [vmem:[%s3717 + $0x4] sm:$0x1]
  %v3905 = vld [vmem:[%s3717] sm:$0x6]
  %v3906 = vld [vmem:[%s3717 + $0x4] sm:$0x6]
  %v3907 = vld [vmem:[%s3717] sm:$0x3]
  %v3908 = vld [vmem:[%s3717 + $0x4] sm:$0x3]
  %v3909 = vld [vmem:[%s3717] sm:$0x4]
  %v3910 = vld [vmem:[%s3717 + $0x4] sm:$0x4]
  %v3913 = vunpack.c.l.b16 %v3905
  %v3914 = vunpack.c.l.b16 %v3906
  %v3915 = vpack.c.b16 %v3913, %v3913
  %v3916 = vpack.c.b16 %v3914, %v3914
  %v3918 = vshrl.u32 %v3915, 16
  %v3920 = vrot.slane %v3918, 1
  %v3921 = vshll.u32 %v3915, 16
  %v3923 = vrot.slane %v3921, 2
  %v3924 = vor.u32 %v3920, %v3923
  %v3926 = vshrl.u32 %v3916, 16
  %v3928 = vrot.slane %v3926, 1
  %v3929 = vshll.u32 %v3916, 16
  %v3931 = vrot.slane %v3929, 2
  %v3932 = vor.u32 %v3928, %v3931
  %3933 = vrot.lane.b32.xlu0 %v3924, 64
  %v3934 = vpop.permute.xlu0 %3933
  %3935 = vrot.lane.b32.xlu0 %v3932, 64
  %v3936 = vpop.permute.xlu0 %3935
  %v3939 = vunpack.c.l.b16 %v3907
  %v3940 = vunpack.c.l.b16 %v3908
  %v3941 = vpack.c.b16 %v3939, %v3939
  %v3942 = vpack.c.b16 %v3940, %v3940
  %v3944 = vshrl.u32 %v3941, 16
  %v3946 = vshll.u32 %v3941, 16
  %v3948 = vrot.slane %v3946, 1
  %v3949 = vor.u32 %v3944, %v3948
  %v3951 = vshrl.u32 %v3942, 16
  %v3953 = vshll.u32 %v3942, 16
  %v3955 = vrot.slane %v3953, 1
  %v3956 = vor.u32 %v3951, %v3955
  %v3959 = vunpack.c.l.b16 %v3909
  %v3960 = vunpack.c.l.b16 %v3910
  %v3961 = vpack.c.b16 %v3959, %v3959
  %v3962 = vpack.c.b16 %v3960, %v3960
  %v3963 = vrot.slane %v3961, 2
  %v3964 = vrot.slane %v3962, 2
  %3965 = vrot.lane.b32.xlu0 %v3963, 64
  %v3966 = vpop.permute.xlu0 %3965
  %3967 = vrot.lane.b32.xlu0 %v3964, 64
  %v3968 = vpop.permute.xlu0 %3967
  %v3971 = vsel %vm1271, %v3903, %v3934
  %v3974 = vsel %vm1271, %v3904, %v3936
  %v3977 = vsel %vm1271, %v3949, %v3966
  %v3980 = vsel %vm1271, %v3956, %v3968
  %v3983 = vrot.slane %v3977, 7
  %v3984 = vrot.slane %v3980, 7
  %v3986 = vsel %vm3211, %v3971, %v3983
  %v3988 = vsel %vm3211, %v3974, %v3984
  %s3989 = scalar_lea.vmem [#allocation1], 2
  %3990 = vst [vmem:[%s3989] ss:$4 sm:$0xff] %v3986
  %s3991 = scalar_lea.vmem [#allocation1], 3
  %3992 = vst [vmem:[%s3991] ss:$4 sm:$0xff] %v3988
  %v3993 = vld [vmem:[#allocation1] sm:$0xff]
  %3995 = vst [vmem:[#allocation6] sm:$0xcc] %v3993
  %v3996 = vld [vmem:[%s3810] sm:$0x1]
  %v3997 = vld [vmem:[%s3810 + $0x4] sm:$0x1]
  %v3998 = vld [vmem:[%s3810] sm:$0x6]
  %v3999 = vld [vmem:[%s3810 + $0x4] sm:$0x6]
  %v4000 = vld [vmem:[%s3810] sm:$0x3]
  %v4001 = vld [vmem:[%s3810 + $0x4] sm:$0x3]
  %v4002 = vld [vmem:[%s3810] sm:$0x4]
  %v4003 = vld [vmem:[%s3810 + $0x4] sm:$0x4]
  %v4006 = vunpack.c.l.b16 %v3998
  %v4007 = vunpack.c.l.b16 %v3999
  %v4008 = vpack.c.b16 %v4006, %v4006
  %v4009 = vpack.c.b16 %v4007, %v4007
  %v4011 = vshrl.u32 %v4008, 16
  %v4013 = vrot.slane %v4011, 1
  %v4014 = vshll.u32 %v4008, 16
  %v4016 = vrot.slane %v4014, 2
  %v4017 = vor.u32 %v4013, %v4016
  %v4019 = vshrl.u32 %v4009, 16
  %v4021 = vrot.slane %v4019, 1
  %v4022 = vshll.u32 %v4009, 16
  %v4024 = vrot.slane %v4022, 2
  %v4025 = vor.u32 %v4021, %v4024
  %4026 = vrot.lane.b32.xlu0 %v4017, 64
  %v4027 = vpop.permute.xlu0 %4026
  %4028 = vrot.lane.b32.xlu0 %v4025, 64
  %v4029 = vpop.permute.xlu0 %4028
  %v4032 = vunpack.c.l.b16 %v4000
  %v4033 = vunpack.c.l.b16 %v4001
  %v4034 = vpack.c.b16 %v4032, %v4032
  %v4035 = vpack.c.b16 %v4033, %v4033
  %v4037 = vshrl.u32 %v4034, 16
  %v4039 = vshll.u32 %v4034, 16
  %v4041 = vrot.slane %v4039, 1
  %v4042 = vor.u32 %v4037, %v4041
  %v4044 = vshrl.u32 %v4035, 16
  %v4046 = vshll.u32 %v4035, 16
  %v4048 = vrot.slane %v4046, 1
  %v4049 = vor.u32 %v4044, %v4048
  %v4052 = vunpack.c.l.b16 %v4002
  %v4053 = vunpack.c.l.b16 %v4003
  %v4054 = vpack.c.b16 %v4052, %v4052
  %v4055 = vpack.c.b16 %v4053, %v4053
  %v4056 = vrot.slane %v4054, 2
  %v4057 = vrot.slane %v4055, 2
  %4058 = vrot.lane.b32.xlu0 %v4056, 64
  %v4059 = vpop.permute.xlu0 %4058
  %4060 = vrot.lane.b32.xlu0 %v4057, 64
  %v4061 = vpop.permute.xlu0 %4060
  %v4064 = vsel %vm1271, %v3996, %v4027
  %v4067 = vsel %vm1271, %v3997, %v4029
  %v4070 = vsel %vm1271, %v4042, %v4059
  %v4073 = vsel %vm1271, %v4049, %v4061
  %v4076 = vrot.slane %v4070, 7
  %v4077 = vrot.slane %v4073, 7
  %v4079 = vsel %vm3211, %v4064, %v4076
  %v4081 = vsel %vm3211, %v4067, %v4077
  %s4082 = scalar_lea.vmem [#allocation1], 2
  %4083 = vst [vmem:[%s4082] ss:$4 sm:$0xff] %v4079
  %s4084 = scalar_lea.vmem [#allocation1], 3
  %4085 = vst [vmem:[%s4084] ss:$4 sm:$0xff] %v4081
  %v4086 = vld [vmem:[#allocation1] sm:$0xff]
  %4088 = vst [vmem:[#allocation6 + $0x8] sm:$0xcc] %v4086
  %s4089 = scalar_lea.vmem [#allocation3], 32
  %v4090 = vld [vmem:[%s4089] sm:$0x1]
  %v4091 = vld [vmem:[%s4089 + $0x4] sm:$0x1]
  %v4092 = vld [vmem:[%s4089] sm:$0x6]
  %v4093 = vld [vmem:[%s4089 + $0x4] sm:$0x6]
  %v4094 = vld [vmem:[%s4089] sm:$0x3]
  %v4095 = vld [vmem:[%s4089 + $0x4] sm:$0x3]
  %v4096 = vld [vmem:[%s4089] sm:$0x4]
  %v4097 = vld [vmem:[%s4089 + $0x4] sm:$0x4]
  %v4100 = vunpack.c.l.b16 %v4092
  %v4101 = vunpack.c.l.b16 %v4093
  %v4102 = vpack.c.b16 %v4100, %v4100
  %v4103 = vpack.c.b16 %v4101, %v4101
  %v4105 = vshrl.u32 %v4102, 16
  %v4107 = vrot.slane %v4105, 1
  %v4108 = vshll.u32 %v4102, 16
  %v4110 = vrot.slane %v4108, 2
  %v4111 = vor.u32 %v4107, %v4110
  %v4113 = vshrl.u32 %v4103, 16
  %v4115 = vrot.slane %v4113, 1
  %v4116 = vshll.u32 %v4103, 16
  %v4118 = vrot.slane %v4116, 2
  %v4119 = vor.u32 %v4115, %v4118
  %4120 = vrot.lane.b32.xlu0 %v4111, 64
  %v4121 = vpop.permute.xlu0 %4120
  %4122 = vrot.lane.b32.xlu0 %v4119, 64
  %v4123 = vpop.permute.xlu0 %4122
  %v4126 = vunpack.c.l.b16 %v4094
  %v4127 = vunpack.c.l.b16 %v4095
  %v4128 = vpack.c.b16 %v4126, %v4126
  %v4129 = vpack.c.b16 %v4127, %v4127
  %v4131 = vshrl.u32 %v4128, 16
  %v4133 = vshll.u32 %v4128, 16
  %v4135 = vrot.slane %v4133, 1
  %v4136 = vor.u32 %v4131, %v4135
  %v4138 = vshrl.u32 %v4129, 16
  %v4140 = vshll.u32 %v4129, 16
  %v4142 = vrot.slane %v4140, 1
  %v4143 = vor.u32 %v4138, %v4142
  %v4146 = vunpack.c.l.b16 %v4096
  %v4147 = vunpack.c.l.b16 %v4097
  %v4148 = vpack.c.b16 %v4146, %v4146
  %v4149 = vpack.c.b16 %v4147, %v4147
  %v4150 = vrot.slane %v4148, 2
  %v4151 = vrot.slane %v4149, 2
  %4152 = vrot.lane.b32.xlu0 %v4150, 64
  %v4153 = vpop.permute.xlu0 %4152
  %4154 = vrot.lane.b32.xlu0 %v4151, 64
  %v4155 = vpop.permute.xlu0 %4154
  %v4158 = vsel %vm1271, %v4090, %v4121
  %v4161 = vsel %vm1271, %v4091, %v4123
  %v4164 = vsel %vm1271, %v4136, %v4153
  %v4167 = vsel %vm1271, %v4143, %v4155
  %v4170 = vrot.slane %v4164, 7
  %v4171 = vrot.slane %v4167, 7
  %v4173 = vsel %vm3211, %v4158, %v4170
  %v4175 = vsel %vm3211, %v4161, %v4171
  %s4176 = scalar_lea.vmem [#allocation1], 2
  %4177 = vst [vmem:[%s4176] ss:$4 sm:$0xff] %v4173
  %s4178 = scalar_lea.vmem [#allocation1], 3
  %4179 = vst [vmem:[%s4178] ss:$4 sm:$0xff] %v4175
  %v4180 = vld [vmem:[#allocation1] sm:$0xff]
  %4182 = vst [vmem:[#allocation6 + $0x10] sm:$0xcc] %v4180
  %v4183 = vld [vmem:[%s172] sm:$0x1]
  %v4184 = vld [vmem:[%s172 + $0x4] sm:$0x1]
  %v4185 = vld [vmem:[%s172] sm:$0x6]
  %v4186 = vld [vmem:[%s172 + $0x4] sm:$0x6]
  %v4187 = vld [vmem:[%s172] sm:$0x3]
  %v4188 = vld [vmem:[%s172 + $0x4] sm:$0x3]
  %v4189 = vld [vmem:[%s172] sm:$0x4]
  %v4190 = vld [vmem:[%s172 + $0x4] sm:$0x4]
  %v4193 = vunpack.c.l.b16 %v4185
  %v4194 = vunpack.c.l.b16 %v4186
  %v4195 = vpack.c.b16 %v4193, %v4193
  %v4196 = vpack.c.b16 %v4194, %v4194
  %v4198 = vshrl.u32 %v4195, 16
  %v4200 = vrot.slane %v4198, 1
  %v4201 = vshll.u32 %v4195, 16
  %v4203 = vrot.slane %v4201, 2
  %v4204 = vor.u32 %v4200, %v4203
  %v4206 = vshrl.u32 %v4196, 16
  %v4208 = vrot.slane %v4206, 1
  %v4209 = vshll.u32 %v4196, 16
  %v4211 = vrot.slane %v4209, 2
  %v4212 = vor.u32 %v4208, %v4211
  %4213 = vrot.lane.b32.xlu0 %v4204, 64
  %v4214 = vpop.permute.xlu0 %4213
  %4215 = vrot.lane.b32.xlu0 %v4212, 64
  %v4216 = vpop.permute.xlu0 %4215
  %v4219 = vunpack.c.l.b16 %v4187
  %v4220 = vunpack.c.l.b16 %v4188
  %v4221 = vpack.c.b16 %v4219, %v4219
  %v4222 = vpack.c.b16 %v4220, %v4220
  %v4224 = vshrl.u32 %v4221, 16
  %v4226 = vshll.u32 %v4221, 16
  %v4228 = vrot.slane %v4226, 1
  %v4229 = vor.u32 %v4224, %v4228
  %v4231 = vshrl.u32 %v4222, 16
  %v4233 = vshll.u32 %v4222, 16
  %v4235 = vrot.slane %v4233, 1
  %v4236 = vor.u32 %v4231, %v4235
  %v4239 = vunpack.c.l.b16 %v4189
  %v4240 = vunpack.c.l.b16 %v4190
  %v4241 = vpack.c.b16 %v4239, %v4239
  %v4242 = vpack.c.b16 %v4240, %v4240
  %v4243 = vrot.slane %v4241, 2
  %v4244 = vrot.slane %v4242, 2
  %4245 = vrot.lane.b32.xlu0 %v4243, 64
  %v4246 = vpop.permute.xlu0 %4245
  %4247 = vrot.lane.b32.xlu0 %v4244, 64
  %v4248 = vpop.permute.xlu0 %4247
  %v4251 = vsel %vm1271, %v4183, %v4214
  %v4254 = vsel %vm1271, %v4184, %v4216
  %v4257 = vsel %vm1271, %v4229, %v4246
  %v4260 = vsel %vm1271, %v4236, %v4248
  %v4263 = vrot.slane %v4257, 7
  %v4264 = vrot.slane %v4260, 7
  %v4266 = vsel %vm3211, %v4251, %v4263
  %v4268 = vsel %vm3211, %v4254, %v4264
  %s4269 = scalar_lea.vmem [#allocation1], 2
  %4270 = vst [vmem:[%s4269] ss:$4 sm:$0xff] %v4266
  %s4271 = scalar_lea.vmem [#allocation1], 3
  %4272 = vst [vmem:[%s4271] ss:$4 sm:$0xff] %v4268
  %v4273 = vld [vmem:[#allocation1] sm:$0xff]
  %4275 = vst [vmem:[#allocation6 + $0x18] sm:$0xcc] %v4273
  %v4276 = vld [vmem:[#allocation6] sm:$0xff]
  %v4277 = vld [vmem:[#allocation6 + $0x8] sm:$0xff]
  %v4278 = vld [vmem:[#allocation6 + $0x10] sm:$0xff]
  %v4279 = vld [vmem:[#allocation6 + $0x18] sm:$0xff]
  %v4280 = vld [vmem:[%s3] sm:$0xf]
  %v4281 = vld [vmem:[%s3 + $0x4] sm:$0xf]
  %v4282 = vld [vmem:[%s3 + $0x8] sm:$0xf]
  %v4283 = vld [vmem:[%s3 + $0xc] sm:$0xf]
  %v4284 = vld [vmem:[%s3 + $0x10] sm:$0xf]
  %v4285 = vld [vmem:[%s3 + $0x14] sm:$0xf]
  %v4286 = vld [vmem:[%s3 + $0x18] sm:$0xf]
  %v4287 = vld [vmem:[%s3 + $0x1c] sm:$0xf]
  %v4288 = vld [vmem:[%s3 + $0x20] sm:$0xf]
  %v4289 = vld [vmem:[%s3 + $0x24] sm:$0xf]
  %v4290 = vld [vmem:[%s3 + $0x28] sm:$0xf]
  %v4291 = vld [vmem:[%s3 + $0x2c] sm:$0xf]
  %v4292 = vld [vmem:[%s3 + $0x30] sm:$0xf]
  %v4293 = vld [vmem:[%s3 + $0x34] sm:$0xf]
  %v4294 = vld [vmem:[%s3 + $0x38] sm:$0xf]
  %v4295 = vld [vmem:[%s3 + $0x3c] sm:$0xf]
  %v4296 = vld [vmem:[%s3 + $0x40] sm:$0xf]
  %v4297 = vld [vmem:[%s3 + $0x44] sm:$0xf]
  %v4298 = vld [vmem:[%s3 + $0x48] sm:$0xf]
  %v4299 = vld [vmem:[%s3 + $0x4c] sm:$0xf]
  %v4300 = vld [vmem:[%s3 + $0x50] sm:$0xf]
  %v4301 = vld [vmem:[%s3 + $0x54] sm:$0xf]
  %v4302 = vld [vmem:[%s3 + $0x58] sm:$0xf]
  %v4303 = vld [vmem:[%s3 + $0x5c] sm:$0xf]
  %v4304 = vld [vmem:[%s3 + $0x60] sm:$0xf]
  %v4305 = vld [vmem:[%s3 + $0x64] sm:$0xf]
  %v4306 = vld [vmem:[%s3 + $0x68] sm:$0xf]
  %v4307 = vld [vmem:[%s3 + $0x6c] sm:$0xf]
  %v4308 = vld [vmem:[%s3 + $0x70] sm:$0xf]
  %v4309 = vld [vmem:[%s3 + $0x74] sm:$0xf]
  %v4310 = vld [vmem:[%s3 + $0x78] sm:$0xf]
  %v4311 = vld [vmem:[%s3 + $0x7c] sm:$0xf]
  %v4312 = vld [vmem:[%s3 + $0x80] sm:$0xf]
  %v4313 = vld [vmem:[%s3 + $0x84] sm:$0xf]
  %v4314 = vld [vmem:[%s3 + $0x88] sm:$0xf]
  %v4315 = vld [vmem:[%s3 + $0x8c] sm:$0xf]
  %v4316 = vld [vmem:[%s3 + $0x90] sm:$0xf]
  %v4317 = vld [vmem:[%s3 + $0x94] sm:$0xf]
  %v4318 = vld [vmem:[%s3 + $0x98] sm:$0xf]
  %v4319 = vld [vmem:[%s3 + $0x9c] sm:$0xf]
  %v4320 = vld [vmem:[%s3 + $0xa0] sm:$0xf]
  %v4321 = vld [vmem:[%s3 + $0xa4] sm:$0xf]
  %v4322 = vld [vmem:[%s3 + $0xa8] sm:$0xf]
  %v4323 = vld [vmem:[%s3 + $0xac] sm:$0xf]
  %v4324 = vld [vmem:[%s3 + $0xb0] sm:$0xf]
  %v4325 = vld [vmem:[%s3 + $0xb4] sm:$0xf]
  %v4326 = vld [vmem:[%s3 + $0xb8] sm:$0xf]
  %v4327 = vld [vmem:[%s3 + $0xbc] sm:$0xf]
  %v4328 = vld [vmem:[%s3 + $0xc0] sm:$0xf]
  %v4329 = vld [vmem:[%s3 + $0xc4] sm:$0xf]
  %v4330 = vld [vmem:[%s3 + $0xc8] sm:$0xf]
  %v4331 = vld [vmem:[%s3 + $0xcc] sm:$0xf]
  %v4332 = vld [vmem:[%s3 + $0xd0] sm:$0xf]
  %v4333 = vld [vmem:[%s3 + $0xd4] sm:$0xf]
  %v4334 = vld [vmem:[%s3 + $0xd8] sm:$0xf]
  %v4335 = vld [vmem:[%s3 + $0xdc] sm:$0xf]
  %v4336 = vld [vmem:[%s3 + $0xe0] sm:$0xf]
  %v4337 = vld [vmem:[%s3 + $0xe4] sm:$0xf]
  %v4338 = vld [vmem:[%s3 + $0xe8] sm:$0xf]
  %v4339 = vld [vmem:[%s3 + $0xec] sm:$0xf]
  %v4340 = vld [vmem:[%s3 + $0xf0] sm:$0xf]
  %v4341 = vld [vmem:[%s3 + $0xf4] sm:$0xf]
  %v4342 = vld [vmem:[%s3 + $0xf8] sm:$0xf]
  %v4343 = vld [vmem:[%s3 + $0xfc] sm:$0xf]
  %v4344 = vld [vmem:[%s3 + $0x100] sm:$0xf]
  %v4345 = vld [vmem:[%s3 + $0x104] sm:$0xf]
  %v4346 = vld [vmem:[%s3 + $0x108] sm:$0xf]
  %v4347 = vld [vmem:[%s3 + $0x10c] sm:$0xf]
  %v4348 = vld [vmem:[%s3 + $0x110] sm:$0xf]
  %v4349 = vld [vmem:[%s3 + $0x114] sm:$0xf]
  %v4350 = vld [vmem:[%s3 + $0x118] sm:$0xf]
  %v4351 = vld [vmem:[%s3 + $0x11c] sm:$0xf]
  %v4352 = vld [vmem:[%s3 + $0x120] sm:$0xf]
  %v4353 = vld [vmem:[%s3 + $0x124] sm:$0xf]
  %v4354 = vld [vmem:[%s3 + $0x128] sm:$0xf]
  %v4355 = vld [vmem:[%s3 + $0x12c] sm:$0xf]
  %v4356 = vld [vmem:[%s3 + $0x130] sm:$0xf]
  %v4357 = vld [vmem:[%s3 + $0x134] sm:$0xf]
  %v4358 = vld [vmem:[%s3 + $0x138] sm:$0xf]
  %v4359 = vld [vmem:[%s3 + $0x13c] sm:$0xf]
  %v4360 = vld [vmem:[%s3 + $0x140] sm:$0xf]
  %v4361 = vld [vmem:[%s3 + $0x144] sm:$0xf]
  %v4362 = vld [vmem:[%s3 + $0x148] sm:$0xf]
  %v4363 = vld [vmem:[%s3 + $0x14c] sm:$0xf]
  %v4364 = vld [vmem:[%s3 + $0x150] sm:$0xf]
  %v4365 = vld [vmem:[%s3 + $0x154] sm:$0xf]
  %v4366 = vld [vmem:[%s3 + $0x158] sm:$0xf]
  %v4367 = vld [vmem:[%s3 + $0x15c] sm:$0xf]
  %v4368 = vld [vmem:[%s3 + $0x160] sm:$0xf]
  %v4369 = vld [vmem:[%s3 + $0x164] sm:$0xf]
  %v4370 = vld [vmem:[%s3 + $0x168] sm:$0xf]
  %v4371 = vld [vmem:[%s3 + $0x16c] sm:$0xf]
  %v4372 = vld [vmem:[%s3 + $0x170] sm:$0xf]
  %v4373 = vld [vmem:[%s3 + $0x174] sm:$0xf]
  %v4374 = vld [vmem:[%s3 + $0x178] sm:$0xf]
  %v4375 = vld [vmem:[%s3 + $0x17c] sm:$0xf]
  %v4376 = vld [vmem:[%s3 + $0x180] sm:$0xf]
  %v4377 = vld [vmem:[%s3 + $0x184] sm:$0xf]
  %v4378 = vld [vmem:[%s3 + $0x188] sm:$0xf]
  %v4379 = vld [vmem:[%s3 + $0x18c] sm:$0xf]
  %v4380 = vld [vmem:[%s3 + $0x190] sm:$0xf]
  %v4381 = vld [vmem:[%s3 + $0x194] sm:$0xf]
  %v4382 = vld [vmem:[%s3 + $0x198] sm:$0xf]
  %v4383 = vld [vmem:[%s3 + $0x19c] sm:$0xf]
  %v4384 = vld [vmem:[%s3 + $0x1a0] sm:$0xf]
  %v4385 = vld [vmem:[%s3 + $0x1a4] sm:$0xf]
  %v4386 = vld [vmem:[%s3 + $0x1a8] sm:$0xf]
  %v4387 = vld [vmem:[%s3 + $0x1ac] sm:$0xf]
  %v4388 = vld [vmem:[%s3 + $0x1b0] sm:$0xf]
  %v4389 = vld [vmem:[%s3 + $0x1b4] sm:$0xf]
  %v4390 = vld [vmem:[%s3 + $0x1b8] sm:$0xf]
  %v4391 = vld [vmem:[%s3 + $0x1bc] sm:$0xf]
  %v4392 = vld [vmem:[%s3 + $0x1c0] sm:$0xf]
  %v4393 = vld [vmem:[%s3 + $0x1c4] sm:$0xf]
  %v4394 = vld [vmem:[%s3 + $0x1c8] sm:$0xf]
  %v4395 = vld [vmem:[%s3 + $0x1cc] sm:$0xf]
  %v4396 = vld [vmem:[%s3 + $0x1d0] sm:$0xf]
  %v4397 = vld [vmem:[%s3 + $0x1d4] sm:$0xf]
  %v4398 = vld [vmem:[%s3 + $0x1d8] sm:$0xf]
  %v4399 = vld [vmem:[%s3 + $0x1dc] sm:$0xf]
  %v4400 = vld [vmem:[%s3 + $0x1e0] sm:$0xf]
  %v4401 = vld [vmem:[%s3 + $0x1e4] sm:$0xf]
  %v4402 = vld [vmem:[%s3 + $0x1e8] sm:$0xf]
  %v4403 = vld [vmem:[%s3 + $0x1ec] sm:$0xf]
  %v4404 = vld [vmem:[%s3 + $0x1f0] sm:$0xf]
  %v4405 = vld [vmem:[%s3 + $0x1f4] sm:$0xf]
  %v4406 = vld [vmem:[%s3 + $0x1f8] sm:$0xf]
  %v4407 = vld [vmem:[%s3 + $0x1fc] sm:$0xf]
  %v4412 = vunpack.c.l.b16 %v4276
  %v4413 = vunpack.c.h.b16 %v4276
  %v4414 = vunpack.c.l.b16 %v4277
  %v4415 = vunpack.c.h.b16 %v4277
  %v4416 = vunpack.c.l.b16 %v4278
  %v4417 = vunpack.c.h.b16 %v4278
  %v4418 = vunpack.c.l.b16 %v4279
  %v4419 = vunpack.c.h.b16 %v4279
  %v4420 = vpack.c.b16 %v4412, %v4412
  %v4421 = vpack.c.b16 %v4413, %v4413
  %v4422 = vpack.c.b16 %v4414, %v4414
  %v4423 = vpack.c.b16 %v4415, %v4415
  %v4424 = vpack.c.b16 %v4416, %v4416
  %v4425 = vpack.c.b16 %v4417, %v4417
  %v4426 = vpack.c.b16 %v4418, %v4418
  %v4427 = vpack.c.b16 %v4419, %v4419
  %v4564 = vunpack.c.l.b16 %v4280
  %v4565 = vunpack.c.l.b16 %v4281
  %v4566 = vunpack.c.l.b16 %v4282
  %v4567 = vunpack.c.l.b16 %v4283
  %v4568 = vunpack.c.l.b16 %v4284
  %v4569 = vunpack.c.l.b16 %v4285
  %v4570 = vunpack.c.l.b16 %v4286
  %v4571 = vunpack.c.l.b16 %v4287
  %v4572 = vunpack.c.l.b16 %v4288
  %v4573 = vunpack.c.l.b16 %v4289
  %v4574 = vunpack.c.l.b16 %v4290
  %v4575 = vunpack.c.l.b16 %v4291
  %v4576 = vunpack.c.l.b16 %v4292
  %v4577 = vunpack.c.l.b16 %v4293
  %v4578 = vunpack.c.l.b16 %v4294
  %v4579 = vunpack.c.l.b16 %v4295
  %v4580 = vunpack.c.l.b16 %v4296
  %v4581 = vunpack.c.l.b16 %v4297
  %v4582 = vunpack.c.l.b16 %v4298
  %v4583 = vunpack.c.l.b16 %v4299
  %v4584 = vunpack.c.l.b16 %v4300
  %v4585 = vunpack.c.l.b16 %v4301
  %v4586 = vunpack.c.l.b16 %v4302
  %v4587 = vunpack.c.l.b16 %v4303
  %v4588 = vunpack.c.l.b16 %v4304
  %v4589 = vunpack.c.l.b16 %v4305
  %v4590 = vunpack.c.l.b16 %v4306
  %v4591 = vunpack.c.l.b16 %v4307
  %v4592 = vunpack.c.l.b16 %v4308
  %v4593 = vunpack.c.l.b16 %v4309
  %v4594 = vunpack.c.l.b16 %v4310
  %v4595 = vunpack.c.l.b16 %v4311
  %v4596 = vunpack.c.l.b16 %v4312
  %v4597 = vunpack.c.l.b16 %v4313
  %v4598 = vunpack.c.l.b16 %v4314
  %v4599 = vunpack.c.l.b16 %v4315
  %v4600 = vunpack.c.l.b16 %v4316
  %v4601 = vunpack.c.l.b16 %v4317
  %v4602 = vunpack.c.l.b16 %v4318
  %v4603 = vunpack.c.l.b16 %v4319
  %v4604 = vunpack.c.l.b16 %v4320
  %v4605 = vunpack.c.l.b16 %v4321
  %v4606 = vunpack.c.l.b16 %v4322
  %v4607 = vunpack.c.l.b16 %v4323
  %v4608 = vunpack.c.l.b16 %v4324
  %v4609 = vunpack.c.l.b16 %v4325
  %v4610 = vunpack.c.l.b16 %v4326
  %v4611 = vunpack.c.l.b16 %v4327
  %v4612 = vunpack.c.l.b16 %v4328
  %v4613 = vunpack.c.l.b16 %v4329
  %v4614 = vunpack.c.l.b16 %v4330
  %v4615 = vunpack.c.l.b16 %v4331
  %v4616 = vunpack.c.l.b16 %v4332
  %v4617 = vunpack.c.l.b16 %v4333
  %v4618 = vunpack.c.l.b16 %v4334
  %v4619 = vunpack.c.l.b16 %v4335
  %v4620 = vunpack.c.l.b16 %v4336
  %v4621 = vunpack.c.l.b16 %v4337
  %v4622 = vunpack.c.l.b16 %v4338
  %v4623 = vunpack.c.l.b16 %v4339
  %v4624 = vunpack.c.l.b16 %v4340
  %v4625 = vunpack.c.l.b16 %v4341
  %v4626 = vunpack.c.l.b16 %v4342
  %v4627 = vunpack.c.l.b16 %v4343
  %v4628 = vunpack.c.l.b16 %v4344
  %v4629 = vunpack.c.l.b16 %v4345
  %v4630 = vunpack.c.l.b16 %v4346
  %v4631 = vunpack.c.l.b16 %v4347
  %v4632 = vunpack.c.l.b16 %v4348
  %v4633 = vunpack.c.l.b16 %v4349
  %v4634 = vunpack.c.l.b16 %v4350
  %v4635 = vunpack.c.l.b16 %v4351
  %v4636 = vunpack.c.l.b16 %v4352
  %v4637 = vunpack.c.l.b16 %v4353
  %v4638 = vunpack.c.l.b16 %v4354
  %v4639 = vunpack.c.l.b16 %v4355
  %v4640 = vunpack.c.l.b16 %v4356
  %v4641 = vunpack.c.l.b16 %v4357
  %v4642 = vunpack.c.l.b16 %v4358
  %v4643 = vunpack.c.l.b16 %v4359
  %v4644 = vunpack.c.l.b16 %v4360
  %v4645 = vunpack.c.l.b16 %v4361
  %v4646 = vunpack.c.l.b16 %v4362
  %v4647 = vunpack.c.l.b16 %v4363
  %v4648 = vunpack.c.l.b16 %v4364
  %v4649 = vunpack.c.l.b16 %v4365
  %v4650 = vunpack.c.l.b16 %v4366
  %v4651 = vunpack.c.l.b16 %v4367
  %v4652 = vunpack.c.l.b16 %v4368
  %v4653 = vunpack.c.l.b16 %v4369
  %v4654 = vunpack.c.l.b16 %v4370
  %v4655 = vunpack.c.l.b16 %v4371
  %v4656 = vunpack.c.l.b16 %v4372
  %v4657 = vunpack.c.l.b16 %v4373
  %v4658 = vunpack.c.l.b16 %v4374
  %v4659 = vunpack.c.l.b16 %v4375
  %v4660 = vunpack.c.l.b16 %v4376
  %v4661 = vunpack.c.l.b16 %v4377
  %v4662 = vunpack.c.l.b16 %v4378
  %v4663 = vunpack.c.l.b16 %v4379
  %v4664 = vunpack.c.l.b16 %v4380
  %v4665 = vunpack.c.l.b16 %v4381
  %v4666 = vunpack.c.l.b16 %v4382
  %v4667 = vunpack.c.l.b16 %v4383
  %v4668 = vunpack.c.l.b16 %v4384
  %v4669 = vunpack.c.l.b16 %v4385
  %v4670 = vunpack.c.l.b16 %v4386
  %v4671 = vunpack.c.l.b16 %v4387
  %v4672 = vunpack.c.l.b16 %v4388
  %v4673 = vunpack.c.l.b16 %v4389
  %v4674 = vunpack.c.l.b16 %v4390
  %v4675 = vunpack.c.l.b16 %v4391
  %v4676 = vunpack.c.l.b16 %v4392
  %v4677 = vunpack.c.l.b16 %v4393
  %v4678 = vunpack.c.l.b16 %v4394
  %v4679 = vunpack.c.l.b16 %v4395
  %v4680 = vunpack.c.l.b16 %v4396
  %v4681 = vunpack.c.l.b16 %v4397
  %v4682 = vunpack.c.l.b16 %v4398
  %v4683 = vunpack.c.l.b16 %v4399
  %v4684 = vunpack.c.l.b16 %v4400
  %v4685 = vunpack.c.l.b16 %v4401
  %v4686 = vunpack.c.l.b16 %v4402
  %v4687 = vunpack.c.l.b16 %v4403
  %v4688 = vunpack.c.l.b16 %v4404
  %v4689 = vunpack.c.l.b16 %v4405
  %v4690 = vunpack.c.l.b16 %v4406
  %v4691 = vunpack.c.l.b16 %v4407
  %v4692 = vpack.c.b16 %v4565, %v4564
  %v4693 = vpack.c.b16 %v4567, %v4566
  %v4694 = vpack.c.b16 %v4569, %v4568
  %v4695 = vpack.c.b16 %v4571, %v4570
  %v4696 = vpack.c.b16 %v4573, %v4572
  %v4697 = vpack.c.b16 %v4575, %v4574
  %v4698 = vpack.c.b16 %v4577, %v4576
  %v4699 = vpack.c.b16 %v4579, %v4578
  %v4700 = vpack.c.b16 %v4581, %v4580
  %v4701 = vpack.c.b16 %v4583, %v4582
  %v4702 = vpack.c.b16 %v4585, %v4584
  %v4703 = vpack.c.b16 %v4587, %v4586
  %v4704 = vpack.c.b16 %v4589, %v4588
  %v4705 = vpack.c.b16 %v4591, %v4590
  %v4706 = vpack.c.b16 %v4593, %v4592
  %v4707 = vpack.c.b16 %v4595, %v4594
  %v4708 = vpack.c.b16 %v4597, %v4596
  %v4709 = vpack.c.b16 %v4599, %v4598
  %v4710 = vpack.c.b16 %v4601, %v4600
  %v4711 = vpack.c.b16 %v4603, %v4602
  %v4712 = vpack.c.b16 %v4605, %v4604
  %v4713 = vpack.c.b16 %v4607, %v4606
  %v4714 = vpack.c.b16 %v4609, %v4608
  %v4715 = vpack.c.b16 %v4611, %v4610
  %v4716 = vpack.c.b16 %v4613, %v4612
  %v4717 = vpack.c.b16 %v4615, %v4614
  %v4718 = vpack.c.b16 %v4617, %v4616
  %v4719 = vpack.c.b16 %v4619, %v4618
  %v4720 = vpack.c.b16 %v4621, %v4620
  %v4721 = vpack.c.b16 %v4623, %v4622
  %v4722 = vpack.c.b16 %v4625, %v4624
  %v4723 = vpack.c.b16 %v4627, %v4626
  %v4724 = vpack.c.b16 %v4629, %v4628
  %v4725 = vpack.c.b16 %v4631, %v4630
  %v4726 = vpack.c.b16 %v4633, %v4632
  %v4727 = vpack.c.b16 %v4635, %v4634
  %v4728 = vpack.c.b16 %v4637, %v4636
  %v4729 = vpack.c.b16 %v4639, %v4638
  %v4730 = vpack.c.b16 %v4641, %v4640
  %v4731 = vpack.c.b16 %v4643, %v4642
  %v4732 = vpack.c.b16 %v4645, %v4644
  %v4733 = vpack.c.b16 %v4647, %v4646
  %v4734 = vpack.c.b16 %v4649, %v4648
  %v4735 = vpack.c.b16 %v4651, %v4650
  %v4736 = vpack.c.b16 %v4653, %v4652
  %v4737 = vpack.c.b16 %v4655, %v4654
  %v4738 = vpack.c.b16 %v4657, %v4656
  %v4739 = vpack.c.b16 %v4659, %v4658
  %v4740 = vpack.c.b16 %v4661, %v4660
  %v4741 = vpack.c.b16 %v4663, %v4662
  %v4742 = vpack.c.b16 %v4665, %v4664
  %v4743 = vpack.c.b16 %v4667, %v4666
  %v4744 = vpack.c.b16 %v4669, %v4668
  %v4745 = vpack.c.b16 %v4671, %v4670
  %v4746 = vpack.c.b16 %v4673, %v4672
  %v4747 = vpack.c.b16 %v4675, %v4674
  %v4748 = vpack.c.b16 %v4677, %v4676
  %v4749 = vpack.c.b16 %v4679, %v4678
  %v4750 = vpack.c.b16 %v4681, %v4680
  %v4751 = vpack.c.b16 %v4683, %v4682
  %v4752 = vpack.c.b16 %v4685, %v4684
  %v4753 = vpack.c.b16 %v4687, %v4686
  %v4754 = vpack.c.b16 %v4689, %v4688
  %v4755 = vpack.c.b16 %v4691, %v4690
  %4820 = vmatpush.bf16.msra.mxu0 %v4699
  %4821 = vmatpush.bf16.msra.mxu0 %v4698
  %4822 = vmatpush.bf16.msra.mxu0 %v4697
  %4823 = vmatpush.bf16.msra.mxu0 %v4696
  %4824 = vmatpush.bf16.msra.mxu0 %v4695
  %4825 = vmatpush.bf16.msra.mxu0 %v4694
  %4826 = vmatpush.bf16.msra.mxu0 %v4693
  %4827 = vmatpush.bf16.msra.mxu0 %v4692
  %4828 = vmatmul.bf16.gmra.mxu0 %v4420
  %v4829 = vpop.f32.mrf.mxu0
  %v4830 = vadd.f32 0.0, %v4829
  %v4831 = vpop.f32.mrf.mxu0
  %4832 = vdwg.mxu0
  %4833 = vmatpush.bf16.msra.mxu0 %v4707
  %4834 = vmatpush.bf16.msra.mxu0 %v4706
  %4835 = vmatpush.bf16.msra.mxu0 %v4705
  %4836 = vmatpush.bf16.msra.mxu0 %v4704
  %4837 = vmatpush.bf16.msra.mxu0 %v4703
  %4838 = vmatpush.bf16.msra.mxu0 %v4702
  %4839 = vmatpush.bf16.msra.mxu0 %v4701
  %4840 = vmatpush.bf16.msra.mxu0 %v4700
  %4841 = vmatmul.bf16.gmra.mxu0 %v4421
  %v4842 = vpop.f32.mrf.mxu0
  %v4843 = vadd.f32 %v4830, %v4842
  %v4844 = vpop.f32.mrf.mxu0
  %4845 = vdwg.mxu0
  %4846 = vmatpush.bf16.msra.mxu0 %v4715
  %4847 = vmatpush.bf16.msra.mxu0 %v4714
  %4848 = vmatpush.bf16.msra.mxu0 %v4713
  %4849 = vmatpush.bf16.msra.mxu0 %v4712
  %4850 = vmatpush.bf16.msra.mxu0 %v4711
  %4851 = vmatpush.bf16.msra.mxu0 %v4710
  %4852 = vmatpush.bf16.msra.mxu0 %v4709
  %4853 = vmatpush.bf16.msra.mxu0 %v4708
  %4854 = vmatmul.bf16.gmra.mxu0 %v4422
  %v4855 = vpop.f32.mrf.mxu0
  %v4856 = vadd.f32 %v4843, %v4855
  %v4857 = vpop.f32.mrf.mxu0
  %4858 = vdwg.mxu0
  %4859 = vmatpush.bf16.msra.mxu0 %v4723
  %4860 = vmatpush.bf16.msra.mxu0 %v4722
  %4861 = vmatpush.bf16.msra.mxu0 %v4721
  %4862 = vmatpush.bf16.msra.mxu0 %v4720
  %4863 = vmatpush.bf16.msra.mxu0 %v4719
  %4864 = vmatpush.bf16.msra.mxu0 %v4718
  %4865 = vmatpush.bf16.msra.mxu0 %v4717
  %4866 = vmatpush.bf16.msra.mxu0 %v4716
  %4867 = vmatmul.bf16.gmra.mxu0 %v4423
  %v4868 = vpop.f32.mrf.mxu0
  %v4869 = vadd.f32 %v4856, %v4868
  %v4870 = vpop.f32.mrf.mxu0
  %4871 = vdwg.mxu0
  %4872 = vmatpush.bf16.msra.mxu0 %v4731
  %4873 = vmatpush.bf16.msra.mxu0 %v4730
  %4874 = vmatpush.bf16.msra.mxu0 %v4729
  %4875 = vmatpush.bf16.msra.mxu0 %v4728
  %4876 = vmatpush.bf16.msra.mxu0 %v4727
  %4877 = vmatpush.bf16.msra.mxu0 %v4726
  %4878 = vmatpush.bf16.msra.mxu0 %v4725
  %4879 = vmatpush.bf16.msra.mxu0 %v4724
  %4880 = vmatmul.bf16.gmra.mxu0 %v4424
  %v4881 = vpop.f32.mrf.mxu0
  %v4882 = vadd.f32 %v4869, %v4881
  %v4883 = vpop.f32.mrf.mxu0
  %4884 = vdwg.mxu0
  %4885 = vmatpush.bf16.msra.mxu0 %v4739
  %4886 = vmatpush.bf16.msra.mxu0 %v4738
  %4887 = vmatpush.bf16.msra.mxu0 %v4737
  %4888 = vmatpush.bf16.msra.mxu0 %v4736
  %4889 = vmatpush.bf16.msra.mxu0 %v4735
  %4890 = vmatpush.bf16.msra.mxu0 %v4734
  %4891 = vmatpush.bf16.msra.mxu0 %v4733
  %4892 = vmatpush.bf16.msra.mxu0 %v4732
  %4893 = vmatmul.bf16.gmra.mxu0 %v4425
  %v4894 = vpop.f32.mrf.mxu0
  %v4895 = vadd.f32 %v4882, %v4894
  %v4896 = vpop.f32.mrf.mxu0
  %4897 = vdwg.mxu0
  %4898 = vmatpush.bf16.msra.mxu0 %v4747
  %4899 = vmatpush.bf16.msra.mxu0 %v4746
  %4900 = vmatpush.bf16.msra.mxu0 %v4745
  %4901 = vmatpush.bf16.msra.mxu0 %v4744
  %4902 = vmatpush.bf16.msra.mxu0 %v4743
  %4903 = vmatpush.bf16.msra.mxu0 %v4742
  %4904 = vmatpush.bf16.msra.mxu0 %v4741
  %4905 = vmatpush.bf16.msra.mxu0 %v4740
  %4906 = vmatmul.bf16.gmra.mxu0 %v4426
  %v4907 = vpop.f32.mrf.mxu0
  %v4908 = vadd.f32 %v4895, %v4907
  %v4909 = vpop.f32.mrf.mxu0
  %4910 = vdwg.mxu0
  %4911 = vmatpush.bf16.msra.mxu0 %v4755
  %4912 = vmatpush.bf16.msra.mxu0 %v4754
  %4913 = vmatpush.bf16.msra.mxu0 %v4753
  %4914 = vmatpush.bf16.msra.mxu0 %v4752
  %4915 = vmatpush.bf16.msra.mxu0 %v4751
  %4916 = vmatpush.bf16.msra.mxu0 %v4750
  %4917 = vmatpush.bf16.msra.mxu0 %v4749
  %4918 = vmatpush.bf16.msra.mxu0 %v4748
  %4919 = vmatmul.bf16.gmra.mxu0 %v4427
  %v4920 = vpop.f32.mrf.mxu0
  %v4921 = vadd.f32 %v4908, %v4920
  %v4922 = vpop.f32.mrf.mxu0
  %4923 = vdwg.mxu0
  %v4924 = vld [vmem:[%s7] sm:$0x1]
  %v4925 = vld [vmem:[%s8] sm:$0x1]
  %v4926 = vsel %vm1271, %v4921, 0.0
  %v4927 = vrot.slane %v4926, 4
  %v4928 = vadd.f32 %v4926, %v4927
  %v4929 = vrot.slane %v4928, 2
  %v4930 = vadd.f32 %v4928, %v4929
  %v4931 = vrot.slane %v4930, 1
  %v4932 = vadd.f32 %v4930, %v4931
  %v4933 = vrcp.pop 8.0
  %v4934 = vmul.f32 8.0, %v4933
  %v4935 = vsub.f32 1.0, %v4934
  %v4936 = vmul.f32 %v4933, %v4935
  %v4937 = vadd.f32 %v4933, %v4936
  %vm4938 = vweird.f32 %v4933
  %v4939 = vsel %vm4938, %v4933, %v4937
  %v4940 = vmul.f32 %v4932, %v4939
  %v4941 = vsub.f32 %v4921, %v4940
  %v4942 = vmul.f32 %v4941, %v4941
  %v4943 = vsel %vm1271, %v4942, 0.0
  %v4944 = vrot.slane %v4943, 4
  %v4945 = vadd.f32 %v4943, %v4944
  %v4946 = vrot.slane %v4945, 2
  %v4947 = vadd.f32 %v4945, %v4946
  %v4948 = vrot.slane %v4947, 1
  %v4949 = vadd.f32 %v4947, %v4948
  %v4950 = vmul.f32 %v4949, %v4939
  %v4951 = vadd.f32 %v4950, 1e-05
  %v4952 = vrsqrt.pop %v4951
  %v4953 = vmul.f32 %v4952, %v4951
  %v4954 = vmul.f32 %v4953, %v4952
  %v4955 = vmul.f32 0.5, %v4954
  %v4956 = vsub.f32 1.5, %v4955
  %v4957 = vmul.f32 %v4952, %v4956
  %vm4958 = vweird.f32 %v4951
  %vm4959 = vweird.f32 %v4952
  %vm4960 = vmor %vm4958, %vm4959
  %v4961 = vsel %vm4960, %v4952, %v4957
  %v4962 = vmul.f32 %v4924, %v4961
  %v4964 = vperm.slane %v4962, 0
  %v4966 = vmul.f32 %v4921, %v4964
  %v4967 = vmul.f32 %v4940, %v4962
  %v4968 = vsub.f32 %v4925, %v4967
  %v4970 = vperm.slane %v4968, 0
  %v4972 = vadd.f32 %v4966, %v4970
  %vm4973 = vcmp.gt.f32.partialorder %v4972, 0.0
  %v4974 = vmul.f32 %v4972, 0.2
  %v4975 = vsel %vm4973, %v4972, %v4974
  %v4976 = vpack.c.bf16 %v4975, %v4975
  %v4978 = vrot.slane %v4976, 3
  %v4981 = vsel %vm3211, %v4976, %v4978
  %v4982 = vsel %vm3215, %v4976, %v4978
  %v4984 = vrot.slane %v4982, 1
  %v4985 = vsel %vm3219, %v4976, %v4978
  %v4987 = vrot.slane %v4985, 2
  %v4988 = vsel %vm3223, %v4976, %v4978
  %v4990 = vrot.slane %v4988, 3
  %4991 = vst [vmem:[#allocation1] ss:$2 sm:$0xff] %v4981
  %v4992 = vld [vmem:[#allocation1] sm:$0xff]
  %s4994 = scalar_lea.vmem [#allocation1], 16
  %4995 = vst [vmem:[%s4994] ss:$2 sm:$0xff] %v4984
  %v4996 = vld [vmem:[#allocation1 + $0x10] sm:$0xff]
  %s4998 = scalar_lea.vmem [#allocation1], 32
  %4999 = vst [vmem:[%s4998] ss:$2 sm:$0xff] %v4987
  %v5000 = vld [vmem:[#allocation1 + $0x20] sm:$0xff]
  %s5002 = scalar_lea.vmem [#allocation1], 48
  %5003 = vst [vmem:[%s5002] ss:$2 sm:$0xff] %v4990
  %v5004 = vld [vmem:[#allocation1 + $0x30] sm:$0xff]
  %v5005 = vshrl.u32 %v4992, 16
  %v5007 = vrot.slane %v5005, 7
  %v5008 = vshll.u32 %v4992, 16
  %v5010 = vor.u32 %v5007, %v5008
  %v5011 = vshrl.u32 %v4996, 16
  %v5013 = vrot.slane %v5011, 7
  %v5014 = vshll.u32 %v4996, 16
  %v5016 = vor.u32 %v5013, %v5014
  %v5017 = vshrl.u32 %v5000, 16
  %v5019 = vrot.slane %v5017, 7
  %v5020 = vshll.u32 %v5000, 16
  %v5022 = vor.u32 %v5019, %v5020
  %v5023 = vshrl.u32 %v5004, 16
  %v5025 = vrot.slane %v5023, 7
  %v5026 = vshll.u32 %v5004, 16
  %v5028 = vor.u32 %v5025, %v5026
  %s5033 = scalar_lea.vmem [#allocation4], 4
  %v5034 = vld [vmem:[%s5033] sm:$0x3]
  %v5035 = vsel %vm3508, %v5010, %v5034
  %5036 = vst [vmem:[%s5033] sm:$0x3] %v5035
  %v5037 = vld [vmem:[%s5033 + $0x2] sm:$0x3]
  %v5038 = vsel %vm3508, %v5016, %v5037
  %5039 = vst [vmem:[%s5033 + $0x2] sm:$0x3] %v5038
  %v5040 = vld [vmem:[%s5033 + $0x4] sm:$0x3]
  %v5041 = vsel %vm3508, %v5022, %v5040
  %5042 = vst [vmem:[%s5033 + $0x4] sm:$0x3] %v5041
  %v5043 = vld [vmem:[%s5033 + $0x6] sm:$0x3]
  %v5044 = vsel %vm3508, %v5028, %v5043
  %5045 = vst [vmem:[%s5033 + $0x6] sm:$0x3] %v5044
  %v5046 = vld [vmem:[#allocation4] sm:$0x1]
  %v5047 = vld [vmem:[#allocation4 + $0x2] sm:$0x1]
  %v5048 = vld [vmem:[#allocation4] sm:$0x2]
  %v5049 = vld [vmem:[#allocation4 + $0x2] sm:$0x2]
  %5051 = vst [vmem:[#allocation1] ss:$4 sm:$0xff] %v5046
  %v5052 = vld.sshfl [vmem:[#allocation1] sm:$0xff pattern:$0x73625140]
  %s5054 = scalar_lea.vmem [#allocation1], 32
  %5055 = vst [vmem:[%s5054] ss:$4 sm:$0xff] %v5047
  %v5056 = vld.sshfl [vmem:[#allocation1 + $0x20] sm:$0xff pattern:$0x73625140]
  %v5057 = vshrl.u32 %v5052, 16
  %v5059 = vshrl.u32 %v5056, 16
  %5061 = vrot.lane.b32.xlu0 %v5057, 64
  %v5062 = vpop.permute.xlu0 %5061
  %5063 = vrot.lane.b32.xlu0 %v5059, 64
  %v5064 = vpop.permute.xlu0 %5063
  %5066 = vst [vmem:[#allocation1] ss:$4 sm:$0xff] %v5048
  %v5067 = vld.sshfl [vmem:[#allocation1] sm:$0xff pattern:$0x73625140]
  %s5070 = scalar_lea.vmem [#allocation1], 32
  %5071 = vst [vmem:[%s5070] ss:$4 sm:$0xff] %v5049
  %v5072 = vld.sshfl [vmem:[#allocation1 + $0x20] sm:$0xff pattern:$0x73625140]
  %v5074 = vrot.slane %v5067, 1
  %v5075 = vrot.slane %v5072, 1
  %5076 = vst [vmem:[#allocation1] ss:$4 sm:$0xff] %v5048
  %v5077 = vld.sshfl [vmem:[#allocation1] sm:$0xff pattern:$0x73625140]
  %s5078 = scalar_lea.vmem [#allocation1], 32
  %5079 = vst [vmem:[%s5078] ss:$4 sm:$0xff] %v5049
  %v5080 = vld.sshfl [vmem:[#allocation1 + $0x20] sm:$0xff pattern:$0x73625140]
  %v5081 = vshrl.u32 %v5077, 16
  %v5083 = vrot.slane %v5081, 1
  %v5084 = vshrl.u32 %v5080, 16
  %v5086 = vrot.slane %v5084, 1
  %5087 = vrot.lane.b32.xlu0 %v5083, 64
  %v5088 = vpop.permute.xlu0 %5087
  %5089 = vrot.lane.b32.xlu0 %v5086, 64
  %v5090 = vpop.permute.xlu0 %5089
  %v5092 = vsel %vm1271, %v5046, %v5062
  %v5094 = vsel %vm1271, %v5047, %v5064
  %v5097 = vsel %vm1271, %v5074, %v5088
  %v5100 = vsel %vm1271, %v5075, %v5090
  %v5103 = vrot.slane %v5097, 7
  %v5104 = vrot.slane %v5100, 7
  %v5106 = vsel %vm3211, %v5092, %v5103
  %v5108 = vsel %vm3211, %v5094, %v5104
  %5109 = vst [vmem:[#allocation1] ss:$4 sm:$0xff] %v5106
  %v5110 = vld [vmem:[#allocation1] sm:$0xff]
  %s5112 = scalar_lea.vmem [#allocation1], 32
  %5113 = vst [vmem:[%s5112] ss:$4 sm:$0xff] %v5108
  %v5114 = vld [vmem:[#allocation1 + $0x20] sm:$0xff]
  %v5116 = vunpack.c.l.b16 %v5110
  %v5117 = vunpack.c.h.b16 %v5110
  %v5118 = vunpack.c.l.b16 %v5114
  %v5119 = vunpack.c.h.b16 %v5114
  %v5120 = vrot.slane %v5118, 7
  %v5121 = vsel %vm3215, %v5120, %v5116
  %v5122 = vrot.slane %v5119, 7
  %v5123 = vsel %vm3215, %v5122, %v5117
  %v5124 = vpack.c.b16 %v5123, %v5121
  %v5125 = vrot.slane %v5124, 3
  %v5128 = vsel %vm3211, %v5124, %v5125
  %5130 = vst [vmem:[#allocation7] sm:$0x3] %v5128
  %v5131 = vld [vmem:[%s5033] sm:$0x1]
  %v5132 = vld [vmem:[%s5033 + $0x2] sm:$0x1]
  %v5133 = vld [vmem:[%s5033] sm:$0x2]
  %v5134 = vld [vmem:[%s5033 + $0x2] sm:$0x2]
  %5136 = vst [vmem:[#allocation1] ss:$4 sm:$0xff] %v5131
  %v5137 = vld.sshfl [vmem:[#allocation1] sm:$0xff pattern:$0x73625140]
  %s5139 = scalar_lea.vmem [#allocation1], 32
  %5140 = vst [vmem:[%s5139] ss:$4 sm:$0xff] %v5132
  %v5141 = vld.sshfl [vmem:[#allocation1 + $0x20] sm:$0xff pattern:$0x73625140]
  %v5142 = vshrl.u32 %v5137, 16
  %v5144 = vshrl.u32 %v5141, 16
  %5146 = vrot.lane.b32.xlu0 %v5142, 64
  %v5147 = vpop.permute.xlu0 %5146
  %5148 = vrot.lane.b32.xlu0 %v5144, 64
  %v5149 = vpop.permute.xlu0 %5148
  %5151 = vst [vmem:[#allocation1] ss:$4 sm:$0xff] %v5133
  %v5152 = vld.sshfl [vmem:[#allocation1] sm:$0xff pattern:$0x73625140]
  %s5155 = scalar_lea.vmem [#allocation1], 32
  %5156 = vst [vmem:[%s5155] ss:$4 sm:$0xff] %v5134
  %v5157 = vld.sshfl [vmem:[#allocation1 + $0x20] sm:$0xff pattern:$0x73625140]
  %v5159 = vrot.slane %v5152, 1
  %v5160 = vrot.slane %v5157, 1
  %5161 = vst [vmem:[#allocation1] ss:$4 sm:$0xff] %v5133
  %v5162 = vld.sshfl [vmem:[#allocation1] sm:$0xff pattern:$0x73625140]
  %s5163 = scalar_lea.vmem [#allocation1], 32
  %5164 = vst [vmem:[%s5163] ss:$4 sm:$0xff] %v5134
  %v5165 = vld.sshfl [vmem:[#allocation1 + $0x20] sm:$0xff pattern:$0x73625140]
  %v5166 = vshrl.u32 %v5162, 16
  %v5168 = vrot.slane %v5166, 1
  %v5169 = vshrl.u32 %v5165, 16
  %v5171 = vrot.slane %v5169, 1
  %5172 = vrot.lane.b32.xlu0 %v5168, 64
  %v5173 = vpop.permute.xlu0 %5172
  %5174 = vrot.lane.b32.xlu0 %v5171, 64
  %v5175 = vpop.permute.xlu0 %5174
  %v5177 = vsel %vm1271, %v5131, %v5147
  %v5179 = vsel %vm1271, %v5132, %v5149
  %v5182 = vsel %vm1271, %v5159, %v5173
  %v5185 = vsel %vm1271, %v5160, %v5175
  %v5188 = vrot.slane %v5182, 7
  %v5189 = vrot.slane %v5185, 7
  %v5191 = vsel %vm3211, %v5177, %v5188
  %v5193 = vsel %vm3211, %v5179, %v5189
  %5194 = vst [vmem:[#allocation1] ss:$4 sm:$0xff] %v5191
  %v5195 = vld [vmem:[#allocation1] sm:$0xff]
  %s5197 = scalar_lea.vmem [#allocation1], 32
  %5198 = vst [vmem:[%s5197] ss:$4 sm:$0xff] %v5193
  %v5199 = vld [vmem:[#allocation1 + $0x20] sm:$0xff]
  %v5201 = vunpack.c.l.b16 %v5195
  %v5202 = vunpack.c.h.b16 %v5195
  %v5203 = vunpack.c.l.b16 %v5199
  %v5204 = vunpack.c.h.b16 %v5199
  %v5205 = vrot.slane %v5203, 7
  %v5206 = vsel %vm3215, %v5205, %v5201
  %v5207 = vrot.slane %v5204, 7
  %v5208 = vsel %vm3215, %v5207, %v5202
  %v5209 = vpack.c.b16 %v5208, %v5206
  %v5210 = vrot.slane %v5209, 3
  %v5213 = vsel %vm3211, %v5209, %v5210
  %5215 = vst [vmem:[#allocation7 + $0x2] sm:$0x3] %v5213
  %s5216 = scalar_lea.vmem [#allocation4], 8
  %v5217 = vld [vmem:[%s5216] sm:$0x1]
  %v5218 = vld [vmem:[%s5216 + $0x2] sm:$0x1]
  %v5219 = vld [vmem:[%s5216] sm:$0x2]
  %v5220 = vld [vmem:[%s5216 + $0x2] sm:$0x2]
  %5222 = vst [vmem:[#allocation1] ss:$4 sm:$0xff] %v5217
  %v5223 = vld.sshfl [vmem:[#allocation1] sm:$0xff pattern:$0x73625140]
  %s5225 = scalar_lea.vmem [#allocation1], 32
  %5226 = vst [vmem:[%s5225] ss:$4 sm:$0xff] %v5218
  %v5227 = vld.sshfl [vmem:[#allocation1 + $0x20] sm:$0xff pattern:$0x73625140]
  %v5228 = vshrl.u32 %v5223, 16
  %v5230 = vshrl.u32 %v5227, 16
  %5232 = vrot.lane.b32.xlu0 %v5228, 64
  %v5233 = vpop.permute.xlu0 %5232
  %5234 = vrot.lane.b32.xlu0 %v5230, 64
  %v5235 = vpop.permute.xlu0 %5234
  %5237 = vst [vmem:[#allocation1] ss:$4 sm:$0xff] %v5219
  %v5238 = vld.sshfl [vmem:[#allocation1] sm:$0xff pattern:$0x73625140]
  %s5241 = scalar_lea.vmem [#allocation1], 32
  %5242 = vst [vmem:[%s5241] ss:$4 sm:$0xff] %v5220
  %v5243 = vld.sshfl [vmem:[#allocation1 + $0x20] sm:$0xff pattern:$0x73625140]
  %v5245 = vrot.slane %v5238, 1
  %v5246 = vrot.slane %v5243, 1
  %5247 = vst [vmem:[#allocation1] ss:$4 sm:$0xff] %v5219
  %v5248 = vld.sshfl [vmem:[#allocation1] sm:$0xff pattern:$0x73625140]
  %s5249 = scalar_lea.vmem [#allocation1], 32
  %5250 = vst [vmem:[%s5249] ss:$4 sm:$0xff] %v5220
  %v5251 = vld.sshfl [vmem:[#allocation1 + $0x20] sm:$0xff pattern:$0x73625140]
  %v5252 = vshrl.u32 %v5248, 16
  %v5254 = vrot.slane %v5252, 1
  %v5255 = vshrl.u32 %v5251, 16
  %v5257 = vrot.slane %v5255, 1
  %5258 = vrot.lane.b32.xlu0 %v5254, 64
  %v5259 = vpop.permute.xlu0 %5258
  %5260 = vrot.lane.b32.xlu0 %v5257, 64
  %v5261 = vpop.permute.xlu0 %5260
  %v5263 = vsel %vm1271, %v5217, %v5233
  %v5265 = vsel %vm1271, %v5218, %v5235
  %v5268 = vsel %vm1271, %v5245, %v5259
  %v5271 = vsel %vm1271, %v5246, %v5261
  %v5274 = vrot.slane %v5268, 7
  %v5275 = vrot.slane %v5271, 7
  %v5277 = vsel %vm3211, %v5263, %v5274
  %v5279 = vsel %vm3211, %v5265, %v5275
  %5280 = vst [vmem:[#allocation1] ss:$4 sm:$0xff] %v5277
  %v5281 = vld [vmem:[#allocation1] sm:$0xff]
  %s5283 = scalar_lea.vmem [#allocation1], 32
  %5284 = vst [vmem:[%s5283] ss:$4 sm:$0xff] %v5279
  %v5285 = vld [vmem:[#allocation1 + $0x20] sm:$0xff]
  %v5287 = vunpack.c.l.b16 %v5281
  %v5288 = vunpack.c.h.b16 %v5281
  %v5289 = vunpack.c.l.b16 %v5285
  %v5290 = vunpack.c.h.b16 %v5285
  %v5291 = vrot.slane %v5289, 7
  %v5292 = vsel %vm3215, %v5291, %v5287
  %v5293 = vrot.slane %v5290, 7
  %v5294 = vsel %vm3215, %v5293, %v5288
  %v5295 = vpack.c.b16 %v5294, %v5292
  %v5296 = vrot.slane %v5295, 3
  %v5299 = vsel %vm3211, %v5295, %v5296
  %5301 = vst [vmem:[#allocation7 + $0x4] sm:$0x3] %v5299
  %v5302 = vld [vmem:[%s255] sm:$0x1]
  %v5303 = vld [vmem:[%s255 + $0x2] sm:$0x1]
  %v5304 = vld [vmem:[%s255] sm:$0x2]
  %v5305 = vld [vmem:[%s255 + $0x2] sm:$0x2]
  %5307 = vst [vmem:[#allocation1] ss:$4 sm:$0xff] %v5302
  %v5308 = vld.sshfl [vmem:[#allocation1] sm:$0xff pattern:$0x73625140]
  %s5310 = scalar_lea.vmem [#allocation1], 32
  %5311 = vst [vmem:[%s5310] ss:$4 sm:$0xff] %v5303
  %v5312 = vld.sshfl [vmem:[#allocation1 + $0x20] sm:$0xff pattern:$0x73625140]
  %v5313 = vshrl.u32 %v5308, 16
  %v5315 = vshrl.u32 %v5312, 16
  %5317 = vrot.lane.b32.xlu0 %v5313, 64
  %v5318 = vpop.permute.xlu0 %5317
  %5319 = vrot.lane.b32.xlu0 %v5315, 64
  %v5320 = vpop.permute.xlu0 %5319
  %5322 = vst [vmem:[#allocation1] ss:$4 sm:$0xff] %v5304
  %v5323 = vld.sshfl [vmem:[#allocation1] sm:$0xff pattern:$0x73625140]
  %s5326 = scalar_lea.vmem [#allocation1], 32
  %5327 = vst [vmem:[%s5326] ss:$4 sm:$0xff] %v5305
  %v5328 = vld.sshfl [vmem:[#allocation1 + $0x20] sm:$0xff pattern:$0x73625140]
  %v5330 = vrot.slane %v5323, 1
  %v5331 = vrot.slane %v5328, 1
  %5332 = vst [vmem:[#allocation1] ss:$4 sm:$0xff] %v5304
  %v5333 = vld.sshfl [vmem:[#allocation1] sm:$0xff pattern:$0x73625140]
  %s5334 = scalar_lea.vmem [#allocation1], 32
  %5335 = vst [vmem:[%s5334] ss:$4 sm:$0xff] %v5305
  %v5336 = vld.sshfl [vmem:[#allocation1 + $0x20] sm:$0xff pattern:$0x73625140]
  %v5337 = vshrl.u32 %v5333, 16
  %v5339 = vrot.slane %v5337, 1
  %v5340 = vshrl.u32 %v5336, 16
  %v5342 = vrot.slane %v5340, 1
  %5343 = vrot.lane.b32.xlu0 %v5339, 64
  %v5344 = vpop.permute.xlu0 %5343
  %5345 = vrot.lane.b32.xlu0 %v5342, 64
  %v5346 = vpop.permute.xlu0 %5345
  %v5348 = vsel %vm1271, %v5302, %v5318
  %v5350 = vsel %vm1271, %v5303, %v5320
  %v5353 = vsel %vm1271, %v5330, %v5344
  %v5356 = vsel %vm1271, %v5331, %v5346
  %v5359 = vrot.slane %v5353, 7
  %v5360 = vrot.slane %v5356, 7
  %v5362 = vsel %vm3211, %v5348, %v5359
  %v5364 = vsel %vm3211, %v5350, %v5360
  %5365 = vst [vmem:[#allocation1] ss:$4 sm:$0xff] %v5362
  %v5366 = vld [vmem:[#allocation1] sm:$0xff]
  %s5368 = scalar_lea.vmem [#allocation1], 32
  %5369 = vst [vmem:[%s5368] ss:$4 sm:$0xff] %v5364
  %v5370 = vld [vmem:[#allocation1 + $0x20] sm:$0xff]
  %v5372 = vunpack.c.l.b16 %v5366
  %v5373 = vunpack.c.h.b16 %v5366
  %v5374 = vunpack.c.l.b16 %v5370
  %v5375 = vunpack.c.h.b16 %v5370
  %v5376 = vrot.slane %v5374, 7
  %v5377 = vsel %vm3215, %v5376, %v5372
  %v5378 = vrot.slane %v5375, 7
  %v5379 = vsel %vm3215, %v5378, %v5373
  %v5380 = vpack.c.b16 %v5379, %v5377
  %v5381 = vrot.slane %v5380, 3
  %v5384 = vsel %vm3211, %v5380, %v5381
  %5386 = vst [vmem:[#allocation7 + $0x6] sm:$0x3] %v5384
  %v5387 = vld [vmem:[#allocation7] sm:$0xff]
  %v5388 = vld [vmem:[%s4] sm:$0xf]
  %v5389 = vld [vmem:[%s4 + $0x4] sm:$0xf]
  %v5390 = vld [vmem:[%s4 + $0x8] sm:$0xf]
  %v5391 = vld [vmem:[%s4 + $0xc] sm:$0xf]
  %v5392 = vld [vmem:[%s4 + $0x10] sm:$0xf]
  %v5393 = vld [vmem:[%s4 + $0x14] sm:$0xf]
  %v5394 = vld [vmem:[%s4 + $0x18] sm:$0xf]
  %v5395 = vld [vmem:[%s4 + $0x1c] sm:$0xf]
  %v5396 = vld [vmem:[%s4 + $0x20] sm:$0xf]
  %v5397 = vld [vmem:[%s4 + $0x24] sm:$0xf]
  %v5398 = vld [vmem:[%s4 + $0x28] sm:$0xf]
  %v5399 = vld [vmem:[%s4 + $0x2c] sm:$0xf]
  %v5400 = vld [vmem:[%s4 + $0x30] sm:$0xf]
  %v5401 = vld [vmem:[%s4 + $0x34] sm:$0xf]
  %v5402 = vld [vmem:[%s4 + $0x38] sm:$0xf]
  %v5403 = vld [vmem:[%s4 + $0x3c] sm:$0xf]
  %v5404 = vld [vmem:[%s4 + $0x40] sm:$0xf]
  %v5405 = vld [vmem:[%s4 + $0x44] sm:$0xf]
  %v5406 = vld [vmem:[%s4 + $0x48] sm:$0xf]
  %v5407 = vld [vmem:[%s4 + $0x4c] sm:$0xf]
  %v5408 = vld [vmem:[%s4 + $0x50] sm:$0xf]
  %v5409 = vld [vmem:[%s4 + $0x54] sm:$0xf]
  %v5410 = vld [vmem:[%s4 + $0x58] sm:$0xf]
  %v5411 = vld [vmem:[%s4 + $0x5c] sm:$0xf]
  %v5412 = vld [vmem:[%s4 + $0x60] sm:$0xf]
  %v5413 = vld [vmem:[%s4 + $0x64] sm:$0xf]
  %v5414 = vld [vmem:[%s4 + $0x68] sm:$0xf]
  %v5415 = vld [vmem:[%s4 + $0x6c] sm:$0xf]
  %v5416 = vld [vmem:[%s4 + $0x70] sm:$0xf]
  %v5417 = vld [vmem:[%s4 + $0x74] sm:$0xf]
  %v5418 = vld [vmem:[%s4 + $0x78] sm:$0xf]
  %v5419 = vld [vmem:[%s4 + $0x7c] sm:$0xf]
  %v5420 = vld [vmem:[%s4 + $0x80] sm:$0xf]
  %v5421 = vld [vmem:[%s4 + $0x84] sm:$0xf]
  %v5422 = vld [vmem:[%s4 + $0x88] sm:$0xf]
  %v5423 = vld [vmem:[%s4 + $0x8c] sm:$0xf]
  %v5424 = vld [vmem:[%s4 + $0x90] sm:$0xf]
  %v5425 = vld [vmem:[%s4 + $0x94] sm:$0xf]
  %v5426 = vld [vmem:[%s4 + $0x98] sm:$0xf]
  %v5427 = vld [vmem:[%s4 + $0x9c] sm:$0xf]
  %v5428 = vld [vmem:[%s4 + $0xa0] sm:$0xf]
  %v5429 = vld [vmem:[%s4 + $0xa4] sm:$0xf]
  %v5430 = vld [vmem:[%s4 + $0xa8] sm:$0xf]
  %v5431 = vld [vmem:[%s4 + $0xac] sm:$0xf]
  %v5432 = vld [vmem:[%s4 + $0xb0] sm:$0xf]
  %v5433 = vld [vmem:[%s4 + $0xb4] sm:$0xf]
  %v5434 = vld [vmem:[%s4 + $0xb8] sm:$0xf]
  %v5435 = vld [vmem:[%s4 + $0xbc] sm:$0xf]
  %v5436 = vld [vmem:[%s4 + $0xc0] sm:$0xf]
  %v5437 = vld [vmem:[%s4 + $0xc4] sm:$0xf]
  %v5438 = vld [vmem:[%s4 + $0xc8] sm:$0xf]
  %v5439 = vld [vmem:[%s4 + $0xcc] sm:$0xf]
  %v5440 = vld [vmem:[%s4 + $0xd0] sm:$0xf]
  %v5441 = vld [vmem:[%s4 + $0xd4] sm:$0xf]
  %v5442 = vld [vmem:[%s4 + $0xd8] sm:$0xf]
  %v5443 = vld [vmem:[%s4 + $0xdc] sm:$0xf]
  %v5444 = vld [vmem:[%s4 + $0xe0] sm:$0xf]
  %v5445 = vld [vmem:[%s4 + $0xe4] sm:$0xf]
  %v5446 = vld [vmem:[%s4 + $0xe8] sm:$0xf]
  %v5447 = vld [vmem:[%s4 + $0xec] sm:$0xf]
  %v5448 = vld [vmem:[%s4 + $0xf0] sm:$0xf]
  %v5449 = vld [vmem:[%s4 + $0xf4] sm:$0xf]
  %v5450 = vld [vmem:[%s4 + $0xf8] sm:$0xf]
  %v5451 = vld [vmem:[%s4 + $0xfc] sm:$0xf]
  %v5452 = vld [vmem:[%s4 + $0x100] sm:$0xf]
  %v5453 = vld [vmem:[%s4 + $0x104] sm:$0xf]
  %v5454 = vld [vmem:[%s4 + $0x108] sm:$0xf]
  %v5455 = vld [vmem:[%s4 + $0x10c] sm:$0xf]
  %v5456 = vld [vmem:[%s4 + $0x110] sm:$0xf]
  %v5457 = vld [vmem:[%s4 + $0x114] sm:$0xf]
  %v5458 = vld [vmem:[%s4 + $0x118] sm:$0xf]
  %v5459 = vld [vmem:[%s4 + $0x11c] sm:$0xf]
  %v5460 = vld [vmem:[%s4 + $0x120] sm:$0xf]
  %v5461 = vld [vmem:[%s4 + $0x124] sm:$0xf]
  %v5462 = vld [vmem:[%s4 + $0x128] sm:$0xf]
  %v5463 = vld [vmem:[%s4 + $0x12c] sm:$0xf]
  %v5464 = vld [vmem:[%s4 + $0x130] sm:$0xf]
  %v5465 = vld [vmem:[%s4 + $0x134] sm:$0xf]
  %v5466 = vld [vmem:[%s4 + $0x138] sm:$0xf]
  %v5467 = vld [vmem:[%s4 + $0x13c] sm:$0xf]
  %v5468 = vld [vmem:[%s4 + $0x140] sm:$0xf]
  %v5469 = vld [vmem:[%s4 + $0x144] sm:$0xf]
  %v5470 = vld [vmem:[%s4 + $0x148] sm:$0xf]
  %v5471 = vld [vmem:[%s4 + $0x14c] sm:$0xf]
  %v5472 = vld [vmem:[%s4 + $0x150] sm:$0xf]
  %v5473 = vld [vmem:[%s4 + $0x154] sm:$0xf]
  %v5474 = vld [vmem:[%s4 + $0x158] sm:$0xf]
  %v5475 = vld [vmem:[%s4 + $0x15c] sm:$0xf]
  %v5476 = vld [vmem:[%s4 + $0x160] sm:$0xf]
  %v5477 = vld [vmem:[%s4 + $0x164] sm:$0xf]
  %v5478 = vld [vmem:[%s4 + $0x168] sm:$0xf]
  %v5479 = vld [vmem:[%s4 + $0x16c] sm:$0xf]
  %v5480 = vld [vmem:[%s4 + $0x170] sm:$0xf]
  %v5481 = vld [vmem:[%s4 + $0x174] sm:$0xf]
  %v5482 = vld [vmem:[%s4 + $0x178] sm:$0xf]
  %v5483 = vld [vmem:[%s4 + $0x17c] sm:$0xf]
  %v5484 = vld [vmem:[%s4 + $0x180] sm:$0xf]
  %v5485 = vld [vmem:[%s4 + $0x184] sm:$0xf]
  %v5486 = vld [vmem:[%s4 + $0x188] sm:$0xf]
  %v5487 = vld [vmem:[%s4 + $0x18c] sm:$0xf]
  %v5488 = vld [vmem:[%s4 + $0x190] sm:$0xf]
  %v5489 = vld [vmem:[%s4 + $0x194] sm:$0xf]
  %v5490 = vld [vmem:[%s4 + $0x198] sm:$0xf]
  %v5491 = vld [vmem:[%s4 + $0x19c] sm:$0xf]
  %v5492 = vld [vmem:[%s4 + $0x1a0] sm:$0xf]
  %v5493 = vld [vmem:[%s4 + $0x1a4] sm:$0xf]
  %v5494 = vld [vmem:[%s4 + $0x1a8] sm:$0xf]
  %v5495 = vld [vmem:[%s4 + $0x1ac] sm:$0xf]
  %v5496 = vld [vmem:[%s4 + $0x1b0] sm:$0xf]
  %v5497 = vld [vmem:[%s4 + $0x1b4] sm:$0xf]
  %v5498 = vld [vmem:[%s4 + $0x1b8] sm:$0xf]
  %v5499 = vld [vmem:[%s4 + $0x1bc] sm:$0xf]
  %v5500 = vld [vmem:[%s4 + $0x1c0] sm:$0xf]
  %v5501 = vld [vmem:[%s4 + $0x1c4] sm:$0xf]
  %v5502 = vld [vmem:[%s4 + $0x1c8] sm:$0xf]
  %v5503 = vld [vmem:[%s4 + $0x1cc] sm:$0xf]
  %v5504 = vld [vmem:[%s4 + $0x1d0] sm:$0xf]
  %v5505 = vld [vmem:[%s4 + $0x1d4] sm:$0xf]
  %v5506 = vld [vmem:[%s4 + $0x1d8] sm:$0xf]
  %v5507 = vld [vmem:[%s4 + $0x1dc] sm:$0xf]
  %v5508 = vld [vmem:[%s4 + $0x1e0] sm:$0xf]
  %v5509 = vld [vmem:[%s4 + $0x1e4] sm:$0xf]
  %v5510 = vld [vmem:[%s4 + $0x1e8] sm:$0xf]
  %v5511 = vld [vmem:[%s4 + $0x1ec] sm:$0xf]
  %v5512 = vld [vmem:[%s4 + $0x1f0] sm:$0xf]
  %v5513 = vld [vmem:[%s4 + $0x1f4] sm:$0xf]
  %v5514 = vld [vmem:[%s4 + $0x1f8] sm:$0xf]
  %v5515 = vld [vmem:[%s4 + $0x1fc] sm:$0xf]
  %5517 = vst [vmem:[#allocation1] ss:$9 sm:$0xff] %v5387
  %v5518 = vld [vmem:[#allocation1] sm:$0xff]
  %v5519 = vld [vmem:[#allocation1 + $0x9] sm:$0xff]
  %v5520 = vld [vmem:[#allocation1 + $0x12] sm:$0xff]
  %v5521 = vld [vmem:[#allocation1 + $0x1b] sm:$0xff]
  %v5522 = vld [vmem:[#allocation1 + $0x24] sm:$0xff]
  %v5523 = vld [vmem:[#allocation1 + $0x2d] sm:$0xff]
  %v5524 = vld [vmem:[#allocation1 + $0x36] sm:$0xff]
  %v5525 = vld [vmem:[#allocation1 + $0x3f] sm:$0xff]
  %v5662 = vunpack.c.l.b16 %v5388
  %v5663 = vunpack.c.l.b16 %v5389
  %v5664 = vunpack.c.l.b16 %v5390
  %v5665 = vunpack.c.l.b16 %v5391
  %v5666 = vunpack.c.l.b16 %v5392
  %v5667 = vunpack.c.l.b16 %v5393
  %v5668 = vunpack.c.l.b16 %v5394
  %v5669 = vunpack.c.l.b16 %v5395
  %v5670 = vunpack.c.l.b16 %v5396
  %v5671 = vunpack.c.l.b16 %v5397
  %v5672 = vunpack.c.l.b16 %v5398
  %v5673 = vunpack.c.l.b16 %v5399
  %v5674 = vunpack.c.l.b16 %v5400
  %v5675 = vunpack.c.l.b16 %v5401
  %v5676 = vunpack.c.l.b16 %v5402
  %v5677 = vunpack.c.l.b16 %v5403
  %v5678 = vunpack.c.l.b16 %v5404
  %v5679 = vunpack.c.l.b16 %v5405
  %v5680 = vunpack.c.l.b16 %v5406
  %v5681 = vunpack.c.l.b16 %v5407
  %v5682 = vunpack.c.l.b16 %v5408
  %v5683 = vunpack.c.l.b16 %v5409
  %v5684 = vunpack.c.l.b16 %v5410
  %v5685 = vunpack.c.l.b16 %v5411
  %v5686 = vunpack.c.l.b16 %v5412
  %v5687 = vunpack.c.l.b16 %v5413
  %v5688 = vunpack.c.l.b16 %v5414
  %v5689 = vunpack.c.l.b16 %v5415
  %v5690 = vunpack.c.l.b16 %v5416
  %v5691 = vunpack.c.l.b16 %v5417
  %v5692 = vunpack.c.l.b16 %v5418
  %v5693 = vunpack.c.l.b16 %v5419
  %v5694 = vunpack.c.l.b16 %v5420
  %v5695 = vunpack.c.l.b16 %v5421
  %v5696 = vunpack.c.l.b16 %v5422
  %v5697 = vunpack.c.l.b16 %v5423
  %v5698 = vunpack.c.l.b16 %v5424
  %v5699 = vunpack.c.l.b16 %v5425
  %v5700 = vunpack.c.l.b16 %v5426
  %v5701 = vunpack.c.l.b16 %v5427
  %v5702 = vunpack.c.l.b16 %v5428
  %v5703 = vunpack.c.l.b16 %v5429
  %v5704 = vunpack.c.l.b16 %v5430
  %v5705 = vunpack.c.l.b16 %v5431
  %v5706 = vunpack.c.l.b16 %v5432
  %v5707 = vunpack.c.l.b16 %v5433
  %v5708 = vunpack.c.l.b16 %v5434
  %v5709 = vunpack.c.l.b16 %v5435
  %v5710 = vunpack.c.l.b16 %v5436
  %v5711 = vunpack.c.l.b16 %v5437
  %v5712 = vunpack.c.l.b16 %v5438
  %v5713 = vunpack.c.l.b16 %v5439
  %v5714 = vunpack.c.l.b16 %v5440
  %v5715 = vunpack.c.l.b16 %v5441
  %v5716 = vunpack.c.l.b16 %v5442
  %v5717 = vunpack.c.l.b16 %v5443
  %v5718 = vunpack.c.l.b16 %v5444
  %v5719 = vunpack.c.l.b16 %v5445
  %v5720 = vunpack.c.l.b16 %v5446
  %v5721 = vunpack.c.l.b16 %v5447
  %v5722 = vunpack.c.l.b16 %v5448
  %v5723 = vunpack.c.l.b16 %v5449
  %v5724 = vunpack.c.l.b16 %v5450
  %v5725 = vunpack.c.l.b16 %v5451
  %v5726 = vunpack.c.l.b16 %v5452
  %v5727 = vunpack.c.l.b16 %v5453
  %v5728 = vunpack.c.l.b16 %v5454
  %v5729 = vunpack.c.l.b16 %v5455
  %v5730 = vunpack.c.l.b16 %v5456
  %v5731 = vunpack.c.l.b16 %v5457
  %v5732 = vunpack.c.l.b16 %v5458
  %v5733 = vunpack.c.l.b16 %v5459
  %v5734 = vunpack.c.l.b16 %v5460
  %v5735 = vunpack.c.l.b16 %v5461
  %v5736 = vunpack.c.l.b16 %v5462
  %v5737 = vunpack.c.l.b16 %v5463
  %v5738 = vunpack.c.l.b16 %v5464
  %v5739 = vunpack.c.l.b16 %v5465
  %v5740 = vunpack.c.l.b16 %v5466
  %v5741 = vunpack.c.l.b16 %v5467
  %v5742 = vunpack.c.l.b16 %v5468
  %v5743 = vunpack.c.l.b16 %v5469
  %v5744 = vunpack.c.l.b16 %v5470
  %v5745 = vunpack.c.l.b16 %v5471
  %v5746 = vunpack.c.l.b16 %v5472
  %v5747 = vunpack.c.l.b16 %v5473
  %v5748 = vunpack.c.l.b16 %v5474
  %v5749 = vunpack.c.l.b16 %v5475
  %v5750 = vunpack.c.l.b16 %v5476
  %v5751 = vunpack.c.l.b16 %v5477
  %v5752 = vunpack.c.l.b16 %v5478
  %v5753 = vunpack.c.l.b16 %v5479
  %v5754 = vunpack.c.l.b16 %v5480
  %v5755 = vunpack.c.l.b16 %v5481
  %v5756 = vunpack.c.l.b16 %v5482
  %v5757 = vunpack.c.l.b16 %v5483
  %v5758 = vunpack.c.l.b16 %v5484
  %v5759 = vunpack.c.l.b16 %v5485
  %v5760 = vunpack.c.l.b16 %v5486
  %v5761 = vunpack.c.l.b16 %v5487
  %v5762 = vunpack.c.l.b16 %v5488
  %v5763 = vunpack.c.l.b16 %v5489
  %v5764 = vunpack.c.l.b16 %v5490
  %v5765 = vunpack.c.l.b16 %v5491
  %v5766 = vunpack.c.l.b16 %v5492
  %v5767 = vunpack.c.l.b16 %v5493
  %v5768 = vunpack.c.l.b16 %v5494
  %v5769 = vunpack.c.l.b16 %v5495
  %v5770 = vunpack.c.l.b16 %v5496
  %v5771 = vunpack.c.l.b16 %v5497
  %v5772 = vunpack.c.l.b16 %v5498
  %v5773 = vunpack.c.l.b16 %v5499
  %v5774 = vunpack.c.l.b16 %v5500
  %v5775 = vunpack.c.l.b16 %v5501
  %v5776 = vunpack.c.l.b16 %v5502
  %v5777 = vunpack.c.l.b16 %v5503
  %v5778 = vunpack.c.l.b16 %v5504
  %v5779 = vunpack.c.l.b16 %v5505
  %v5780 = vunpack.c.l.b16 %v5506
  %v5781 = vunpack.c.l.b16 %v5507
  %v5782 = vunpack.c.l.b16 %v5508
  %v5783 = vunpack.c.l.b16 %v5509
  %v5784 = vunpack.c.l.b16 %v5510
  %v5785 = vunpack.c.l.b16 %v5511
  %v5786 = vunpack.c.l.b16 %v5512
  %v5787 = vunpack.c.l.b16 %v5513
  %v5788 = vunpack.c.l.b16 %v5514
  %v5789 = vunpack.c.l.b16 %v5515
  %v5790 = vpack.c.b16 %v5663, %v5662
  %v5791 = vpack.c.b16 %v5665, %v5664
  %v5792 = vpack.c.b16 %v5667, %v5666
  %v5793 = vpack.c.b16 %v5669, %v5668
  %v5794 = vpack.c.b16 %v5671, %v5670
  %v5795 = vpack.c.b16 %v5673, %v5672
  %v5796 = vpack.c.b16 %v5675, %v5674
  %v5797 = vpack.c.b16 %v5677, %v5676
  %v5798 = vpack.c.b16 %v5679, %v5678
  %v5799 = vpack.c.b16 %v5681, %v5680
  %v5800 = vpack.c.b16 %v5683, %v5682
  %v5801 = vpack.c.b16 %v5685, %v5684
  %v5802 = vpack.c.b16 %v5687, %v5686
  %v5803 = vpack.c.b16 %v5689, %v5688
  %v5804 = vpack.c.b16 %v5691, %v5690
  %v5805 = vpack.c.b16 %v5693, %v5692
  %v5806 = vpack.c.b16 %v5695, %v5694
  %v5807 = vpack.c.b16 %v5697, %v5696
  %v5808 = vpack.c.b16 %v5699, %v5698
  %v5809 = vpack.c.b16 %v5701, %v5700
  %v5810 = vpack.c.b16 %v5703, %v5702
  %v5811 = vpack.c.b16 %v5705, %v5704
  %v5812 = vpack.c.b16 %v5707, %v5706
  %v5813 = vpack.c.b16 %v5709, %v5708
  %v5814 = vpack.c.b16 %v5711, %v5710
  %v5815 = vpack.c.b16 %v5713, %v5712
  %v5816 = vpack.c.b16 %v5715, %v5714
  %v5817 = vpack.c.b16 %v5717, %v5716
  %v5818 = vpack.c.b16 %v5719, %v5718
  %v5819 = vpack.c.b16 %v5721, %v5720
  %v5820 = vpack.c.b16 %v5723, %v5722
  %v5821 = vpack.c.b16 %v5725, %v5724
  %v5822 = vpack.c.b16 %v5727, %v5726
  %v5823 = vpack.c.b16 %v5729, %v5728
  %v5824 = vpack.c.b16 %v5731, %v5730
  %v5825 = vpack.c.b16 %v5733, %v5732
  %v5826 = vpack.c.b16 %v5735, %v5734
  %v5827 = vpack.c.b16 %v5737, %v5736
  %v5828 = vpack.c.b16 %v5739, %v5738
  %v5829 = vpack.c.b16 %v5741, %v5740
  %v5830 = vpack.c.b16 %v5743, %v5742
  %v5831 = vpack.c.b16 %v5745, %v5744
  %v5832 = vpack.c.b16 %v5747, %v5746
  %v5833 = vpack.c.b16 %v5749, %v5748
  %v5834 = vpack.c.b16 %v5751, %v5750
  %v5835 = vpack.c.b16 %v5753, %v5752
  %v5836 = vpack.c.b16 %v5755, %v5754
  %v5837 = vpack.c.b16 %v5757, %v5756
  %v5838 = vpack.c.b16 %v5759, %v5758
  %v5839 = vpack.c.b16 %v5761, %v5760
  %v5840 = vpack.c.b16 %v5763, %v5762
  %v5841 = vpack.c.b16 %v5765, %v5764
  %v5842 = vpack.c.b16 %v5767, %v5766
  %v5843 = vpack.c.b16 %v5769, %v5768
  %v5844 = vpack.c.b16 %v5771, %v5770
  %v5845 = vpack.c.b16 %v5773, %v5772
  %v5846 = vpack.c.b16 %v5775, %v5774
  %v5847 = vpack.c.b16 %v5777, %v5776
  %v5848 = vpack.c.b16 %v5779, %v5778
  %v5849 = vpack.c.b16 %v5781, %v5780
  %v5850 = vpack.c.b16 %v5783, %v5782
  %v5851 = vpack.c.b16 %v5785, %v5784
  %v5852 = vpack.c.b16 %v5787, %v5786
  %v5853 = vpack.c.b16 %v5789, %v5788
  %5918 = vmatpush.bf16.msra.mxu0 %v5797
  %5919 = vmatpush.bf16.msra.mxu0 %v5796
  %5920 = vmatpush.bf16.msra.mxu0 %v5795
  %5921 = vmatpush.bf16.msra.mxu0 %v5794
  %5922 = vmatpush.bf16.msra.mxu0 %v5793
  %5923 = vmatpush.bf16.msra.mxu0 %v5792
  %5924 = vmatpush.bf16.msra.mxu0 %v5791
  %5925 = vmatpush.bf16.msra.mxu0 %v5790
  %5926 = vmatmul.bf16.gmra.mxu0 %v5518
  %v5927 = vpop.f32.mrf.mxu0
  %v5928 = vadd.f32 0.0, %v5927
  %v5929 = vpop.f32.mrf.mxu0
  %5930 = vdwg.mxu0
  %5931 = vmatpush.bf16.msra.mxu0 %v5805
  %5932 = vmatpush.bf16.msra.mxu0 %v5804
  %5933 = vmatpush.bf16.msra.mxu0 %v5803
  %5934 = vmatpush.bf16.msra.mxu0 %v5802
  %5935 = vmatpush.bf16.msra.mxu0 %v5801
  %5936 = vmatpush.bf16.msra.mxu0 %v5800
  %5937 = vmatpush.bf16.msra.mxu0 %v5799
  %5938 = vmatpush.bf16.msra.mxu0 %v5798
  %5939 = vmatmul.bf16.gmra.mxu0 %v5519
  %v5940 = vpop.f32.mrf.mxu0
  %v5941 = vadd.f32 %v5928, %v5940
  %v5942 = vpop.f32.mrf.mxu0
  %5943 = vdwg.mxu0
  %5944 = vmatpush.bf16.msra.mxu0 %v5813
  %5945 = vmatpush.bf16.msra.mxu0 %v5812
  %5946 = vmatpush.bf16.msra.mxu0 %v5811
  %5947 = vmatpush.bf16.msra.mxu0 %v5810
  %5948 = vmatpush.bf16.msra.mxu0 %v5809
  %5949 = vmatpush.bf16.msra.mxu0 %v5808
  %5950 = vmatpush.bf16.msra.mxu0 %v5807
  %5951 = vmatpush.bf16.msra.mxu0 %v5806
  %5952 = vmatmul.bf16.gmra.mxu0 %v5520
  %v5953 = vpop.f32.mrf.mxu0
  %v5954 = vadd.f32 %v5941, %v5953
  %v5955 = vpop.f32.mrf.mxu0
  %5956 = vdwg.mxu0
  %5957 = vmatpush.bf16.msra.mxu0 %v5821
  %5958 = vmatpush.bf16.msra.mxu0 %v5820
  %5959 = vmatpush.bf16.msra.mxu0 %v5819
  %5960 = vmatpush.bf16.msra.mxu0 %v5818
  %5961 = vmatpush.bf16.msra.mxu0 %v5817
  %5962 = vmatpush.bf16.msra.mxu0 %v5816
  %5963 = vmatpush.bf16.msra.mxu0 %v5815
  %5964 = vmatpush.bf16.msra.mxu0 %v5814
  %5965 = vmatmul.bf16.gmra.mxu0 %v5521
  %v5966 = vpop.f32.mrf.mxu0
  %v5967 = vadd.f32 %v5954, %v5966
  %v5968 = vpop.f32.mrf.mxu0
  %5969 = vdwg.mxu0
  %5970 = vmatpush.bf16.msra.mxu0 %v5829
  %5971 = vmatpush.bf16.msra.mxu0 %v5828
  %5972 = vmatpush.bf16.msra.mxu0 %v5827
  %5973 = vmatpush.bf16.msra.mxu0 %v5826
  %5974 = vmatpush.bf16.msra.mxu0 %v5825
  %5975 = vmatpush.bf16.msra.mxu0 %v5824
  %5976 = vmatpush.bf16.msra.mxu0 %v5823
  %5977 = vmatpush.bf16.msra.mxu0 %v5822
  %5978 = vmatmul.bf16.gmra.mxu0 %v5522
  %v5979 = vpop.f32.mrf.mxu0
  %v5980 = vadd.f32 %v5967, %v5979
  %v5981 = vpop.f32.mrf.mxu0
  %5982 = vdwg.mxu0
  %5983 = vmatpush.bf16.msra.mxu0 %v5837
  %5984 = vmatpush.bf16.msra.mxu0 %v5836
  %5985 = vmatpush.bf16.msra.mxu0 %v5835
  %5986 = vmatpush.bf16.msra.mxu0 %v5834
  %5987 = vmatpush.bf16.msra.mxu0 %v5833
  %5988 = vmatpush.bf16.msra.mxu0 %v5832
  %5989 = vmatpush.bf16.msra.mxu0 %v5831
  %5990 = vmatpush.bf16.msra.mxu0 %v5830
  %5991 = vmatmul.bf16.gmra.mxu0 %v5523
  %v5992 = vpop.f32.mrf.mxu0
  %v5993 = vadd.f32 %v5980, %v5992
  %v5994 = vpop.f32.mrf.mxu0
  %5995 = vdwg.mxu0
  %5996 = vmatpush.bf16.msra.mxu0 %v5845
  %5997 = vmatpush.bf16.msra.mxu0 %v5844
  %5998 = vmatpush.bf16.msra.mxu0 %v5843
  %5999 = vmatpush.bf16.msra.mxu0 %v5842
  %6000 = vmatpush.bf16.msra.mxu0 %v5841
  %6001 = vmatpush.bf16.msra.mxu0 %v5840
  %6002 = vmatpush.bf16.msra.mxu0 %v5839
  %6003 = vmatpush.bf16.msra.mxu0 %v5838
  %6004 = vmatmul.bf16.gmra.mxu0 %v5524
  %v6005 = vpop.f32.mrf.mxu0
  %v6006 = vadd.f32 %v5993, %v6005
  %v6007 = vpop.f32.mrf.mxu0
  %6008 = vdwg.mxu0
  %6009 = vmatpush.bf16.msra.mxu0 %v5853
  %6010 = vmatpush.bf16.msra.mxu0 %v5852
  %6011 = vmatpush.bf16.msra.mxu0 %v5851
  %6012 = vmatpush.bf16.msra.mxu0 %v5850
  %6013 = vmatpush.bf16.msra.mxu0 %v5849
  %6014 = vmatpush.bf16.msra.mxu0 %v5848
  %6015 = vmatpush.bf16.msra.mxu0 %v5847
  %6016 = vmatpush.bf16.msra.mxu0 %v5846
  %6017 = vmatmul.bf16.gmra.mxu0 %v5525
  %v6018 = vpop.f32.mrf.mxu0
  %v6019 = vadd.f32 %v6006, %v6018
  %v6020 = vpop.f32.mrf.mxu0
  %6021 = vdwg.mxu0
  %v6022 = vsub.f32 0.0, %v6019
  %v6023 = vmul.f32 %v6022, 1.442695
  %v6024 = vpow.pop %v6023
  %v6025 = vadd.f32 %v6024, 1.0
  %v6026 = vrcp.pop %v6025
  %v6027 = vmul.f32 %v6025, %v6026
  %v6028 = vsub.f32 1.0, %v6027
  %v6029 = vmul.f32 %v6026, %v6028
  %v6030 = vadd.f32 %v6026, %v6029
  %vm6031 = vweird.f32 %v6025
  %vm6032 = vweird.f32 %v6026
  %vm6033 = vmor %vm6031, %vm6032
  %v6034 = vsel %vm6033, %v6026, %v6030
  %v6035 = vand.u32 2147483647, %v6025
  %vm6036 = vcmp.eq.f32.partialorder %v6035, 8.507059e+37
  %v6037 = vand.u32 %v6025, 2147483648
  %v6038 = vor.u32 1.1754944e-38, %v6037
  %v6039 = vsel %vm6036, %v6038, %v6034
  %v6040 = vmul.f32 1.0, %v6039
  %6041 = vst [vmem:[%s9] sm:$0x3] %v6040
  // Predicated region
  $region38: #{discriminator_forward.1} parent=0 // pred_check
    _
  $region39: #{discriminator_forward.1} parent=0 // pred_check_branch
    %6043 = sbr.rel (0) target = $region41
  $region40: #{discriminator_forward.1} parent=0 // pred_region
    _
  $region41: #{discriminator_forward.1} parent=0 // pred_fallthru
    _
  // Predicated region
  $region42: #{discriminator_forward.1} parent=0 // pred_check
    _
  $region43: #{discriminator_forward.1} parent=0 // pred_check_branch
    %6045 = sbr.rel (0) target = $region45
  $region44: #{discriminator_forward.1} parent=0 // pred_region
    _
  $region45: #{discriminator_forward.1} parent=0 // pred_fallthru
    _

</llo_original>
